<compile_context>
chip_gen: v7x
topology: tpu7x:2x2x1
jax: 0.10.0
libtpu: 0.0.40
codegen_flags: <defaults>
</compile_context>

<pallas_src>
import functools

import jax
import jax.numpy as jnp
from jax import lax
from jax.experimental import pallas as pl
from jax.experimental.pallas import tpu as pltpu

EPS = 1e-5  # nn.InstanceNorm2d default eps (affine=False, no running stats)


def _round_up(x, m):
    return (x + m - 1) // m * m


# ---------------------------------------------------------------------------
# Fused Pallas kernel: conv -> IN -> ReLU -> reflpad -> conv -> IN -> +x
# ---------------------------------------------------------------------------
def _make_fused_kernel(H, W, Cp):
    HW = H * W
    shifts = [(dh, dw) for dh in range(3) for dw in range(3)]

    def kernel(xp_ref, w1_ref, w2_ref, o_ref, hpad_ref):
        # xp_ref   : (1, H+2, W+2, Cp) reflection-padded input (NHWC, ch-padded)
        # w1_ref   : (9, Cp, Cp) per-tap weight matrices (Cin x Cout), stage 1
        # w2_ref   : (9, Cp, Cp) per-tap weight matrices, stage 2
        # o_ref    : (1, HW, Cp) final output  x + block(x)
        # hpad_ref : VMEM scratch (H+2, W+2, Cp) holding reflection-padded h1

        # ---- stage 1: conv3x3 as 9 shifted matmuls, accumulate in f32 ----
        acc = jnp.zeros((HW, Cp), jnp.float32)
        for k, (dh, dw) in enumerate(shifts):
            patch = xp_ref[0, dh:dh + H, dw:dw + W, :].reshape(HW, Cp)
            acc = acc + jnp.dot(patch, w1_ref[k],
                                preferred_element_type=jnp.float32)

        # InstanceNorm (biased var, f32 stats) + ReLU
        mean = jnp.mean(acc, axis=0, keepdims=True)
        var = jnp.mean(jnp.square(acc - mean), axis=0, keepdims=True)
        h1 = jnp.maximum((acc - mean) * lax.rsqrt(var + EPS), 0.0)

        # ---- in-kernel ReflectionPad2d(1) of h1 into the VMEM scratch ----
        hpad_ref[1:H + 1, 1:W + 1, :] = (
            h1.reshape(H, W, Cp).astype(hpad_ref.dtype))
        # top / bottom rows (interior columns only, then full column reflect)
        hpad_ref[0, 1:W + 1, :] = hpad_ref[2, 1:W + 1, :]
        hpad_ref[H + 1, 1:W + 1, :] = hpad_ref[H - 1, 1:W + 1, :]
        # left / right columns (covers the corners too)
        hpad_ref[:, 0, :] = hpad_ref[:, 2, :]
        hpad_ref[:, W + 1, :] = hpad_ref[:, W - 1, :]

        # ---- stage 2: conv3x3 + InstanceNorm + residual add ----
        acc2 = jnp.zeros((HW, Cp), jnp.float32)
        for k, (dh, dw) in enumerate(shifts):
            patch = hpad_ref[dh:dh + H, dw:dw + W, :].reshape(HW, Cp)
            acc2 = acc2 + jnp.dot(patch, w2_ref[k],
                                  preferred_element_type=jnp.float32)

        mean2 = jnp.mean(acc2, axis=0, keepdims=True)
        var2 = jnp.mean(jnp.square(acc2 - mean2), axis=0, keepdims=True)
        y = (acc2 - mean2) * lax.rsqrt(var2 + EPS)

        # residual = interior of the padded input tile (no extra HBM input)
        res = xp_ref[0, 1:H + 1, 1:W + 1, :].reshape(HW, Cp).astype(jnp.float32)
        o_ref[0] = res + y

    return kernel


# ---------------------------------------------------------------------------
# Host wrapper
# ---------------------------------------------------------------------------
@functools.partial(jax.jit, static_argnames=("compute_dtype",))
def residual_block(x, w1, b1, w2, b2, compute_dtype=jnp.float32):
    """x: (N, C, H, W) float32; w*: (C, C, 3, 3); b*: (C,) (unused, see below)."""
    del b1, b2  # conv bias cancels exactly under InstanceNorm(affine=False)

    N, C, H, W = x.shape
    Cp = _round_up(C, 128)   # lane-dense channel dimension for MXU / stores
    HW = H * W

    # NCHW -> NHWC once at the boundary, zero-pad channels, reflect-pad spatial.
    x_nhwc = jnp.transpose(x, (0, 2, 3, 1))
    x_cp = jnp.pad(x_nhwc, ((0, 0), (0, 0), (0, 0), (0, Cp - C)))
    xp = jnp.pad(x_cp, ((0, 0), (1, 1), (1, 1), (0, 0)), mode="reflect")
    xp = xp.astype(compute_dtype)

    # (Cout, Cin, 3, 3) -> per-tap (Cin, Cout) matrices, tap index = kh*3 + kw.
    def prep_w(w):
        wm = jnp.transpose(w, (2, 3, 1, 0)).reshape(9, C, C)
        wm = jnp.pad(wm, ((0, 0), (0, Cp - C), (0, Cp - C)))
        return wm.astype(compute_dtype)

    wm1, wm2 = prep_w(w1), prep_w(w2)

    kernel = _make_fused_kernel(H, W, Cp)
    out = pl.pallas_call(
        kernel,
        out_shape=jax.ShapeDtypeStruct((N, HW, Cp), jnp.float32),
        grid=(N,),
        in_specs=[
            pl.BlockSpec((1, H + 2, W + 2, Cp), lambda n: (n, 0, 0, 0)),
            pl.BlockSpec((9, Cp, Cp), lambda n: (0, 0, 0)),
            pl.BlockSpec((9, Cp, Cp), lambda n: (0, 0, 0)),
        ],
        out_specs=pl.BlockSpec((1, HW, Cp), lambda n: (n, 0, 0)),
        scratch_shapes=[pltpu.VMEM((H + 2, W + 2, Cp), compute_dtype)],
        compiler_params=pltpu.CompilerParams(
            dimension_semantics=("parallel",),
            vmem_limit_bytes=64 * 1024 * 1024,
        ),
    )(xp, wm1, wm2)

    out = out[:, :, :C].reshape(N, H, W, C)
    return jnp.transpose(out, (0, 3, 1, 2))


# ---------------------------------------------------------------------------
# Pure-JAX f32 reference (keeps the conv bias; InstanceNorm cancels it)
# ---------------------------------------------------------------------------
def _reflect_pad(x):
    return jnp.pad(x, ((0, 0), (0, 0), (1, 1), (1, 1)), mode="reflect")


def _reference(x, w1, b1, w2, b2):
    def conv(x_, w, b):
        xp = _reflect_pad(x_)
        y = lax.conv_general_dilated(
            xp, w, window_strides=(1, 1), padding="VALID",
            dimension_numbers=("NCHW", "OIHW", "NCHW"))
        return y + b.reshape(1, -1, 1, 1)

    def instance_norm(y):
        mean = jnp.mean(y, axis=(2, 3), keepdims=True)
        var = jnp.mean(jnp.square(y - mean), axis=(2, 3), keepdims=True)
        return (y - mean) * lax.rsqrt(var + EPS)

    h = jnp.maximum(instance_norm(conv(x, w1, b1)), 0.0)
    return x + instance_norm(conv(h, w2, b2))


# ---------------------------------------------------------------------------
if __name__ == "__main__":
    N, C, H, W = 2, 4, 16, 16
    key = jax.random.PRNGKey(0)
    kx, kw1, kb1, kw2, kb2 = jax.random.split(key, 5)

    x = jax.random.normal(kx, (N, C, H, W), dtype=jnp.float32)

    fan_in = C * 3 * 3
    bound = 1.0 / float(fan_in) ** 0.5
    w1 = jax.random.uniform(kw1, (C, C, 3, 3), jnp.float32, -bound, bound)
    b1 = jax.random.uniform(kb1, (C,), jnp.float32, -bound, bound)
    w2 = jax.random.uniform(kw2, (C, C, 3, 3), jnp.float32, -bound, bound)
    b2 = jax.random.uniform(kb2, (C,), jnp.float32, -bound, bound)

    out = jax.block_until_ready(residual_block(x, w1, b1, w2, b2))
    ref = jax.block_until_ready(_reference(x, w1, b1, w2, b2))

    assert out.shape == (N, C, H, W)
    max_err = float(jnp.max(jnp.abs(out - ref)))
    assert jnp.allclose(out, ref, atol=1e-4, rtol=1e-4), (
        f"mismatch vs reference: max abs err = {max_err}")

    print("KERNEL_OK")
</pallas_src>

<mosaic_0001>
module attributes {stable_mosaic.version = 11 : i64} {
  func.func @kernel(%arg0: i32, %arg1: memref<1x18x18x128xf32, #tpu.memory_space<vmem>>, %arg2: memref<9x128x128xf32, #tpu.memory_space<vmem>>, %arg3: memref<9x128x128xf32, #tpu.memory_space<vmem>>, %arg4: memref<1x256x128xf32, #tpu.memory_space<vmem>>, %arg5: memref<18x18x128xf32, #tpu.memory_space<vmem>>) attributes {dimension_semantics = [#tpu.dimension_semantics<parallel>], iteration_bounds = array<i64: 2>, scalar_prefetch = 0 : i64, scratch_operands = 1 : i64, tpu.core_type = #tpu.core_type<tc>, window_params = [{transform_indices = @transform_0, window_bounds = array<i64: 1, 18, 18, 128>}, {pipeline_mode = #tpu.pipeline_mode<synchronous>, transform_indices = @transform_1, window_bounds = array<i64: 9, 128, 128>}, {pipeline_mode = #tpu.pipeline_mode<synchronous>, transform_indices = @transform_2, window_bounds = array<i64: 9, 128, 128>}, {transform_indices = @transform_3, window_bounds = array<i64: 1, 256, 128>}]} {
    %cst = arith.constant 0.000000e+00 : f32
    %0 = vector.broadcast %cst : f32 to vector<256x128xf32>
    %c0 = arith.constant 0 : index
    %c0_0 = arith.constant 0 : index
    %c0_1 = arith.constant 0 : index
    %c0_2 = arith.constant 0 : index
    %1 = vector.load %arg1[%c0, %c0_0, %c0_1, %c0_2] : memref<1x18x18x128xf32, #tpu.memory_space<vmem>>, vector<1x16x16x128xf32>
    %2 = vector.shape_cast %1 : vector<1x16x16x128xf32> to vector<16x16x128xf32>
    %3 = vector.shape_cast %2 : vector<16x16x128xf32> to vector<256x128xf32>
    %c0_3 = arith.constant 0 : index
    %c0_4 = arith.constant 0 : index
    %c0_5 = arith.constant 0 : index
    %4 = vector.load %arg2[%c0_3, %c0_4, %c0_5] : memref<9x128x128xf32, #tpu.memory_space<vmem>>, vector<1x128x128xf32>
    %5 = vector.shape_cast %4 : vector<1x128x128xf32> to vector<128x128xf32>
    %cst_6 = arith.constant dense<0.000000e+00> : vector<256x128xf32>
    %6 = tpu.matmul %3, %5, %cst_6 {dimension_numbers = #tpu.dot_dimension_numbers<[1], [0], [0], [1], [0, 0, 1, 1], [], []>} : vector<256x128xf32>, vector<128x128xf32>, vector<256x128xf32> -> vector<256x128xf32>
    %7 = arith.addf %0, %6 : vector<256x128xf32>
    %c0_7 = arith.constant 0 : index
    %c0_8 = arith.constant 0 : index
    %c1 = arith.constant 1 : index
    %c0_9 = arith.constant 0 : index
    %8 = vector.load %arg1[%c0_7, %c0_8, %c1, %c0_9] : memref<1x18x18x128xf32, #tpu.memory_space<vmem>>, vector<1x16x16x128xf32>
    %9 = vector.shape_cast %8 : vector<1x16x16x128xf32> to vector<16x16x128xf32>
    %10 = vector.shape_cast %9 : vector<16x16x128xf32> to vector<256x128xf32>
    %c1_10 = arith.constant 1 : index
    %c0_11 = arith.constant 0 : index
    %c0_12 = arith.constant 0 : index
    %11 = vector.load %arg2[%c1_10, %c0_11, %c0_12] : memref<9x128x128xf32, #tpu.memory_space<vmem>>, vector<1x128x128xf32>
    %12 = vector.shape_cast %11 : vector<1x128x128xf32> to vector<128x128xf32>
    %cst_13 = arith.constant dense<0.000000e+00> : vector<256x128xf32>
    %13 = tpu.matmul %10, %12, %cst_13 {dimension_numbers = #tpu.dot_dimension_numbers<[1], [0], [0], [1], [0, 0, 1, 1], [], []>} : vector<256x128xf32>, vector<128x128xf32>, vector<256x128xf32> -> vector<256x128xf32>
    %14 = arith.addf %7, %13 : vector<256x128xf32>
    %c0_14 = arith.constant 0 : index
    %c0_15 = arith.constant 0 : index
    %c2 = arith.constant 2 : index
    %c0_16 = arith.constant 0 : index
    %15 = vector.load %arg1[%c0_14, %c0_15, %c2, %c0_16] : memref<1x18x18x128xf32, #tpu.memory_space<vmem>>, vector<1x16x16x128xf32>
    %16 = vector.shape_cast %15 : vector<1x16x16x128xf32> to vector<16x16x128xf32>
    %17 = vector.shape_cast %16 : vector<16x16x128xf32> to vector<256x128xf32>
    %c2_17 = arith.constant 2 : index
    %c0_18 = arith.constant 0 : index
    %c0_19 = arith.constant 0 : index
    %18 = vector.load %arg2[%c2_17, %c0_18, %c0_19] : memref<9x128x128xf32, #tpu.memory_space<vmem>>, vector<1x128x128xf32>
    %19 = vector.shape_cast %18 : vector<1x128x128xf32> to vector<128x128xf32>
    %cst_20 = arith.constant dense<0.000000e+00> : vector<256x128xf32>
    %20 = tpu.matmul %17, %19, %cst_20 {dimension_numbers = #tpu.dot_dimension_numbers<[1], [0], [0], [1], [0, 0, 1, 1], [], []>} : vector<256x128xf32>, vector<128x128xf32>, vector<256x128xf32> -> vector<256x128xf32>
    %21 = arith.addf %14, %20 : vector<256x128xf32>
    %c0_21 = arith.constant 0 : index
    %c1_22 = arith.constant 1 : index
    %c0_23 = arith.constant 0 : index
    %c0_24 = arith.constant 0 : index
    %22 = vector.load %arg1[%c0_21, %c1_22, %c0_23, %c0_24] : memref<1x18x18x128xf32, #tpu.memory_space<vmem>>, vector<1x16x16x128xf32>
    %23 = vector.shape_cast %22 : vector<1x16x16x128xf32> to vector<16x16x128xf32>
    %24 = vector.shape_cast %23 : vector<16x16x128xf32> to vector<256x128xf32>
    %c3 = arith.constant 3 : index
    %c0_25 = arith.constant 0 : index
    %c0_26 = arith.constant 0 : index
    %25 = vector.load %arg2[%c3, %c0_25, %c0_26] : memref<9x128x128xf32, #tpu.memory_space<vmem>>, vector<1x128x128xf32>
    %26 = vector.shape_cast %25 : vector<1x128x128xf32> to vector<128x128xf32>
    %cst_27 = arith.constant dense<0.000000e+00> : vector<256x128xf32>
    %27 = tpu.matmul %24, %26, %cst_27 {dimension_numbers = #tpu.dot_dimension_numbers<[1], [0], [0], [1], [0, 0, 1, 1], [], []>} : vector<256x128xf32>, vector<128x128xf32>, vector<256x128xf32> -> vector<256x128xf32>
    %28 = arith.addf %21, %27 : vector<256x128xf32>
    %c0_28 = arith.constant 0 : index
    %c1_29 = arith.constant 1 : index
    %c1_30 = arith.constant 1 : index
    %c0_31 = arith.constant 0 : index
    %29 = vector.load %arg1[%c0_28, %c1_29, %c1_30, %c0_31] : memref<1x18x18x128xf32, #tpu.memory_space<vmem>>, vector<1x16x16x128xf32>
    %30 = vector.shape_cast %29 : vector<1x16x16x128xf32> to vector<16x16x128xf32>
    %31 = vector.shape_cast %30 : vector<16x16x128xf32> to vector<256x128xf32>
    %c4 = arith.constant 4 : index
    %c0_32 = arith.constant 0 : index
    %c0_33 = arith.constant 0 : index
    %32 = vector.load %arg2[%c4, %c0_32, %c0_33] : memref<9x128x128xf32, #tpu.memory_space<vmem>>, vector<1x128x128xf32>
    %33 = vector.shape_cast %32 : vector<1x128x128xf32> to vector<128x128xf32>
    %cst_34 = arith.constant dense<0.000000e+00> : vector<256x128xf32>
    %34 = tpu.matmul %31, %33, %cst_34 {dimension_numbers = #tpu.dot_dimension_numbers<[1], [0], [0], [1], [0, 0, 1, 1], [], []>} : vector<256x128xf32>, vector<128x128xf32>, vector<256x128xf32> -> vector<256x128xf32>
    %35 = arith.addf %28, %34 : vector<256x128xf32>
    %c0_35 = arith.constant 0 : index
    %c1_36 = arith.constant 1 : index
    %c2_37 = arith.constant 2 : index
    %c0_38 = arith.constant 0 : index
    %36 = vector.load %arg1[%c0_35, %c1_36, %c2_37, %c0_38] : memref<1x18x18x128xf32, #tpu.memory_space<vmem>>, vector<1x16x16x128xf32>
    %37 = vector.shape_cast %36 : vector<1x16x16x128xf32> to vector<16x16x128xf32>
    %38 = vector.shape_cast %37 : vector<16x16x128xf32> to vector<256x128xf32>
    %c5 = arith.constant 5 : index
    %c0_39 = arith.constant 0 : index
    %c0_40 = arith.constant 0 : index
    %39 = vector.load %arg2[%c5, %c0_39, %c0_40] : memref<9x128x128xf32, #tpu.memory_space<vmem>>, vector<1x128x128xf32>
    %40 = vector.shape_cast %39 : vector<1x128x128xf32> to vector<128x128xf32>
    %cst_41 = arith.constant dense<0.000000e+00> : vector<256x128xf32>
    %41 = tpu.matmul %38, %40, %cst_41 {dimension_numbers = #tpu.dot_dimension_numbers<[1], [0], [0], [1], [0, 0, 1, 1], [], []>} : vector<256x128xf32>, vector<128x128xf32>, vector<256x128xf32> -> vector<256x128xf32>
    %42 = arith.addf %35, %41 : vector<256x128xf32>
    %c0_42 = arith.constant 0 : index
    %c2_43 = arith.constant 2 : index
    %c0_44 = arith.constant 0 : index
    %c0_45 = arith.constant 0 : index
    %43 = vector.load %arg1[%c0_42, %c2_43, %c0_44, %c0_45] : memref<1x18x18x128xf32, #tpu.memory_space<vmem>>, vector<1x16x16x128xf32>
    %44 = vector.shape_cast %43 : vector<1x16x16x128xf32> to vector<16x16x128xf32>
    %45 = vector.shape_cast %44 : vector<16x16x128xf32> to vector<256x128xf32>
    %c6 = arith.constant 6 : index
    %c0_46 = arith.constant 0 : index
    %c0_47 = arith.constant 0 : index
    %46 = vector.load %arg2[%c6, %c0_46, %c0_47] : memref<9x128x128xf32, #tpu.memory_space<vmem>>, vector<1x128x128xf32>
    %47 = vector.shape_cast %46 : vector<1x128x128xf32> to vector<128x128xf32>
    %cst_48 = arith.constant dense<0.000000e+00> : vector<256x128xf32>
    %48 = tpu.matmul %45, %47, %cst_48 {dimension_numbers = #tpu.dot_dimension_numbers<[1], [0], [0], [1], [0, 0, 1, 1], [], []>} : vector<256x128xf32>, vector<128x128xf32>, vector<256x128xf32> -> vector<256x128xf32>
    %49 = arith.addf %42, %48 : vector<256x128xf32>
    %c0_49 = arith.constant 0 : index
    %c2_50 = arith.constant 2 : index
    %c1_51 = arith.constant 1 : index
    %c0_52 = arith.constant 0 : index
    %50 = vector.load %arg1[%c0_49, %c2_50, %c1_51, %c0_52] : memref<1x18x18x128xf32, #tpu.memory_space<vmem>>, vector<1x16x16x128xf32>
    %51 = vector.shape_cast %50 : vector<1x16x16x128xf32> to vector<16x16x128xf32>
    %52 = vector.shape_cast %51 : vector<16x16x128xf32> to vector<256x128xf32>
    %c7 = arith.constant 7 : index
    %c0_53 = arith.constant 0 : index
    %c0_54 = arith.constant 0 : index
    %53 = vector.load %arg2[%c7, %c0_53, %c0_54] : memref<9x128x128xf32, #tpu.memory_space<vmem>>, vector<1x128x128xf32>
    %54 = vector.shape_cast %53 : vector<1x128x128xf32> to vector<128x128xf32>
    %cst_55 = arith.constant dense<0.000000e+00> : vector<256x128xf32>
    %55 = tpu.matmul %52, %54, %cst_55 {dimension_numbers = #tpu.dot_dimension_numbers<[1], [0], [0], [1], [0, 0, 1, 1], [], []>} : vector<256x128xf32>, vector<128x128xf32>, vector<256x128xf32> -> vector<256x128xf32>
    %56 = arith.addf %49, %55 : vector<256x128xf32>
    %c0_56 = arith.constant 0 : index
    %c2_57 = arith.constant 2 : index
    %c2_58 = arith.constant 2 : index
    %c0_59 = arith.constant 0 : index
    %57 = vector.load %arg1[%c0_56, %c2_57, %c2_58, %c0_59] : memref<1x18x18x128xf32, #tpu.memory_space<vmem>>, vector<1x16x16x128xf32>
    %58 = vector.shape_cast %57 : vector<1x16x16x128xf32> to vector<16x16x128xf32>
    %59 = vector.shape_cast %58 : vector<16x16x128xf32> to vector<256x128xf32>
    %c8 = arith.constant 8 : index
    %c0_60 = arith.constant 0 : index
    %c0_61 = arith.constant 0 : index
    %60 = vector.load %arg2[%c8, %c0_60, %c0_61] : memref<9x128x128xf32, #tpu.memory_space<vmem>>, vector<1x128x128xf32>
    %61 = vector.shape_cast %60 : vector<1x128x128xf32> to vector<128x128xf32>
    %cst_62 = arith.constant dense<0.000000e+00> : vector<256x128xf32>
    %62 = tpu.matmul %59, %61, %cst_62 {dimension_numbers = #tpu.dot_dimension_numbers<[1], [0], [0], [1], [0, 0, 1, 1], [], []>} : vector<256x128xf32>, vector<128x128xf32>, vector<256x128xf32> -> vector<256x128xf32>
    %63 = arith.addf %56, %62 : vector<256x128xf32>
    %cst_63 = arith.constant dense<0.000000e+00> : vector<128xf32>
    %64 = vector.multi_reduction <add>, %63, %cst_63 [0] : vector<256x128xf32> to vector<128xf32>
    %65 = vector.shape_cast %64 : vector<128xf32> to vector<1x128xf32>
    %cst_64 = arith.constant 2.560000e+02 : f32
    %66 = vector.broadcast %cst_64 : f32 to vector<1x128xf32>
    %67 = arith.divf %65, %66 : vector<1x128xf32>
    %68 = vector.broadcast %67 : vector<1x128xf32> to vector<256x128xf32>
    %69 = arith.subf %63, %68 : vector<256x128xf32>
    %70 = arith.mulf %69, %69 : vector<256x128xf32>
    %cst_65 = arith.constant dense<0.000000e+00> : vector<128xf32>
    %71 = vector.multi_reduction <add>, %70, %cst_65 [0] : vector<256x128xf32> to vector<128xf32>
    %72 = vector.shape_cast %71 : vector<128xf32> to vector<1x128xf32>
    %cst_66 = arith.constant 2.560000e+02 : f32
    %73 = vector.broadcast %cst_66 : f32 to vector<1x128xf32>
    %74 = arith.divf %72, %73 : vector<1x128xf32>
    %75 = vector.broadcast %67 : vector<1x128xf32> to vector<256x128xf32>
    %76 = arith.subf %63, %75 : vector<256x128xf32>
    %cst_67 = arith.constant 9.99999974E-6 : f32
    %77 = vector.broadcast %cst_67 : f32 to vector<1x128xf32>
    %78 = arith.addf %74, %77 : vector<1x128xf32>
    %79 = math.rsqrt %78 : vector<1x128xf32>
    %80 = vector.broadcast %79 : vector<1x128xf32> to vector<256x128xf32>
    %81 = arith.mulf %76, %80 : vector<256x128xf32>
    %cst_68 = arith.constant 0.000000e+00 : f32
    %82 = vector.broadcast %cst_68 : f32 to vector<256x128xf32>
    %83 = arith.maximumf %81, %82 : vector<256x128xf32>
    %84 = vector.shape_cast %83 : vector<256x128xf32> to vector<16x16x128xf32>
    %c1_69 = arith.constant 1 : index
    %c1_70 = arith.constant 1 : index
    %c0_71 = arith.constant 0 : index
    %85 = vector.load %arg5[%c1_69, %c1_70, %c0_71] : memref<18x18x128xf32, #tpu.memory_space<vmem>>, vector<16x16x128xf32>
    tpu.vector_store %arg5[%c1_69, %c1_70, %c0_71], %84 {strides = array<i32>} : memref<18x18x128xf32, #tpu.memory_space<vmem>>, vector<16x16x128xf32>,
    %c2_72 = arith.constant 2 : index
    %c1_73 = arith.constant 1 : index
    %c0_74 = arith.constant 0 : index
    %86 = vector.load %arg5[%c2_72, %c1_73, %c0_74] : memref<18x18x128xf32, #tpu.memory_space<vmem>>, vector<1x16x128xf32>
    %87 = vector.shape_cast %86 : vector<1x16x128xf32> to vector<16x128xf32>
    %c0_75 = arith.constant 0 : index
    %c1_76 = arith.constant 1 : index
    %c0_77 = arith.constant 0 : index
    %88 = vector.load %arg5[%c0_75, %c1_76, %c0_77] : memref<18x18x128xf32, #tpu.memory_space<vmem>>, vector<1x16x128xf32>
    %89 = vector.shape_cast %88 : vector<1x16x128xf32> to vector<16x128xf32>
    %90 = vector.shape_cast %87 : vector<16x128xf32> to vector<1x16x128xf32>
    tpu.vector_store %arg5[%c0_75, %c1_76, %c0_77], %90 {strides = array<i32>} : memref<18x18x128xf32, #tpu.memory_space<vmem>>, vector<1x16x128xf32>,
    %c15 = arith.constant 15 : index
    %c1_78 = arith.constant 1 : index
    %c0_79 = arith.constant 0 : index
    %91 = vector.load %arg5[%c15, %c1_78, %c0_79] : memref<18x18x128xf32, #tpu.memory_space<vmem>>, vector<1x16x128xf32>
    %92 = vector.shape_cast %91 : vector<1x16x128xf32> to vector<16x128xf32>
    %c17 = arith.constant 17 : index
    %c1_80 = arith.constant 1 : index
    %c0_81 = arith.constant 0 : index
    %93 = vector.load %arg5[%c17, %c1_80, %c0_81] : memref<18x18x128xf32, #tpu.memory_space<vmem>>, vector<1x16x128xf32>
    %94 = vector.shape_cast %93 : vector<1x16x128xf32> to vector<16x128xf32>
    %95 = vector.shape_cast %92 : vector<16x128xf32> to vector<1x16x128xf32>
    tpu.vector_store %arg5[%c17, %c1_80, %c0_81], %95 {strides = array<i32>} : memref<18x18x128xf32, #tpu.memory_space<vmem>>, vector<1x16x128xf32>,
    %c0_82 = arith.constant 0 : index
    %c2_83 = arith.constant 2 : index
    %c0_84 = arith.constant 0 : index
    %96 = vector.load %arg5[%c0_82, %c2_83, %c0_84] : memref<18x18x128xf32, #tpu.memory_space<vmem>>, vector<18x1x128xf32>
    %97 = vector.shape_cast %96 : vector<18x1x128xf32> to vector<18x128xf32>
    %c0_85 = arith.constant 0 : index
    %c0_86 = arith.constant 0 : index
    %c0_87 = arith.constant 0 : index
    %98 = vector.load %arg5[%c0_85, %c0_86, %c0_87] : memref<18x18x128xf32, #tpu.memory_space<vmem>>, vector<18x1x128xf32>
    %99 = vector.shape_cast %98 : vector<18x1x128xf32> to vector<18x128xf32>
    %100 = vector.shape_cast %97 : vector<18x128xf32> to vector<18x1x128xf32>
    tpu.vector_store %arg5[%c0_85, %c0_86, %c0_87], %100 {strides = array<i32>} : memref<18x18x128xf32, #tpu.memory_space<vmem>>, vector<18x1x128xf32>,
    %c0_88 = arith.constant 0 : index
    %c15_89 = arith.constant 15 : index
    %c0_90 = arith.constant 0 : index
    %101 = vector.load %arg5[%c0_88, %c15_89, %c0_90] : memref<18x18x128xf32, #tpu.memory_space<vmem>>, vector<18x1x128xf32>
    %102 = vector.shape_cast %101 : vector<18x1x128xf32> to vector<18x128xf32>
    %c0_91 = arith.constant 0 : index
    %c17_92 = arith.constant 17 : index
    %c0_93 = arith.constant 0 : index
    %103 = vector.load %arg5[%c0_91, %c17_92, %c0_93] : memref<18x18x128xf32, #tpu.memory_space<vmem>>, vector<18x1x128xf32>
    %104 = vector.shape_cast %103 : vector<18x1x128xf32> to vector<18x128xf32>
    %105 = vector.shape_cast %102 : vector<18x128xf32> to vector<18x1x128xf32>
    tpu.vector_store %arg5[%c0_91, %c17_92, %c0_93], %105 {strides = array<i32>} : memref<18x18x128xf32, #tpu.memory_space<vmem>>, vector<18x1x128xf32>,
    %cst_94 = arith.constant 0.000000e+00 : f32
    %106 = vector.broadcast %cst_94 : f32 to vector<256x128xf32>
    %c0_95 = arith.constant 0 : index
    %c0_96 = arith.constant 0 : index
    %c0_97 = arith.constant 0 : index
    %107 = vector.load %arg5[%c0_95, %c0_96, %c0_97] : memref<18x18x128xf32, #tpu.memory_space<vmem>>, vector<16x16x128xf32>
    %108 = vector.shape_cast %107 : vector<16x16x128xf32> to vector<256x128xf32>
    %c0_98 = arith.constant 0 : index
    %c0_99 = arith.constant 0 : index
    %c0_100 = arith.constant 0 : index
    %109 = vector.load %arg3[%c0_98, %c0_99, %c0_100] : memref<9x128x128xf32, #tpu.memory_space<vmem>>, vector<1x128x128xf32>
    %110 = vector.shape_cast %109 : vector<1x128x128xf32> to vector<128x128xf32>
    %cst_101 = arith.constant dense<0.000000e+00> : vector<256x128xf32>
    %111 = tpu.matmul %108, %110, %cst_101 {dimension_numbers = #tpu.dot_dimension_numbers<[1], [0], [0], [1], [0, 0, 1, 1], [], []>} : vector<256x128xf32>, vector<128x128xf32>, vector<256x128xf32> -> vector<256x128xf32>
    %112 = arith.addf %106, %111 : vector<256x128xf32>
    %c0_102 = arith.constant 0 : index
    %c1_103 = arith.constant 1 : index
    %c0_104 = arith.constant 0 : index
    %113 = vector.load %arg5[%c0_102, %c1_103, %c0_104] : memref<18x18x128xf32, #tpu.memory_space<vmem>>, vector<16x16x128xf32>
    %114 = vector.shape_cast %113 : vector<16x16x128xf32> to vector<256x128xf32>
    %c1_105 = arith.constant 1 : index
    %c0_106 = arith.constant 0 : index
    %c0_107 = arith.constant 0 : index
    %115 = vector.load %arg3[%c1_105, %c0_106, %c0_107] : memref<9x128x128xf32, #tpu.memory_space<vmem>>, vector<1x128x128xf32>
    %116 = vector.shape_cast %115 : vector<1x128x128xf32> to vector<128x128xf32>
    %cst_108 = arith.constant dense<0.000000e+00> : vector<256x128xf32>
    %117 = tpu.matmul %114, %116, %cst_108 {dimension_numbers = #tpu.dot_dimension_numbers<[1], [0], [0], [1], [0, 0, 1, 1], [], []>} : vector<256x128xf32>, vector<128x128xf32>, vector<256x128xf32> -> vector<256x128xf32>
    %118 = arith.addf %112, %117 : vector<256x128xf32>
    %c0_109 = arith.constant 0 : index
    %c2_110 = arith.constant 2 : index
    %c0_111 = arith.constant 0 : index
    %119 = vector.load %arg5[%c0_109, %c2_110, %c0_111] : memref<18x18x128xf32, #tpu.memory_space<vmem>>, vector<16x16x128xf32>
    %120 = vector.shape_cast %119 : vector<16x16x128xf32> to vector<256x128xf32>
    %c2_112 = arith.constant 2 : index
    %c0_113 = arith.constant 0 : index
    %c0_114 = arith.constant 0 : index
    %121 = vector.load %arg3[%c2_112, %c0_113, %c0_114] : memref<9x128x128xf32, #tpu.memory_space<vmem>>, vector<1x128x128xf32>
    %122 = vector.shape_cast %121 : vector<1x128x128xf32> to vector<128x128xf32>
    %cst_115 = arith.constant dense<0.000000e+00> : vector<256x128xf32>
    %123 = tpu.matmul %120, %122, %cst_115 {dimension_numbers = #tpu.dot_dimension_numbers<[1], [0], [0], [1], [0, 0, 1, 1], [], []>} : vector<256x128xf32>, vector<128x128xf32>, vector<256x128xf32> -> vector<256x128xf32>
    %124 = arith.addf %118, %123 : vector<256x128xf32>
    %c1_116 = arith.constant 1 : index
    %c0_117 = arith.constant 0 : index
    %c0_118 = arith.constant 0 : index
    %125 = vector.load %arg5[%c1_116, %c0_117, %c0_118] : memref<18x18x128xf32, #tpu.memory_space<vmem>>, vector<16x16x128xf32>
    %126 = vector.shape_cast %125 : vector<16x16x128xf32> to vector<256x128xf32>
    %c3_119 = arith.constant 3 : index
    %c0_120 = arith.constant 0 : index
    %c0_121 = arith.constant 0 : index
    %127 = vector.load %arg3[%c3_119, %c0_120, %c0_121] : memref<9x128x128xf32, #tpu.memory_space<vmem>>, vector<1x128x128xf32>
    %128 = vector.shape_cast %127 : vector<1x128x128xf32> to vector<128x128xf32>
    %cst_122 = arith.constant dense<0.000000e+00> : vector<256x128xf32>
    %129 = tpu.matmul %126, %128, %cst_122 {dimension_numbers = #tpu.dot_dimension_numbers<[1], [0], [0], [1], [0, 0, 1, 1], [], []>} : vector<256x128xf32>, vector<128x128xf32>, vector<256x128xf32> -> vector<256x128xf32>
    %130 = arith.addf %124, %129 : vector<256x128xf32>
    %c1_123 = arith.constant 1 : index
    %c1_124 = arith.constant 1 : index
    %c0_125 = arith.constant 0 : index
    %131 = vector.load %arg5[%c1_123, %c1_124, %c0_125] : memref<18x18x128xf32, #tpu.memory_space<vmem>>, vector<16x16x128xf32>
    %132 = vector.shape_cast %131 : vector<16x16x128xf32> to vector<256x128xf32>
    %c4_126 = arith.constant 4 : index
    %c0_127 = arith.constant 0 : index
    %c0_128 = arith.constant 0 : index
    %133 = vector.load %arg3[%c4_126, %c0_127, %c0_128] : memref<9x128x128xf32, #tpu.memory_space<vmem>>, vector<1x128x128xf32>
    %134 = vector.shape_cast %133 : vector<1x128x128xf32> to vector<128x128xf32>
    %cst_129 = arith.constant dense<0.000000e+00> : vector<256x128xf32>
    %135 = tpu.matmul %132, %134, %cst_129 {dimension_numbers = #tpu.dot_dimension_numbers<[1], [0], [0], [1], [0, 0, 1, 1], [], []>} : vector<256x128xf32>, vector<128x128xf32>, vector<256x128xf32> -> vector<256x128xf32>
    %136 = arith.addf %130, %135 : vector<256x128xf32>
    %c1_130 = arith.constant 1 : index
    %c2_131 = arith.constant 2 : index
    %c0_132 = arith.constant 0 : index
    %137 = vector.load %arg5[%c1_130, %c2_131, %c0_132] : memref<18x18x128xf32, #tpu.memory_space<vmem>>, vector<16x16x128xf32>
    %138 = vector.shape_cast %137 : vector<16x16x128xf32> to vector<256x128xf32>
    %c5_133 = arith.constant 5 : index
    %c0_134 = arith.constant 0 : index
    %c0_135 = arith.constant 0 : index
    %139 = vector.load %arg3[%c5_133, %c0_134, %c0_135] : memref<9x128x128xf32, #tpu.memory_space<vmem>>, vector<1x128x128xf32>
    %140 = vector.shape_cast %139 : vector<1x128x128xf32> to vector<128x128xf32>
    %cst_136 = arith.constant dense<0.000000e+00> : vector<256x128xf32>
    %141 = tpu.matmul %138, %140, %cst_136 {dimension_numbers = #tpu.dot_dimension_numbers<[1], [0], [0], [1], [0, 0, 1, 1], [], []>} : vector<256x128xf32>, vector<128x128xf32>, vector<256x128xf32> -> vector<256x128xf32>
    %142 = arith.addf %136, %141 : vector<256x128xf32>
    %c2_137 = arith.constant 2 : index
    %c0_138 = arith.constant 0 : index
    %c0_139 = arith.constant 0 : index
    %143 = vector.load %arg5[%c2_137, %c0_138, %c0_139] : memref<18x18x128xf32, #tpu.memory_space<vmem>>, vector<16x16x128xf32>
    %144 = vector.shape_cast %143 : vector<16x16x128xf32> to vector<256x128xf32>
    %c6_140 = arith.constant 6 : index
    %c0_141 = arith.constant 0 : index
    %c0_142 = arith.constant 0 : index
    %145 = vector.load %arg3[%c6_140, %c0_141, %c0_142] : memref<9x128x128xf32, #tpu.memory_space<vmem>>, vector<1x128x128xf32>
    %146 = vector.shape_cast %145 : vector<1x128x128xf32> to vector<128x128xf32>
    %cst_143 = arith.constant dense<0.000000e+00> : vector<256x128xf32>
    %147 = tpu.matmul %144, %146, %cst_143 {dimension_numbers = #tpu.dot_dimension_numbers<[1], [0], [0], [1], [0, 0, 1, 1], [], []>} : vector<256x128xf32>, vector<128x128xf32>, vector<256x128xf32> -> vector<256x128xf32>
    %148 = arith.addf %142, %147 : vector<256x128xf32>
    %c2_144 = arith.constant 2 : index
    %c1_145 = arith.constant 1 : index
    %c0_146 = arith.constant 0 : index
    %149 = vector.load %arg5[%c2_144, %c1_145, %c0_146] : memref<18x18x128xf32, #tpu.memory_space<vmem>>, vector<16x16x128xf32>
    %150 = vector.shape_cast %149 : vector<16x16x128xf32> to vector<256x128xf32>
    %c7_147 = arith.constant 7 : index
    %c0_148 = arith.constant 0 : index
    %c0_149 = arith.constant 0 : index
    %151 = vector.load %arg3[%c7_147, %c0_148, %c0_149] : memref<9x128x128xf32, #tpu.memory_space<vmem>>, vector<1x128x128xf32>
    %152 = vector.shape_cast %151 : vector<1x128x128xf32> to vector<128x128xf32>
    %cst_150 = arith.constant dense<0.000000e+00> : vector<256x128xf32>
    %153 = tpu.matmul %150, %152, %cst_150 {dimension_numbers = #tpu.dot_dimension_numbers<[1], [0], [0], [1], [0, 0, 1, 1], [], []>} : vector<256x128xf32>, vector<128x128xf32>, vector<256x128xf32> -> vector<256x128xf32>
    %154 = arith.addf %148, %153 : vector<256x128xf32>
    %c2_151 = arith.constant 2 : index
    %c2_152 = arith.constant 2 : index
    %c0_153 = arith.constant 0 : index
    %155 = vector.load %arg5[%c2_151, %c2_152, %c0_153] : memref<18x18x128xf32, #tpu.memory_space<vmem>>, vector<16x16x128xf32>
    %156 = vector.shape_cast %155 : vector<16x16x128xf32> to vector<256x128xf32>
    %c8_154 = arith.constant 8 : index
    %c0_155 = arith.constant 0 : index
    %c0_156 = arith.constant 0 : index
    %157 = vector.load %arg3[%c8_154, %c0_155, %c0_156] : memref<9x128x128xf32, #tpu.memory_space<vmem>>, vector<1x128x128xf32>
    %158 = vector.shape_cast %157 : vector<1x128x128xf32> to vector<128x128xf32>
    %cst_157 = arith.constant dense<0.000000e+00> : vector<256x128xf32>
    %159 = tpu.matmul %156, %158, %cst_157 {dimension_numbers = #tpu.dot_dimension_numbers<[1], [0], [0], [1], [0, 0, 1, 1], [], []>} : vector<256x128xf32>, vector<128x128xf32>, vector<256x128xf32> -> vector<256x128xf32>
    %160 = arith.addf %154, %159 : vector<256x128xf32>
    %cst_158 = arith.constant dense<0.000000e+00> : vector<128xf32>
    %161 = vector.multi_reduction <add>, %160, %cst_158 [0] : vector<256x128xf32> to vector<128xf32>
    %162 = vector.shape_cast %161 : vector<128xf32> to vector<1x128xf32>
    %cst_159 = arith.constant 2.560000e+02 : f32
    %163 = vector.broadcast %cst_159 : f32 to vector<1x128xf32>
    %164 = arith.divf %162, %163 : vector<1x128xf32>
    %165 = vector.broadcast %164 : vector<1x128xf32> to vector<256x128xf32>
    %166 = arith.subf %160, %165 : vector<256x128xf32>
    %167 = arith.mulf %166, %166 : vector<256x128xf32>
    %cst_160 = arith.constant dense<0.000000e+00> : vector<128xf32>
    %168 = vector.multi_reduction <add>, %167, %cst_160 [0] : vector<256x128xf32> to vector<128xf32>
    %169 = vector.shape_cast %168 : vector<128xf32> to vector<1x128xf32>
    %cst_161 = arith.constant 2.560000e+02 : f32
    %170 = vector.broadcast %cst_161 : f32 to vector<1x128xf32>
    %171 = arith.divf %169, %170 : vector<1x128xf32>
    %172 = vector.broadcast %164 : vector<1x128xf32> to vector<256x128xf32>
    %173 = arith.subf %160, %172 : vector<256x128xf32>
    %cst_162 = arith.constant 9.99999974E-6 : f32
    %174 = vector.broadcast %cst_162 : f32 to vector<1x128xf32>
    %175 = arith.addf %171, %174 : vector<1x128xf32>
    %176 = math.rsqrt %175 : vector<1x128xf32>
    %177 = vector.broadcast %176 : vector<1x128xf32> to vector<256x128xf32>
    %178 = arith.mulf %173, %177 : vector<256x128xf32>
    %c0_163 = arith.constant 0 : index
    %c1_164 = arith.constant 1 : index
    %c1_165 = arith.constant 1 : index
    %c0_166 = arith.constant 0 : index
    %179 = vector.load %arg1[%c0_163, %c1_164, %c1_165, %c0_166] : memref<1x18x18x128xf32, #tpu.memory_space<vmem>>, vector<1x16x16x128xf32>
    %180 = vector.shape_cast %179 : vector<1x16x16x128xf32> to vector<16x16x128xf32>
    %181 = vector.shape_cast %180 : vector<16x16x128xf32> to vector<256x128xf32>
    %182 = arith.addf %181, %178 : vector<256x128xf32>
    %c0_167 = arith.constant 0 : index
    %c0_168 = arith.constant 0 : index
    %c0_169 = arith.constant 0 : index
    %183 = vector.load %arg4[%c0_167, %c0_168, %c0_169] : memref<1x256x128xf32, #tpu.memory_space<vmem>>, vector<1x256x128xf32>
    %184 = vector.shape_cast %183 : vector<1x256x128xf32> to vector<256x128xf32>
    %185 = vector.shape_cast %182 : vector<256x128xf32> to vector<1x256x128xf32>
    tpu.vector_store %arg4[%c0_167, %c0_168, %c0_169], %185 {strides = array<i32>} : memref<1x256x128xf32, #tpu.memory_space<vmem>>, vector<1x256x128xf32>,
    return
  }
  func.func @transform_0(%arg0: i32) -> (i32, i32, i32, i32) {
    %c0_i32 = arith.constant 0 : i32
    %c0_i32_0 = arith.constant 0 : i32
    %c0_i32_1 = arith.constant 0 : i32
    %c0_i32_2 = arith.constant 0 : i32
    return %arg0, %c0_i32, %c0_i32_0, %c0_i32_1 : i32, i32, i32, i32
  }
  func.func @transform_1(%arg0: i32) -> (i32, i32, i32) {
    %c0_i32 = arith.constant 0 : i32
    %c0_i32_0 = arith.constant 0 : i32
    %c0_i32_1 = arith.constant 0 : i32
    %c0_i32_2 = arith.constant 0 : i32
    return %c0_i32, %c0_i32_0, %c0_i32_1 : i32, i32, i32
  }
  func.func @transform_2(%arg0: i32) -> (i32, i32, i32) {
    %c0_i32 = arith.constant 0 : i32
    %c0_i32_0 = arith.constant 0 : i32
    %c0_i32_1 = arith.constant 0 : i32
    %c0_i32_2 = arith.constant 0 : i32
    return %c0_i32, %c0_i32_0, %c0_i32_1 : i32, i32, i32
  }
  func.func @transform_3(%arg0: i32) -> (i32, i32, i32) {
    %c0_i32 = arith.constant 0 : i32
    %c0_i32_0 = arith.constant 0 : i32
    %c0_i32_1 = arith.constant 0 : i32
    return %arg0, %c0_i32, %c0_i32_0 : i32, i32, i32
  }
}

</mosaic_0001>

<llo_original>
// kernel: residual_block.1
$region0: #{residual_block.1}
  #allocation0 [shape = 'u32[]', space=smem, size = 0x4, offset = 0x4, fixed_abs, tag = 'smem constant byte address 0x4 - core index']
  #allocation1 [shape = 'u32[144,128]{1,0:T(1,128)}', space=vmem, size = 0x12000, scoped, tag = 'internal scratch']
  #allocation2 [shape = 'f32[18,18,128]{2,1,0:T(8,128)}', space=vmem, size = 0x36000, scoped, tag = 'scratch operand']
  %s0 = inlined_call_operand.hbm [shape: f32[2,18,18,128], index: 0, kind: input, shape index: {}]
  %s1 = inlined_call_operand.hbm [shape: f32[9,128,128], index: 1, kind: input, shape index: {}]
  %s2 = inlined_call_operand.hbm [shape: f32[9,128,128], index: 2, kind: input, shape index: {}]
  %s3 = inlined_call_operand.hbm [shape: f32[2,256,128], index: 3, kind: output, shape index: {}]
  %s4 = sld [smem:[#allocation0]]
  $region57: #{residual_block.1} parent=0
    _
  %s6 = ssub.s32 1, %s4
  %s7 = scalar_select 0, %s6, %s4
  $region1: #{residual_block.1} parent=0
    #allocation3 [shape = 'u8[442368]{0}', space=vmem, size = 0x6c000, scoped, tag = 'input window, operand 0']
    #allocation4 [shape = 's32[2]{0}', space=sflag, size = 0x8, scoped, tag = 'scoped memory for residual_block.1']
    #allocation5 [shape = 's32[2]{0}', space=sflag, size = 0x8, scoped, tag = 'scoped memory for residual_block.1']
    #allocation6 [shape = 'u8[589824]{0}', space=vmem, size = 0x90000, scoped, tag = 'input window, operand 1, single buffered']
    #allocation7 [shape = 's32[1]{0}', space=sflag, size = 0x4, scoped, tag = 'scoped memory for residual_block.1']
    #allocation8 [shape = 'u8[589824]{0}', space=vmem, size = 0x90000, scoped, tag = 'input window, operand 2, single buffered']
    #allocation9 [shape = 'u8[262144]{0}', space=vmem, size = 0x40000, scoped, tag = 'output window, operand 0']
    %8 = vsyncpa [#allocation4], 0
    %s9 = scalar_lea.sflag [#allocation4], 1
    %10 = vsyncpa %s9, 0
    %11 = vsyncpa [#allocation7], 0
    %12 = vsyncpa [#allocation5], 0
    %s13 = scalar_lea.sflag [#allocation5], 1
    %14 = vsyncpa %s13, 0
    loop: start=0, step=1, limit=4
    $region2: #{residual_block.1} parent=1 // loop_pre_header
      _
    $region3: #{residual_block.1} parent=1 // loop_header
      %s16 = sphi 0, %s20
      %p17 = scmp.ge.s32.totalorder %s16, 4
      %s26 = sphi 0, %s28
      %s29 = sphi 0, %s26
      %s30 = sphi 0, %s29
      %s46 = sphi 0, %s30
      %s50 = sphi 0, %s50
      %s52 = sphi 0, %s50
      %s53 = sphi 0, %s52
      %s67 = sphi 0, %s53
      %s71 = sphi 0, %s71
      %s73 = sphi 0, %s71
      %s74 = sphi 0, %s73
      %s88 = sphi 0, %s74
      %s94 = sphi 0, %s96
      %s97 = sphi 0, %s94
      %s98 = sphi 0, %s97
      %s114 = sphi 0, %s98
    $region4: #{residual_block.1} parent=1 // loop_header_branch
      %19 = sbr.rel (%p17) target = $region8
    $region5: #{residual_block.1} parent=1 // loop_body
      %s21 = ssub.s32 %s16, 1
      %s22 = ssub.s32 %s16, 2
      %s23 = sadd.s32 %s16, 1
      %s24 = ssub.s32 %s16, %s23
      %p25 = scmp.eq.s32.totalorder %s24, 0
      %s27 = sadd.s32 %s26, 1
      %s28 = scalar_select %p25, %s26, %s27
      %p31 = pneg %p25
      %p32 = scmp.eq.s32.totalorder %s16, 1
      %p33 = por %p31, %p32
      %p34 = scmp.ne.s32.totalorder %s26, %s29
      %p35 = scmp.eq.s32.totalorder %s16, 0
      %p36 = por %p34, %p35
      %p37 = scmp.ne.s32.totalorder %s26, %s29
      %p38 = scmp.eq.s32.totalorder %s21, 1
      %p39 = por %p37, %p38
      %p40 = scmp.ne.s32.totalorder %s29, %s30
      %p41 = scmp.eq.s32.totalorder %s21, 0
      %p42 = por %p40, %p41
      %p43 = scmp.ne.s32.totalorder %s29, %s30
      %p44 = scmp.eq.s32.totalorder %s22, 1
      %p45 = por %p43, %p44
      %p47 = scmp.ne.s32.totalorder %s30, %s46
      %p48 = scmp.eq.s32.totalorder %s22, 0
      %p49 = por %p47, %p48
      %s51 = sadd.s32 %s50, 1
      %p54 = scmp.eq.s32.totalorder %s16, 1
      %p55 = scmp.ne.s32.totalorder %s50, %s52
      %p56 = scmp.eq.s32.totalorder %s16, 0
      %p57 = por %p55, %p56
      %p58 = scmp.ne.s32.totalorder %s50, %s52
      %p59 = scmp.eq.s32.totalorder %s21, 1
      %p60 = por %p58, %p59
      %p61 = scmp.ne.s32.totalorder %s52, %s53
      %p62 = scmp.eq.s32.totalorder %s21, 0
      %p63 = por %p61, %p62
      %p64 = scmp.ne.s32.totalorder %s52, %s53
      %p65 = scmp.eq.s32.totalorder %s22, 1
      %p66 = por %p64, %p65
      %p68 = scmp.ne.s32.totalorder %s53, %s67
      %p69 = scmp.eq.s32.totalorder %s22, 0
      %p70 = por %p68, %p69
      %s72 = sadd.s32 %s71, 1
      %p75 = scmp.eq.s32.totalorder %s16, 1
      %p76 = scmp.ne.s32.totalorder %s71, %s73
      %p77 = scmp.eq.s32.totalorder %s16, 0
      %p78 = por %p76, %p77
      %p79 = scmp.ne.s32.totalorder %s71, %s73
      %p80 = scmp.eq.s32.totalorder %s21, 1
      %p81 = por %p79, %p80
      %p82 = scmp.ne.s32.totalorder %s73, %s74
      %p83 = scmp.eq.s32.totalorder %s21, 0
      %p84 = por %p82, %p83
      %p85 = scmp.ne.s32.totalorder %s73, %s74
      %p86 = scmp.eq.s32.totalorder %s22, 1
      %p87 = por %p85, %p86
      %p89 = scmp.ne.s32.totalorder %s74, %s88
      %p90 = scmp.eq.s32.totalorder %s22, 0
      %p91 = por %p89, %p90
      %s92 = ssub.s32 %s16, %s23
      %p93 = scmp.eq.s32.totalorder %s92, 0
      %s95 = sadd.s32 %s94, 1
      %s96 = scalar_select %p93, %s94, %s95
      %p99 = pneg %p93
      %p100 = scmp.eq.s32.totalorder %s16, 1
      %p101 = por %p99, %p100
      %p102 = scmp.ne.s32.totalorder %s94, %s97
      %p103 = scmp.eq.s32.totalorder %s16, 0
      %p104 = por %p102, %p103
      %p105 = scmp.ne.s32.totalorder %s94, %s97
      %p106 = scmp.eq.s32.totalorder %s21, 1
      %p107 = por %p105, %p106
      %p108 = scmp.ne.s32.totalorder %s97, %s98
      %p109 = scmp.eq.s32.totalorder %s21, 0
      %p110 = por %p108, %p109
      %p111 = scmp.ne.s32.totalorder %s97, %s98
      %p112 = scmp.eq.s32.totalorder %s22, 1
      %p113 = por %p111, %p112
      %p115 = scmp.ne.s32.totalorder %s98, %s114
      %p116 = scmp.eq.s32.totalorder %s22, 0
      %p117 = por %p115, %p116
      %p118 = scmp.le.s32.totalorder 1, %s16
      %p119 = scmp.lt.s32.totalorder %s16, 3
      %p120 = pnand %p118, %p119
      %p121 = pneg %p120
      // Predicated region
      $region9: #{residual_block.1} parent=5 // pred_check
        _
      $region10: #{residual_block.1} parent=5 // pred_check_branch
        %123 = sbr.rel (%p120) target = $region12
      $region11: #{residual_block.1} parent=5 // pred_region
        %s124 = ssub.s32 %s16, 1
        // Predicated region
        $region13: #{residual_block.1} parent=11 // pred_check
          %p125 = pneg %p63
        $region14: #{residual_block.1} parent=11 // pred_check_branch
          %127 = sbr.rel (%p125) target = $region16
        $region15: #{residual_block.1} parent=11 // pred_region
          %s129 = ssub.s32 18432, 18432
          %130 = vsyncadd [#allocation7], %s129
          %s131 = sshll.u32 [#allocation6], 4
          %s132 = int_to_ptr.vmem [resolvable:$true] %s131
          %137 = dma.hbm_to_vmem [thread:$0]  %s1, 18432, %s132, [#allocation7], 128, 128, 8
        $region16: #{residual_block.1} parent=11 // pred_fallthru
          _
        // Predicated region
        $region17: #{residual_block.1} parent=11 // pred_check
          %p138 = pneg %p84
        $region18: #{residual_block.1} parent=11 // pred_check_branch
          %140 = sbr.rel (%p138) target = $region20
        $region19: #{residual_block.1} parent=11 // pred_region
          %s142 = ssub.s32 18432, 18432
          %143 = vsyncadd [#allocation7], %s142
          %s144 = sshll.u32 [#allocation8], 4
          %s145 = int_to_ptr.vmem [resolvable:$true] %s144
          %150 = dma.hbm_to_vmem [thread:$0]  %s2, 18432, %s145, [#allocation7], 128, 128, 8
        $region20: #{residual_block.1} parent=11 // pred_fallthru
          _
      $region12: #{residual_block.1} parent=5 // pred_fallthru
        _
      %p151 = scmp.lt.s32.totalorder %s16, 2
      // Predicated region
      $region21: #{residual_block.1} parent=5 // pred_check
        %p152 = pneg %p151
      $region22: #{residual_block.1} parent=5 // pred_check_branch
        %154 = sbr.rel (%p152) target = $region24
      $region23: #{residual_block.1} parent=5 // pred_region
        // Predicated region
        $region25: #{residual_block.1} parent=23 // pred_check
          %p155 = pneg %p36
        $region26: #{residual_block.1} parent=23 // pred_check_branch
          %157 = sbr.rel (%p155) target = $region28
        $region27: #{residual_block.1} parent=23 // pred_region
          %s158 = sand.u32 %s26, 1
          %s159 = scalar_lea.sflag [#allocation4], %s158
          %s160 = sand.u32 %s26, 1
          %s161 = smul.addr %s160, 432
          %s162 = scalar_lea.vmem [#allocation3], %s161
          %s164 = ssub.s32 6912, 6912
          %165 = vsyncadd %s159, %s164
          %s166 = smul.addr %s16, 54
          %s167 = smul.addr %s166, 128
          %s168 = scalar_lea.hbm %s0, %s167
          %s169 = sshll.u32 %s162, 4
          %s170 = int_to_ptr.vmem [resolvable:$true] %s169
          %175 = dma.hbm_to_vmem [thread:$0]  %s168, 6912, %s170, %s159, 128, 128, 8
        $region28: #{residual_block.1} parent=23 // pred_fallthru
          _
      $region24: #{residual_block.1} parent=5 // pred_fallthru
        _
      %p176 = scmp.le.s32.totalorder 1, %s16
      %p177 = scmp.lt.s32.totalorder %s16, 3
      %p178 = pnand %p176, %p177
      %p179 = pneg %p178
      // Predicated region
      $region29: #{residual_block.1} parent=5 // pred_check
        _
      $region30: #{residual_block.1} parent=5 // pred_check_branch
        %181 = sbr.rel (%p178) target = $region32
      $region31: #{residual_block.1} parent=5 // pred_region
        %s182 = ssub.s32 %s16, 1
        %s183 = sand.u32 %s29, 1
        %s184 = scalar_lea.sflag [#allocation4], %s183
        %s185 = sand.u32 %s29, 1
        %s186 = smul.addr %s185, 432
        %s187 = scalar_lea.vmem [#allocation3], %s186
        // Predicated region
        $region33: #{residual_block.1} parent=31 // pred_check
          %p188 = pneg %p42
        $region34: #{residual_block.1} parent=31 // pred_check_branch
          %190 = sbr.rel (%p188) target = $region36
        $region35: #{residual_block.1} parent=31 // pred_region
          %191 = dma.done %s184, 6912
        $region36: #{residual_block.1} parent=31 // pred_fallthru
          _
        // Predicated region
        $region37: #{residual_block.1} parent=31 // pred_check
          %p192 = pneg %p63
        $region38: #{residual_block.1} parent=31 // pred_check_branch
          %194 = sbr.rel (%p192) target = $region40
        $region39: #{residual_block.1} parent=31 // pred_region
          %195 = dma.done [#allocation7], 18432
        $region40: #{residual_block.1} parent=31 // pred_fallthru
          _
        // Predicated region
        $region41: #{residual_block.1} parent=31 // pred_check
          %p196 = pneg %p84
        $region42: #{residual_block.1} parent=31 // pred_check_branch
          %198 = sbr.rel (%p196) target = $region44
        $region43: #{residual_block.1} parent=31 // pred_region
          %199 = dma.done [#allocation7], 18432
        $region44: #{residual_block.1} parent=31 // pred_fallthru
          _
        %s200 = sand.u32 %s29, 1
        %s201 = scalar_lea.sflag [#allocation4], %s200
        %s202 = sand.u32 %s29, 1
        %s203 = smul.addr %s202, 432
        %s204 = scalar_lea.vmem [#allocation3], %s203
        %p205 = pneg %p42
        %p206 = pneg %p39
        %p207 = pneg %p63
        %p208 = pneg %p60
        %p209 = pneg %p84
        %p210 = pneg %p81
        %p211 = pneg %p110
        %p212 = pneg %p107
        %s213 = sand.u32 %s97, 1
        %s214 = scalar_lea.sflag [#allocation5], %s213
        %s215 = sand.u32 %s97, 1
        %s216 = smul.addr %s215, 256
        %s217 = scalar_lea.vmem [#allocation9], %s216
        %v218 = vld [vmem:[%s187] sm:$0xff]
        %v219 = vld [vmem:[%s187 + $0x8] sm:$0xff]
        %v220 = vld [vmem:[%s187 + $0x18] sm:$0xff]
        %v221 = vld [vmem:[%s187 + $0x20] sm:$0xff]
        %v222 = vld [vmem:[%s187 + $0x30] sm:$0xff]
        %v223 = vld [vmem:[%s187 + $0x38] sm:$0xff]
        %v224 = vld [vmem:[%s187 + $0x48] sm:$0xff]
        %v225 = vld [vmem:[%s187 + $0x50] sm:$0xff]
        %v226 = vld [vmem:[%s187 + $0x60] sm:$0xff]
        %v227 = vld [vmem:[%s187 + $0x68] sm:$0xff]
        %v228 = vld [vmem:[%s187 + $0x78] sm:$0xff]
        %v229 = vld [vmem:[%s187 + $0x80] sm:$0xff]
        %v230 = vld [vmem:[%s187 + $0x90] sm:$0xff]
        %v231 = vld [vmem:[%s187 + $0x98] sm:$0xff]
        %v232 = vld [vmem:[%s187 + $0xa8] sm:$0xff]
        %v233 = vld [vmem:[%s187 + $0xb0] sm:$0xff]
        %v234 = vld [vmem:[%s187 + $0xc0] sm:$0xff]
        %v235 = vld [vmem:[%s187 + $0xc8] sm:$0xff]
        %v236 = vld [vmem:[%s187 + $0xd8] sm:$0xff]
        %v237 = vld [vmem:[%s187 + $0xe0] sm:$0xff]
        %v238 = vld [vmem:[%s187 + $0xf0] sm:$0xff]
        %v239 = vld [vmem:[%s187 + $0xf8] sm:$0xff]
        %v240 = vld [vmem:[%s187 + $0x108] sm:$0xff]
        %v241 = vld [vmem:[%s187 + $0x110] sm:$0xff]
        %v242 = vld [vmem:[%s187 + $0x120] sm:$0xff]
        %v243 = vld [vmem:[%s187 + $0x128] sm:$0xff]
        %v244 = vld [vmem:[%s187 + $0x138] sm:$0xff]
        %v245 = vld [vmem:[%s187 + $0x140] sm:$0xff]
        %v246 = vld [vmem:[%s187 + $0x150] sm:$0xff]
        %v247 = vld [vmem:[%s187 + $0x158] sm:$0xff]
        %v248 = vld [vmem:[%s187 + $0x168] sm:$0xff]
        %v249 = vld [vmem:[%s187 + $0x170] sm:$0xff]
        %v250 = vld [vmem:[#allocation6] sm:$0xff]
        %v251 = vld [vmem:[#allocation6 + $0x8] sm:$0xff]
        %v252 = vld [vmem:[#allocation6 + $0x10] sm:$0xff]
        %v253 = vld [vmem:[#allocation6 + $0x18] sm:$0xff]
        %v254 = vld [vmem:[#allocation6 + $0x20] sm:$0xff]
        %v255 = vld [vmem:[#allocation6 + $0x28] sm:$0xff]
        %v256 = vld [vmem:[#allocation6 + $0x30] sm:$0xff]
        %v257 = vld [vmem:[#allocation6 + $0x38] sm:$0xff]
        %v258 = vld [vmem:[#allocation6 + $0x40] sm:$0xff]
        %v259 = vld [vmem:[#allocation6 + $0x48] sm:$0xff]
        %v260 = vld [vmem:[#allocation6 + $0x50] sm:$0xff]
        %v261 = vld [vmem:[#allocation6 + $0x58] sm:$0xff]
        %v262 = vld [vmem:[#allocation6 + $0x60] sm:$0xff]
        %v263 = vld [vmem:[#allocation6 + $0x68] sm:$0xff]
        %v264 = vld [vmem:[#allocation6 + $0x70] sm:$0xff]
        %v265 = vld [vmem:[#allocation6 + $0x78] sm:$0xff]
        %v266 = vld [vmem:[%s187 + $0x1] sm:$0xff]
        %v267 = vld [vmem:[%s187 + $0x9] sm:$0xff]
        %v268 = vld [vmem:[%s187 + $0x19] sm:$0xff]
        %v269 = vld [vmem:[%s187 + $0x21] sm:$0xff]
        %v270 = vld [vmem:[%s187 + $0x31] sm:$0xff]
        %v271 = vld [vmem:[%s187 + $0x39] sm:$0xff]
        %v272 = vld [vmem:[%s187 + $0x49] sm:$0xff]
        %v273 = vld [vmem:[%s187 + $0x51] sm:$0xff]
        %v274 = vld [vmem:[%s187 + $0x61] sm:$0xff]
        %v275 = vld [vmem:[%s187 + $0x69] sm:$0xff]
        %v276 = vld [vmem:[%s187 + $0x79] sm:$0xff]
        %v277 = vld [vmem:[%s187 + $0x81] sm:$0xff]
        %v278 = vld [vmem:[%s187 + $0x91] sm:$0xff]
        %v279 = vld [vmem:[%s187 + $0x99] sm:$0xff]
        %v280 = vld [vmem:[%s187 + $0xa9] sm:$0xff]
        %v281 = vld [vmem:[%s187 + $0xb1] sm:$0xff]
        %v282 = vld [vmem:[%s187 + $0xc1] sm:$0xff]
        %v283 = vld [vmem:[%s187 + $0xc9] sm:$0xff]
        %v284 = vld [vmem:[%s187 + $0xd9] sm:$0xff]
        %v285 = vld [vmem:[%s187 + $0xe1] sm:$0xff]
        %v286 = vld [vmem:[%s187 + $0xf1] sm:$0xff]
        %v287 = vld [vmem:[%s187 + $0xf9] sm:$0xff]
        %v288 = vld [vmem:[%s187 + $0x109] sm:$0xff]
        %v289 = vld [vmem:[%s187 + $0x111] sm:$0xff]
        %v290 = vld [vmem:[%s187 + $0x121] sm:$0xff]
        %v291 = vld [vmem:[%s187 + $0x129] sm:$0xff]
        %v292 = vld [vmem:[%s187 + $0x139] sm:$0xff]
        %v293 = vld [vmem:[%s187 + $0x141] sm:$0xff]
        %v294 = vld [vmem:[%s187 + $0x151] sm:$0xff]
        %v295 = vld [vmem:[%s187 + $0x159] sm:$0xff]
        %v296 = vld [vmem:[%s187 + $0x169] sm:$0xff]
        %v297 = vld [vmem:[%s187 + $0x171] sm:$0xff]
        %s298 = scalar_lea.vmem [#allocation6], 128
        %v299 = vld [vmem:[%s298] sm:$0xff]
        %v300 = vld [vmem:[%s298 + $0x8] sm:$0xff]
        %v301 = vld [vmem:[%s298 + $0x10] sm:$0xff]
        %v302 = vld [vmem:[%s298 + $0x18] sm:$0xff]
        %v303 = vld [vmem:[%s298 + $0x20] sm:$0xff]
        %v304 = vld [vmem:[%s298 + $0x28] sm:$0xff]
        %v305 = vld [vmem:[%s298 + $0x30] sm:$0xff]
        %v306 = vld [vmem:[%s298 + $0x38] sm:$0xff]
        %v307 = vld [vmem:[%s298 + $0x40] sm:$0xff]
        %v308 = vld [vmem:[%s298 + $0x48] sm:$0xff]
        %v309 = vld [vmem:[%s298 + $0x50] sm:$0xff]
        %v310 = vld [vmem:[%s298 + $0x58] sm:$0xff]
        %v311 = vld [vmem:[%s298 + $0x60] sm:$0xff]
        %v312 = vld [vmem:[%s298 + $0x68] sm:$0xff]
        %v313 = vld [vmem:[%s298 + $0x70] sm:$0xff]
        %v314 = vld [vmem:[%s298 + $0x78] sm:$0xff]
        %315 = vmatprep.subr.mxu0 0.0
        %316 = vmatpush1.msra.mxu0 %v299
        %317 = vmatprep.subr.mxu0 0.0
        %318 = vmatpush1.msra.mxu0 %v300
        %319 = vmatprep.subr.mxu0 0.0
        %320 = vmatpush1.msra.mxu0 %v301
        %321 = vmatprep.subr.mxu0 0.0
        %322 = vmatpush1.msra.mxu0 %v302
        %323 = vmatprep.subr.mxu0 0.0
        %324 = vmatpush1.msra.mxu0 %v303
        %325 = vmatprep.subr.mxu0 0.0
        %326 = vmatpush1.msra.mxu0 %v304
        %327 = vmatprep.subr.mxu0 0.0
        %328 = vmatpush1.msra.mxu0 %v305
        %329 = vmatprep.subr.mxu0 0.0
        %330 = vmatpush1.msra.mxu0 %v306
        %331 = vmatprep.subr.mxu0 0.0
        %332 = vmatpush1.msra.mxu0 %v307
        %333 = vmatprep.subr.mxu0 0.0
        %334 = vmatpush1.msra.mxu0 %v308
        %335 = vmatprep.subr.mxu0 0.0
        %336 = vmatpush1.msra.mxu0 %v309
        %337 = vmatprep.subr.mxu0 0.0
        %338 = vmatpush1.msra.mxu0 %v310
        %339 = vmatprep.subr.mxu0 0.0
        %340 = vmatpush1.msra.mxu0 %v311
        %341 = vmatprep.subr.mxu0 0.0
        %342 = vmatpush1.msra.mxu0 %v312
        %343 = vmatprep.subr.mxu0 0.0
        %344 = vmatpush1.msra.mxu0 %v313
        %345 = vmatprep.subr.mxu0 0.0
        %346 = vmatpush1.msra.mxu0 %v314
        %347 = vmatprep.subr.mxu0 0.0
        %348 = vmatpush1.msra.mxu0 0.0
        %349 = vmatprep.subr.mxu0 0.0
        %350 = vmatpush1.msra.mxu0 0.0
        %351 = vmatprep.subr.mxu0 0.0
        %352 = vmatpush1.msra.mxu0 0.0
        %353 = vmatprep.subr.mxu0 0.0
        %354 = vmatpush1.msra.mxu0 0.0
        %355 = vmatprep.subr.mxu0 0.0
        %356 = vmatpush1.msra.mxu0 0.0
        %357 = vmatprep.subr.mxu0 0.0
        %358 = vmatpush1.msra.mxu0 0.0
        %359 = vmatprep.subr.mxu0 0.0
        %360 = vmatpush1.msra.mxu0 0.0
        %361 = vmatprep.subr.mxu0 0.0
        %362 = vmatpush1.msra.mxu0 0.0
        %363 = vmatprep.subr.mxu0 0.0
        %364 = vmatpush1.msra.mxu0 0.0
        %365 = vmatprep.subr.mxu0 0.0
        %366 = vmatpush1.msra.mxu0 0.0
        %367 = vmatprep.subr.mxu0 0.0
        %368 = vmatpush1.msra.mxu0 0.0
        %369 = vmatprep.subr.mxu0 0.0
        %370 = vmatpush1.msra.mxu0 0.0
        %371 = vmatprep.subr.mxu0 0.0
        %372 = vmatpush1.msra.mxu0 0.0
        %373 = vmatprep.subr.mxu0 0.0
        %374 = vmatpush1.msra.mxu0 0.0
        %375 = vmatprep.subr.mxu0 0.0
        %376 = vmatpush1.msra.mxu0 0.0
        %377 = vmatprep.subr.mxu0 0.0
        %378 = vmatpush1.msra.mxu0 0.0
        %379 = vmatprep.mubr.f32.mxu0 0.0
        %380 = vmatmul.mubr.f32.gmra.mrb[0].mxu0 %v266
        %v381 = vpop.f32.mrb[0].mxu0
        %v382 = vadd.f32 0.0, %v381
        %v383 = vpop.f32.mrb[0].mxu0
        %384 = vmatprep.mubr.f32.mxu0 0.0
        %385 = vmatmul.mubr.f32.gmra.mrb[0].mxu0 %v267
        %v386 = vpop.f32.mrb[0].mxu0
        %v387 = vadd.f32 0.0, %v386
        %v388 = vpop.f32.mrb[0].mxu0
        %389 = vmatprep.mubr.f32.mxu0 0.0
        %390 = vmatmul.mubr.f32.gmra.mrb[0].mxu0 %v268
        %v391 = vpop.f32.mrb[0].mxu0
        %v392 = vadd.f32 0.0, %v391
        %v393 = vpop.f32.mrb[0].mxu0
        %394 = vmatprep.mubr.f32.mxu0 0.0
        %395 = vmatmul.mubr.f32.gmra.mrb[0].mxu0 %v269
        %v396 = vpop.f32.mrb[0].mxu0
        %v397 = vadd.f32 0.0, %v396
        %v398 = vpop.f32.mrb[0].mxu0
        %399 = vmatprep.mubr.f32.mxu0 0.0
        %400 = vmatmul.mubr.f32.gmra.mrb[0].mxu0 %v270
        %v401 = vpop.f32.mrb[0].mxu0
        %v402 = vadd.f32 0.0, %v401
        %v403 = vpop.f32.mrb[0].mxu0
        %404 = vmatprep.mubr.f32.mxu0 0.0
        %405 = vmatmul.mubr.f32.gmra.mrb[0].mxu0 %v271
        %v406 = vpop.f32.mrb[0].mxu0
        %v407 = vadd.f32 0.0, %v406
        %v408 = vpop.f32.mrb[0].mxu0
        %409 = vmatprep.mubr.f32.mxu0 0.0
        %410 = vmatmul.mubr.f32.gmra.mrb[0].mxu0 %v272
        %v411 = vpop.f32.mrb[0].mxu0
        %v412 = vadd.f32 0.0, %v411
        %v413 = vpop.f32.mrb[0].mxu0
        %414 = vmatprep.mubr.f32.mxu0 0.0
        %415 = vmatmul.mubr.f32.gmra.mrb[0].mxu0 %v273
        %v416 = vpop.f32.mrb[0].mxu0
        %v417 = vadd.f32 0.0, %v416
        %v418 = vpop.f32.mrb[0].mxu0
        %419 = vmatprep.mubr.f32.mxu0 0.0
        %420 = vmatmul.mubr.f32.gmra.mrb[0].mxu0 %v274
        %v421 = vpop.f32.mrb[0].mxu0
        %v422 = vadd.f32 0.0, %v421
        %v423 = vpop.f32.mrb[0].mxu0
        %424 = vmatprep.mubr.f32.mxu0 0.0
        %425 = vmatmul.mubr.f32.gmra.mrb[0].mxu0 %v275
        %v426 = vpop.f32.mrb[0].mxu0
        %v427 = vadd.f32 0.0, %v426
        %v428 = vpop.f32.mrb[0].mxu0
        %429 = vmatprep.mubr.f32.mxu0 0.0
        %430 = vmatmul.mubr.f32.gmra.mrb[0].mxu0 %v276
        %v431 = vpop.f32.mrb[0].mxu0
        %v432 = vadd.f32 0.0, %v431
        %v433 = vpop.f32.mrb[0].mxu0
        %434 = vmatprep.mubr.f32.mxu0 0.0
        %435 = vmatmul.mubr.f32.gmra.mrb[0].mxu0 %v277
        %v436 = vpop.f32.mrb[0].mxu0
        %v437 = vadd.f32 0.0, %v436
        %v438 = vpop.f32.mrb[0].mxu0
        %439 = vmatprep.mubr.f32.mxu0 0.0
        %440 = vmatmul.mubr.f32.gmra.mrb[0].mxu0 %v278
        %v441 = vpop.f32.mrb[0].mxu0
        %v442 = vadd.f32 0.0, %v441
        %v443 = vpop.f32.mrb[0].mxu0
        %444 = vmatprep.mubr.f32.mxu0 0.0
        %445 = vmatmul.mubr.f32.gmra.mrb[0].mxu0 %v279
        %v446 = vpop.f32.mrb[0].mxu0
        %v447 = vadd.f32 0.0, %v446
        %v448 = vpop.f32.mrb[0].mxu0
        %449 = vmatprep.mubr.f32.mxu0 0.0
        %450 = vmatmul.mubr.f32.gmra.mrb[0].mxu0 %v280
        %v451 = vpop.f32.mrb[0].mxu0
        %v452 = vadd.f32 0.0, %v451
        %v453 = vpop.f32.mrb[0].mxu0
        %454 = vmatprep.mubr.f32.mxu0 0.0
        %455 = vmatmul.mubr.f32.gmra.mrb[0].mxu0 %v281
        %v456 = vpop.f32.mrb[0].mxu0
        %v457 = vadd.f32 0.0, %v456
        %v458 = vpop.f32.mrb[0].mxu0
        %459 = vmatprep.mubr.f32.mxu0 0.0
        %460 = vmatmul.mubr.f32.gmra.mrb[0].mxu0 %v282
        %v461 = vpop.f32.mrb[0].mxu0
        %v462 = vadd.f32 0.0, %v461
        %v463 = vpop.f32.mrb[0].mxu0
        %464 = vmatprep.mubr.f32.mxu0 0.0
        %465 = vmatmul.mubr.f32.gmra.mrb[0].mxu0 %v283
        %v466 = vpop.f32.mrb[0].mxu0
        %v467 = vadd.f32 0.0, %v466
        %v468 = vpop.f32.mrb[0].mxu0
        %469 = vmatprep.mubr.f32.mxu0 0.0
        %470 = vmatmul.mubr.f32.gmra.mrb[0].mxu0 %v284
        %v471 = vpop.f32.mrb[0].mxu0
        %v472 = vadd.f32 0.0, %v471
        %v473 = vpop.f32.mrb[0].mxu0
        %474 = vmatprep.mubr.f32.mxu0 0.0
        %475 = vmatmul.mubr.f32.gmra.mrb[0].mxu0 %v285
        %v476 = vpop.f32.mrb[0].mxu0
        %v477 = vadd.f32 0.0, %v476
        %v478 = vpop.f32.mrb[0].mxu0
        %479 = vmatprep.mubr.f32.mxu0 0.0
        %480 = vmatmul.mubr.f32.gmra.mrb[0].mxu0 %v286
        %v481 = vpop.f32.mrb[0].mxu0
        %v482 = vadd.f32 0.0, %v481
        %v483 = vpop.f32.mrb[0].mxu0
        %484 = vmatprep.mubr.f32.mxu0 0.0
        %485 = vmatmul.mubr.f32.gmra.mrb[0].mxu0 %v287
        %v486 = vpop.f32.mrb[0].mxu0
        %v487 = vadd.f32 0.0, %v486
        %v488 = vpop.f32.mrb[0].mxu0
        %489 = vmatprep.mubr.f32.mxu0 0.0
        %490 = vmatmul.mubr.f32.gmra.mrb[0].mxu0 %v288
        %v491 = vpop.f32.mrb[0].mxu0
        %v492 = vadd.f32 0.0, %v491
        %v493 = vpop.f32.mrb[0].mxu0
        %494 = vmatprep.mubr.f32.mxu0 0.0
        %495 = vmatmul.mubr.f32.gmra.mrb[0].mxu0 %v289
        %v496 = vpop.f32.mrb[0].mxu0
        %v497 = vadd.f32 0.0, %v496
        %v498 = vpop.f32.mrb[0].mxu0
        %499 = vmatprep.mubr.f32.mxu0 0.0
        %500 = vmatmul.mubr.f32.gmra.mrb[0].mxu0 %v290
        %v501 = vpop.f32.mrb[0].mxu0
        %v502 = vadd.f32 0.0, %v501
        %v503 = vpop.f32.mrb[0].mxu0
        %504 = vmatprep.mubr.f32.mxu0 0.0
        %505 = vmatmul.mubr.f32.gmra.mrb[0].mxu0 %v291
        %v506 = vpop.f32.mrb[0].mxu0
        %v507 = vadd.f32 0.0, %v506
        %v508 = vpop.f32.mrb[0].mxu0
        %509 = vmatprep.mubr.f32.mxu0 0.0
        %510 = vmatmul.mubr.f32.gmra.mrb[0].mxu0 %v292
        %v511 = vpop.f32.mrb[0].mxu0
        %v512 = vadd.f32 0.0, %v511
        %v513 = vpop.f32.mrb[0].mxu0
        %514 = vmatprep.mubr.f32.mxu0 0.0
        %515 = vmatmul.mubr.f32.gmra.mrb[0].mxu0 %v293
        %v516 = vpop.f32.mrb[0].mxu0
        %v517 = vadd.f32 0.0, %v516
        %v518 = vpop.f32.mrb[0].mxu0
        %519 = vmatprep.mubr.f32.mxu0 0.0
        %520 = vmatmul.mubr.f32.gmra.mrb[0].mxu0 %v294
        %v521 = vpop.f32.mrb[0].mxu0
        %v522 = vadd.f32 0.0, %v521
        %v523 = vpop.f32.mrb[0].mxu0
        %524 = vmatprep.mubr.f32.mxu0 0.0
        %525 = vmatmul.mubr.f32.gmra.mrb[0].mxu0 %v295
        %v526 = vpop.f32.mrb[0].mxu0
        %v527 = vadd.f32 0.0, %v526
        %v528 = vpop.f32.mrb[0].mxu0
        %529 = vmatprep.mubr.f32.mxu0 0.0
        %530 = vmatmul.mubr.f32.gmra.mrb[0].mxu0 %v296
        %v531 = vpop.f32.mrb[0].mxu0
        %v532 = vadd.f32 0.0, %v531
        %v533 = vpop.f32.mrb[0].mxu0
        %534 = vmatprep.mubr.f32.mxu0 0.0
        %535 = vmatmul.mubr.f32.gmra.mrb[0].mxu0 %v297
        %v536 = vpop.f32.mrb[0].mxu0
        %v537 = vadd.f32 0.0, %v536
        %v538 = vpop.f32.mrb[0].mxu0
        %539 = vdwg.mxu0
        %540 = vmatprep.subr.mxu0 0.0
        %541 = vmatpush1.msra.mxu0 %v250
        %542 = vmatprep.subr.mxu0 0.0
        %543 = vmatpush1.msra.mxu0 %v251
        %544 = vmatprep.subr.mxu0 0.0
        %545 = vmatpush1.msra.mxu0 %v252
        %546 = vmatprep.subr.mxu0 0.0
        %547 = vmatpush1.msra.mxu0 %v253
        %548 = vmatprep.subr.mxu0 0.0
        %549 = vmatpush1.msra.mxu0 %v254
        %550 = vmatprep.subr.mxu0 0.0
        %551 = vmatpush1.msra.mxu0 %v255
        %552 = vmatprep.subr.mxu0 0.0
        %553 = vmatpush1.msra.mxu0 %v256
        %554 = vmatprep.subr.mxu0 0.0
        %555 = vmatpush1.msra.mxu0 %v257
        %556 = vmatprep.subr.mxu0 0.0
        %557 = vmatpush1.msra.mxu0 %v258
        %558 = vmatprep.subr.mxu0 0.0
        %559 = vmatpush1.msra.mxu0 %v259
        %560 = vmatprep.subr.mxu0 0.0
        %561 = vmatpush1.msra.mxu0 %v260
        %562 = vmatprep.subr.mxu0 0.0
        %563 = vmatpush1.msra.mxu0 %v261
        %564 = vmatprep.subr.mxu0 0.0
        %565 = vmatpush1.msra.mxu0 %v262
        %566 = vmatprep.subr.mxu0 0.0
        %567 = vmatpush1.msra.mxu0 %v263
        %568 = vmatprep.subr.mxu0 0.0
        %569 = vmatpush1.msra.mxu0 %v264
        %570 = vmatprep.subr.mxu0 0.0
        %571 = vmatpush1.msra.mxu0 %v265
        %572 = vmatprep.subr.mxu0 0.0
        %573 = vmatpush1.msra.mxu0 0.0
        %574 = vmatprep.subr.mxu0 0.0
        %575 = vmatpush1.msra.mxu0 0.0
        %576 = vmatprep.subr.mxu0 0.0
        %577 = vmatpush1.msra.mxu0 0.0
        %578 = vmatprep.subr.mxu0 0.0
        %579 = vmatpush1.msra.mxu0 0.0
        %580 = vmatprep.subr.mxu0 0.0
        %581 = vmatpush1.msra.mxu0 0.0
        %582 = vmatprep.subr.mxu0 0.0
        %583 = vmatpush1.msra.mxu0 0.0
        %584 = vmatprep.subr.mxu0 0.0
        %585 = vmatpush1.msra.mxu0 0.0
        %586 = vmatprep.subr.mxu0 0.0
        %587 = vmatpush1.msra.mxu0 0.0
        %588 = vmatprep.subr.mxu0 0.0
        %589 = vmatpush1.msra.mxu0 0.0
        %590 = vmatprep.subr.mxu0 0.0
        %591 = vmatpush1.msra.mxu0 0.0
        %592 = vmatprep.subr.mxu0 0.0
        %593 = vmatpush1.msra.mxu0 0.0
        %594 = vmatprep.subr.mxu0 0.0
        %595 = vmatpush1.msra.mxu0 0.0
        %596 = vmatprep.subr.mxu0 0.0
        %597 = vmatpush1.msra.mxu0 0.0
        %598 = vmatprep.subr.mxu0 0.0
        %599 = vmatpush1.msra.mxu0 0.0
        %600 = vmatprep.subr.mxu0 0.0
        %601 = vmatpush1.msra.mxu0 0.0
        %602 = vmatprep.subr.mxu0 0.0
        %603 = vmatpush1.msra.mxu0 0.0
        %604 = vmatprep.mubr.f32.mxu0 0.0
        %605 = vmatmul.mubr.f32.gmra.mrb[0].mxu0 %v218
        %v606 = vpop.f32.mrb[0].mxu0
        %v607 = vadd.f32 %v382, %v606
        %v608 = vpop.f32.mrb[0].mxu0
        %609 = vmatprep.mubr.f32.mxu0 0.0
        %610 = vmatmul.mubr.f32.gmra.mrb[0].mxu0 %v219
        %v611 = vpop.f32.mrb[0].mxu0
        %v612 = vadd.f32 %v387, %v611
        %v613 = vpop.f32.mrb[0].mxu0
        %614 = vmatprep.mubr.f32.mxu0 0.0
        %615 = vmatmul.mubr.f32.gmra.mrb[0].mxu0 %v220
        %v616 = vpop.f32.mrb[0].mxu0
        %v617 = vadd.f32 %v392, %v616
        %v618 = vpop.f32.mrb[0].mxu0
        %619 = vmatprep.mubr.f32.mxu0 0.0
        %620 = vmatmul.mubr.f32.gmra.mrb[0].mxu0 %v221
        %v621 = vpop.f32.mrb[0].mxu0
        %v622 = vadd.f32 %v397, %v621
        %v623 = vpop.f32.mrb[0].mxu0
        %624 = vmatprep.mubr.f32.mxu0 0.0
        %625 = vmatmul.mubr.f32.gmra.mrb[0].mxu0 %v222
        %v626 = vpop.f32.mrb[0].mxu0
        %v627 = vadd.f32 %v402, %v626
        %v628 = vpop.f32.mrb[0].mxu0
        %629 = vmatprep.mubr.f32.mxu0 0.0
        %630 = vmatmul.mubr.f32.gmra.mrb[0].mxu0 %v223
        %v631 = vpop.f32.mrb[0].mxu0
        %v632 = vadd.f32 %v407, %v631
        %v633 = vpop.f32.mrb[0].mxu0
        %634 = vmatprep.mubr.f32.mxu0 0.0
        %635 = vmatmul.mubr.f32.gmra.mrb[0].mxu0 %v224
        %v636 = vpop.f32.mrb[0].mxu0
        %v637 = vadd.f32 %v412, %v636
        %v638 = vpop.f32.mrb[0].mxu0
        %639 = vmatprep.mubr.f32.mxu0 0.0
        %640 = vmatmul.mubr.f32.gmra.mrb[0].mxu0 %v225
        %v641 = vpop.f32.mrb[0].mxu0
        %v642 = vadd.f32 %v417, %v641
        %v643 = vpop.f32.mrb[0].mxu0
        %644 = vmatprep.mubr.f32.mxu0 0.0
        %645 = vmatmul.mubr.f32.gmra.mrb[0].mxu0 %v226
        %v646 = vpop.f32.mrb[0].mxu0
        %v647 = vadd.f32 %v422, %v646
        %v648 = vpop.f32.mrb[0].mxu0
        %649 = vmatprep.mubr.f32.mxu0 0.0
        %650 = vmatmul.mubr.f32.gmra.mrb[0].mxu0 %v227
        %v651 = vpop.f32.mrb[0].mxu0
        %v652 = vadd.f32 %v427, %v651
        %v653 = vpop.f32.mrb[0].mxu0
        %654 = vmatprep.mubr.f32.mxu0 0.0
        %655 = vmatmul.mubr.f32.gmra.mrb[0].mxu0 %v228
        %v656 = vpop.f32.mrb[0].mxu0
        %v657 = vadd.f32 %v432, %v656
        %v658 = vpop.f32.mrb[0].mxu0
        %659 = vmatprep.mubr.f32.mxu0 0.0
        %660 = vmatmul.mubr.f32.gmra.mrb[0].mxu0 %v229
        %v661 = vpop.f32.mrb[0].mxu0
        %v662 = vadd.f32 %v437, %v661
        %v663 = vpop.f32.mrb[0].mxu0
        %664 = vmatprep.mubr.f32.mxu0 0.0
        %665 = vmatmul.mubr.f32.gmra.mrb[0].mxu0 %v230
        %v666 = vpop.f32.mrb[0].mxu0
        %v667 = vadd.f32 %v442, %v666
        %v668 = vpop.f32.mrb[0].mxu0
        %669 = vmatprep.mubr.f32.mxu0 0.0
        %670 = vmatmul.mubr.f32.gmra.mrb[0].mxu0 %v231
        %v671 = vpop.f32.mrb[0].mxu0
        %v672 = vadd.f32 %v447, %v671
        %v673 = vpop.f32.mrb[0].mxu0
        %674 = vmatprep.mubr.f32.mxu0 0.0
        %675 = vmatmul.mubr.f32.gmra.mrb[0].mxu0 %v232
        %v676 = vpop.f32.mrb[0].mxu0
        %v677 = vadd.f32 %v452, %v676
        %v678 = vpop.f32.mrb[0].mxu0
        %679 = vmatprep.mubr.f32.mxu0 0.0
        %680 = vmatmul.mubr.f32.gmra.mrb[0].mxu0 %v233
        %v681 = vpop.f32.mrb[0].mxu0
        %v682 = vadd.f32 %v457, %v681
        %v683 = vpop.f32.mrb[0].mxu0
        %684 = vmatprep.mubr.f32.mxu0 0.0
        %685 = vmatmul.mubr.f32.gmra.mrb[0].mxu0 %v234
        %v686 = vpop.f32.mrb[0].mxu0
        %v687 = vadd.f32 %v462, %v686
        %v688 = vpop.f32.mrb[0].mxu0
        %689 = vmatprep.mubr.f32.mxu0 0.0
        %690 = vmatmul.mubr.f32.gmra.mrb[0].mxu0 %v235
        %v691 = vpop.f32.mrb[0].mxu0
        %v692 = vadd.f32 %v467, %v691
        %v693 = vpop.f32.mrb[0].mxu0
        %694 = vmatprep.mubr.f32.mxu0 0.0
        %695 = vmatmul.mubr.f32.gmra.mrb[0].mxu0 %v236
        %v696 = vpop.f32.mrb[0].mxu0
        %v697 = vadd.f32 %v472, %v696
        %v698 = vpop.f32.mrb[0].mxu0
        %699 = vmatprep.mubr.f32.mxu0 0.0
        %700 = vmatmul.mubr.f32.gmra.mrb[0].mxu0 %v237
        %v701 = vpop.f32.mrb[0].mxu0
        %v702 = vadd.f32 %v477, %v701
        %v703 = vpop.f32.mrb[0].mxu0
        %704 = vmatprep.mubr.f32.mxu0 0.0
        %705 = vmatmul.mubr.f32.gmra.mrb[0].mxu0 %v238
        %v706 = vpop.f32.mrb[0].mxu0
        %v707 = vadd.f32 %v482, %v706
        %v708 = vpop.f32.mrb[0].mxu0
        %709 = vmatprep.mubr.f32.mxu0 0.0
        %710 = vmatmul.mubr.f32.gmra.mrb[0].mxu0 %v239
        %v711 = vpop.f32.mrb[0].mxu0
        %v712 = vadd.f32 %v487, %v711
        %v713 = vpop.f32.mrb[0].mxu0
        %714 = vmatprep.mubr.f32.mxu0 0.0
        %715 = vmatmul.mubr.f32.gmra.mrb[0].mxu0 %v240
        %v716 = vpop.f32.mrb[0].mxu0
        %v717 = vadd.f32 %v492, %v716
        %v718 = vpop.f32.mrb[0].mxu0
        %719 = vmatprep.mubr.f32.mxu0 0.0
        %720 = vmatmul.mubr.f32.gmra.mrb[0].mxu0 %v241
        %v721 = vpop.f32.mrb[0].mxu0
        %v722 = vadd.f32 %v497, %v721
        %v723 = vpop.f32.mrb[0].mxu0
        %724 = vmatprep.mubr.f32.mxu0 0.0
        %725 = vmatmul.mubr.f32.gmra.mrb[0].mxu0 %v242
        %v726 = vpop.f32.mrb[0].mxu0
        %v727 = vadd.f32 %v502, %v726
        %v728 = vpop.f32.mrb[0].mxu0
        %729 = vmatprep.mubr.f32.mxu0 0.0
        %730 = vmatmul.mubr.f32.gmra.mrb[0].mxu0 %v243
        %v731 = vpop.f32.mrb[0].mxu0
        %v732 = vadd.f32 %v507, %v731
        %v733 = vpop.f32.mrb[0].mxu0
        %734 = vmatprep.mubr.f32.mxu0 0.0
        %735 = vmatmul.mubr.f32.gmra.mrb[0].mxu0 %v244
        %v736 = vpop.f32.mrb[0].mxu0
        %v737 = vadd.f32 %v512, %v736
        %v738 = vpop.f32.mrb[0].mxu0
        %739 = vmatprep.mubr.f32.mxu0 0.0
        %740 = vmatmul.mubr.f32.gmra.mrb[0].mxu0 %v245
        %v741 = vpop.f32.mrb[0].mxu0
        %v742 = vadd.f32 %v517, %v741
        %v743 = vpop.f32.mrb[0].mxu0
        %744 = vmatprep.mubr.f32.mxu0 0.0
        %745 = vmatmul.mubr.f32.gmra.mrb[0].mxu0 %v246
        %v746 = vpop.f32.mrb[0].mxu0
        %v747 = vadd.f32 %v522, %v746
        %v748 = vpop.f32.mrb[0].mxu0
        %749 = vmatprep.mubr.f32.mxu0 0.0
        %750 = vmatmul.mubr.f32.gmra.mrb[0].mxu0 %v247
        %v751 = vpop.f32.mrb[0].mxu0
        %v752 = vadd.f32 %v527, %v751
        %v753 = vpop.f32.mrb[0].mxu0
        %754 = vmatprep.mubr.f32.mxu0 0.0
        %755 = vmatmul.mubr.f32.gmra.mrb[0].mxu0 %v248
        %v756 = vpop.f32.mrb[0].mxu0
        %v757 = vadd.f32 %v532, %v756
        %v758 = vpop.f32.mrb[0].mxu0
        %759 = vmatprep.mubr.f32.mxu0 0.0
        %760 = vmatmul.mubr.f32.gmra.mrb[0].mxu0 %v249
        %v761 = vpop.f32.mrb[0].mxu0
        %v762 = vadd.f32 %v537, %v761
        %v763 = vpop.f32.mrb[0].mxu0
        %764 = vdwg.mxu0
        %v765 = vld [vmem:[%s187 + $0x2] sm:$0xff]
        %v766 = vld [vmem:[%s187 + $0xa] sm:$0xff]
        %v767 = vld [vmem:[%s187 + $0x1a] sm:$0xff]
        %v768 = vld [vmem:[%s187 + $0x22] sm:$0xff]
        %v769 = vld [vmem:[%s187 + $0x32] sm:$0xff]
        %v770 = vld [vmem:[%s187 + $0x3a] sm:$0xff]
        %v771 = vld [vmem:[%s187 + $0x4a] sm:$0xff]
        %v772 = vld [vmem:[%s187 + $0x52] sm:$0xff]
        %v773 = vld [vmem:[%s187 + $0x62] sm:$0xff]
        %v774 = vld [vmem:[%s187 + $0x6a] sm:$0xff]
        %v775 = vld [vmem:[%s187 + $0x7a] sm:$0xff]
        %v776 = vld [vmem:[%s187 + $0x82] sm:$0xff]
        %v777 = vld [vmem:[%s187 + $0x92] sm:$0xff]
        %v778 = vld [vmem:[%s187 + $0x9a] sm:$0xff]
        %v779 = vld [vmem:[%s187 + $0xaa] sm:$0xff]
        %v780 = vld [vmem:[%s187 + $0xb2] sm:$0xff]
        %v781 = vld [vmem:[%s187 + $0xc2] sm:$0xff]
        %v782 = vld [vmem:[%s187 + $0xca] sm:$0xff]
        %v783 = vld [vmem:[%s187 + $0xda] sm:$0xff]
        %v784 = vld [vmem:[%s187 + $0xe2] sm:$0xff]
        %v785 = vld [vmem:[%s187 + $0xf2] sm:$0xff]
        %v786 = vld [vmem:[%s187 + $0xfa] sm:$0xff]
        %v787 = vld [vmem:[%s187 + $0x10a] sm:$0xff]
        %v788 = vld [vmem:[%s187 + $0x112] sm:$0xff]
        %v789 = vld [vmem:[%s187 + $0x122] sm:$0xff]
        %v790 = vld [vmem:[%s187 + $0x12a] sm:$0xff]
        %v791 = vld [vmem:[%s187 + $0x13a] sm:$0xff]
        %v792 = vld [vmem:[%s187 + $0x142] sm:$0xff]
        %v793 = vld [vmem:[%s187 + $0x152] sm:$0xff]
        %v794 = vld [vmem:[%s187 + $0x15a] sm:$0xff]
        %v795 = vld [vmem:[%s187 + $0x16a] sm:$0xff]
        %v796 = vld [vmem:[%s187 + $0x172] sm:$0xff]
        %s797 = scalar_lea.vmem [#allocation6], 256
        %v798 = vld [vmem:[%s797] sm:$0xff]
        %v799 = vld [vmem:[%s797 + $0x8] sm:$0xff]
        %v800 = vld [vmem:[%s797 + $0x10] sm:$0xff]
        %v801 = vld [vmem:[%s797 + $0x18] sm:$0xff]
        %v802 = vld [vmem:[%s797 + $0x20] sm:$0xff]
        %v803 = vld [vmem:[%s797 + $0x28] sm:$0xff]
        %v804 = vld [vmem:[%s797 + $0x30] sm:$0xff]
        %v805 = vld [vmem:[%s797 + $0x38] sm:$0xff]
        %v806 = vld [vmem:[%s797 + $0x40] sm:$0xff]
        %v807 = vld [vmem:[%s797 + $0x48] sm:$0xff]
        %v808 = vld [vmem:[%s797 + $0x50] sm:$0xff]
        %v809 = vld [vmem:[%s797 + $0x58] sm:$0xff]
        %v810 = vld [vmem:[%s797 + $0x60] sm:$0xff]
        %v811 = vld [vmem:[%s797 + $0x68] sm:$0xff]
        %v812 = vld [vmem:[%s797 + $0x70] sm:$0xff]
        %v813 = vld [vmem:[%s797 + $0x78] sm:$0xff]
        %814 = vmatprep.subr.mxu0 0.0
        %815 = vmatpush1.msra.mxu0 %v798
        %816 = vmatprep.subr.mxu0 0.0
        %817 = vmatpush1.msra.mxu0 %v799
        %818 = vmatprep.subr.mxu0 0.0
        %819 = vmatpush1.msra.mxu0 %v800
        %820 = vmatprep.subr.mxu0 0.0
        %821 = vmatpush1.msra.mxu0 %v801
        %822 = vmatprep.subr.mxu0 0.0
        %823 = vmatpush1.msra.mxu0 %v802
        %824 = vmatprep.subr.mxu0 0.0
        %825 = vmatpush1.msra.mxu0 %v803
        %826 = vmatprep.subr.mxu0 0.0
        %827 = vmatpush1.msra.mxu0 %v804
        %828 = vmatprep.subr.mxu0 0.0
        %829 = vmatpush1.msra.mxu0 %v805
        %830 = vmatprep.subr.mxu0 0.0
        %831 = vmatpush1.msra.mxu0 %v806
        %832 = vmatprep.subr.mxu0 0.0
        %833 = vmatpush1.msra.mxu0 %v807
        %834 = vmatprep.subr.mxu0 0.0
        %835 = vmatpush1.msra.mxu0 %v808
        %836 = vmatprep.subr.mxu0 0.0
        %837 = vmatpush1.msra.mxu0 %v809
        %838 = vmatprep.subr.mxu0 0.0
        %839 = vmatpush1.msra.mxu0 %v810
        %840 = vmatprep.subr.mxu0 0.0
        %841 = vmatpush1.msra.mxu0 %v811
        %842 = vmatprep.subr.mxu0 0.0
        %843 = vmatpush1.msra.mxu0 %v812
        %844 = vmatprep.subr.mxu0 0.0
        %845 = vmatpush1.msra.mxu0 %v813
        %846 = vmatprep.subr.mxu0 0.0
        %847 = vmatpush1.msra.mxu0 0.0
        %848 = vmatprep.subr.mxu0 0.0
        %849 = vmatpush1.msra.mxu0 0.0
        %850 = vmatprep.subr.mxu0 0.0
        %851 = vmatpush1.msra.mxu0 0.0
        %852 = vmatprep.subr.mxu0 0.0
        %853 = vmatpush1.msra.mxu0 0.0
        %854 = vmatprep.subr.mxu0 0.0
        %855 = vmatpush1.msra.mxu0 0.0
        %856 = vmatprep.subr.mxu0 0.0
        %857 = vmatpush1.msra.mxu0 0.0
        %858 = vmatprep.subr.mxu0 0.0
        %859 = vmatpush1.msra.mxu0 0.0
        %860 = vmatprep.subr.mxu0 0.0
        %861 = vmatpush1.msra.mxu0 0.0
        %862 = vmatprep.subr.mxu0 0.0
        %863 = vmatpush1.msra.mxu0 0.0
        %864 = vmatprep.subr.mxu0 0.0
        %865 = vmatpush1.msra.mxu0 0.0
        %866 = vmatprep.subr.mxu0 0.0
        %867 = vmatpush1.msra.mxu0 0.0
        %868 = vmatprep.subr.mxu0 0.0
        %869 = vmatpush1.msra.mxu0 0.0
        %870 = vmatprep.subr.mxu0 0.0
        %871 = vmatpush1.msra.mxu0 0.0
        %872 = vmatprep.subr.mxu0 0.0
        %873 = vmatpush1.msra.mxu0 0.0
        %874 = vmatprep.subr.mxu0 0.0
        %875 = vmatpush1.msra.mxu0 0.0
        %876 = vmatprep.subr.mxu0 0.0
        %877 = vmatpush1.msra.mxu0 0.0
        %878 = vmatprep.mubr.f32.mxu0 0.0
        %879 = vmatmul.mubr.f32.gmra.mrb[0].mxu0 %v765
        %v880 = vpop.f32.mrb[0].mxu0
        %v881 = vadd.f32 0.0, %v880
        %v882 = vpop.f32.mrb[0].mxu0
        %883 = vmatprep.mubr.f32.mxu0 0.0
        %884 = vmatmul.mubr.f32.gmra.mrb[0].mxu0 %v766
        %v885 = vpop.f32.mrb[0].mxu0
        %v886 = vadd.f32 0.0, %v885
        %v887 = vpop.f32.mrb[0].mxu0
        %888 = vmatprep.mubr.f32.mxu0 0.0
        %889 = vmatmul.mubr.f32.gmra.mrb[0].mxu0 %v767
        %v890 = vpop.f32.mrb[0].mxu0
        %v891 = vadd.f32 0.0, %v890
        %v892 = vpop.f32.mrb[0].mxu0
        %893 = vmatprep.mubr.f32.mxu0 0.0
        %894 = vmatmul.mubr.f32.gmra.mrb[0].mxu0 %v768
        %v895 = vpop.f32.mrb[0].mxu0
        %v896 = vadd.f32 0.0, %v895
        %v897 = vpop.f32.mrb[0].mxu0
        %898 = vmatprep.mubr.f32.mxu0 0.0
        %899 = vmatmul.mubr.f32.gmra.mrb[0].mxu0 %v769
        %v900 = vpop.f32.mrb[0].mxu0
        %v901 = vadd.f32 0.0, %v900
        %v902 = vpop.f32.mrb[0].mxu0
        %903 = vmatprep.mubr.f32.mxu0 0.0
        %904 = vmatmul.mubr.f32.gmra.mrb[0].mxu0 %v770
        %v905 = vpop.f32.mrb[0].mxu0
        %v906 = vadd.f32 0.0, %v905
        %v907 = vpop.f32.mrb[0].mxu0
        %908 = vmatprep.mubr.f32.mxu0 0.0
        %909 = vmatmul.mubr.f32.gmra.mrb[0].mxu0 %v771
        %v910 = vpop.f32.mrb[0].mxu0
        %v911 = vadd.f32 0.0, %v910
        %v912 = vpop.f32.mrb[0].mxu0
        %913 = vmatprep.mubr.f32.mxu0 0.0
        %914 = vmatmul.mubr.f32.gmra.mrb[0].mxu0 %v772
        %v915 = vpop.f32.mrb[0].mxu0
        %v916 = vadd.f32 0.0, %v915
        %v917 = vpop.f32.mrb[0].mxu0
        %918 = vmatprep.mubr.f32.mxu0 0.0
        %919 = vmatmul.mubr.f32.gmra.mrb[0].mxu0 %v773
        %v920 = vpop.f32.mrb[0].mxu0
        %v921 = vadd.f32 0.0, %v920
        %v922 = vpop.f32.mrb[0].mxu0
        %923 = vmatprep.mubr.f32.mxu0 0.0
        %924 = vmatmul.mubr.f32.gmra.mrb[0].mxu0 %v774
        %v925 = vpop.f32.mrb[0].mxu0
        %v926 = vadd.f32 0.0, %v925
        %v927 = vpop.f32.mrb[0].mxu0
        %928 = vmatprep.mubr.f32.mxu0 0.0
        %929 = vmatmul.mubr.f32.gmra.mrb[0].mxu0 %v775
        %v930 = vpop.f32.mrb[0].mxu0
        %v931 = vadd.f32 0.0, %v930
        %v932 = vpop.f32.mrb[0].mxu0
        %933 = vmatprep.mubr.f32.mxu0 0.0
        %934 = vmatmul.mubr.f32.gmra.mrb[0].mxu0 %v776
        %v935 = vpop.f32.mrb[0].mxu0
        %v936 = vadd.f32 0.0, %v935
        %v937 = vpop.f32.mrb[0].mxu0
        %938 = vmatprep.mubr.f32.mxu0 0.0
        %939 = vmatmul.mubr.f32.gmra.mrb[0].mxu0 %v777
        %v940 = vpop.f32.mrb[0].mxu0
        %v941 = vadd.f32 0.0, %v940
        %v942 = vpop.f32.mrb[0].mxu0
        %943 = vmatprep.mubr.f32.mxu0 0.0
        %944 = vmatmul.mubr.f32.gmra.mrb[0].mxu0 %v778
        %v945 = vpop.f32.mrb[0].mxu0
        %v946 = vadd.f32 0.0, %v945
        %v947 = vpop.f32.mrb[0].mxu0
        %948 = vmatprep.mubr.f32.mxu0 0.0
        %949 = vmatmul.mubr.f32.gmra.mrb[0].mxu0 %v779
        %v950 = vpop.f32.mrb[0].mxu0
        %v951 = vadd.f32 0.0, %v950
        %v952 = vpop.f32.mrb[0].mxu0
        %953 = vmatprep.mubr.f32.mxu0 0.0
        %954 = vmatmul.mubr.f32.gmra.mrb[0].mxu0 %v780
        %v955 = vpop.f32.mrb[0].mxu0
        %v956 = vadd.f32 0.0, %v955
        %v957 = vpop.f32.mrb[0].mxu0
        %958 = vmatprep.mubr.f32.mxu0 0.0
        %959 = vmatmul.mubr.f32.gmra.mrb[0].mxu0 %v781
        %v960 = vpop.f32.mrb[0].mxu0
        %v961 = vadd.f32 0.0, %v960
        %v962 = vpop.f32.mrb[0].mxu0
        %963 = vmatprep.mubr.f32.mxu0 0.0
        %964 = vmatmul.mubr.f32.gmra.mrb[0].mxu0 %v782
        %v965 = vpop.f32.mrb[0].mxu0
        %v966 = vadd.f32 0.0, %v965
        %v967 = vpop.f32.mrb[0].mxu0
        %968 = vmatprep.mubr.f32.mxu0 0.0
        %969 = vmatmul.mubr.f32.gmra.mrb[0].mxu0 %v783
        %v970 = vpop.f32.mrb[0].mxu0
        %v971 = vadd.f32 0.0, %v970
        %v972 = vpop.f32.mrb[0].mxu0
        %973 = vmatprep.mubr.f32.mxu0 0.0
        %974 = vmatmul.mubr.f32.gmra.mrb[0].mxu0 %v784
        %v975 = vpop.f32.mrb[0].mxu0
        %v976 = vadd.f32 0.0, %v975
        %v977 = vpop.f32.mrb[0].mxu0
        %978 = vmatprep.mubr.f32.mxu0 0.0
        %979 = vmatmul.mubr.f32.gmra.mrb[0].mxu0 %v785
        %v980 = vpop.f32.mrb[0].mxu0
        %v981 = vadd.f32 0.0, %v980
        %v982 = vpop.f32.mrb[0].mxu0
        %983 = vmatprep.mubr.f32.mxu0 0.0
        %984 = vmatmul.mubr.f32.gmra.mrb[0].mxu0 %v786
        %v985 = vpop.f32.mrb[0].mxu0
        %v986 = vadd.f32 0.0, %v985
        %v987 = vpop.f32.mrb[0].mxu0
        %988 = vmatprep.mubr.f32.mxu0 0.0
        %989 = vmatmul.mubr.f32.gmra.mrb[0].mxu0 %v787
        %v990 = vpop.f32.mrb[0].mxu0
        %v991 = vadd.f32 0.0, %v990
        %v992 = vpop.f32.mrb[0].mxu0
        %993 = vmatprep.mubr.f32.mxu0 0.0
        %994 = vmatmul.mubr.f32.gmra.mrb[0].mxu0 %v788
        %v995 = vpop.f32.mrb[0].mxu0
        %v996 = vadd.f32 0.0, %v995
        %v997 = vpop.f32.mrb[0].mxu0
        %998 = vmatprep.mubr.f32.mxu0 0.0
        %999 = vmatmul.mubr.f32.gmra.mrb[0].mxu0 %v789
        %v1000 = vpop.f32.mrb[0].mxu0
        %v1001 = vadd.f32 0.0, %v1000
        %v1002 = vpop.f32.mrb[0].mxu0
        %1003 = vmatprep.mubr.f32.mxu0 0.0
        %1004 = vmatmul.mubr.f32.gmra.mrb[0].mxu0 %v790
        %v1005 = vpop.f32.mrb[0].mxu0
        %v1006 = vadd.f32 0.0, %v1005
        %v1007 = vpop.f32.mrb[0].mxu0
        %1008 = vmatprep.mubr.f32.mxu0 0.0
        %1009 = vmatmul.mubr.f32.gmra.mrb[0].mxu0 %v791
        %v1010 = vpop.f32.mrb[0].mxu0
        %v1011 = vadd.f32 0.0, %v1010
        %v1012 = vpop.f32.mrb[0].mxu0
        %1013 = vmatprep.mubr.f32.mxu0 0.0
        %1014 = vmatmul.mubr.f32.gmra.mrb[0].mxu0 %v792
        %v1015 = vpop.f32.mrb[0].mxu0
        %v1016 = vadd.f32 0.0, %v1015
        %v1017 = vpop.f32.mrb[0].mxu0
        %1018 = vmatprep.mubr.f32.mxu0 0.0
        %1019 = vmatmul.mubr.f32.gmra.mrb[0].mxu0 %v793
        %v1020 = vpop.f32.mrb[0].mxu0
        %v1021 = vadd.f32 0.0, %v1020
        %v1022 = vpop.f32.mrb[0].mxu0
        %1023 = vmatprep.mubr.f32.mxu0 0.0
        %1024 = vmatmul.mubr.f32.gmra.mrb[0].mxu0 %v794
        %v1025 = vpop.f32.mrb[0].mxu0
        %v1026 = vadd.f32 0.0, %v1025
        %v1027 = vpop.f32.mrb[0].mxu0
        %1028 = vmatprep.mubr.f32.mxu0 0.0
        %1029 = vmatmul.mubr.f32.gmra.mrb[0].mxu0 %v795
        %v1030 = vpop.f32.mrb[0].mxu0
        %v1031 = vadd.f32 0.0, %v1030
        %v1032 = vpop.f32.mrb[0].mxu0
        %1033 = vmatprep.mubr.f32.mxu0 0.0
        %1034 = vmatmul.mubr.f32.gmra.mrb[0].mxu0 %v796
        %v1035 = vpop.f32.mrb[0].mxu0
        %v1036 = vadd.f32 0.0, %v1035
        %v1037 = vpop.f32.mrb[0].mxu0
        %1038 = vdwg.mxu0
        %v1039 = vadd.f32 %v607, %v881
        %v1040 = vadd.f32 %v612, %v886
        %v1041 = vadd.f32 %v617, %v891
        %v1042 = vadd.f32 %v622, %v896
        %v1043 = vadd.f32 %v627, %v901
        %v1044 = vadd.f32 %v632, %v906
        %v1045 = vadd.f32 %v637, %v911
        %v1046 = vadd.f32 %v642, %v916
        %v1047 = vadd.f32 %v647, %v921
        %v1048 = vadd.f32 %v652, %v926
        %v1049 = vadd.f32 %v657, %v931
        %v1050 = vadd.f32 %v662, %v936
        %v1051 = vadd.f32 %v667, %v941
        %v1052 = vadd.f32 %v672, %v946
        %v1053 = vadd.f32 %v677, %v951
        %v1054 = vadd.f32 %v682, %v956
        %v1055 = vadd.f32 %v687, %v961
        %v1056 = vadd.f32 %v692, %v966
        %v1057 = vadd.f32 %v697, %v971
        %v1058 = vadd.f32 %v702, %v976
        %v1059 = vadd.f32 %v707, %v981
        %v1060 = vadd.f32 %v712, %v986
        %v1061 = vadd.f32 %v717, %v991
        %v1062 = vadd.f32 %v722, %v996
        %v1063 = vadd.f32 %v727, %v1001
        %v1064 = vadd.f32 %v732, %v1006
        %v1065 = vadd.f32 %v737, %v1011
        %v1066 = vadd.f32 %v742, %v1016
        %v1067 = vadd.f32 %v747, %v1021
        %v1068 = vadd.f32 %v752, %v1026
        %v1069 = vadd.f32 %v757, %v1031
        %v1070 = vadd.f32 %v762, %v1036
        %s1071 = scalar_lea.vmem %s187, 24 [#allocation3]
        %v1072 = vld [vmem:[%s1071] sm:$0xff]
        %v1073 = vld [vmem:[%s1071 + $0x8] sm:$0xff]
        %v1074 = vld [vmem:[%s1071 + $0x18] sm:$0xff]
        %v1075 = vld [vmem:[%s1071 + $0x20] sm:$0xff]
        %v1076 = vld [vmem:[%s1071 + $0x30] sm:$0xff]
        %v1077 = vld [vmem:[%s1071 + $0x38] sm:$0xff]
        %v1078 = vld [vmem:[%s1071 + $0x48] sm:$0xff]
        %v1079 = vld [vmem:[%s1071 + $0x50] sm:$0xff]
        %v1080 = vld [vmem:[%s1071 + $0x60] sm:$0xff]
        %v1081 = vld [vmem:[%s1071 + $0x68] sm:$0xff]
        %v1082 = vld [vmem:[%s1071 + $0x78] sm:$0xff]
        %v1083 = vld [vmem:[%s1071 + $0x80] sm:$0xff]
        %v1084 = vld [vmem:[%s1071 + $0x90] sm:$0xff]
        %v1085 = vld [vmem:[%s1071 + $0x98] sm:$0xff]
        %v1086 = vld [vmem:[%s1071 + $0xa8] sm:$0xff]
        %v1087 = vld [vmem:[%s1071 + $0xb0] sm:$0xff]
        %v1088 = vld [vmem:[%s1071 + $0xc0] sm:$0xff]
        %v1089 = vld [vmem:[%s1071 + $0xc8] sm:$0xff]
        %v1090 = vld [vmem:[%s1071 + $0xd8] sm:$0xff]
        %v1091 = vld [vmem:[%s1071 + $0xe0] sm:$0xff]
        %v1092 = vld [vmem:[%s1071 + $0xf0] sm:$0xff]
        %v1093 = vld [vmem:[%s1071 + $0xf8] sm:$0xff]
        %v1094 = vld [vmem:[%s1071 + $0x108] sm:$0xff]
        %v1095 = vld [vmem:[%s1071 + $0x110] sm:$0xff]
        %v1096 = vld [vmem:[%s1071 + $0x120] sm:$0xff]
        %v1097 = vld [vmem:[%s1071 + $0x128] sm:$0xff]
        %v1098 = vld [vmem:[%s1071 + $0x138] sm:$0xff]
        %v1099 = vld [vmem:[%s1071 + $0x140] sm:$0xff]
        %v1100 = vld [vmem:[%s1071 + $0x150] sm:$0xff]
        %v1101 = vld [vmem:[%s1071 + $0x158] sm:$0xff]
        %v1102 = vld [vmem:[%s1071 + $0x168] sm:$0xff]
        %v1103 = vld [vmem:[%s1071 + $0x170] sm:$0xff]
        %s1104 = scalar_lea.vmem [#allocation6], 384
        %v1105 = vld [vmem:[%s1104] sm:$0xff]
        %v1106 = vld [vmem:[%s1104 + $0x8] sm:$0xff]
        %v1107 = vld [vmem:[%s1104 + $0x10] sm:$0xff]
        %v1108 = vld [vmem:[%s1104 + $0x18] sm:$0xff]
        %v1109 = vld [vmem:[%s1104 + $0x20] sm:$0xff]
        %v1110 = vld [vmem:[%s1104 + $0x28] sm:$0xff]
        %v1111 = vld [vmem:[%s1104 + $0x30] sm:$0xff]
        %v1112 = vld [vmem:[%s1104 + $0x38] sm:$0xff]
        %v1113 = vld [vmem:[%s1104 + $0x40] sm:$0xff]
        %v1114 = vld [vmem:[%s1104 + $0x48] sm:$0xff]
        %v1115 = vld [vmem:[%s1104 + $0x50] sm:$0xff]
        %v1116 = vld [vmem:[%s1104 + $0x58] sm:$0xff]
        %v1117 = vld [vmem:[%s1104 + $0x60] sm:$0xff]
        %v1118 = vld [vmem:[%s1104 + $0x68] sm:$0xff]
        %v1119 = vld [vmem:[%s1104 + $0x70] sm:$0xff]
        %v1120 = vld [vmem:[%s1104 + $0x78] sm:$0xff]
        %1121 = vmatprep.subr.mxu0 0.0
        %1122 = vmatpush1.msra.mxu0 %v1105
        %1123 = vmatprep.subr.mxu0 0.0
        %1124 = vmatpush1.msra.mxu0 %v1106
        %1125 = vmatprep.subr.mxu0 0.0
        %1126 = vmatpush1.msra.mxu0 %v1107
        %1127 = vmatprep.subr.mxu0 0.0
        %1128 = vmatpush1.msra.mxu0 %v1108
        %1129 = vmatprep.subr.mxu0 0.0
        %1130 = vmatpush1.msra.mxu0 %v1109
        %1131 = vmatprep.subr.mxu0 0.0
        %1132 = vmatpush1.msra.mxu0 %v1110
        %1133 = vmatprep.subr.mxu0 0.0
        %1134 = vmatpush1.msra.mxu0 %v1111
        %1135 = vmatprep.subr.mxu0 0.0
        %1136 = vmatpush1.msra.mxu0 %v1112
        %1137 = vmatprep.subr.mxu0 0.0
        %1138 = vmatpush1.msra.mxu0 %v1113
        %1139 = vmatprep.subr.mxu0 0.0
        %1140 = vmatpush1.msra.mxu0 %v1114
        %1141 = vmatprep.subr.mxu0 0.0
        %1142 = vmatpush1.msra.mxu0 %v1115
        %1143 = vmatprep.subr.mxu0 0.0
        %1144 = vmatpush1.msra.mxu0 %v1116
        %1145 = vmatprep.subr.mxu0 0.0
        %1146 = vmatpush1.msra.mxu0 %v1117
        %1147 = vmatprep.subr.mxu0 0.0
        %1148 = vmatpush1.msra.mxu0 %v1118
        %1149 = vmatprep.subr.mxu0 0.0
        %1150 = vmatpush1.msra.mxu0 %v1119
        %1151 = vmatprep.subr.mxu0 0.0
        %1152 = vmatpush1.msra.mxu0 %v1120
        %1153 = vmatprep.subr.mxu0 0.0
        %1154 = vmatpush1.msra.mxu0 0.0
        %1155 = vmatprep.subr.mxu0 0.0
        %1156 = vmatpush1.msra.mxu0 0.0
        %1157 = vmatprep.subr.mxu0 0.0
        %1158 = vmatpush1.msra.mxu0 0.0
        %1159 = vmatprep.subr.mxu0 0.0
        %1160 = vmatpush1.msra.mxu0 0.0
        %1161 = vmatprep.subr.mxu0 0.0
        %1162 = vmatpush1.msra.mxu0 0.0
        %1163 = vmatprep.subr.mxu0 0.0
        %1164 = vmatpush1.msra.mxu0 0.0
        %1165 = vmatprep.subr.mxu0 0.0
        %1166 = vmatpush1.msra.mxu0 0.0
        %1167 = vmatprep.subr.mxu0 0.0
        %1168 = vmatpush1.msra.mxu0 0.0
        %1169 = vmatprep.subr.mxu0 0.0
        %1170 = vmatpush1.msra.mxu0 0.0
        %1171 = vmatprep.subr.mxu0 0.0
        %1172 = vmatpush1.msra.mxu0 0.0
        %1173 = vmatprep.subr.mxu0 0.0
        %1174 = vmatpush1.msra.mxu0 0.0
        %1175 = vmatprep.subr.mxu0 0.0
        %1176 = vmatpush1.msra.mxu0 0.0
        %1177 = vmatprep.subr.mxu0 0.0
        %1178 = vmatpush1.msra.mxu0 0.0
        %1179 = vmatprep.subr.mxu0 0.0
        %1180 = vmatpush1.msra.mxu0 0.0
        %1181 = vmatprep.subr.mxu0 0.0
        %1182 = vmatpush1.msra.mxu0 0.0
        %1183 = vmatprep.subr.mxu0 0.0
        %1184 = vmatpush1.msra.mxu0 0.0
        %1185 = vmatprep.mubr.f32.mxu0 0.0
        %1186 = vmatmul.mubr.f32.gmra.mrb[0].mxu0 %v1072
        %v1187 = vpop.f32.mrb[0].mxu0
        %v1188 = vadd.f32 0.0, %v1187
        %v1189 = vpop.f32.mrb[0].mxu0
        %1190 = vmatprep.mubr.f32.mxu0 0.0
        %1191 = vmatmul.mubr.f32.gmra.mrb[0].mxu0 %v1073
        %v1192 = vpop.f32.mrb[0].mxu0
        %v1193 = vadd.f32 0.0, %v1192
        %v1194 = vpop.f32.mrb[0].mxu0
        %1195 = vmatprep.mubr.f32.mxu0 0.0
        %1196 = vmatmul.mubr.f32.gmra.mrb[0].mxu0 %v1074
        %v1197 = vpop.f32.mrb[0].mxu0
        %v1198 = vadd.f32 0.0, %v1197
        %v1199 = vpop.f32.mrb[0].mxu0
        %1200 = vmatprep.mubr.f32.mxu0 0.0
        %1201 = vmatmul.mubr.f32.gmra.mrb[0].mxu0 %v1075
        %v1202 = vpop.f32.mrb[0].mxu0
        %v1203 = vadd.f32 0.0, %v1202
        %v1204 = vpop.f32.mrb[0].mxu0
        %1205 = vmatprep.mubr.f32.mxu0 0.0
        %1206 = vmatmul.mubr.f32.gmra.mrb[0].mxu0 %v1076
        %v1207 = vpop.f32.mrb[0].mxu0
        %v1208 = vadd.f32 0.0, %v1207
        %v1209 = vpop.f32.mrb[0].mxu0
        %1210 = vmatprep.mubr.f32.mxu0 0.0
        %1211 = vmatmul.mubr.f32.gmra.mrb[0].mxu0 %v1077
        %v1212 = vpop.f32.mrb[0].mxu0
        %v1213 = vadd.f32 0.0, %v1212
        %v1214 = vpop.f32.mrb[0].mxu0
        %1215 = vmatprep.mubr.f32.mxu0 0.0
        %1216 = vmatmul.mubr.f32.gmra.mrb[0].mxu0 %v1078
        %v1217 = vpop.f32.mrb[0].mxu0
        %v1218 = vadd.f32 0.0, %v1217
        %v1219 = vpop.f32.mrb[0].mxu0
        %1220 = vmatprep.mubr.f32.mxu0 0.0
        %1221 = vmatmul.mubr.f32.gmra.mrb[0].mxu0 %v1079
        %v1222 = vpop.f32.mrb[0].mxu0
        %v1223 = vadd.f32 0.0, %v1222
        %v1224 = vpop.f32.mrb[0].mxu0
        %1225 = vmatprep.mubr.f32.mxu0 0.0
        %1226 = vmatmul.mubr.f32.gmra.mrb[0].mxu0 %v1080
        %v1227 = vpop.f32.mrb[0].mxu0
        %v1228 = vadd.f32 0.0, %v1227
        %v1229 = vpop.f32.mrb[0].mxu0
        %1230 = vmatprep.mubr.f32.mxu0 0.0
        %1231 = vmatmul.mubr.f32.gmra.mrb[0].mxu0 %v1081
        %v1232 = vpop.f32.mrb[0].mxu0
        %v1233 = vadd.f32 0.0, %v1232
        %v1234 = vpop.f32.mrb[0].mxu0
        %1235 = vmatprep.mubr.f32.mxu0 0.0
        %1236 = vmatmul.mubr.f32.gmra.mrb[0].mxu0 %v1082
        %v1237 = vpop.f32.mrb[0].mxu0
        %v1238 = vadd.f32 0.0, %v1237
        %v1239 = vpop.f32.mrb[0].mxu0
        %1240 = vmatprep.mubr.f32.mxu0 0.0
        %1241 = vmatmul.mubr.f32.gmra.mrb[0].mxu0 %v1083
        %v1242 = vpop.f32.mrb[0].mxu0
        %v1243 = vadd.f32 0.0, %v1242
        %v1244 = vpop.f32.mrb[0].mxu0
        %1245 = vmatprep.mubr.f32.mxu0 0.0
        %1246 = vmatmul.mubr.f32.gmra.mrb[0].mxu0 %v1084
        %v1247 = vpop.f32.mrb[0].mxu0
        %v1248 = vadd.f32 0.0, %v1247
        %v1249 = vpop.f32.mrb[0].mxu0
        %1250 = vmatprep.mubr.f32.mxu0 0.0
        %1251 = vmatmul.mubr.f32.gmra.mrb[0].mxu0 %v1085
        %v1252 = vpop.f32.mrb[0].mxu0
        %v1253 = vadd.f32 0.0, %v1252
        %v1254 = vpop.f32.mrb[0].mxu0
        %1255 = vmatprep.mubr.f32.mxu0 0.0
        %1256 = vmatmul.mubr.f32.gmra.mrb[0].mxu0 %v1086
        %v1257 = vpop.f32.mrb[0].mxu0
        %v1258 = vadd.f32 0.0, %v1257
        %v1259 = vpop.f32.mrb[0].mxu0
        %1260 = vmatprep.mubr.f32.mxu0 0.0
        %1261 = vmatmul.mubr.f32.gmra.mrb[0].mxu0 %v1087
        %v1262 = vpop.f32.mrb[0].mxu0
        %v1263 = vadd.f32 0.0, %v1262
        %v1264 = vpop.f32.mrb[0].mxu0
        %1265 = vmatprep.mubr.f32.mxu0 0.0
        %1266 = vmatmul.mubr.f32.gmra.mrb[0].mxu0 %v1088
        %v1267 = vpop.f32.mrb[0].mxu0
        %v1268 = vadd.f32 0.0, %v1267
        %v1269 = vpop.f32.mrb[0].mxu0
        %1270 = vmatprep.mubr.f32.mxu0 0.0
        %1271 = vmatmul.mubr.f32.gmra.mrb[0].mxu0 %v1089
        %v1272 = vpop.f32.mrb[0].mxu0
        %v1273 = vadd.f32 0.0, %v1272
        %v1274 = vpop.f32.mrb[0].mxu0
        %1275 = vmatprep.mubr.f32.mxu0 0.0
        %1276 = vmatmul.mubr.f32.gmra.mrb[0].mxu0 %v1090
        %v1277 = vpop.f32.mrb[0].mxu0
        %v1278 = vadd.f32 0.0, %v1277
        %v1279 = vpop.f32.mrb[0].mxu0
        %1280 = vmatprep.mubr.f32.mxu0 0.0
        %1281 = vmatmul.mubr.f32.gmra.mrb[0].mxu0 %v1091
        %v1282 = vpop.f32.mrb[0].mxu0
        %v1283 = vadd.f32 0.0, %v1282
        %v1284 = vpop.f32.mrb[0].mxu0
        %1285 = vmatprep.mubr.f32.mxu0 0.0
        %1286 = vmatmul.mubr.f32.gmra.mrb[0].mxu0 %v1092
        %v1287 = vpop.f32.mrb[0].mxu0
        %v1288 = vadd.f32 0.0, %v1287
        %v1289 = vpop.f32.mrb[0].mxu0
        %1290 = vmatprep.mubr.f32.mxu0 0.0
        %1291 = vmatmul.mubr.f32.gmra.mrb[0].mxu0 %v1093
        %v1292 = vpop.f32.mrb[0].mxu0
        %v1293 = vadd.f32 0.0, %v1292
        %v1294 = vpop.f32.mrb[0].mxu0
        %1295 = vmatprep.mubr.f32.mxu0 0.0
        %1296 = vmatmul.mubr.f32.gmra.mrb[0].mxu0 %v1094
        %v1297 = vpop.f32.mrb[0].mxu0
        %v1298 = vadd.f32 0.0, %v1297
        %v1299 = vpop.f32.mrb[0].mxu0
        %1300 = vmatprep.mubr.f32.mxu0 0.0
        %1301 = vmatmul.mubr.f32.gmra.mrb[0].mxu0 %v1095
        %v1302 = vpop.f32.mrb[0].mxu0
        %v1303 = vadd.f32 0.0, %v1302
        %v1304 = vpop.f32.mrb[0].mxu0
        %1305 = vmatprep.mubr.f32.mxu0 0.0
        %1306 = vmatmul.mubr.f32.gmra.mrb[0].mxu0 %v1096
        %v1307 = vpop.f32.mrb[0].mxu0
        %v1308 = vadd.f32 0.0, %v1307
        %v1309 = vpop.f32.mrb[0].mxu0
        %1310 = vmatprep.mubr.f32.mxu0 0.0
        %1311 = vmatmul.mubr.f32.gmra.mrb[0].mxu0 %v1097
        %v1312 = vpop.f32.mrb[0].mxu0
        %v1313 = vadd.f32 0.0, %v1312
        %v1314 = vpop.f32.mrb[0].mxu0
        %1315 = vmatprep.mubr.f32.mxu0 0.0
        %1316 = vmatmul.mubr.f32.gmra.mrb[0].mxu0 %v1098
        %v1317 = vpop.f32.mrb[0].mxu0
        %v1318 = vadd.f32 0.0, %v1317
        %v1319 = vpop.f32.mrb[0].mxu0
        %1320 = vmatprep.mubr.f32.mxu0 0.0
        %1321 = vmatmul.mubr.f32.gmra.mrb[0].mxu0 %v1099
        %v1322 = vpop.f32.mrb[0].mxu0
        %v1323 = vadd.f32 0.0, %v1322
        %v1324 = vpop.f32.mrb[0].mxu0
        %1325 = vmatprep.mubr.f32.mxu0 0.0
        %1326 = vmatmul.mubr.f32.gmra.mrb[0].mxu0 %v1100
        %v1327 = vpop.f32.mrb[0].mxu0
        %v1328 = vadd.f32 0.0, %v1327
        %v1329 = vpop.f32.mrb[0].mxu0
        %1330 = vmatprep.mubr.f32.mxu0 0.0
        %1331 = vmatmul.mubr.f32.gmra.mrb[0].mxu0 %v1101
        %v1332 = vpop.f32.mrb[0].mxu0
        %v1333 = vadd.f32 0.0, %v1332
        %v1334 = vpop.f32.mrb[0].mxu0
        %1335 = vmatprep.mubr.f32.mxu0 0.0
        %1336 = vmatmul.mubr.f32.gmra.mrb[0].mxu0 %v1102
        %v1337 = vpop.f32.mrb[0].mxu0
        %v1338 = vadd.f32 0.0, %v1337
        %v1339 = vpop.f32.mrb[0].mxu0
        %1340 = vmatprep.mubr.f32.mxu0 0.0
        %1341 = vmatmul.mubr.f32.gmra.mrb[0].mxu0 %v1103
        %v1342 = vpop.f32.mrb[0].mxu0
        %v1343 = vadd.f32 0.0, %v1342
        %v1344 = vpop.f32.mrb[0].mxu0
        %1345 = vdwg.mxu0
        %v1346 = vadd.f32 %v1039, %v1188
        %v1347 = vadd.f32 %v1040, %v1193
        %v1348 = vadd.f32 %v1041, %v1198
        %v1349 = vadd.f32 %v1042, %v1203
        %v1350 = vadd.f32 %v1043, %v1208
        %v1351 = vadd.f32 %v1044, %v1213
        %v1352 = vadd.f32 %v1045, %v1218
        %v1353 = vadd.f32 %v1046, %v1223
        %v1354 = vadd.f32 %v1047, %v1228
        %v1355 = vadd.f32 %v1048, %v1233
        %v1356 = vadd.f32 %v1049, %v1238
        %v1357 = vadd.f32 %v1050, %v1243
        %v1358 = vadd.f32 %v1051, %v1248
        %v1359 = vadd.f32 %v1052, %v1253
        %v1360 = vadd.f32 %v1053, %v1258
        %v1361 = vadd.f32 %v1054, %v1263
        %v1362 = vadd.f32 %v1055, %v1268
        %v1363 = vadd.f32 %v1056, %v1273
        %v1364 = vadd.f32 %v1057, %v1278
        %v1365 = vadd.f32 %v1058, %v1283
        %v1366 = vadd.f32 %v1059, %v1288
        %v1367 = vadd.f32 %v1060, %v1293
        %v1368 = vadd.f32 %v1061, %v1298
        %v1369 = vadd.f32 %v1062, %v1303
        %v1370 = vadd.f32 %v1063, %v1308
        %v1371 = vadd.f32 %v1064, %v1313
        %v1372 = vadd.f32 %v1065, %v1318
        %v1373 = vadd.f32 %v1066, %v1323
        %v1374 = vadd.f32 %v1067, %v1328
        %v1375 = vadd.f32 %v1068, %v1333
        %v1376 = vadd.f32 %v1069, %v1338
        %v1377 = vadd.f32 %v1070, %v1343
        %v1378 = vld [vmem:[%s1071 + $0x1] sm:$0xff]
        %v1379 = vld [vmem:[%s1071 + $0x9] sm:$0xff]
        %v1380 = vld [vmem:[%s1071 + $0x19] sm:$0xff]
        %v1381 = vld [vmem:[%s1071 + $0x21] sm:$0xff]
        %v1382 = vld [vmem:[%s1071 + $0x31] sm:$0xff]
        %v1383 = vld [vmem:[%s1071 + $0x39] sm:$0xff]
        %v1384 = vld [vmem:[%s1071 + $0x49] sm:$0xff]
        %v1385 = vld [vmem:[%s1071 + $0x51] sm:$0xff]
        %v1386 = vld [vmem:[%s1071 + $0x61] sm:$0xff]
        %v1387 = vld [vmem:[%s1071 + $0x69] sm:$0xff]
        %v1388 = vld [vmem:[%s1071 + $0x79] sm:$0xff]
        %v1389 = vld [vmem:[%s1071 + $0x81] sm:$0xff]
        %v1390 = vld [vmem:[%s1071 + $0x91] sm:$0xff]
        %v1391 = vld [vmem:[%s1071 + $0x99] sm:$0xff]
        %v1392 = vld [vmem:[%s1071 + $0xa9] sm:$0xff]
        %v1393 = vld [vmem:[%s1071 + $0xb1] sm:$0xff]
        %v1394 = vld [vmem:[%s1071 + $0xc1] sm:$0xff]
        %v1395 = vld [vmem:[%s1071 + $0xc9] sm:$0xff]
        %v1396 = vld [vmem:[%s1071 + $0xd9] sm:$0xff]
        %v1397 = vld [vmem:[%s1071 + $0xe1] sm:$0xff]
        %v1398 = vld [vmem:[%s1071 + $0xf1] sm:$0xff]
        %v1399 = vld [vmem:[%s1071 + $0xf9] sm:$0xff]
        %v1400 = vld [vmem:[%s1071 + $0x109] sm:$0xff]
        %v1401 = vld [vmem:[%s1071 + $0x111] sm:$0xff]
        %v1402 = vld [vmem:[%s1071 + $0x121] sm:$0xff]
        %v1403 = vld [vmem:[%s1071 + $0x129] sm:$0xff]
        %v1404 = vld [vmem:[%s1071 + $0x139] sm:$0xff]
        %v1405 = vld [vmem:[%s1071 + $0x141] sm:$0xff]
        %v1406 = vld [vmem:[%s1071 + $0x151] sm:$0xff]
        %v1407 = vld [vmem:[%s1071 + $0x159] sm:$0xff]
        %v1408 = vld [vmem:[%s1071 + $0x169] sm:$0xff]
        %v1409 = vld [vmem:[%s1071 + $0x171] sm:$0xff]
        %s1410 = scalar_lea.vmem [#allocation6], 512
        %v1411 = vld [vmem:[%s1410] sm:$0xff]
        %v1412 = vld [vmem:[%s1410 + $0x8] sm:$0xff]
        %v1413 = vld [vmem:[%s1410 + $0x10] sm:$0xff]
        %v1414 = vld [vmem:[%s1410 + $0x18] sm:$0xff]
        %v1415 = vld [vmem:[%s1410 + $0x20] sm:$0xff]
        %v1416 = vld [vmem:[%s1410 + $0x28] sm:$0xff]
        %v1417 = vld [vmem:[%s1410 + $0x30] sm:$0xff]
        %v1418 = vld [vmem:[%s1410 + $0x38] sm:$0xff]
        %v1419 = vld [vmem:[%s1410 + $0x40] sm:$0xff]
        %v1420 = vld [vmem:[%s1410 + $0x48] sm:$0xff]
        %v1421 = vld [vmem:[%s1410 + $0x50] sm:$0xff]
        %v1422 = vld [vmem:[%s1410 + $0x58] sm:$0xff]
        %v1423 = vld [vmem:[%s1410 + $0x60] sm:$0xff]
        %v1424 = vld [vmem:[%s1410 + $0x68] sm:$0xff]
        %v1425 = vld [vmem:[%s1410 + $0x70] sm:$0xff]
        %v1426 = vld [vmem:[%s1410 + $0x78] sm:$0xff]
        %1427 = vmatprep.subr.mxu0 0.0
        %1428 = vmatpush1.msra.mxu0 %v1411
        %1429 = vmatprep.subr.mxu0 0.0
        %1430 = vmatpush1.msra.mxu0 %v1412
        %1431 = vmatprep.subr.mxu0 0.0
        %1432 = vmatpush1.msra.mxu0 %v1413
        %1433 = vmatprep.subr.mxu0 0.0
        %1434 = vmatpush1.msra.mxu0 %v1414
        %1435 = vmatprep.subr.mxu0 0.0
        %1436 = vmatpush1.msra.mxu0 %v1415
        %1437 = vmatprep.subr.mxu0 0.0
        %1438 = vmatpush1.msra.mxu0 %v1416
        %1439 = vmatprep.subr.mxu0 0.0
        %1440 = vmatpush1.msra.mxu0 %v1417
        %1441 = vmatprep.subr.mxu0 0.0
        %1442 = vmatpush1.msra.mxu0 %v1418
        %1443 = vmatprep.subr.mxu0 0.0
        %1444 = vmatpush1.msra.mxu0 %v1419
        %1445 = vmatprep.subr.mxu0 0.0
        %1446 = vmatpush1.msra.mxu0 %v1420
        %1447 = vmatprep.subr.mxu0 0.0
        %1448 = vmatpush1.msra.mxu0 %v1421
        %1449 = vmatprep.subr.mxu0 0.0
        %1450 = vmatpush1.msra.mxu0 %v1422
        %1451 = vmatprep.subr.mxu0 0.0
        %1452 = vmatpush1.msra.mxu0 %v1423
        %1453 = vmatprep.subr.mxu0 0.0
        %1454 = vmatpush1.msra.mxu0 %v1424
        %1455 = vmatprep.subr.mxu0 0.0
        %1456 = vmatpush1.msra.mxu0 %v1425
        %1457 = vmatprep.subr.mxu0 0.0
        %1458 = vmatpush1.msra.mxu0 %v1426
        %1459 = vmatprep.subr.mxu0 0.0
        %1460 = vmatpush1.msra.mxu0 0.0
        %1461 = vmatprep.subr.mxu0 0.0
        %1462 = vmatpush1.msra.mxu0 0.0
        %1463 = vmatprep.subr.mxu0 0.0
        %1464 = vmatpush1.msra.mxu0 0.0
        %1465 = vmatprep.subr.mxu0 0.0
        %1466 = vmatpush1.msra.mxu0 0.0
        %1467 = vmatprep.subr.mxu0 0.0
        %1468 = vmatpush1.msra.mxu0 0.0
        %1469 = vmatprep.subr.mxu0 0.0
        %1470 = vmatpush1.msra.mxu0 0.0
        %1471 = vmatprep.subr.mxu0 0.0
        %1472 = vmatpush1.msra.mxu0 0.0
        %1473 = vmatprep.subr.mxu0 0.0
        %1474 = vmatpush1.msra.mxu0 0.0
        %1475 = vmatprep.subr.mxu0 0.0
        %1476 = vmatpush1.msra.mxu0 0.0
        %1477 = vmatprep.subr.mxu0 0.0
        %1478 = vmatpush1.msra.mxu0 0.0
        %1479 = vmatprep.subr.mxu0 0.0
        %1480 = vmatpush1.msra.mxu0 0.0
        %1481 = vmatprep.subr.mxu0 0.0
        %1482 = vmatpush1.msra.mxu0 0.0
        %1483 = vmatprep.subr.mxu0 0.0
        %1484 = vmatpush1.msra.mxu0 0.0
        %1485 = vmatprep.subr.mxu0 0.0
        %1486 = vmatpush1.msra.mxu0 0.0
        %1487 = vmatprep.subr.mxu0 0.0
        %1488 = vmatpush1.msra.mxu0 0.0
        %1489 = vmatprep.subr.mxu0 0.0
        %1490 = vmatpush1.msra.mxu0 0.0
        %1491 = vmatprep.mubr.f32.mxu0 0.0
        %1492 = vmatmul.mubr.f32.gmra.mrb[0].mxu0 %v1378
        %v1493 = vpop.f32.mrb[0].mxu0
        %v1494 = vadd.f32 0.0, %v1493
        %v1495 = vpop.f32.mrb[0].mxu0
        %1496 = vmatprep.mubr.f32.mxu0 0.0
        %1497 = vmatmul.mubr.f32.gmra.mrb[0].mxu0 %v1379
        %v1498 = vpop.f32.mrb[0].mxu0
        %v1499 = vadd.f32 0.0, %v1498
        %v1500 = vpop.f32.mrb[0].mxu0
        %1501 = vmatprep.mubr.f32.mxu0 0.0
        %1502 = vmatmul.mubr.f32.gmra.mrb[0].mxu0 %v1380
        %v1503 = vpop.f32.mrb[0].mxu0
        %v1504 = vadd.f32 0.0, %v1503
        %v1505 = vpop.f32.mrb[0].mxu0
        %1506 = vmatprep.mubr.f32.mxu0 0.0
        %1507 = vmatmul.mubr.f32.gmra.mrb[0].mxu0 %v1381
        %v1508 = vpop.f32.mrb[0].mxu0
        %v1509 = vadd.f32 0.0, %v1508
        %v1510 = vpop.f32.mrb[0].mxu0
        %1511 = vmatprep.mubr.f32.mxu0 0.0
        %1512 = vmatmul.mubr.f32.gmra.mrb[0].mxu0 %v1382
        %v1513 = vpop.f32.mrb[0].mxu0
        %v1514 = vadd.f32 0.0, %v1513
        %v1515 = vpop.f32.mrb[0].mxu0
        %1516 = vmatprep.mubr.f32.mxu0 0.0
        %1517 = vmatmul.mubr.f32.gmra.mrb[0].mxu0 %v1383
        %v1518 = vpop.f32.mrb[0].mxu0
        %v1519 = vadd.f32 0.0, %v1518
        %v1520 = vpop.f32.mrb[0].mxu0
        %1521 = vmatprep.mubr.f32.mxu0 0.0
        %1522 = vmatmul.mubr.f32.gmra.mrb[0].mxu0 %v1384
        %v1523 = vpop.f32.mrb[0].mxu0
        %v1524 = vadd.f32 0.0, %v1523
        %v1525 = vpop.f32.mrb[0].mxu0
        %1526 = vmatprep.mubr.f32.mxu0 0.0
        %1527 = vmatmul.mubr.f32.gmra.mrb[0].mxu0 %v1385
        %v1528 = vpop.f32.mrb[0].mxu0
        %v1529 = vadd.f32 0.0, %v1528
        %v1530 = vpop.f32.mrb[0].mxu0
        %1531 = vmatprep.mubr.f32.mxu0 0.0
        %1532 = vmatmul.mubr.f32.gmra.mrb[0].mxu0 %v1386
        %v1533 = vpop.f32.mrb[0].mxu0
        %v1534 = vadd.f32 0.0, %v1533
        %v1535 = vpop.f32.mrb[0].mxu0
        %1536 = vmatprep.mubr.f32.mxu0 0.0
        %1537 = vmatmul.mubr.f32.gmra.mrb[0].mxu0 %v1387
        %v1538 = vpop.f32.mrb[0].mxu0
        %v1539 = vadd.f32 0.0, %v1538
        %v1540 = vpop.f32.mrb[0].mxu0
        %1541 = vmatprep.mubr.f32.mxu0 0.0
        %1542 = vmatmul.mubr.f32.gmra.mrb[0].mxu0 %v1388
        %v1543 = vpop.f32.mrb[0].mxu0
        %v1544 = vadd.f32 0.0, %v1543
        %v1545 = vpop.f32.mrb[0].mxu0
        %1546 = vmatprep.mubr.f32.mxu0 0.0
        %1547 = vmatmul.mubr.f32.gmra.mrb[0].mxu0 %v1389
        %v1548 = vpop.f32.mrb[0].mxu0
        %v1549 = vadd.f32 0.0, %v1548
        %v1550 = vpop.f32.mrb[0].mxu0
        %1551 = vmatprep.mubr.f32.mxu0 0.0
        %1552 = vmatmul.mubr.f32.gmra.mrb[0].mxu0 %v1390
        %v1553 = vpop.f32.mrb[0].mxu0
        %v1554 = vadd.f32 0.0, %v1553
        %v1555 = vpop.f32.mrb[0].mxu0
        %1556 = vmatprep.mubr.f32.mxu0 0.0
        %1557 = vmatmul.mubr.f32.gmra.mrb[0].mxu0 %v1391
        %v1558 = vpop.f32.mrb[0].mxu0
        %v1559 = vadd.f32 0.0, %v1558
        %v1560 = vpop.f32.mrb[0].mxu0
        %1561 = vmatprep.mubr.f32.mxu0 0.0
        %1562 = vmatmul.mubr.f32.gmra.mrb[0].mxu0 %v1392
        %v1563 = vpop.f32.mrb[0].mxu0
        %v1564 = vadd.f32 0.0, %v1563
        %v1565 = vpop.f32.mrb[0].mxu0
        %1566 = vmatprep.mubr.f32.mxu0 0.0
        %1567 = vmatmul.mubr.f32.gmra.mrb[0].mxu0 %v1393
        %v1568 = vpop.f32.mrb[0].mxu0
        %v1569 = vadd.f32 0.0, %v1568
        %v1570 = vpop.f32.mrb[0].mxu0
        %1571 = vmatprep.mubr.f32.mxu0 0.0
        %1572 = vmatmul.mubr.f32.gmra.mrb[0].mxu0 %v1394
        %v1573 = vpop.f32.mrb[0].mxu0
        %v1574 = vadd.f32 0.0, %v1573
        %v1575 = vpop.f32.mrb[0].mxu0
        %1576 = vmatprep.mubr.f32.mxu0 0.0
        %1577 = vmatmul.mubr.f32.gmra.mrb[0].mxu0 %v1395
        %v1578 = vpop.f32.mrb[0].mxu0
        %v1579 = vadd.f32 0.0, %v1578
        %v1580 = vpop.f32.mrb[0].mxu0
        %1581 = vmatprep.mubr.f32.mxu0 0.0
        %1582 = vmatmul.mubr.f32.gmra.mrb[0].mxu0 %v1396
        %v1583 = vpop.f32.mrb[0].mxu0
        %v1584 = vadd.f32 0.0, %v1583
        %v1585 = vpop.f32.mrb[0].mxu0
        %1586 = vmatprep.mubr.f32.mxu0 0.0
        %1587 = vmatmul.mubr.f32.gmra.mrb[0].mxu0 %v1397
        %v1588 = vpop.f32.mrb[0].mxu0
        %v1589 = vadd.f32 0.0, %v1588
        %v1590 = vpop.f32.mrb[0].mxu0
        %1591 = vmatprep.mubr.f32.mxu0 0.0
        %1592 = vmatmul.mubr.f32.gmra.mrb[0].mxu0 %v1398
        %v1593 = vpop.f32.mrb[0].mxu0
        %v1594 = vadd.f32 0.0, %v1593
        %v1595 = vpop.f32.mrb[0].mxu0
        %1596 = vmatprep.mubr.f32.mxu0 0.0
        %1597 = vmatmul.mubr.f32.gmra.mrb[0].mxu0 %v1399
        %v1598 = vpop.f32.mrb[0].mxu0
        %v1599 = vadd.f32 0.0, %v1598
        %v1600 = vpop.f32.mrb[0].mxu0
        %1601 = vmatprep.mubr.f32.mxu0 0.0
        %1602 = vmatmul.mubr.f32.gmra.mrb[0].mxu0 %v1400
        %v1603 = vpop.f32.mrb[0].mxu0
        %v1604 = vadd.f32 0.0, %v1603
        %v1605 = vpop.f32.mrb[0].mxu0
        %1606 = vmatprep.mubr.f32.mxu0 0.0
        %1607 = vmatmul.mubr.f32.gmra.mrb[0].mxu0 %v1401
        %v1608 = vpop.f32.mrb[0].mxu0
        %v1609 = vadd.f32 0.0, %v1608
        %v1610 = vpop.f32.mrb[0].mxu0
        %1611 = vmatprep.mubr.f32.mxu0 0.0
        %1612 = vmatmul.mubr.f32.gmra.mrb[0].mxu0 %v1402
        %v1613 = vpop.f32.mrb[0].mxu0
        %v1614 = vadd.f32 0.0, %v1613
        %v1615 = vpop.f32.mrb[0].mxu0
        %1616 = vmatprep.mubr.f32.mxu0 0.0
        %1617 = vmatmul.mubr.f32.gmra.mrb[0].mxu0 %v1403
        %v1618 = vpop.f32.mrb[0].mxu0
        %v1619 = vadd.f32 0.0, %v1618
        %v1620 = vpop.f32.mrb[0].mxu0
        %1621 = vmatprep.mubr.f32.mxu0 0.0
        %1622 = vmatmul.mubr.f32.gmra.mrb[0].mxu0 %v1404
        %v1623 = vpop.f32.mrb[0].mxu0
        %v1624 = vadd.f32 0.0, %v1623
        %v1625 = vpop.f32.mrb[0].mxu0
        %1626 = vmatprep.mubr.f32.mxu0 0.0
        %1627 = vmatmul.mubr.f32.gmra.mrb[0].mxu0 %v1405
        %v1628 = vpop.f32.mrb[0].mxu0
        %v1629 = vadd.f32 0.0, %v1628
        %v1630 = vpop.f32.mrb[0].mxu0
        %1631 = vmatprep.mubr.f32.mxu0 0.0
        %1632 = vmatmul.mubr.f32.gmra.mrb[0].mxu0 %v1406
        %v1633 = vpop.f32.mrb[0].mxu0
        %v1634 = vadd.f32 0.0, %v1633
        %v1635 = vpop.f32.mrb[0].mxu0
        %1636 = vmatprep.mubr.f32.mxu0 0.0
        %1637 = vmatmul.mubr.f32.gmra.mrb[0].mxu0 %v1407
        %v1638 = vpop.f32.mrb[0].mxu0
        %v1639 = vadd.f32 0.0, %v1638
        %v1640 = vpop.f32.mrb[0].mxu0
        %1641 = vmatprep.mubr.f32.mxu0 0.0
        %1642 = vmatmul.mubr.f32.gmra.mrb[0].mxu0 %v1408
        %v1643 = vpop.f32.mrb[0].mxu0
        %v1644 = vadd.f32 0.0, %v1643
        %v1645 = vpop.f32.mrb[0].mxu0
        %1646 = vmatprep.mubr.f32.mxu0 0.0
        %1647 = vmatmul.mubr.f32.gmra.mrb[0].mxu0 %v1409
        %v1648 = vpop.f32.mrb[0].mxu0
        %v1649 = vadd.f32 0.0, %v1648
        %v1650 = vpop.f32.mrb[0].mxu0
        %1651 = vdwg.mxu0
        %v1652 = vadd.f32 %v1346, %v1494
        %v1653 = vadd.f32 %v1347, %v1499
        %v1654 = vadd.f32 %v1348, %v1504
        %v1655 = vadd.f32 %v1349, %v1509
        %v1656 = vadd.f32 %v1350, %v1514
        %v1657 = vadd.f32 %v1351, %v1519
        %v1658 = vadd.f32 %v1352, %v1524
        %v1659 = vadd.f32 %v1353, %v1529
        %v1660 = vadd.f32 %v1354, %v1534
        %v1661 = vadd.f32 %v1355, %v1539
        %v1662 = vadd.f32 %v1356, %v1544
        %v1663 = vadd.f32 %v1357, %v1549
        %v1664 = vadd.f32 %v1358, %v1554
        %v1665 = vadd.f32 %v1359, %v1559
        %v1666 = vadd.f32 %v1360, %v1564
        %v1667 = vadd.f32 %v1361, %v1569
        %v1668 = vadd.f32 %v1362, %v1574
        %v1669 = vadd.f32 %v1363, %v1579
        %v1670 = vadd.f32 %v1364, %v1584
        %v1671 = vadd.f32 %v1365, %v1589
        %v1672 = vadd.f32 %v1366, %v1594
        %v1673 = vadd.f32 %v1367, %v1599
        %v1674 = vadd.f32 %v1368, %v1604
        %v1675 = vadd.f32 %v1369, %v1609
        %v1676 = vadd.f32 %v1370, %v1614
        %v1677 = vadd.f32 %v1371, %v1619
        %v1678 = vadd.f32 %v1372, %v1624
        %v1679 = vadd.f32 %v1373, %v1629
        %v1680 = vadd.f32 %v1374, %v1634
        %v1681 = vadd.f32 %v1375, %v1639
        %v1682 = vadd.f32 %v1376, %v1644
        %v1683 = vadd.f32 %v1377, %v1649
        %v1684 = vld [vmem:[%s1071 + $0x2] sm:$0xff]
        %v1685 = vld [vmem:[%s1071 + $0xa] sm:$0xff]
        %v1686 = vld [vmem:[%s1071 + $0x1a] sm:$0xff]
        %v1687 = vld [vmem:[%s1071 + $0x22] sm:$0xff]
        %v1688 = vld [vmem:[%s1071 + $0x32] sm:$0xff]
        %v1689 = vld [vmem:[%s1071 + $0x3a] sm:$0xff]
        %v1690 = vld [vmem:[%s1071 + $0x4a] sm:$0xff]
        %v1691 = vld [vmem:[%s1071 + $0x52] sm:$0xff]
        %v1692 = vld [vmem:[%s1071 + $0x62] sm:$0xff]
        %v1693 = vld [vmem:[%s1071 + $0x6a] sm:$0xff]
        %v1694 = vld [vmem:[%s1071 + $0x7a] sm:$0xff]
        %v1695 = vld [vmem:[%s1071 + $0x82] sm:$0xff]
        %v1696 = vld [vmem:[%s1071 + $0x92] sm:$0xff]
        %v1697 = vld [vmem:[%s1071 + $0x9a] sm:$0xff]
        %v1698 = vld [vmem:[%s1071 + $0xaa] sm:$0xff]
        %v1699 = vld [vmem:[%s1071 + $0xb2] sm:$0xff]
        %v1700 = vld [vmem:[%s1071 + $0xc2] sm:$0xff]
        %v1701 = vld [vmem:[%s1071 + $0xca] sm:$0xff]
        %v1702 = vld [vmem:[%s1071 + $0xda] sm:$0xff]
        %v1703 = vld [vmem:[%s1071 + $0xe2] sm:$0xff]
        %v1704 = vld [vmem:[%s1071 + $0xf2] sm:$0xff]
        %v1705 = vld [vmem:[%s1071 + $0xfa] sm:$0xff]
        %v1706 = vld [vmem:[%s1071 + $0x10a] sm:$0xff]
        %v1707 = vld [vmem:[%s1071 + $0x112] sm:$0xff]
        %v1708 = vld [vmem:[%s1071 + $0x122] sm:$0xff]
        %v1709 = vld [vmem:[%s1071 + $0x12a] sm:$0xff]
        %v1710 = vld [vmem:[%s1071 + $0x13a] sm:$0xff]
        %v1711 = vld [vmem:[%s1071 + $0x142] sm:$0xff]
        %v1712 = vld [vmem:[%s1071 + $0x152] sm:$0xff]
        %v1713 = vld [vmem:[%s1071 + $0x15a] sm:$0xff]
        %v1714 = vld [vmem:[%s1071 + $0x16a] sm:$0xff]
        %v1715 = vld [vmem:[%s1071 + $0x172] sm:$0xff]
        %s1716 = scalar_lea.vmem [#allocation6], 640
        %v1717 = vld [vmem:[%s1716] sm:$0xff]
        %v1718 = vld [vmem:[%s1716 + $0x8] sm:$0xff]
        %v1719 = vld [vmem:[%s1716 + $0x10] sm:$0xff]
        %v1720 = vld [vmem:[%s1716 + $0x18] sm:$0xff]
        %v1721 = vld [vmem:[%s1716 + $0x20] sm:$0xff]
        %v1722 = vld [vmem:[%s1716 + $0x28] sm:$0xff]
        %v1723 = vld [vmem:[%s1716 + $0x30] sm:$0xff]
        %v1724 = vld [vmem:[%s1716 + $0x38] sm:$0xff]
        %v1725 = vld [vmem:[%s1716 + $0x40] sm:$0xff]
        %v1726 = vld [vmem:[%s1716 + $0x48] sm:$0xff]
        %v1727 = vld [vmem:[%s1716 + $0x50] sm:$0xff]
        %v1728 = vld [vmem:[%s1716 + $0x58] sm:$0xff]
        %v1729 = vld [vmem:[%s1716 + $0x60] sm:$0xff]
        %v1730 = vld [vmem:[%s1716 + $0x68] sm:$0xff]
        %v1731 = vld [vmem:[%s1716 + $0x70] sm:$0xff]
        %v1732 = vld [vmem:[%s1716 + $0x78] sm:$0xff]
        %1733 = vmatprep.subr.mxu0 0.0
        %1734 = vmatpush1.msra.mxu0 %v1717
        %1735 = vmatprep.subr.mxu0 0.0
        %1736 = vmatpush1.msra.mxu0 %v1718
        %1737 = vmatprep.subr.mxu0 0.0
        %1738 = vmatpush1.msra.mxu0 %v1719
        %1739 = vmatprep.subr.mxu0 0.0
        %1740 = vmatpush1.msra.mxu0 %v1720
        %1741 = vmatprep.subr.mxu0 0.0
        %1742 = vmatpush1.msra.mxu0 %v1721
        %1743 = vmatprep.subr.mxu0 0.0
        %1744 = vmatpush1.msra.mxu0 %v1722
        %1745 = vmatprep.subr.mxu0 0.0
        %1746 = vmatpush1.msra.mxu0 %v1723
        %1747 = vmatprep.subr.mxu0 0.0
        %1748 = vmatpush1.msra.mxu0 %v1724
        %1749 = vmatprep.subr.mxu0 0.0
        %1750 = vmatpush1.msra.mxu0 %v1725
        %1751 = vmatprep.subr.mxu0 0.0
        %1752 = vmatpush1.msra.mxu0 %v1726
        %1753 = vmatprep.subr.mxu0 0.0
        %1754 = vmatpush1.msra.mxu0 %v1727
        %1755 = vmatprep.subr.mxu0 0.0
        %1756 = vmatpush1.msra.mxu0 %v1728
        %1757 = vmatprep.subr.mxu0 0.0
        %1758 = vmatpush1.msra.mxu0 %v1729
        %1759 = vmatprep.subr.mxu0 0.0
        %1760 = vmatpush1.msra.mxu0 %v1730
        %1761 = vmatprep.subr.mxu0 0.0
        %1762 = vmatpush1.msra.mxu0 %v1731
        %1763 = vmatprep.subr.mxu0 0.0
        %1764 = vmatpush1.msra.mxu0 %v1732
        %1765 = vmatprep.subr.mxu0 0.0
        %1766 = vmatpush1.msra.mxu0 0.0
        %1767 = vmatprep.subr.mxu0 0.0
        %1768 = vmatpush1.msra.mxu0 0.0
        %1769 = vmatprep.subr.mxu0 0.0
        %1770 = vmatpush1.msra.mxu0 0.0
        %1771 = vmatprep.subr.mxu0 0.0
        %1772 = vmatpush1.msra.mxu0 0.0
        %1773 = vmatprep.subr.mxu0 0.0
        %1774 = vmatpush1.msra.mxu0 0.0
        %1775 = vmatprep.subr.mxu0 0.0
        %1776 = vmatpush1.msra.mxu0 0.0
        %1777 = vmatprep.subr.mxu0 0.0
        %1778 = vmatpush1.msra.mxu0 0.0
        %1779 = vmatprep.subr.mxu0 0.0
        %1780 = vmatpush1.msra.mxu0 0.0
        %1781 = vmatprep.subr.mxu0 0.0
        %1782 = vmatpush1.msra.mxu0 0.0
        %1783 = vmatprep.subr.mxu0 0.0
        %1784 = vmatpush1.msra.mxu0 0.0
        %1785 = vmatprep.subr.mxu0 0.0
        %1786 = vmatpush1.msra.mxu0 0.0
        %1787 = vmatprep.subr.mxu0 0.0
        %1788 = vmatpush1.msra.mxu0 0.0
        %1789 = vmatprep.subr.mxu0 0.0
        %1790 = vmatpush1.msra.mxu0 0.0
        %1791 = vmatprep.subr.mxu0 0.0
        %1792 = vmatpush1.msra.mxu0 0.0
        %1793 = vmatprep.subr.mxu0 0.0
        %1794 = vmatpush1.msra.mxu0 0.0
        %1795 = vmatprep.subr.mxu0 0.0
        %1796 = vmatpush1.msra.mxu0 0.0
        %1797 = vmatprep.mubr.f32.mxu0 0.0
        %1798 = vmatmul.mubr.f32.gmra.mrb[0].mxu0 %v1684
        %v1799 = vpop.f32.mrb[0].mxu0
        %v1800 = vadd.f32 0.0, %v1799
        %v1801 = vpop.f32.mrb[0].mxu0
        %1802 = vmatprep.mubr.f32.mxu0 0.0
        %1803 = vmatmul.mubr.f32.gmra.mrb[0].mxu0 %v1685
        %v1804 = vpop.f32.mrb[0].mxu0
        %v1805 = vadd.f32 0.0, %v1804
        %v1806 = vpop.f32.mrb[0].mxu0
        %1807 = vmatprep.mubr.f32.mxu0 0.0
        %1808 = vmatmul.mubr.f32.gmra.mrb[0].mxu0 %v1686
        %v1809 = vpop.f32.mrb[0].mxu0
        %v1810 = vadd.f32 0.0, %v1809
        %v1811 = vpop.f32.mrb[0].mxu0
        %1812 = vmatprep.mubr.f32.mxu0 0.0
        %1813 = vmatmul.mubr.f32.gmra.mrb[0].mxu0 %v1687
        %v1814 = vpop.f32.mrb[0].mxu0
        %v1815 = vadd.f32 0.0, %v1814
        %v1816 = vpop.f32.mrb[0].mxu0
        %1817 = vmatprep.mubr.f32.mxu0 0.0
        %1818 = vmatmul.mubr.f32.gmra.mrb[0].mxu0 %v1688
        %v1819 = vpop.f32.mrb[0].mxu0
        %v1820 = vadd.f32 0.0, %v1819
        %v1821 = vpop.f32.mrb[0].mxu0
        %1822 = vmatprep.mubr.f32.mxu0 0.0
        %1823 = vmatmul.mubr.f32.gmra.mrb[0].mxu0 %v1689
        %v1824 = vpop.f32.mrb[0].mxu0
        %v1825 = vadd.f32 0.0, %v1824
        %v1826 = vpop.f32.mrb[0].mxu0
        %1827 = vmatprep.mubr.f32.mxu0 0.0
        %1828 = vmatmul.mubr.f32.gmra.mrb[0].mxu0 %v1690
        %v1829 = vpop.f32.mrb[0].mxu0
        %v1830 = vadd.f32 0.0, %v1829
        %v1831 = vpop.f32.mrb[0].mxu0
        %1832 = vmatprep.mubr.f32.mxu0 0.0
        %1833 = vmatmul.mubr.f32.gmra.mrb[0].mxu0 %v1691
        %v1834 = vpop.f32.mrb[0].mxu0
        %v1835 = vadd.f32 0.0, %v1834
        %v1836 = vpop.f32.mrb[0].mxu0
        %1837 = vmatprep.mubr.f32.mxu0 0.0
        %1838 = vmatmul.mubr.f32.gmra.mrb[0].mxu0 %v1692
        %v1839 = vpop.f32.mrb[0].mxu0
        %v1840 = vadd.f32 0.0, %v1839
        %v1841 = vpop.f32.mrb[0].mxu0
        %1842 = vmatprep.mubr.f32.mxu0 0.0
        %1843 = vmatmul.mubr.f32.gmra.mrb[0].mxu0 %v1693
        %v1844 = vpop.f32.mrb[0].mxu0
        %v1845 = vadd.f32 0.0, %v1844
        %v1846 = vpop.f32.mrb[0].mxu0
        %1847 = vmatprep.mubr.f32.mxu0 0.0
        %1848 = vmatmul.mubr.f32.gmra.mrb[0].mxu0 %v1694
        %v1849 = vpop.f32.mrb[0].mxu0
        %v1850 = vadd.f32 0.0, %v1849
        %v1851 = vpop.f32.mrb[0].mxu0
        %1852 = vmatprep.mubr.f32.mxu0 0.0
        %1853 = vmatmul.mubr.f32.gmra.mrb[0].mxu0 %v1695
        %v1854 = vpop.f32.mrb[0].mxu0
        %v1855 = vadd.f32 0.0, %v1854
        %v1856 = vpop.f32.mrb[0].mxu0
        %1857 = vmatprep.mubr.f32.mxu0 0.0
        %1858 = vmatmul.mubr.f32.gmra.mrb[0].mxu0 %v1696
        %v1859 = vpop.f32.mrb[0].mxu0
        %v1860 = vadd.f32 0.0, %v1859
        %v1861 = vpop.f32.mrb[0].mxu0
        %1862 = vmatprep.mubr.f32.mxu0 0.0
        %1863 = vmatmul.mubr.f32.gmra.mrb[0].mxu0 %v1697
        %v1864 = vpop.f32.mrb[0].mxu0
        %v1865 = vadd.f32 0.0, %v1864
        %v1866 = vpop.f32.mrb[0].mxu0
        %1867 = vmatprep.mubr.f32.mxu0 0.0
        %1868 = vmatmul.mubr.f32.gmra.mrb[0].mxu0 %v1698
        %v1869 = vpop.f32.mrb[0].mxu0
        %v1870 = vadd.f32 0.0, %v1869
        %v1871 = vpop.f32.mrb[0].mxu0
        %1872 = vmatprep.mubr.f32.mxu0 0.0
        %1873 = vmatmul.mubr.f32.gmra.mrb[0].mxu0 %v1699
        %v1874 = vpop.f32.mrb[0].mxu0
        %v1875 = vadd.f32 0.0, %v1874
        %v1876 = vpop.f32.mrb[0].mxu0
        %1877 = vmatprep.mubr.f32.mxu0 0.0
        %1878 = vmatmul.mubr.f32.gmra.mrb[0].mxu0 %v1700
        %v1879 = vpop.f32.mrb[0].mxu0
        %v1880 = vadd.f32 0.0, %v1879
        %v1881 = vpop.f32.mrb[0].mxu0
        %1882 = vmatprep.mubr.f32.mxu0 0.0
        %1883 = vmatmul.mubr.f32.gmra.mrb[0].mxu0 %v1701
        %v1884 = vpop.f32.mrb[0].mxu0
        %v1885 = vadd.f32 0.0, %v1884
        %v1886 = vpop.f32.mrb[0].mxu0
        %1887 = vmatprep.mubr.f32.mxu0 0.0
        %1888 = vmatmul.mubr.f32.gmra.mrb[0].mxu0 %v1702
        %v1889 = vpop.f32.mrb[0].mxu0
        %v1890 = vadd.f32 0.0, %v1889
        %v1891 = vpop.f32.mrb[0].mxu0
        %1892 = vmatprep.mubr.f32.mxu0 0.0
        %1893 = vmatmul.mubr.f32.gmra.mrb[0].mxu0 %v1703
        %v1894 = vpop.f32.mrb[0].mxu0
        %v1895 = vadd.f32 0.0, %v1894
        %v1896 = vpop.f32.mrb[0].mxu0
        %1897 = vmatprep.mubr.f32.mxu0 0.0
        %1898 = vmatmul.mubr.f32.gmra.mrb[0].mxu0 %v1704
        %v1899 = vpop.f32.mrb[0].mxu0
        %v1900 = vadd.f32 0.0, %v1899
        %v1901 = vpop.f32.mrb[0].mxu0
        %1902 = vmatprep.mubr.f32.mxu0 0.0
        %1903 = vmatmul.mubr.f32.gmra.mrb[0].mxu0 %v1705
        %v1904 = vpop.f32.mrb[0].mxu0
        %v1905 = vadd.f32 0.0, %v1904
        %v1906 = vpop.f32.mrb[0].mxu0
        %1907 = vmatprep.mubr.f32.mxu0 0.0
        %1908 = vmatmul.mubr.f32.gmra.mrb[0].mxu0 %v1706
        %v1909 = vpop.f32.mrb[0].mxu0
        %v1910 = vadd.f32 0.0, %v1909
        %v1911 = vpop.f32.mrb[0].mxu0
        %1912 = vmatprep.mubr.f32.mxu0 0.0
        %1913 = vmatmul.mubr.f32.gmra.mrb[0].mxu0 %v1707
        %v1914 = vpop.f32.mrb[0].mxu0
        %v1915 = vadd.f32 0.0, %v1914
        %v1916 = vpop.f32.mrb[0].mxu0
        %1917 = vmatprep.mubr.f32.mxu0 0.0
        %1918 = vmatmul.mubr.f32.gmra.mrb[0].mxu0 %v1708
        %v1919 = vpop.f32.mrb[0].mxu0
        %v1920 = vadd.f32 0.0, %v1919
        %v1921 = vpop.f32.mrb[0].mxu0
        %1922 = vmatprep.mubr.f32.mxu0 0.0
        %1923 = vmatmul.mubr.f32.gmra.mrb[0].mxu0 %v1709
        %v1924 = vpop.f32.mrb[0].mxu0
        %v1925 = vadd.f32 0.0, %v1924
        %v1926 = vpop.f32.mrb[0].mxu0
        %1927 = vmatprep.mubr.f32.mxu0 0.0
        %1928 = vmatmul.mubr.f32.gmra.mrb[0].mxu0 %v1710
        %v1929 = vpop.f32.mrb[0].mxu0
        %v1930 = vadd.f32 0.0, %v1929
        %v1931 = vpop.f32.mrb[0].mxu0
        %1932 = vmatprep.mubr.f32.mxu0 0.0
        %1933 = vmatmul.mubr.f32.gmra.mrb[0].mxu0 %v1711
        %v1934 = vpop.f32.mrb[0].mxu0
        %v1935 = vadd.f32 0.0, %v1934
        %v1936 = vpop.f32.mrb[0].mxu0
        %1937 = vmatprep.mubr.f32.mxu0 0.0
        %1938 = vmatmul.mubr.f32.gmra.mrb[0].mxu0 %v1712
        %v1939 = vpop.f32.mrb[0].mxu0
        %v1940 = vadd.f32 0.0, %v1939
        %v1941 = vpop.f32.mrb[0].mxu0
        %1942 = vmatprep.mubr.f32.mxu0 0.0
        %1943 = vmatmul.mubr.f32.gmra.mrb[0].mxu0 %v1713
        %v1944 = vpop.f32.mrb[0].mxu0
        %v1945 = vadd.f32 0.0, %v1944
        %v1946 = vpop.f32.mrb[0].mxu0
        %1947 = vmatprep.mubr.f32.mxu0 0.0
        %1948 = vmatmul.mubr.f32.gmra.mrb[0].mxu0 %v1714
        %v1949 = vpop.f32.mrb[0].mxu0
        %v1950 = vadd.f32 0.0, %v1949
        %v1951 = vpop.f32.mrb[0].mxu0
        %1952 = vmatprep.mubr.f32.mxu0 0.0
        %1953 = vmatmul.mubr.f32.gmra.mrb[0].mxu0 %v1715
        %v1954 = vpop.f32.mrb[0].mxu0
        %v1955 = vadd.f32 0.0, %v1954
        %v1956 = vpop.f32.mrb[0].mxu0
        %1957 = vdwg.mxu0
        %v1958 = vadd.f32 %v1652, %v1800
        %v1959 = vadd.f32 %v1653, %v1805
        %v1960 = vadd.f32 %v1654, %v1810
        %v1961 = vadd.f32 %v1655, %v1815
        %v1962 = vadd.f32 %v1656, %v1820
        %v1963 = vadd.f32 %v1657, %v1825
        %v1964 = vadd.f32 %v1658, %v1830
        %v1965 = vadd.f32 %v1659, %v1835
        %v1966 = vadd.f32 %v1660, %v1840
        %v1967 = vadd.f32 %v1661, %v1845
        %v1968 = vadd.f32 %v1662, %v1850
        %v1969 = vadd.f32 %v1663, %v1855
        %v1970 = vadd.f32 %v1664, %v1860
        %v1971 = vadd.f32 %v1665, %v1865
        %v1972 = vadd.f32 %v1666, %v1870
        %v1973 = vadd.f32 %v1667, %v1875
        %v1974 = vadd.f32 %v1668, %v1880
        %v1975 = vadd.f32 %v1669, %v1885
        %v1976 = vadd.f32 %v1670, %v1890
        %v1977 = vadd.f32 %v1671, %v1895
        %v1978 = vadd.f32 %v1672, %v1900
        %v1979 = vadd.f32 %v1673, %v1905
        %v1980 = vadd.f32 %v1674, %v1910
        %v1981 = vadd.f32 %v1675, %v1915
        %v1982 = vadd.f32 %v1676, %v1920
        %v1983 = vadd.f32 %v1677, %v1925
        %v1984 = vadd.f32 %v1678, %v1930
        %v1985 = vadd.f32 %v1679, %v1935
        %v1986 = vadd.f32 %v1680, %v1940
        %v1987 = vadd.f32 %v1681, %v1945
        %v1988 = vadd.f32 %v1682, %v1950
        %v1989 = vadd.f32 %v1683, %v1955
        %s1990 = scalar_lea.vmem %s187, 48 [#allocation3]
        %v1991 = vld [vmem:[%s1990] sm:$0xff]
        %v1992 = vld [vmem:[%s1990 + $0x8] sm:$0xff]
        %v1993 = vld [vmem:[%s1990 + $0x18] sm:$0xff]
        %v1994 = vld [vmem:[%s1990 + $0x20] sm:$0xff]
        %v1995 = vld [vmem:[%s1990 + $0x30] sm:$0xff]
        %v1996 = vld [vmem:[%s1990 + $0x38] sm:$0xff]
        %v1997 = vld [vmem:[%s1990 + $0x48] sm:$0xff]
        %v1998 = vld [vmem:[%s1990 + $0x50] sm:$0xff]
        %v1999 = vld [vmem:[%s1990 + $0x60] sm:$0xff]
        %v2000 = vld [vmem:[%s1990 + $0x68] sm:$0xff]
        %v2001 = vld [vmem:[%s1990 + $0x78] sm:$0xff]
        %v2002 = vld [vmem:[%s1990 + $0x80] sm:$0xff]
        %v2003 = vld [vmem:[%s1990 + $0x90] sm:$0xff]
        %v2004 = vld [vmem:[%s1990 + $0x98] sm:$0xff]
        %v2005 = vld [vmem:[%s1990 + $0xa8] sm:$0xff]
        %v2006 = vld [vmem:[%s1990 + $0xb0] sm:$0xff]
        %v2007 = vld [vmem:[%s1990 + $0xc0] sm:$0xff]
        %v2008 = vld [vmem:[%s1990 + $0xc8] sm:$0xff]
        %v2009 = vld [vmem:[%s1990 + $0xd8] sm:$0xff]
        %v2010 = vld [vmem:[%s1990 + $0xe0] sm:$0xff]
        %v2011 = vld [vmem:[%s1990 + $0xf0] sm:$0xff]
        %v2012 = vld [vmem:[%s1990 + $0xf8] sm:$0xff]
        %v2013 = vld [vmem:[%s1990 + $0x108] sm:$0xff]
        %v2014 = vld [vmem:[%s1990 + $0x110] sm:$0xff]
        %v2015 = vld [vmem:[%s1990 + $0x120] sm:$0xff]
        %v2016 = vld [vmem:[%s1990 + $0x128] sm:$0xff]
        %v2017 = vld [vmem:[%s1990 + $0x138] sm:$0xff]
        %v2018 = vld [vmem:[%s1990 + $0x140] sm:$0xff]
        %v2019 = vld [vmem:[%s1990 + $0x150] sm:$0xff]
        %v2020 = vld [vmem:[%s1990 + $0x158] sm:$0xff]
        %v2021 = vld [vmem:[%s1990 + $0x168] sm:$0xff]
        %v2022 = vld [vmem:[%s1990 + $0x170] sm:$0xff]
        %s2023 = scalar_lea.vmem [#allocation6], 768
        %v2024 = vld [vmem:[%s2023] sm:$0xff]
        %v2025 = vld [vmem:[%s2023 + $0x8] sm:$0xff]
        %v2026 = vld [vmem:[%s2023 + $0x10] sm:$0xff]
        %v2027 = vld [vmem:[%s2023 + $0x18] sm:$0xff]
        %v2028 = vld [vmem:[%s2023 + $0x20] sm:$0xff]
        %v2029 = vld [vmem:[%s2023 + $0x28] sm:$0xff]
        %v2030 = vld [vmem:[%s2023 + $0x30] sm:$0xff]
        %v2031 = vld [vmem:[%s2023 + $0x38] sm:$0xff]
        %v2032 = vld [vmem:[%s2023 + $0x40] sm:$0xff]
        %v2033 = vld [vmem:[%s2023 + $0x48] sm:$0xff]
        %v2034 = vld [vmem:[%s2023 + $0x50] sm:$0xff]
        %v2035 = vld [vmem:[%s2023 + $0x58] sm:$0xff]
        %v2036 = vld [vmem:[%s2023 + $0x60] sm:$0xff]
        %v2037 = vld [vmem:[%s2023 + $0x68] sm:$0xff]
        %v2038 = vld [vmem:[%s2023 + $0x70] sm:$0xff]
        %v2039 = vld [vmem:[%s2023 + $0x78] sm:$0xff]
        %2040 = vmatprep.subr.mxu0 0.0
        %2041 = vmatpush1.msra.mxu0 %v2024
        %2042 = vmatprep.subr.mxu0 0.0
        %2043 = vmatpush1.msra.mxu0 %v2025
        %2044 = vmatprep.subr.mxu0 0.0
        %2045 = vmatpush1.msra.mxu0 %v2026
        %2046 = vmatprep.subr.mxu0 0.0
        %2047 = vmatpush1.msra.mxu0 %v2027
        %2048 = vmatprep.subr.mxu0 0.0
        %2049 = vmatpush1.msra.mxu0 %v2028
        %2050 = vmatprep.subr.mxu0 0.0
        %2051 = vmatpush1.msra.mxu0 %v2029
        %2052 = vmatprep.subr.mxu0 0.0
        %2053 = vmatpush1.msra.mxu0 %v2030
        %2054 = vmatprep.subr.mxu0 0.0
        %2055 = vmatpush1.msra.mxu0 %v2031
        %2056 = vmatprep.subr.mxu0 0.0
        %2057 = vmatpush1.msra.mxu0 %v2032
        %2058 = vmatprep.subr.mxu0 0.0
        %2059 = vmatpush1.msra.mxu0 %v2033
        %2060 = vmatprep.subr.mxu0 0.0
        %2061 = vmatpush1.msra.mxu0 %v2034
        %2062 = vmatprep.subr.mxu0 0.0
        %2063 = vmatpush1.msra.mxu0 %v2035
        %2064 = vmatprep.subr.mxu0 0.0
        %2065 = vmatpush1.msra.mxu0 %v2036
        %2066 = vmatprep.subr.mxu0 0.0
        %2067 = vmatpush1.msra.mxu0 %v2037
        %2068 = vmatprep.subr.mxu0 0.0
        %2069 = vmatpush1.msra.mxu0 %v2038
        %2070 = vmatprep.subr.mxu0 0.0
        %2071 = vmatpush1.msra.mxu0 %v2039
        %2072 = vmatprep.subr.mxu0 0.0
        %2073 = vmatpush1.msra.mxu0 0.0
        %2074 = vmatprep.subr.mxu0 0.0
        %2075 = vmatpush1.msra.mxu0 0.0
        %2076 = vmatprep.subr.mxu0 0.0
        %2077 = vmatpush1.msra.mxu0 0.0
        %2078 = vmatprep.subr.mxu0 0.0
        %2079 = vmatpush1.msra.mxu0 0.0
        %2080 = vmatprep.subr.mxu0 0.0
        %2081 = vmatpush1.msra.mxu0 0.0
        %2082 = vmatprep.subr.mxu0 0.0
        %2083 = vmatpush1.msra.mxu0 0.0
        %2084 = vmatprep.subr.mxu0 0.0
        %2085 = vmatpush1.msra.mxu0 0.0
        %2086 = vmatprep.subr.mxu0 0.0
        %2087 = vmatpush1.msra.mxu0 0.0
        %2088 = vmatprep.subr.mxu0 0.0
        %2089 = vmatpush1.msra.mxu0 0.0
        %2090 = vmatprep.subr.mxu0 0.0
        %2091 = vmatpush1.msra.mxu0 0.0
        %2092 = vmatprep.subr.mxu0 0.0
        %2093 = vmatpush1.msra.mxu0 0.0
        %2094 = vmatprep.subr.mxu0 0.0
        %2095 = vmatpush1.msra.mxu0 0.0
        %2096 = vmatprep.subr.mxu0 0.0
        %2097 = vmatpush1.msra.mxu0 0.0
        %2098 = vmatprep.subr.mxu0 0.0
        %2099 = vmatpush1.msra.mxu0 0.0
        %2100 = vmatprep.subr.mxu0 0.0
        %2101 = vmatpush1.msra.mxu0 0.0
        %2102 = vmatprep.subr.mxu0 0.0
        %2103 = vmatpush1.msra.mxu0 0.0
        %2104 = vmatprep.mubr.f32.mxu0 0.0
        %2105 = vmatmul.mubr.f32.gmra.mrb[0].mxu0 %v1991
        %v2106 = vpop.f32.mrb[0].mxu0
        %v2107 = vadd.f32 0.0, %v2106
        %v2108 = vpop.f32.mrb[0].mxu0
        %2109 = vmatprep.mubr.f32.mxu0 0.0
        %2110 = vmatmul.mubr.f32.gmra.mrb[0].mxu0 %v1992
        %v2111 = vpop.f32.mrb[0].mxu0
        %v2112 = vadd.f32 0.0, %v2111
        %v2113 = vpop.f32.mrb[0].mxu0
        %2114 = vmatprep.mubr.f32.mxu0 0.0
        %2115 = vmatmul.mubr.f32.gmra.mrb[0].mxu0 %v1993
        %v2116 = vpop.f32.mrb[0].mxu0
        %v2117 = vadd.f32 0.0, %v2116
        %v2118 = vpop.f32.mrb[0].mxu0
        %2119 = vmatprep.mubr.f32.mxu0 0.0
        %2120 = vmatmul.mubr.f32.gmra.mrb[0].mxu0 %v1994
        %v2121 = vpop.f32.mrb[0].mxu0
        %v2122 = vadd.f32 0.0, %v2121
        %v2123 = vpop.f32.mrb[0].mxu0
        %2124 = vmatprep.mubr.f32.mxu0 0.0
        %2125 = vmatmul.mubr.f32.gmra.mrb[0].mxu0 %v1995
        %v2126 = vpop.f32.mrb[0].mxu0
        %v2127 = vadd.f32 0.0, %v2126
        %v2128 = vpop.f32.mrb[0].mxu0
        %2129 = vmatprep.mubr.f32.mxu0 0.0
        %2130 = vmatmul.mubr.f32.gmra.mrb[0].mxu0 %v1996
        %v2131 = vpop.f32.mrb[0].mxu0
        %v2132 = vadd.f32 0.0, %v2131
        %v2133 = vpop.f32.mrb[0].mxu0
        %2134 = vmatprep.mubr.f32.mxu0 0.0
        %2135 = vmatmul.mubr.f32.gmra.mrb[0].mxu0 %v1997
        %v2136 = vpop.f32.mrb[0].mxu0
        %v2137 = vadd.f32 0.0, %v2136
        %v2138 = vpop.f32.mrb[0].mxu0
        %2139 = vmatprep.mubr.f32.mxu0 0.0
        %2140 = vmatmul.mubr.f32.gmra.mrb[0].mxu0 %v1998
        %v2141 = vpop.f32.mrb[0].mxu0
        %v2142 = vadd.f32 0.0, %v2141
        %v2143 = vpop.f32.mrb[0].mxu0
        %2144 = vmatprep.mubr.f32.mxu0 0.0
        %2145 = vmatmul.mubr.f32.gmra.mrb[0].mxu0 %v1999
        %v2146 = vpop.f32.mrb[0].mxu0
        %v2147 = vadd.f32 0.0, %v2146
        %v2148 = vpop.f32.mrb[0].mxu0
        %2149 = vmatprep.mubr.f32.mxu0 0.0
        %2150 = vmatmul.mubr.f32.gmra.mrb[0].mxu0 %v2000
        %v2151 = vpop.f32.mrb[0].mxu0
        %v2152 = vadd.f32 0.0, %v2151
        %v2153 = vpop.f32.mrb[0].mxu0
        %2154 = vmatprep.mubr.f32.mxu0 0.0
        %2155 = vmatmul.mubr.f32.gmra.mrb[0].mxu0 %v2001
        %v2156 = vpop.f32.mrb[0].mxu0
        %v2157 = vadd.f32 0.0, %v2156
        %v2158 = vpop.f32.mrb[0].mxu0
        %2159 = vmatprep.mubr.f32.mxu0 0.0
        %2160 = vmatmul.mubr.f32.gmra.mrb[0].mxu0 %v2002
        %v2161 = vpop.f32.mrb[0].mxu0
        %v2162 = vadd.f32 0.0, %v2161
        %v2163 = vpop.f32.mrb[0].mxu0
        %2164 = vmatprep.mubr.f32.mxu0 0.0
        %2165 = vmatmul.mubr.f32.gmra.mrb[0].mxu0 %v2003
        %v2166 = vpop.f32.mrb[0].mxu0
        %v2167 = vadd.f32 0.0, %v2166
        %v2168 = vpop.f32.mrb[0].mxu0
        %2169 = vmatprep.mubr.f32.mxu0 0.0
        %2170 = vmatmul.mubr.f32.gmra.mrb[0].mxu0 %v2004
        %v2171 = vpop.f32.mrb[0].mxu0
        %v2172 = vadd.f32 0.0, %v2171
        %v2173 = vpop.f32.mrb[0].mxu0
        %2174 = vmatprep.mubr.f32.mxu0 0.0
        %2175 = vmatmul.mubr.f32.gmra.mrb[0].mxu0 %v2005
        %v2176 = vpop.f32.mrb[0].mxu0
        %v2177 = vadd.f32 0.0, %v2176
        %v2178 = vpop.f32.mrb[0].mxu0
        %2179 = vmatprep.mubr.f32.mxu0 0.0
        %2180 = vmatmul.mubr.f32.gmra.mrb[0].mxu0 %v2006
        %v2181 = vpop.f32.mrb[0].mxu0
        %v2182 = vadd.f32 0.0, %v2181
        %v2183 = vpop.f32.mrb[0].mxu0
        %2184 = vmatprep.mubr.f32.mxu0 0.0
        %2185 = vmatmul.mubr.f32.gmra.mrb[0].mxu0 %v2007
        %v2186 = vpop.f32.mrb[0].mxu0
        %v2187 = vadd.f32 0.0, %v2186
        %v2188 = vpop.f32.mrb[0].mxu0
        %2189 = vmatprep.mubr.f32.mxu0 0.0
        %2190 = vmatmul.mubr.f32.gmra.mrb[0].mxu0 %v2008
        %v2191 = vpop.f32.mrb[0].mxu0
        %v2192 = vadd.f32 0.0, %v2191
        %v2193 = vpop.f32.mrb[0].mxu0
        %2194 = vmatprep.mubr.f32.mxu0 0.0
        %2195 = vmatmul.mubr.f32.gmra.mrb[0].mxu0 %v2009
        %v2196 = vpop.f32.mrb[0].mxu0
        %v2197 = vadd.f32 0.0, %v2196
        %v2198 = vpop.f32.mrb[0].mxu0
        %2199 = vmatprep.mubr.f32.mxu0 0.0
        %2200 = vmatmul.mubr.f32.gmra.mrb[0].mxu0 %v2010
        %v2201 = vpop.f32.mrb[0].mxu0
        %v2202 = vadd.f32 0.0, %v2201
        %v2203 = vpop.f32.mrb[0].mxu0
        %2204 = vmatprep.mubr.f32.mxu0 0.0
        %2205 = vmatmul.mubr.f32.gmra.mrb[0].mxu0 %v2011
        %v2206 = vpop.f32.mrb[0].mxu0
        %v2207 = vadd.f32 0.0, %v2206
        %v2208 = vpop.f32.mrb[0].mxu0
        %2209 = vmatprep.mubr.f32.mxu0 0.0
        %2210 = vmatmul.mubr.f32.gmra.mrb[0].mxu0 %v2012
        %v2211 = vpop.f32.mrb[0].mxu0
        %v2212 = vadd.f32 0.0, %v2211
        %v2213 = vpop.f32.mrb[0].mxu0
        %2214 = vmatprep.mubr.f32.mxu0 0.0
        %2215 = vmatmul.mubr.f32.gmra.mrb[0].mxu0 %v2013
        %v2216 = vpop.f32.mrb[0].mxu0
        %v2217 = vadd.f32 0.0, %v2216
        %v2218 = vpop.f32.mrb[0].mxu0
        %2219 = vmatprep.mubr.f32.mxu0 0.0
        %2220 = vmatmul.mubr.f32.gmra.mrb[0].mxu0 %v2014
        %v2221 = vpop.f32.mrb[0].mxu0
        %v2222 = vadd.f32 0.0, %v2221
        %v2223 = vpop.f32.mrb[0].mxu0
        %2224 = vmatprep.mubr.f32.mxu0 0.0
        %2225 = vmatmul.mubr.f32.gmra.mrb[0].mxu0 %v2015
        %v2226 = vpop.f32.mrb[0].mxu0
        %v2227 = vadd.f32 0.0, %v2226
        %v2228 = vpop.f32.mrb[0].mxu0
        %2229 = vmatprep.mubr.f32.mxu0 0.0
        %2230 = vmatmul.mubr.f32.gmra.mrb[0].mxu0 %v2016
        %v2231 = vpop.f32.mrb[0].mxu0
        %v2232 = vadd.f32 0.0, %v2231
        %v2233 = vpop.f32.mrb[0].mxu0
        %2234 = vmatprep.mubr.f32.mxu0 0.0
        %2235 = vmatmul.mubr.f32.gmra.mrb[0].mxu0 %v2017
        %v2236 = vpop.f32.mrb[0].mxu0
        %v2237 = vadd.f32 0.0, %v2236
        %v2238 = vpop.f32.mrb[0].mxu0
        %2239 = vmatprep.mubr.f32.mxu0 0.0
        %2240 = vmatmul.mubr.f32.gmra.mrb[0].mxu0 %v2018
        %v2241 = vpop.f32.mrb[0].mxu0
        %v2242 = vadd.f32 0.0, %v2241
        %v2243 = vpop.f32.mrb[0].mxu0
        %2244 = vmatprep.mubr.f32.mxu0 0.0
        %2245 = vmatmul.mubr.f32.gmra.mrb[0].mxu0 %v2019
        %v2246 = vpop.f32.mrb[0].mxu0
        %v2247 = vadd.f32 0.0, %v2246
        %v2248 = vpop.f32.mrb[0].mxu0
        %2249 = vmatprep.mubr.f32.mxu0 0.0
        %2250 = vmatmul.mubr.f32.gmra.mrb[0].mxu0 %v2020
        %v2251 = vpop.f32.mrb[0].mxu0
        %v2252 = vadd.f32 0.0, %v2251
        %v2253 = vpop.f32.mrb[0].mxu0
        %2254 = vmatprep.mubr.f32.mxu0 0.0
        %2255 = vmatmul.mubr.f32.gmra.mrb[0].mxu0 %v2021
        %v2256 = vpop.f32.mrb[0].mxu0
        %v2257 = vadd.f32 0.0, %v2256
        %v2258 = vpop.f32.mrb[0].mxu0
        %2259 = vmatprep.mubr.f32.mxu0 0.0
        %2260 = vmatmul.mubr.f32.gmra.mrb[0].mxu0 %v2022
        %v2261 = vpop.f32.mrb[0].mxu0
        %v2262 = vadd.f32 0.0, %v2261
        %v2263 = vpop.f32.mrb[0].mxu0
        %2264 = vdwg.mxu0
        %v2265 = vadd.f32 %v1958, %v2107
        %v2266 = vadd.f32 %v1959, %v2112
        %v2267 = vadd.f32 %v1960, %v2117
        %v2268 = vadd.f32 %v1961, %v2122
        %v2269 = vadd.f32 %v1962, %v2127
        %v2270 = vadd.f32 %v1963, %v2132
        %v2271 = vadd.f32 %v1964, %v2137
        %v2272 = vadd.f32 %v1965, %v2142
        %v2273 = vadd.f32 %v1966, %v2147
        %v2274 = vadd.f32 %v1967, %v2152
        %v2275 = vadd.f32 %v1968, %v2157
        %v2276 = vadd.f32 %v1969, %v2162
        %v2277 = vadd.f32 %v1970, %v2167
        %v2278 = vadd.f32 %v1971, %v2172
        %v2279 = vadd.f32 %v1972, %v2177
        %v2280 = vadd.f32 %v1973, %v2182
        %v2281 = vadd.f32 %v1974, %v2187
        %v2282 = vadd.f32 %v1975, %v2192
        %v2283 = vadd.f32 %v1976, %v2197
        %v2284 = vadd.f32 %v1977, %v2202
        %v2285 = vadd.f32 %v1978, %v2207
        %v2286 = vadd.f32 %v1979, %v2212
        %v2287 = vadd.f32 %v1980, %v2217
        %v2288 = vadd.f32 %v1981, %v2222
        %v2289 = vadd.f32 %v1982, %v2227
        %v2290 = vadd.f32 %v1983, %v2232
        %v2291 = vadd.f32 %v1984, %v2237
        %v2292 = vadd.f32 %v1985, %v2242
        %v2293 = vadd.f32 %v1986, %v2247
        %v2294 = vadd.f32 %v1987, %v2252
        %v2295 = vadd.f32 %v1988, %v2257
        %v2296 = vadd.f32 %v1989, %v2262
        %v2297 = vld [vmem:[%s1990 + $0x1] sm:$0xff]
        %v2298 = vld [vmem:[%s1990 + $0x9] sm:$0xff]
        %v2299 = vld [vmem:[%s1990 + $0x19] sm:$0xff]
        %v2300 = vld [vmem:[%s1990 + $0x21] sm:$0xff]
        %v2301 = vld [vmem:[%s1990 + $0x31] sm:$0xff]
        %v2302 = vld [vmem:[%s1990 + $0x39] sm:$0xff]
        %v2303 = vld [vmem:[%s1990 + $0x49] sm:$0xff]
        %v2304 = vld [vmem:[%s1990 + $0x51] sm:$0xff]
        %v2305 = vld [vmem:[%s1990 + $0x61] sm:$0xff]
        %v2306 = vld [vmem:[%s1990 + $0x69] sm:$0xff]
        %v2307 = vld [vmem:[%s1990 + $0x79] sm:$0xff]
        %v2308 = vld [vmem:[%s1990 + $0x81] sm:$0xff]
        %v2309 = vld [vmem:[%s1990 + $0x91] sm:$0xff]
        %v2310 = vld [vmem:[%s1990 + $0x99] sm:$0xff]
        %v2311 = vld [vmem:[%s1990 + $0xa9] sm:$0xff]
        %v2312 = vld [vmem:[%s1990 + $0xb1] sm:$0xff]
        %v2313 = vld [vmem:[%s1990 + $0xc1] sm:$0xff]
        %v2314 = vld [vmem:[%s1990 + $0xc9] sm:$0xff]
        %v2315 = vld [vmem:[%s1990 + $0xd9] sm:$0xff]
        %v2316 = vld [vmem:[%s1990 + $0xe1] sm:$0xff]
        %v2317 = vld [vmem:[%s1990 + $0xf1] sm:$0xff]
        %v2318 = vld [vmem:[%s1990 + $0xf9] sm:$0xff]
        %v2319 = vld [vmem:[%s1990 + $0x109] sm:$0xff]
        %v2320 = vld [vmem:[%s1990 + $0x111] sm:$0xff]
        %v2321 = vld [vmem:[%s1990 + $0x121] sm:$0xff]
        %v2322 = vld [vmem:[%s1990 + $0x129] sm:$0xff]
        %v2323 = vld [vmem:[%s1990 + $0x139] sm:$0xff]
        %v2324 = vld [vmem:[%s1990 + $0x141] sm:$0xff]
        %v2325 = vld [vmem:[%s1990 + $0x151] sm:$0xff]
        %v2326 = vld [vmem:[%s1990 + $0x159] sm:$0xff]
        %v2327 = vld [vmem:[%s1990 + $0x169] sm:$0xff]
        %v2328 = vld [vmem:[%s1990 + $0x171] sm:$0xff]
        %s2329 = scalar_lea.vmem [#allocation6], 896
        %v2330 = vld [vmem:[%s2329] sm:$0xff]
        %v2331 = vld [vmem:[%s2329 + $0x8] sm:$0xff]
        %v2332 = vld [vmem:[%s2329 + $0x10] sm:$0xff]
        %v2333 = vld [vmem:[%s2329 + $0x18] sm:$0xff]
        %v2334 = vld [vmem:[%s2329 + $0x20] sm:$0xff]
        %v2335 = vld [vmem:[%s2329 + $0x28] sm:$0xff]
        %v2336 = vld [vmem:[%s2329 + $0x30] sm:$0xff]
        %v2337 = vld [vmem:[%s2329 + $0x38] sm:$0xff]
        %v2338 = vld [vmem:[%s2329 + $0x40] sm:$0xff]
        %v2339 = vld [vmem:[%s2329 + $0x48] sm:$0xff]
        %v2340 = vld [vmem:[%s2329 + $0x50] sm:$0xff]
        %v2341 = vld [vmem:[%s2329 + $0x58] sm:$0xff]
        %v2342 = vld [vmem:[%s2329 + $0x60] sm:$0xff]
        %v2343 = vld [vmem:[%s2329 + $0x68] sm:$0xff]
        %v2344 = vld [vmem:[%s2329 + $0x70] sm:$0xff]
        %v2345 = vld [vmem:[%s2329 + $0x78] sm:$0xff]
        %2346 = vmatprep.subr.mxu0 0.0
        %2347 = vmatpush1.msra.mxu0 %v2330
        %2348 = vmatprep.subr.mxu0 0.0
        %2349 = vmatpush1.msra.mxu0 %v2331
        %2350 = vmatprep.subr.mxu0 0.0
        %2351 = vmatpush1.msra.mxu0 %v2332
        %2352 = vmatprep.subr.mxu0 0.0
        %2353 = vmatpush1.msra.mxu0 %v2333
        %2354 = vmatprep.subr.mxu0 0.0
        %2355 = vmatpush1.msra.mxu0 %v2334
        %2356 = vmatprep.subr.mxu0 0.0
        %2357 = vmatpush1.msra.mxu0 %v2335
        %2358 = vmatprep.subr.mxu0 0.0
        %2359 = vmatpush1.msra.mxu0 %v2336
        %2360 = vmatprep.subr.mxu0 0.0
        %2361 = vmatpush1.msra.mxu0 %v2337
        %2362 = vmatprep.subr.mxu0 0.0
        %2363 = vmatpush1.msra.mxu0 %v2338
        %2364 = vmatprep.subr.mxu0 0.0
        %2365 = vmatpush1.msra.mxu0 %v2339
        %2366 = vmatprep.subr.mxu0 0.0
        %2367 = vmatpush1.msra.mxu0 %v2340
        %2368 = vmatprep.subr.mxu0 0.0
        %2369 = vmatpush1.msra.mxu0 %v2341
        %2370 = vmatprep.subr.mxu0 0.0
        %2371 = vmatpush1.msra.mxu0 %v2342
        %2372 = vmatprep.subr.mxu0 0.0
        %2373 = vmatpush1.msra.mxu0 %v2343
        %2374 = vmatprep.subr.mxu0 0.0
        %2375 = vmatpush1.msra.mxu0 %v2344
        %2376 = vmatprep.subr.mxu0 0.0
        %2377 = vmatpush1.msra.mxu0 %v2345
        %2378 = vmatprep.subr.mxu0 0.0
        %2379 = vmatpush1.msra.mxu0 0.0
        %2380 = vmatprep.subr.mxu0 0.0
        %2381 = vmatpush1.msra.mxu0 0.0
        %2382 = vmatprep.subr.mxu0 0.0
        %2383 = vmatpush1.msra.mxu0 0.0
        %2384 = vmatprep.subr.mxu0 0.0
        %2385 = vmatpush1.msra.mxu0 0.0
        %2386 = vmatprep.subr.mxu0 0.0
        %2387 = vmatpush1.msra.mxu0 0.0
        %2388 = vmatprep.subr.mxu0 0.0
        %2389 = vmatpush1.msra.mxu0 0.0
        %2390 = vmatprep.subr.mxu0 0.0
        %2391 = vmatpush1.msra.mxu0 0.0
        %2392 = vmatprep.subr.mxu0 0.0
        %2393 = vmatpush1.msra.mxu0 0.0
        %2394 = vmatprep.subr.mxu0 0.0
        %2395 = vmatpush1.msra.mxu0 0.0
        %2396 = vmatprep.subr.mxu0 0.0
        %2397 = vmatpush1.msra.mxu0 0.0
        %2398 = vmatprep.subr.mxu0 0.0
        %2399 = vmatpush1.msra.mxu0 0.0
        %2400 = vmatprep.subr.mxu0 0.0
        %2401 = vmatpush1.msra.mxu0 0.0
        %2402 = vmatprep.subr.mxu0 0.0
        %2403 = vmatpush1.msra.mxu0 0.0
        %2404 = vmatprep.subr.mxu0 0.0
        %2405 = vmatpush1.msra.mxu0 0.0
        %2406 = vmatprep.subr.mxu0 0.0
        %2407 = vmatpush1.msra.mxu0 0.0
        %2408 = vmatprep.subr.mxu0 0.0
        %2409 = vmatpush1.msra.mxu0 0.0
        %2410 = vmatprep.mubr.f32.mxu0 0.0
        %2411 = vmatmul.mubr.f32.gmra.mrb[0].mxu0 %v2297
        %v2412 = vpop.f32.mrb[0].mxu0
        %v2413 = vadd.f32 0.0, %v2412
        %v2414 = vpop.f32.mrb[0].mxu0
        %2415 = vmatprep.mubr.f32.mxu0 0.0
        %2416 = vmatmul.mubr.f32.gmra.mrb[0].mxu0 %v2298
        %v2417 = vpop.f32.mrb[0].mxu0
        %v2418 = vadd.f32 0.0, %v2417
        %v2419 = vpop.f32.mrb[0].mxu0
        %2420 = vmatprep.mubr.f32.mxu0 0.0
        %2421 = vmatmul.mubr.f32.gmra.mrb[0].mxu0 %v2299
        %v2422 = vpop.f32.mrb[0].mxu0
        %v2423 = vadd.f32 0.0, %v2422
        %v2424 = vpop.f32.mrb[0].mxu0
        %2425 = vmatprep.mubr.f32.mxu0 0.0
        %2426 = vmatmul.mubr.f32.gmra.mrb[0].mxu0 %v2300
        %v2427 = vpop.f32.mrb[0].mxu0
        %v2428 = vadd.f32 0.0, %v2427
        %v2429 = vpop.f32.mrb[0].mxu0
        %2430 = vmatprep.mubr.f32.mxu0 0.0
        %2431 = vmatmul.mubr.f32.gmra.mrb[0].mxu0 %v2301
        %v2432 = vpop.f32.mrb[0].mxu0
        %v2433 = vadd.f32 0.0, %v2432
        %v2434 = vpop.f32.mrb[0].mxu0
        %2435 = vmatprep.mubr.f32.mxu0 0.0
        %2436 = vmatmul.mubr.f32.gmra.mrb[0].mxu0 %v2302
        %v2437 = vpop.f32.mrb[0].mxu0
        %v2438 = vadd.f32 0.0, %v2437
        %v2439 = vpop.f32.mrb[0].mxu0
        %2440 = vmatprep.mubr.f32.mxu0 0.0
        %2441 = vmatmul.mubr.f32.gmra.mrb[0].mxu0 %v2303
        %v2442 = vpop.f32.mrb[0].mxu0
        %v2443 = vadd.f32 0.0, %v2442
        %v2444 = vpop.f32.mrb[0].mxu0
        %2445 = vmatprep.mubr.f32.mxu0 0.0
        %2446 = vmatmul.mubr.f32.gmra.mrb[0].mxu0 %v2304
        %v2447 = vpop.f32.mrb[0].mxu0
        %v2448 = vadd.f32 0.0, %v2447
        %v2449 = vpop.f32.mrb[0].mxu0
        %2450 = vmatprep.mubr.f32.mxu0 0.0
        %2451 = vmatmul.mubr.f32.gmra.mrb[0].mxu0 %v2305
        %v2452 = vpop.f32.mrb[0].mxu0
        %v2453 = vadd.f32 0.0, %v2452
        %v2454 = vpop.f32.mrb[0].mxu0
        %2455 = vmatprep.mubr.f32.mxu0 0.0
        %2456 = vmatmul.mubr.f32.gmra.mrb[0].mxu0 %v2306
        %v2457 = vpop.f32.mrb[0].mxu0
        %v2458 = vadd.f32 0.0, %v2457
        %v2459 = vpop.f32.mrb[0].mxu0
        %2460 = vmatprep.mubr.f32.mxu0 0.0
        %2461 = vmatmul.mubr.f32.gmra.mrb[0].mxu0 %v2307
        %v2462 = vpop.f32.mrb[0].mxu0
        %v2463 = vadd.f32 0.0, %v2462
        %v2464 = vpop.f32.mrb[0].mxu0
        %2465 = vmatprep.mubr.f32.mxu0 0.0
        %2466 = vmatmul.mubr.f32.gmra.mrb[0].mxu0 %v2308
        %v2467 = vpop.f32.mrb[0].mxu0
        %v2468 = vadd.f32 0.0, %v2467
        %v2469 = vpop.f32.mrb[0].mxu0
        %2470 = vmatprep.mubr.f32.mxu0 0.0
        %2471 = vmatmul.mubr.f32.gmra.mrb[0].mxu0 %v2309
        %v2472 = vpop.f32.mrb[0].mxu0
        %v2473 = vadd.f32 0.0, %v2472
        %v2474 = vpop.f32.mrb[0].mxu0
        %2475 = vmatprep.mubr.f32.mxu0 0.0
        %2476 = vmatmul.mubr.f32.gmra.mrb[0].mxu0 %v2310
        %v2477 = vpop.f32.mrb[0].mxu0
        %v2478 = vadd.f32 0.0, %v2477
        %v2479 = vpop.f32.mrb[0].mxu0
        %2480 = vmatprep.mubr.f32.mxu0 0.0
        %2481 = vmatmul.mubr.f32.gmra.mrb[0].mxu0 %v2311
        %v2482 = vpop.f32.mrb[0].mxu0
        %v2483 = vadd.f32 0.0, %v2482
        %v2484 = vpop.f32.mrb[0].mxu0
        %2485 = vmatprep.mubr.f32.mxu0 0.0
        %2486 = vmatmul.mubr.f32.gmra.mrb[0].mxu0 %v2312
        %v2487 = vpop.f32.mrb[0].mxu0
        %v2488 = vadd.f32 0.0, %v2487
        %v2489 = vpop.f32.mrb[0].mxu0
        %2490 = vmatprep.mubr.f32.mxu0 0.0
        %2491 = vmatmul.mubr.f32.gmra.mrb[0].mxu0 %v2313
        %v2492 = vpop.f32.mrb[0].mxu0
        %v2493 = vadd.f32 0.0, %v2492
        %v2494 = vpop.f32.mrb[0].mxu0
        %2495 = vmatprep.mubr.f32.mxu0 0.0
        %2496 = vmatmul.mubr.f32.gmra.mrb[0].mxu0 %v2314
        %v2497 = vpop.f32.mrb[0].mxu0
        %v2498 = vadd.f32 0.0, %v2497
        %v2499 = vpop.f32.mrb[0].mxu0
        %2500 = vmatprep.mubr.f32.mxu0 0.0
        %2501 = vmatmul.mubr.f32.gmra.mrb[0].mxu0 %v2315
        %v2502 = vpop.f32.mrb[0].mxu0
        %v2503 = vadd.f32 0.0, %v2502
        %v2504 = vpop.f32.mrb[0].mxu0
        %2505 = vmatprep.mubr.f32.mxu0 0.0
        %2506 = vmatmul.mubr.f32.gmra.mrb[0].mxu0 %v2316
        %v2507 = vpop.f32.mrb[0].mxu0
        %v2508 = vadd.f32 0.0, %v2507
        %v2509 = vpop.f32.mrb[0].mxu0
        %2510 = vmatprep.mubr.f32.mxu0 0.0
        %2511 = vmatmul.mubr.f32.gmra.mrb[0].mxu0 %v2317
        %v2512 = vpop.f32.mrb[0].mxu0
        %v2513 = vadd.f32 0.0, %v2512
        %v2514 = vpop.f32.mrb[0].mxu0
        %2515 = vmatprep.mubr.f32.mxu0 0.0
        %2516 = vmatmul.mubr.f32.gmra.mrb[0].mxu0 %v2318
        %v2517 = vpop.f32.mrb[0].mxu0
        %v2518 = vadd.f32 0.0, %v2517
        %v2519 = vpop.f32.mrb[0].mxu0
        %2520 = vmatprep.mubr.f32.mxu0 0.0
        %2521 = vmatmul.mubr.f32.gmra.mrb[0].mxu0 %v2319
        %v2522 = vpop.f32.mrb[0].mxu0
        %v2523 = vadd.f32 0.0, %v2522
        %v2524 = vpop.f32.mrb[0].mxu0
        %2525 = vmatprep.mubr.f32.mxu0 0.0
        %2526 = vmatmul.mubr.f32.gmra.mrb[0].mxu0 %v2320
        %v2527 = vpop.f32.mrb[0].mxu0
        %v2528 = vadd.f32 0.0, %v2527
        %v2529 = vpop.f32.mrb[0].mxu0
        %2530 = vmatprep.mubr.f32.mxu0 0.0
        %2531 = vmatmul.mubr.f32.gmra.mrb[0].mxu0 %v2321
        %v2532 = vpop.f32.mrb[0].mxu0
        %v2533 = vadd.f32 0.0, %v2532
        %v2534 = vpop.f32.mrb[0].mxu0
        %2535 = vmatprep.mubr.f32.mxu0 0.0
        %2536 = vmatmul.mubr.f32.gmra.mrb[0].mxu0 %v2322
        %v2537 = vpop.f32.mrb[0].mxu0
        %v2538 = vadd.f32 0.0, %v2537
        %v2539 = vpop.f32.mrb[0].mxu0
        %2540 = vmatprep.mubr.f32.mxu0 0.0
        %2541 = vmatmul.mubr.f32.gmra.mrb[0].mxu0 %v2323
        %v2542 = vpop.f32.mrb[0].mxu0
        %v2543 = vadd.f32 0.0, %v2542
        %v2544 = vpop.f32.mrb[0].mxu0
        %2545 = vmatprep.mubr.f32.mxu0 0.0
        %2546 = vmatmul.mubr.f32.gmra.mrb[0].mxu0 %v2324
        %v2547 = vpop.f32.mrb[0].mxu0
        %v2548 = vadd.f32 0.0, %v2547
        %v2549 = vpop.f32.mrb[0].mxu0
        %2550 = vmatprep.mubr.f32.mxu0 0.0
        %2551 = vmatmul.mubr.f32.gmra.mrb[0].mxu0 %v2325
        %v2552 = vpop.f32.mrb[0].mxu0
        %v2553 = vadd.f32 0.0, %v2552
        %v2554 = vpop.f32.mrb[0].mxu0
        %2555 = vmatprep.mubr.f32.mxu0 0.0
        %2556 = vmatmul.mubr.f32.gmra.mrb[0].mxu0 %v2326
        %v2557 = vpop.f32.mrb[0].mxu0
        %v2558 = vadd.f32 0.0, %v2557
        %v2559 = vpop.f32.mrb[0].mxu0
        %2560 = vmatprep.mubr.f32.mxu0 0.0
        %2561 = vmatmul.mubr.f32.gmra.mrb[0].mxu0 %v2327
        %v2562 = vpop.f32.mrb[0].mxu0
        %v2563 = vadd.f32 0.0, %v2562
        %v2564 = vpop.f32.mrb[0].mxu0
        %2565 = vmatprep.mubr.f32.mxu0 0.0
        %2566 = vmatmul.mubr.f32.gmra.mrb[0].mxu0 %v2328
        %v2567 = vpop.f32.mrb[0].mxu0
        %v2568 = vadd.f32 0.0, %v2567
        %v2569 = vpop.f32.mrb[0].mxu0
        %2570 = vdwg.mxu0
        %v2571 = vadd.f32 %v2265, %v2413
        %v2572 = vadd.f32 %v2266, %v2418
        %v2573 = vadd.f32 %v2267, %v2423
        %v2574 = vadd.f32 %v2268, %v2428
        %v2575 = vadd.f32 %v2269, %v2433
        %v2576 = vadd.f32 %v2270, %v2438
        %v2577 = vadd.f32 %v2271, %v2443
        %v2578 = vadd.f32 %v2272, %v2448
        %v2579 = vadd.f32 %v2273, %v2453
        %v2580 = vadd.f32 %v2274, %v2458
        %v2581 = vadd.f32 %v2275, %v2463
        %v2582 = vadd.f32 %v2276, %v2468
        %v2583 = vadd.f32 %v2277, %v2473
        %v2584 = vadd.f32 %v2278, %v2478
        %v2585 = vadd.f32 %v2279, %v2483
        %v2586 = vadd.f32 %v2280, %v2488
        %v2587 = vadd.f32 %v2281, %v2493
        %v2588 = vadd.f32 %v2282, %v2498
        %v2589 = vadd.f32 %v2283, %v2503
        %v2590 = vadd.f32 %v2284, %v2508
        %v2591 = vadd.f32 %v2285, %v2513
        %v2592 = vadd.f32 %v2286, %v2518
        %v2593 = vadd.f32 %v2287, %v2523
        %v2594 = vadd.f32 %v2288, %v2528
        %v2595 = vadd.f32 %v2289, %v2533
        %v2596 = vadd.f32 %v2290, %v2538
        %v2597 = vadd.f32 %v2291, %v2543
        %v2598 = vadd.f32 %v2292, %v2548
        %v2599 = vadd.f32 %v2293, %v2553
        %v2600 = vadd.f32 %v2294, %v2558
        %v2601 = vadd.f32 %v2295, %v2563
        %v2602 = vadd.f32 %v2296, %v2568
        %v2603 = vld [vmem:[%s1990 + $0x2] sm:$0xff]
        %v2604 = vld [vmem:[%s1990 + $0xa] sm:$0xff]
        %v2605 = vld [vmem:[%s1990 + $0x1a] sm:$0xff]
        %v2606 = vld [vmem:[%s1990 + $0x22] sm:$0xff]
        %v2607 = vld [vmem:[%s1990 + $0x32] sm:$0xff]
        %v2608 = vld [vmem:[%s1990 + $0x3a] sm:$0xff]
        %v2609 = vld [vmem:[%s1990 + $0x4a] sm:$0xff]
        %v2610 = vld [vmem:[%s1990 + $0x52] sm:$0xff]
        %v2611 = vld [vmem:[%s1990 + $0x62] sm:$0xff]
        %v2612 = vld [vmem:[%s1990 + $0x6a] sm:$0xff]
        %v2613 = vld [vmem:[%s1990 + $0x7a] sm:$0xff]
        %v2614 = vld [vmem:[%s1990 + $0x82] sm:$0xff]
        %v2615 = vld [vmem:[%s1990 + $0x92] sm:$0xff]
        %v2616 = vld [vmem:[%s1990 + $0x9a] sm:$0xff]
        %v2617 = vld [vmem:[%s1990 + $0xaa] sm:$0xff]
        %v2618 = vld [vmem:[%s1990 + $0xb2] sm:$0xff]
        %v2619 = vld [vmem:[%s1990 + $0xc2] sm:$0xff]
        %v2620 = vld [vmem:[%s1990 + $0xca] sm:$0xff]
        %v2621 = vld [vmem:[%s1990 + $0xda] sm:$0xff]
        %v2622 = vld [vmem:[%s1990 + $0xe2] sm:$0xff]
        %v2623 = vld [vmem:[%s1990 + $0xf2] sm:$0xff]
        %v2624 = vld [vmem:[%s1990 + $0xfa] sm:$0xff]
        %v2625 = vld [vmem:[%s1990 + $0x10a] sm:$0xff]
        %v2626 = vld [vmem:[%s1990 + $0x112] sm:$0xff]
        %v2627 = vld [vmem:[%s1990 + $0x122] sm:$0xff]
        %v2628 = vld [vmem:[%s1990 + $0x12a] sm:$0xff]
        %v2629 = vld [vmem:[%s1990 + $0x13a] sm:$0xff]
        %v2630 = vld [vmem:[%s1990 + $0x142] sm:$0xff]
        %v2631 = vld [vmem:[%s1990 + $0x152] sm:$0xff]
        %v2632 = vld [vmem:[%s1990 + $0x15a] sm:$0xff]
        %v2633 = vld [vmem:[%s1990 + $0x16a] sm:$0xff]
        %v2634 = vld [vmem:[%s1990 + $0x172] sm:$0xff]
        %s2635 = scalar_lea.vmem [#allocation6], 1024
        %v2636 = vld [vmem:[%s2635] sm:$0xff]
        %v2637 = vld [vmem:[%s2635 + $0x8] sm:$0xff]
        %v2638 = vld [vmem:[%s2635 + $0x10] sm:$0xff]
        %v2639 = vld [vmem:[%s2635 + $0x18] sm:$0xff]
        %v2640 = vld [vmem:[%s2635 + $0x20] sm:$0xff]
        %v2641 = vld [vmem:[%s2635 + $0x28] sm:$0xff]
        %v2642 = vld [vmem:[%s2635 + $0x30] sm:$0xff]
        %v2643 = vld [vmem:[%s2635 + $0x38] sm:$0xff]
        %v2644 = vld [vmem:[%s2635 + $0x40] sm:$0xff]
        %v2645 = vld [vmem:[%s2635 + $0x48] sm:$0xff]
        %v2646 = vld [vmem:[%s2635 + $0x50] sm:$0xff]
        %v2647 = vld [vmem:[%s2635 + $0x58] sm:$0xff]
        %v2648 = vld [vmem:[%s2635 + $0x60] sm:$0xff]
        %v2649 = vld [vmem:[%s2635 + $0x68] sm:$0xff]
        %v2650 = vld [vmem:[%s2635 + $0x70] sm:$0xff]
        %v2651 = vld [vmem:[%s2635 + $0x78] sm:$0xff]
        %2652 = vmatprep.subr.mxu0 0.0
        %2653 = vmatpush1.msra.mxu0 %v2636
        %2654 = vmatprep.subr.mxu0 0.0
        %2655 = vmatpush1.msra.mxu0 %v2637
        %2656 = vmatprep.subr.mxu0 0.0
        %2657 = vmatpush1.msra.mxu0 %v2638
        %2658 = vmatprep.subr.mxu0 0.0
        %2659 = vmatpush1.msra.mxu0 %v2639
        %2660 = vmatprep.subr.mxu0 0.0
        %2661 = vmatpush1.msra.mxu0 %v2640
        %2662 = vmatprep.subr.mxu0 0.0
        %2663 = vmatpush1.msra.mxu0 %v2641
        %2664 = vmatprep.subr.mxu0 0.0
        %2665 = vmatpush1.msra.mxu0 %v2642
        %2666 = vmatprep.subr.mxu0 0.0
        %2667 = vmatpush1.msra.mxu0 %v2643
        %2668 = vmatprep.subr.mxu0 0.0
        %2669 = vmatpush1.msra.mxu0 %v2644
        %2670 = vmatprep.subr.mxu0 0.0
        %2671 = vmatpush1.msra.mxu0 %v2645
        %2672 = vmatprep.subr.mxu0 0.0
        %2673 = vmatpush1.msra.mxu0 %v2646
        %2674 = vmatprep.subr.mxu0 0.0
        %2675 = vmatpush1.msra.mxu0 %v2647
        %2676 = vmatprep.subr.mxu0 0.0
        %2677 = vmatpush1.msra.mxu0 %v2648
        %2678 = vmatprep.subr.mxu0 0.0
        %2679 = vmatpush1.msra.mxu0 %v2649
        %2680 = vmatprep.subr.mxu0 0.0
        %2681 = vmatpush1.msra.mxu0 %v2650
        %2682 = vmatprep.subr.mxu0 0.0
        %2683 = vmatpush1.msra.mxu0 %v2651
        %2684 = vmatprep.subr.mxu0 0.0
        %2685 = vmatpush1.msra.mxu0 0.0
        %2686 = vmatprep.subr.mxu0 0.0
        %2687 = vmatpush1.msra.mxu0 0.0
        %2688 = vmatprep.subr.mxu0 0.0
        %2689 = vmatpush1.msra.mxu0 0.0
        %2690 = vmatprep.subr.mxu0 0.0
        %2691 = vmatpush1.msra.mxu0 0.0
        %2692 = vmatprep.subr.mxu0 0.0
        %2693 = vmatpush1.msra.mxu0 0.0
        %2694 = vmatprep.subr.mxu0 0.0
        %2695 = vmatpush1.msra.mxu0 0.0
        %2696 = vmatprep.subr.mxu0 0.0
        %2697 = vmatpush1.msra.mxu0 0.0
        %2698 = vmatprep.subr.mxu0 0.0
        %2699 = vmatpush1.msra.mxu0 0.0
        %2700 = vmatprep.subr.mxu0 0.0
        %2701 = vmatpush1.msra.mxu0 0.0
        %2702 = vmatprep.subr.mxu0 0.0
        %2703 = vmatpush1.msra.mxu0 0.0
        %2704 = vmatprep.subr.mxu0 0.0
        %2705 = vmatpush1.msra.mxu0 0.0
        %2706 = vmatprep.subr.mxu0 0.0
        %2707 = vmatpush1.msra.mxu0 0.0
        %2708 = vmatprep.subr.mxu0 0.0
        %2709 = vmatpush1.msra.mxu0 0.0
        %2710 = vmatprep.subr.mxu0 0.0
        %2711 = vmatpush1.msra.mxu0 0.0
        %2712 = vmatprep.subr.mxu0 0.0
        %2713 = vmatpush1.msra.mxu0 0.0
        %2714 = vmatprep.subr.mxu0 0.0
        %2715 = vmatpush1.msra.mxu0 0.0
        %2716 = vmatprep.mubr.f32.mxu0 0.0
        %2717 = vmatmul.mubr.f32.gmra.mrb[0].mxu0 %v2603
        %v2718 = vpop.f32.mrb[0].mxu0
        %v2719 = vadd.f32 0.0, %v2718
        %v2720 = vpop.f32.mrb[0].mxu0
        %2721 = vmatprep.mubr.f32.mxu0 0.0
        %2722 = vmatmul.mubr.f32.gmra.mrb[0].mxu0 %v2604
        %v2723 = vpop.f32.mrb[0].mxu0
        %v2724 = vadd.f32 0.0, %v2723
        %v2725 = vpop.f32.mrb[0].mxu0
        %2726 = vmatprep.mubr.f32.mxu0 0.0
        %2727 = vmatmul.mubr.f32.gmra.mrb[0].mxu0 %v2605
        %v2728 = vpop.f32.mrb[0].mxu0
        %v2729 = vadd.f32 0.0, %v2728
        %v2730 = vpop.f32.mrb[0].mxu0
        %2731 = vmatprep.mubr.f32.mxu0 0.0
        %2732 = vmatmul.mubr.f32.gmra.mrb[0].mxu0 %v2606
        %v2733 = vpop.f32.mrb[0].mxu0
        %v2734 = vadd.f32 0.0, %v2733
        %v2735 = vpop.f32.mrb[0].mxu0
        %2736 = vmatprep.mubr.f32.mxu0 0.0
        %2737 = vmatmul.mubr.f32.gmra.mrb[0].mxu0 %v2607
        %v2738 = vpop.f32.mrb[0].mxu0
        %v2739 = vadd.f32 0.0, %v2738
        %v2740 = vpop.f32.mrb[0].mxu0
        %2741 = vmatprep.mubr.f32.mxu0 0.0
        %2742 = vmatmul.mubr.f32.gmra.mrb[0].mxu0 %v2608
        %v2743 = vpop.f32.mrb[0].mxu0
        %v2744 = vadd.f32 0.0, %v2743
        %v2745 = vpop.f32.mrb[0].mxu0
        %2746 = vmatprep.mubr.f32.mxu0 0.0
        %2747 = vmatmul.mubr.f32.gmra.mrb[0].mxu0 %v2609
        %v2748 = vpop.f32.mrb[0].mxu0
        %v2749 = vadd.f32 0.0, %v2748
        %v2750 = vpop.f32.mrb[0].mxu0
        %2751 = vmatprep.mubr.f32.mxu0 0.0
        %2752 = vmatmul.mubr.f32.gmra.mrb[0].mxu0 %v2610
        %v2753 = vpop.f32.mrb[0].mxu0
        %v2754 = vadd.f32 0.0, %v2753
        %v2755 = vpop.f32.mrb[0].mxu0
        %2756 = vmatprep.mubr.f32.mxu0 0.0
        %2757 = vmatmul.mubr.f32.gmra.mrb[0].mxu0 %v2611
        %v2758 = vpop.f32.mrb[0].mxu0
        %v2759 = vadd.f32 0.0, %v2758
        %v2760 = vpop.f32.mrb[0].mxu0
        %2761 = vmatprep.mubr.f32.mxu0 0.0
        %2762 = vmatmul.mubr.f32.gmra.mrb[0].mxu0 %v2612
        %v2763 = vpop.f32.mrb[0].mxu0
        %v2764 = vadd.f32 0.0, %v2763
        %v2765 = vpop.f32.mrb[0].mxu0
        %2766 = vmatprep.mubr.f32.mxu0 0.0
        %2767 = vmatmul.mubr.f32.gmra.mrb[0].mxu0 %v2613
        %v2768 = vpop.f32.mrb[0].mxu0
        %v2769 = vadd.f32 0.0, %v2768
        %v2770 = vpop.f32.mrb[0].mxu0
        %2771 = vmatprep.mubr.f32.mxu0 0.0
        %2772 = vmatmul.mubr.f32.gmra.mrb[0].mxu0 %v2614
        %v2773 = vpop.f32.mrb[0].mxu0
        %v2774 = vadd.f32 0.0, %v2773
        %v2775 = vpop.f32.mrb[0].mxu0
        %2776 = vmatprep.mubr.f32.mxu0 0.0
        %2777 = vmatmul.mubr.f32.gmra.mrb[0].mxu0 %v2615
        %v2778 = vpop.f32.mrb[0].mxu0
        %v2779 = vadd.f32 0.0, %v2778
        %v2780 = vpop.f32.mrb[0].mxu0
        %2781 = vmatprep.mubr.f32.mxu0 0.0
        %2782 = vmatmul.mubr.f32.gmra.mrb[0].mxu0 %v2616
        %v2783 = vpop.f32.mrb[0].mxu0
        %v2784 = vadd.f32 0.0, %v2783
        %v2785 = vpop.f32.mrb[0].mxu0
        %2786 = vmatprep.mubr.f32.mxu0 0.0
        %2787 = vmatmul.mubr.f32.gmra.mrb[0].mxu0 %v2617
        %v2788 = vpop.f32.mrb[0].mxu0
        %v2789 = vadd.f32 0.0, %v2788
        %v2790 = vpop.f32.mrb[0].mxu0
        %2791 = vmatprep.mubr.f32.mxu0 0.0
        %2792 = vmatmul.mubr.f32.gmra.mrb[0].mxu0 %v2618
        %v2793 = vpop.f32.mrb[0].mxu0
        %v2794 = vadd.f32 0.0, %v2793
        %v2795 = vpop.f32.mrb[0].mxu0
        %2796 = vmatprep.mubr.f32.mxu0 0.0
        %2797 = vmatmul.mubr.f32.gmra.mrb[0].mxu0 %v2619
        %v2798 = vpop.f32.mrb[0].mxu0
        %v2799 = vadd.f32 0.0, %v2798
        %v2800 = vpop.f32.mrb[0].mxu0
        %2801 = vmatprep.mubr.f32.mxu0 0.0
        %2802 = vmatmul.mubr.f32.gmra.mrb[0].mxu0 %v2620
        %v2803 = vpop.f32.mrb[0].mxu0
        %v2804 = vadd.f32 0.0, %v2803
        %v2805 = vpop.f32.mrb[0].mxu0
        %2806 = vmatprep.mubr.f32.mxu0 0.0
        %2807 = vmatmul.mubr.f32.gmra.mrb[0].mxu0 %v2621
        %v2808 = vpop.f32.mrb[0].mxu0
        %v2809 = vadd.f32 0.0, %v2808
        %v2810 = vpop.f32.mrb[0].mxu0
        %2811 = vmatprep.mubr.f32.mxu0 0.0
        %2812 = vmatmul.mubr.f32.gmra.mrb[0].mxu0 %v2622
        %v2813 = vpop.f32.mrb[0].mxu0
        %v2814 = vadd.f32 0.0, %v2813
        %v2815 = vpop.f32.mrb[0].mxu0
        %2816 = vmatprep.mubr.f32.mxu0 0.0
        %2817 = vmatmul.mubr.f32.gmra.mrb[0].mxu0 %v2623
        %v2818 = vpop.f32.mrb[0].mxu0
        %v2819 = vadd.f32 0.0, %v2818
        %v2820 = vpop.f32.mrb[0].mxu0
        %2821 = vmatprep.mubr.f32.mxu0 0.0
        %2822 = vmatmul.mubr.f32.gmra.mrb[0].mxu0 %v2624
        %v2823 = vpop.f32.mrb[0].mxu0
        %v2824 = vadd.f32 0.0, %v2823
        %v2825 = vpop.f32.mrb[0].mxu0
        %2826 = vmatprep.mubr.f32.mxu0 0.0
        %2827 = vmatmul.mubr.f32.gmra.mrb[0].mxu0 %v2625
        %v2828 = vpop.f32.mrb[0].mxu0
        %v2829 = vadd.f32 0.0, %v2828
        %v2830 = vpop.f32.mrb[0].mxu0
        %2831 = vmatprep.mubr.f32.mxu0 0.0
        %2832 = vmatmul.mubr.f32.gmra.mrb[0].mxu0 %v2626
        %v2833 = vpop.f32.mrb[0].mxu0
        %v2834 = vadd.f32 0.0, %v2833
        %v2835 = vpop.f32.mrb[0].mxu0
        %2836 = vmatprep.mubr.f32.mxu0 0.0
        %2837 = vmatmul.mubr.f32.gmra.mrb[0].mxu0 %v2627
        %v2838 = vpop.f32.mrb[0].mxu0
        %v2839 = vadd.f32 0.0, %v2838
        %v2840 = vpop.f32.mrb[0].mxu0
        %2841 = vmatprep.mubr.f32.mxu0 0.0
        %2842 = vmatmul.mubr.f32.gmra.mrb[0].mxu0 %v2628
        %v2843 = vpop.f32.mrb[0].mxu0
        %v2844 = vadd.f32 0.0, %v2843
        %v2845 = vpop.f32.mrb[0].mxu0
        %2846 = vmatprep.mubr.f32.mxu0 0.0
        %2847 = vmatmul.mubr.f32.gmra.mrb[0].mxu0 %v2629
        %v2848 = vpop.f32.mrb[0].mxu0
        %v2849 = vadd.f32 0.0, %v2848
        %v2850 = vpop.f32.mrb[0].mxu0
        %2851 = vmatprep.mubr.f32.mxu0 0.0
        %2852 = vmatmul.mubr.f32.gmra.mrb[0].mxu0 %v2630
        %v2853 = vpop.f32.mrb[0].mxu0
        %v2854 = vadd.f32 0.0, %v2853
        %v2855 = vpop.f32.mrb[0].mxu0
        %2856 = vmatprep.mubr.f32.mxu0 0.0
        %2857 = vmatmul.mubr.f32.gmra.mrb[0].mxu0 %v2631
        %v2858 = vpop.f32.mrb[0].mxu0
        %v2859 = vadd.f32 0.0, %v2858
        %v2860 = vpop.f32.mrb[0].mxu0
        %2861 = vmatprep.mubr.f32.mxu0 0.0
        %2862 = vmatmul.mubr.f32.gmra.mrb[0].mxu0 %v2632
        %v2863 = vpop.f32.mrb[0].mxu0
        %v2864 = vadd.f32 0.0, %v2863
        %v2865 = vpop.f32.mrb[0].mxu0
        %2866 = vmatprep.mubr.f32.mxu0 0.0
        %2867 = vmatmul.mubr.f32.gmra.mrb[0].mxu0 %v2633
        %v2868 = vpop.f32.mrb[0].mxu0
        %v2869 = vadd.f32 0.0, %v2868
        %v2870 = vpop.f32.mrb[0].mxu0
        %2871 = vmatprep.mubr.f32.mxu0 0.0
        %2872 = vmatmul.mubr.f32.gmra.mrb[0].mxu0 %v2634
        %v2873 = vpop.f32.mrb[0].mxu0
        %v2874 = vadd.f32 0.0, %v2873
        %v2875 = vpop.f32.mrb[0].mxu0
        %2876 = vdwg.mxu0
        %v2877 = vadd.f32 %v2571, %v2719
        %v2878 = vadd.f32 %v2572, %v2724
        %v2879 = vadd.f32 %v2573, %v2729
        %v2880 = vadd.f32 %v2574, %v2734
        %v2881 = vadd.f32 %v2575, %v2739
        %v2882 = vadd.f32 %v2576, %v2744
        %v2883 = vadd.f32 %v2577, %v2749
        %v2884 = vadd.f32 %v2578, %v2754
        %v2885 = vadd.f32 %v2579, %v2759
        %v2886 = vadd.f32 %v2580, %v2764
        %v2887 = vadd.f32 %v2581, %v2769
        %v2888 = vadd.f32 %v2582, %v2774
        %v2889 = vadd.f32 %v2583, %v2779
        %v2890 = vadd.f32 %v2584, %v2784
        %v2891 = vadd.f32 %v2585, %v2789
        %v2892 = vadd.f32 %v2586, %v2794
        %v2893 = vadd.f32 %v2587, %v2799
        %v2894 = vadd.f32 %v2588, %v2804
        %v2895 = vadd.f32 %v2589, %v2809
        %v2896 = vadd.f32 %v2590, %v2814
        %v2897 = vadd.f32 %v2591, %v2819
        %v2898 = vadd.f32 %v2592, %v2824
        %v2899 = vadd.f32 %v2593, %v2829
        %v2900 = vadd.f32 %v2594, %v2834
        %v2901 = vadd.f32 %v2595, %v2839
        %v2902 = vadd.f32 %v2596, %v2844
        %v2903 = vadd.f32 %v2597, %v2849
        %v2904 = vadd.f32 %v2598, %v2854
        %v2905 = vadd.f32 %v2599, %v2859
        %v2906 = vadd.f32 %v2600, %v2864
        %v2907 = vadd.f32 %v2601, %v2869
        %v2908 = vadd.f32 %v2602, %v2874
        %v2909 = vadd.f32 %v2877, %v2878
        %v2910 = vadd.f32 %v2909, %v2879
        %v2911 = vadd.f32 %v2910, %v2880
        %v2912 = vadd.f32 %v2911, %v2881
        %v2913 = vadd.f32 %v2912, %v2882
        %v2914 = vadd.f32 %v2913, %v2883
        %v2915 = vadd.f32 %v2914, %v2884
        %v2916 = vadd.f32 %v2915, %v2885
        %v2917 = vadd.f32 %v2916, %v2886
        %v2918 = vadd.f32 %v2917, %v2887
        %v2919 = vadd.f32 %v2918, %v2888
        %v2920 = vadd.f32 %v2919, %v2889
        %v2921 = vadd.f32 %v2920, %v2890
        %v2922 = vadd.f32 %v2921, %v2891
        %v2923 = vadd.f32 %v2922, %v2892
        %v2924 = vadd.f32 %v2923, %v2893
        %v2925 = vadd.f32 %v2924, %v2894
        %v2926 = vadd.f32 %v2925, %v2895
        %v2927 = vadd.f32 %v2926, %v2896
        %v2928 = vadd.f32 %v2927, %v2897
        %v2929 = vadd.f32 %v2928, %v2898
        %v2930 = vadd.f32 %v2929, %v2899
        %v2931 = vadd.f32 %v2930, %v2900
        %v2932 = vadd.f32 %v2931, %v2901
        %v2933 = vadd.f32 %v2932, %v2902
        %v2934 = vadd.f32 %v2933, %v2903
        %v2935 = vadd.f32 %v2934, %v2904
        %v2936 = vadd.f32 %v2935, %v2905
        %v2937 = vadd.f32 %v2936, %v2906
        %v2938 = vadd.f32 %v2937, %v2907
        %v2939 = vadd.f32 %v2938, %v2908
        %v2940 = vrot.slane %v2939, 4
        %v2941 = vadd.f32 %v2939, %v2940
        %v2942 = vrot.slane %v2941, 2
        %v2943 = vadd.f32 %v2941, %v2942
        %v2944 = vrot.slane %v2943, 1
        %v2945 = vadd.f32 %v2943, %v2944
        %v2946 = vrcp.pop 256.0
        %v2947 = vmul.f32 %v2945, %v2946
        %v2948 = vsub.f32 %v2877, %v2947
        %v2949 = vsub.f32 %v2878, %v2947
        %v2950 = vsub.f32 %v2879, %v2947
        %v2951 = vsub.f32 %v2880, %v2947
        %v2952 = vsub.f32 %v2881, %v2947
        %v2953 = vsub.f32 %v2882, %v2947
        %v2954 = vsub.f32 %v2883, %v2947
        %v2955 = vsub.f32 %v2884, %v2947
        %v2956 = vsub.f32 %v2885, %v2947
        %v2957 = vsub.f32 %v2886, %v2947
        %v2958 = vsub.f32 %v2887, %v2947
        %v2959 = vsub.f32 %v2888, %v2947
        %v2960 = vsub.f32 %v2889, %v2947
        %v2961 = vsub.f32 %v2890, %v2947
        %v2962 = vsub.f32 %v2891, %v2947
        %v2963 = vsub.f32 %v2892, %v2947
        %v2964 = vsub.f32 %v2893, %v2947
        %v2965 = vsub.f32 %v2894, %v2947
        %v2966 = vsub.f32 %v2895, %v2947
        %v2967 = vsub.f32 %v2896, %v2947
        %v2968 = vsub.f32 %v2897, %v2947
        %v2969 = vsub.f32 %v2898, %v2947
        %v2970 = vsub.f32 %v2899, %v2947
        %v2971 = vsub.f32 %v2900, %v2947
        %v2972 = vsub.f32 %v2901, %v2947
        %v2973 = vsub.f32 %v2902, %v2947
        %v2974 = vsub.f32 %v2903, %v2947
        %v2975 = vsub.f32 %v2904, %v2947
        %v2976 = vsub.f32 %v2905, %v2947
        %v2977 = vsub.f32 %v2906, %v2947
        %v2978 = vsub.f32 %v2907, %v2947
        %v2979 = vsub.f32 %v2908, %v2947
        %v2980 = vmul.f32 %v2948, %v2948
        %v2981 = vmul.f32 %v2949, %v2949
        %v2982 = vmul.f32 %v2950, %v2950
        %v2983 = vmul.f32 %v2951, %v2951
        %v2984 = vmul.f32 %v2952, %v2952
        %v2985 = vmul.f32 %v2953, %v2953
        %v2986 = vmul.f32 %v2954, %v2954
        %v2987 = vmul.f32 %v2955, %v2955
        %v2988 = vmul.f32 %v2956, %v2956
        %v2989 = vmul.f32 %v2957, %v2957
        %v2990 = vmul.f32 %v2958, %v2958
        %v2991 = vmul.f32 %v2959, %v2959
        %v2992 = vmul.f32 %v2960, %v2960
        %v2993 = vmul.f32 %v2961, %v2961
        %v2994 = vmul.f32 %v2962, %v2962
        %v2995 = vmul.f32 %v2963, %v2963
        %v2996 = vmul.f32 %v2964, %v2964
        %v2997 = vmul.f32 %v2965, %v2965
        %v2998 = vmul.f32 %v2966, %v2966
        %v2999 = vmul.f32 %v2967, %v2967
        %v3000 = vmul.f32 %v2968, %v2968
        %v3001 = vmul.f32 %v2969, %v2969
        %v3002 = vmul.f32 %v2970, %v2970
        %v3003 = vmul.f32 %v2971, %v2971
        %v3004 = vmul.f32 %v2972, %v2972
        %v3005 = vmul.f32 %v2973, %v2973
        %v3006 = vmul.f32 %v2974, %v2974
        %v3007 = vmul.f32 %v2975, %v2975
        %v3008 = vmul.f32 %v2976, %v2976
        %v3009 = vmul.f32 %v2977, %v2977
        %v3010 = vmul.f32 %v2978, %v2978
        %v3011 = vmul.f32 %v2979, %v2979
        %v3012 = vadd.f32 %v2980, %v2981
        %v3013 = vadd.f32 %v3012, %v2982
        %v3014 = vadd.f32 %v3013, %v2983
        %v3015 = vadd.f32 %v3014, %v2984
        %v3016 = vadd.f32 %v3015, %v2985
        %v3017 = vadd.f32 %v3016, %v2986
        %v3018 = vadd.f32 %v3017, %v2987
        %v3019 = vadd.f32 %v3018, %v2988
        %v3020 = vadd.f32 %v3019, %v2989
        %v3021 = vadd.f32 %v3020, %v2990
        %v3022 = vadd.f32 %v3021, %v2991
        %v3023 = vadd.f32 %v3022, %v2992
        %v3024 = vadd.f32 %v3023, %v2993
        %v3025 = vadd.f32 %v3024, %v2994
        %v3026 = vadd.f32 %v3025, %v2995
        %v3027 = vadd.f32 %v3026, %v2996
        %v3028 = vadd.f32 %v3027, %v2997
        %v3029 = vadd.f32 %v3028, %v2998
        %v3030 = vadd.f32 %v3029, %v2999
        %v3031 = vadd.f32 %v3030, %v3000
        %v3032 = vadd.f32 %v3031, %v3001
        %v3033 = vadd.f32 %v3032, %v3002
        %v3034 = vadd.f32 %v3033, %v3003
        %v3035 = vadd.f32 %v3034, %v3004
        %v3036 = vadd.f32 %v3035, %v3005
        %v3037 = vadd.f32 %v3036, %v3006
        %v3038 = vadd.f32 %v3037, %v3007
        %v3039 = vadd.f32 %v3038, %v3008
        %v3040 = vadd.f32 %v3039, %v3009
        %v3041 = vadd.f32 %v3040, %v3010
        %v3042 = vadd.f32 %v3041, %v3011
        %v3043 = vrot.slane %v3042, 4
        %v3044 = vadd.f32 %v3042, %v3043
        %v3045 = vrot.slane %v3044, 2
        %v3046 = vadd.f32 %v3044, %v3045
        %v3047 = vrot.slane %v3046, 1
        %v3048 = vadd.f32 %v3046, %v3047
        %v3049 = vmul.f32 %v3048, %v2946
        %v3050 = vadd.f32 %v3049, 1e-05
        %v3051 = vrsqrt.pop %v3050
        %v3052 = vmul.f32 %v2948, %v3051
        %v3053 = vmul.f32 %v2949, %v3051
        %v3054 = vmul.f32 %v2950, %v3051
        %v3055 = vmul.f32 %v2951, %v3051
        %v3056 = vmul.f32 %v2952, %v3051
        %v3057 = vmul.f32 %v2953, %v3051
        %v3058 = vmul.f32 %v2954, %v3051
        %v3059 = vmul.f32 %v2955, %v3051
        %v3060 = vmul.f32 %v2956, %v3051
        %v3061 = vmul.f32 %v2957, %v3051
        %v3062 = vmul.f32 %v2958, %v3051
        %v3063 = vmul.f32 %v2959, %v3051
        %v3064 = vmul.f32 %v2960, %v3051
        %v3065 = vmul.f32 %v2961, %v3051
        %v3066 = vmul.f32 %v2962, %v3051
        %v3067 = vmul.f32 %v2963, %v3051
        %v3068 = vmul.f32 %v2964, %v3051
        %v3069 = vmul.f32 %v2965, %v3051
        %v3070 = vmul.f32 %v2966, %v3051
        %v3071 = vmul.f32 %v2967, %v3051
        %v3072 = vmul.f32 %v2968, %v3051
        %v3073 = vmul.f32 %v2969, %v3051
        %v3074 = vmul.f32 %v2970, %v3051
        %v3075 = vmul.f32 %v2971, %v3051
        %v3076 = vmul.f32 %v2972, %v3051
        %v3077 = vmul.f32 %v2973, %v3051
        %v3078 = vmul.f32 %v2974, %v3051
        %v3079 = vmul.f32 %v2975, %v3051
        %v3080 = vmul.f32 %v2976, %v3051
        %v3081 = vmul.f32 %v2977, %v3051
        %v3082 = vmul.f32 %v2978, %v3051
        %v3083 = vmul.f32 %v2979, %v3051
        %v3084 = vmax.f32 %v3052, 0.0
        %v3085 = vmax.f32 %v3053, 0.0
        %v3086 = vmax.f32 %v3054, 0.0
        %v3087 = vmax.f32 %v3055, 0.0
        %v3088 = vmax.f32 %v3056, 0.0
        %v3089 = vmax.f32 %v3057, 0.0
        %v3090 = vmax.f32 %v3058, 0.0
        %v3091 = vmax.f32 %v3059, 0.0
        %v3092 = vmax.f32 %v3060, 0.0
        %v3093 = vmax.f32 %v3061, 0.0
        %v3094 = vmax.f32 %v3062, 0.0
        %v3095 = vmax.f32 %v3063, 0.0
        %v3096 = vmax.f32 %v3064, 0.0
        %v3097 = vmax.f32 %v3065, 0.0
        %v3098 = vmax.f32 %v3066, 0.0
        %v3099 = vmax.f32 %v3067, 0.0
        %v3100 = vmax.f32 %v3068, 0.0
        %v3101 = vmax.f32 %v3069, 0.0
        %v3102 = vmax.f32 %v3070, 0.0
        %v3103 = vmax.f32 %v3071, 0.0
        %v3104 = vmax.f32 %v3072, 0.0
        %v3105 = vmax.f32 %v3073, 0.0
        %v3106 = vmax.f32 %v3074, 0.0
        %v3107 = vmax.f32 %v3075, 0.0
        %v3108 = vmax.f32 %v3076, 0.0
        %v3109 = vmax.f32 %v3077, 0.0
        %v3110 = vmax.f32 %v3078, 0.0
        %v3111 = vmax.f32 %v3079, 0.0
        %v3112 = vmax.f32 %v3080, 0.0
        %v3113 = vmax.f32 %v3081, 0.0
        %v3114 = vmax.f32 %v3082, 0.0
        %v3115 = vmax.f32 %v3083, 0.0
        %s3116 = scalar_lea.vmem [#allocation2], 24
        %3117 = vst [vmem:[%s3116 + $0x1] sm:$0xff] %v3084
        %3118 = vst [vmem:[%s3116 + $0x9] sm:$0xff] %v3085
        %3119 = vst [vmem:[%s3116 + $0x19] sm:$0xff] %v3086
        %3120 = vst [vmem:[%s3116 + $0x21] sm:$0xff] %v3087
        %3121 = vst [vmem:[%s3116 + $0x31] sm:$0xff] %v3088
        %3122 = vst [vmem:[%s3116 + $0x39] sm:$0xff] %v3089
        %3123 = vst [vmem:[%s3116 + $0x49] sm:$0xff] %v3090
        %3124 = vst [vmem:[%s3116 + $0x51] sm:$0xff] %v3091
        %3125 = vst [vmem:[%s3116 + $0x61] sm:$0xff] %v3092
        %3126 = vst [vmem:[%s3116 + $0x69] sm:$0xff] %v3093
        %3127 = vst [vmem:[%s3116 + $0x79] sm:$0xff] %v3094
        %3128 = vst [vmem:[%s3116 + $0x81] sm:$0xff] %v3095
        %3129 = vst [vmem:[%s3116 + $0x91] sm:$0xff] %v3096
        %3130 = vst [vmem:[%s3116 + $0x99] sm:$0xff] %v3097
        %3131 = vst [vmem:[%s3116 + $0xa9] sm:$0xff] %v3098
        %3132 = vst [vmem:[%s3116 + $0xb1] sm:$0xff] %v3099
        %3133 = vst [vmem:[%s3116 + $0xc1] sm:$0xff] %v3100
        %3134 = vst [vmem:[%s3116 + $0xc9] sm:$0xff] %v3101
        %3135 = vst [vmem:[%s3116 + $0xd9] sm:$0xff] %v3102
        %3136 = vst [vmem:[%s3116 + $0xe1] sm:$0xff] %v3103
        %3137 = vst [vmem:[%s3116 + $0xf1] sm:$0xff] %v3104
        %3138 = vst [vmem:[%s3116 + $0xf9] sm:$0xff] %v3105
        %3139 = vst [vmem:[%s3116 + $0x109] sm:$0xff] %v3106
        %3140 = vst [vmem:[%s3116 + $0x111] sm:$0xff] %v3107
        %3141 = vst [vmem:[%s3116 + $0x121] sm:$0xff] %v3108
        %3142 = vst [vmem:[%s3116 + $0x129] sm:$0xff] %v3109
        %3143 = vst [vmem:[%s3116 + $0x139] sm:$0xff] %v3110
        %3144 = vst [vmem:[%s3116 + $0x141] sm:$0xff] %v3111
        %3145 = vst [vmem:[%s3116 + $0x151] sm:$0xff] %v3112
        %3146 = vst [vmem:[%s3116 + $0x159] sm:$0xff] %v3113
        %3147 = vst [vmem:[%s3116 + $0x169] sm:$0xff] %v3114
        %3148 = vst [vmem:[%s3116 + $0x171] sm:$0xff] %v3115
        %s3149 = scalar_lea.vmem [#allocation2], 48
        %v3150 = vld [vmem:[%s3149 + $0x1] sm:$0xff]
        %v3151 = vld [vmem:[%s3149 + $0x9] sm:$0xff]
        %3152 = vst [vmem:[#allocation2 + $0x1] sm:$0xff] %v3150
        %3153 = vst [vmem:[#allocation2 + $0x9] sm:$0xff] %v3151
        %s3154 = scalar_lea.vmem [#allocation2], 360
        %v3155 = vld [vmem:[%s3154 + $0x1] sm:$0xff]
        %v3156 = vld [vmem:[%s3154 + $0x9] sm:$0xff]
        %s3157 = scalar_lea.vmem [#allocation2], 408
        %3158 = vst [vmem:[%s3157 + $0x1] sm:$0xff] %v3155
        %3159 = vst [vmem:[%s3157 + $0x9] sm:$0xff] %v3156
        %v3160 = vld [vmem:[#allocation2 + $0x2] sm:$0x1]
        %v3161 = vld [vmem:[#allocation2 + $0x1a] sm:$0x1]
        %v3162 = vld [vmem:[#allocation2 + $0x32] sm:$0x1]
        %v3163 = vld [vmem:[#allocation2 + $0x4a] sm:$0x1]
        %v3164 = vld [vmem:[#allocation2 + $0x62] sm:$0x1]
        %v3165 = vld [vmem:[#allocation2 + $0x7a] sm:$0x1]
        %v3166 = vld [vmem:[#allocation2 + $0x92] sm:$0x1]
        %v3167 = vld [vmem:[#allocation2 + $0xaa] sm:$0x1]
        %v3168 = vld [vmem:[#allocation2 + $0xc2] sm:$0x1]
        %v3169 = vld [vmem:[#allocation2 + $0xda] sm:$0x1]
        %v3170 = vld [vmem:[#allocation2 + $0xf2] sm:$0x1]
        %v3171 = vld [vmem:[#allocation2 + $0x10a] sm:$0x1]
        %v3172 = vld [vmem:[#allocation2 + $0x122] sm:$0x1]
        %v3173 = vld [vmem:[#allocation2 + $0x13a] sm:$0x1]
        %v3174 = vld [vmem:[#allocation2 + $0x152] sm:$0x1]
        %v3175 = vld [vmem:[#allocation2 + $0x16a] sm:$0x1]
        %v3176 = vld [vmem:[#allocation2 + $0x182] sm:$0x1]
        %v3177 = vld [vmem:[#allocation2 + $0x19a] sm:$0x1]
        %3178 = vst [vmem:[#allocation2] sm:$0x1] %v3160
        %3179 = vst [vmem:[#allocation2 + $0x18] sm:$0x1] %v3161
        %3180 = vst [vmem:[#allocation2 + $0x30] sm:$0x1] %v3162
        %3181 = vst [vmem:[#allocation2 + $0x48] sm:$0x1] %v3163
        %3182 = vst [vmem:[#allocation2 + $0x60] sm:$0x1] %v3164
        %3183 = vst [vmem:[#allocation2 + $0x78] sm:$0x1] %v3165
        %3184 = vst [vmem:[#allocation2 + $0x90] sm:$0x1] %v3166
        %3185 = vst [vmem:[#allocation2 + $0xa8] sm:$0x1] %v3167
        %3186 = vst [vmem:[#allocation2 + $0xc0] sm:$0x1] %v3168
        %3187 = vst [vmem:[#allocation2 + $0xd8] sm:$0x1] %v3169
        %3188 = vst [vmem:[#allocation2 + $0xf0] sm:$0x1] %v3170
        %3189 = vst [vmem:[#allocation2 + $0x108] sm:$0x1] %v3171
        %3190 = vst [vmem:[#allocation2 + $0x120] sm:$0x1] %v3172
        %3191 = vst [vmem:[#allocation2 + $0x138] sm:$0x1] %v3173
        %3192 = vst [vmem:[#allocation2 + $0x150] sm:$0x1] %v3174
        %3193 = vst [vmem:[#allocation2 + $0x168] sm:$0x1] %v3175
        %3194 = vst [vmem:[#allocation2 + $0x180] sm:$0x1] %v3176
        %3195 = vst [vmem:[#allocation2 + $0x198] sm:$0x1] %v3177
        %v3196 = vld [vmem:[#allocation2 + $0xf] sm:$0x1]
        %v3197 = vld [vmem:[#allocation2 + $0x27] sm:$0x1]
        %v3198 = vld [vmem:[#allocation2 + $0x3f] sm:$0x1]
        %v3199 = vld [vmem:[#allocation2 + $0x57] sm:$0x1]
        %v3200 = vld [vmem:[#allocation2 + $0x6f] sm:$0x1]
        %v3201 = vld [vmem:[#allocation2 + $0x87] sm:$0x1]
        %v3202 = vld [vmem:[#allocation2 + $0x9f] sm:$0x1]
        %v3203 = vld [vmem:[#allocation2 + $0xb7] sm:$0x1]
        %v3204 = vld [vmem:[#allocation2 + $0xcf] sm:$0x1]
        %v3205 = vld [vmem:[#allocation2 + $0xe7] sm:$0x1]
        %v3206 = vld [vmem:[#allocation2 + $0xff] sm:$0x1]
        %v3207 = vld [vmem:[#allocation2 + $0x117] sm:$0x1]
        %v3208 = vld [vmem:[#allocation2 + $0x12f] sm:$0x1]
        %v3209 = vld [vmem:[#allocation2 + $0x147] sm:$0x1]
        %v3210 = vld [vmem:[#allocation2 + $0x15f] sm:$0x1]
        %v3211 = vld [vmem:[#allocation2 + $0x177] sm:$0x1]
        %v3212 = vld [vmem:[#allocation2 + $0x18f] sm:$0x1]
        %v3213 = vld [vmem:[#allocation2 + $0x1a7] sm:$0x1]
        %3214 = vst [vmem:[#allocation2 + $0x11] sm:$0x1] %v3196
        %3215 = vst [vmem:[#allocation2 + $0x29] sm:$0x1] %v3197
        %3216 = vst [vmem:[#allocation2 + $0x41] sm:$0x1] %v3198
        %3217 = vst [vmem:[#allocation2 + $0x59] sm:$0x1] %v3199
        %3218 = vst [vmem:[#allocation2 + $0x71] sm:$0x1] %v3200
        %3219 = vst [vmem:[#allocation2 + $0x89] sm:$0x1] %v3201
        %3220 = vst [vmem:[#allocation2 + $0xa1] sm:$0x1] %v3202
        %3221 = vst [vmem:[#allocation2 + $0xb9] sm:$0x1] %v3203
        %3222 = vst [vmem:[#allocation2 + $0xd1] sm:$0x1] %v3204
        %3223 = vst [vmem:[#allocation2 + $0xe9] sm:$0x1] %v3205
        %3224 = vst [vmem:[#allocation2 + $0x101] sm:$0x1] %v3206
        %3225 = vst [vmem:[#allocation2 + $0x119] sm:$0x1] %v3207
        %3226 = vst [vmem:[#allocation2 + $0x131] sm:$0x1] %v3208
        %3227 = vst [vmem:[#allocation2 + $0x149] sm:$0x1] %v3209
        %3228 = vst [vmem:[#allocation2 + $0x161] sm:$0x1] %v3210
        %3229 = vst [vmem:[#allocation2 + $0x179] sm:$0x1] %v3211
        %3230 = vst [vmem:[#allocation2 + $0x191] sm:$0x1] %v3212
        %3231 = vst [vmem:[#allocation2 + $0x1a9] sm:$0x1] %v3213
        %v3232 = vld [vmem:[#allocation2] sm:$0xff]
        %v3233 = vld [vmem:[#allocation2 + $0x8] sm:$0xff]
        %v3234 = vld [vmem:[#allocation2 + $0x18] sm:$0xff]
        %v3235 = vld [vmem:[#allocation2 + $0x20] sm:$0xff]
        %v3236 = vld [vmem:[#allocation2 + $0x30] sm:$0xff]
        %v3237 = vld [vmem:[#allocation2 + $0x38] sm:$0xff]
        %v3238 = vld [vmem:[#allocation2 + $0x48] sm:$0xff]
        %v3239 = vld [vmem:[#allocation2 + $0x50] sm:$0xff]
        %v3240 = vld [vmem:[#allocation2 + $0x60] sm:$0xff]
        %v3241 = vld [vmem:[#allocation2 + $0x68] sm:$0xff]
        %v3242 = vld [vmem:[#allocation2 + $0x78] sm:$0xff]
        %v3243 = vld [vmem:[#allocation2 + $0x80] sm:$0xff]
        %v3244 = vld [vmem:[#allocation2 + $0x90] sm:$0xff]
        %v3245 = vld [vmem:[#allocation2 + $0x98] sm:$0xff]
        %v3246 = vld [vmem:[#allocation2 + $0xa8] sm:$0xff]
        %v3247 = vld [vmem:[#allocation2 + $0xb0] sm:$0xff]
        %v3248 = vld [vmem:[#allocation2 + $0xc0] sm:$0xff]
        %v3249 = vld [vmem:[#allocation2 + $0xc8] sm:$0xff]
        %v3250 = vld [vmem:[#allocation2 + $0xd8] sm:$0xff]
        %v3251 = vld [vmem:[#allocation2 + $0xe0] sm:$0xff]
        %v3252 = vld [vmem:[#allocation2 + $0xf0] sm:$0xff]
        %v3253 = vld [vmem:[#allocation2 + $0xf8] sm:$0xff]
        %v3254 = vld [vmem:[#allocation2 + $0x108] sm:$0xff]
        %v3255 = vld [vmem:[#allocation2 + $0x110] sm:$0xff]
        %v3256 = vld [vmem:[#allocation2 + $0x120] sm:$0xff]
        %v3257 = vld [vmem:[#allocation2 + $0x128] sm:$0xff]
        %v3258 = vld [vmem:[#allocation2 + $0x138] sm:$0xff]
        %v3259 = vld [vmem:[#allocation2 + $0x140] sm:$0xff]
        %v3260 = vld [vmem:[#allocation2 + $0x150] sm:$0xff]
        %v3261 = vld [vmem:[#allocation2 + $0x158] sm:$0xff]
        %v3262 = vld [vmem:[#allocation2 + $0x168] sm:$0xff]
        %v3263 = vld [vmem:[#allocation2 + $0x170] sm:$0xff]
        %v3264 = vld [vmem:[#allocation8] sm:$0xff]
        %v3265 = vld [vmem:[#allocation8 + $0x8] sm:$0xff]
        %v3266 = vld [vmem:[#allocation8 + $0x10] sm:$0xff]
        %v3267 = vld [vmem:[#allocation8 + $0x18] sm:$0xff]
        %v3268 = vld [vmem:[#allocation8 + $0x20] sm:$0xff]
        %v3269 = vld [vmem:[#allocation8 + $0x28] sm:$0xff]
        %v3270 = vld [vmem:[#allocation8 + $0x30] sm:$0xff]
        %v3271 = vld [vmem:[#allocation8 + $0x38] sm:$0xff]
        %v3272 = vld [vmem:[#allocation8 + $0x40] sm:$0xff]
        %v3273 = vld [vmem:[#allocation8 + $0x48] sm:$0xff]
        %v3274 = vld [vmem:[#allocation8 + $0x50] sm:$0xff]
        %v3275 = vld [vmem:[#allocation8 + $0x58] sm:$0xff]
        %v3276 = vld [vmem:[#allocation8 + $0x60] sm:$0xff]
        %v3277 = vld [vmem:[#allocation8 + $0x68] sm:$0xff]
        %v3278 = vld [vmem:[#allocation8 + $0x70] sm:$0xff]
        %v3279 = vld [vmem:[#allocation8 + $0x78] sm:$0xff]
        %v3280 = vld [vmem:[#allocation2 + $0x1] sm:$0xff]
        %v3281 = vld [vmem:[#allocation2 + $0x9] sm:$0xff]
        %v3282 = vld [vmem:[#allocation2 + $0x19] sm:$0xff]
        %v3283 = vld [vmem:[#allocation2 + $0x21] sm:$0xff]
        %v3284 = vld [vmem:[#allocation2 + $0x31] sm:$0xff]
        %v3285 = vld [vmem:[#allocation2 + $0x39] sm:$0xff]
        %v3286 = vld [vmem:[#allocation2 + $0x49] sm:$0xff]
        %v3287 = vld [vmem:[#allocation2 + $0x51] sm:$0xff]
        %v3288 = vld [vmem:[#allocation2 + $0x61] sm:$0xff]
        %v3289 = vld [vmem:[#allocation2 + $0x69] sm:$0xff]
        %v3290 = vld [vmem:[#allocation2 + $0x79] sm:$0xff]
        %v3291 = vld [vmem:[#allocation2 + $0x81] sm:$0xff]
        %v3292 = vld [vmem:[#allocation2 + $0x91] sm:$0xff]
        %v3293 = vld [vmem:[#allocation2 + $0x99] sm:$0xff]
        %v3294 = vld [vmem:[#allocation2 + $0xa9] sm:$0xff]
        %v3295 = vld [vmem:[#allocation2 + $0xb1] sm:$0xff]
        %v3296 = vld [vmem:[#allocation2 + $0xc1] sm:$0xff]
        %v3297 = vld [vmem:[#allocation2 + $0xc9] sm:$0xff]
        %v3298 = vld [vmem:[#allocation2 + $0xd9] sm:$0xff]
        %v3299 = vld [vmem:[#allocation2 + $0xe1] sm:$0xff]
        %v3300 = vld [vmem:[#allocation2 + $0xf1] sm:$0xff]
        %v3301 = vld [vmem:[#allocation2 + $0xf9] sm:$0xff]
        %v3302 = vld [vmem:[#allocation2 + $0x109] sm:$0xff]
        %v3303 = vld [vmem:[#allocation2 + $0x111] sm:$0xff]
        %v3304 = vld [vmem:[#allocation2 + $0x121] sm:$0xff]
        %v3305 = vld [vmem:[#allocation2 + $0x129] sm:$0xff]
        %v3306 = vld [vmem:[#allocation2 + $0x139] sm:$0xff]
        %v3307 = vld [vmem:[#allocation2 + $0x141] sm:$0xff]
        %v3308 = vld [vmem:[#allocation2 + $0x151] sm:$0xff]
        %v3309 = vld [vmem:[#allocation2 + $0x159] sm:$0xff]
        %v3310 = vld [vmem:[#allocation2 + $0x169] sm:$0xff]
        %v3311 = vld [vmem:[#allocation2 + $0x171] sm:$0xff]
        %s3312 = scalar_lea.vmem [#allocation8], 128
        %v3313 = vld [vmem:[%s3312] sm:$0xff]
        %v3314 = vld [vmem:[%s3312 + $0x8] sm:$0xff]
        %v3315 = vld [vmem:[%s3312 + $0x10] sm:$0xff]
        %v3316 = vld [vmem:[%s3312 + $0x18] sm:$0xff]
        %v3317 = vld [vmem:[%s3312 + $0x20] sm:$0xff]
        %v3318 = vld [vmem:[%s3312 + $0x28] sm:$0xff]
        %v3319 = vld [vmem:[%s3312 + $0x30] sm:$0xff]
        %v3320 = vld [vmem:[%s3312 + $0x38] sm:$0xff]
        %v3321 = vld [vmem:[%s3312 + $0x40] sm:$0xff]
        %v3322 = vld [vmem:[%s3312 + $0x48] sm:$0xff]
        %v3323 = vld [vmem:[%s3312 + $0x50] sm:$0xff]
        %v3324 = vld [vmem:[%s3312 + $0x58] sm:$0xff]
        %v3325 = vld [vmem:[%s3312 + $0x60] sm:$0xff]
        %v3326 = vld [vmem:[%s3312 + $0x68] sm:$0xff]
        %v3327 = vld [vmem:[%s3312 + $0x70] sm:$0xff]
        %v3328 = vld [vmem:[%s3312 + $0x78] sm:$0xff]
        %3329 = vmatprep.subr.mxu0 0.0
        %3330 = vmatpush1.msra.mxu0 %v3313
        %3331 = vmatprep.subr.mxu0 0.0
        %3332 = vmatpush1.msra.mxu0 %v3314
        %3333 = vmatprep.subr.mxu0 0.0
        %3334 = vmatpush1.msra.mxu0 %v3315
        %3335 = vmatprep.subr.mxu0 0.0
        %3336 = vmatpush1.msra.mxu0 %v3316
        %3337 = vmatprep.subr.mxu0 0.0
        %3338 = vmatpush1.msra.mxu0 %v3317
        %3339 = vmatprep.subr.mxu0 0.0
        %3340 = vmatpush1.msra.mxu0 %v3318
        %3341 = vmatprep.subr.mxu0 0.0
        %3342 = vmatpush1.msra.mxu0 %v3319
        %3343 = vmatprep.subr.mxu0 0.0
        %3344 = vmatpush1.msra.mxu0 %v3320
        %3345 = vmatprep.subr.mxu0 0.0
        %3346 = vmatpush1.msra.mxu0 %v3321
        %3347 = vmatprep.subr.mxu0 0.0
        %3348 = vmatpush1.msra.mxu0 %v3322
        %3349 = vmatprep.subr.mxu0 0.0
        %3350 = vmatpush1.msra.mxu0 %v3323
        %3351 = vmatprep.subr.mxu0 0.0
        %3352 = vmatpush1.msra.mxu0 %v3324
        %3353 = vmatprep.subr.mxu0 0.0
        %3354 = vmatpush1.msra.mxu0 %v3325
        %3355 = vmatprep.subr.mxu0 0.0
        %3356 = vmatpush1.msra.mxu0 %v3326
        %3357 = vmatprep.subr.mxu0 0.0
        %3358 = vmatpush1.msra.mxu0 %v3327
        %3359 = vmatprep.subr.mxu0 0.0
        %3360 = vmatpush1.msra.mxu0 %v3328
        %3361 = vmatprep.subr.mxu0 0.0
        %3362 = vmatpush1.msra.mxu0 0.0
        %3363 = vmatprep.subr.mxu0 0.0
        %3364 = vmatpush1.msra.mxu0 0.0
        %3365 = vmatprep.subr.mxu0 0.0
        %3366 = vmatpush1.msra.mxu0 0.0
        %3367 = vmatprep.subr.mxu0 0.0
        %3368 = vmatpush1.msra.mxu0 0.0
        %3369 = vmatprep.subr.mxu0 0.0
        %3370 = vmatpush1.msra.mxu0 0.0
        %3371 = vmatprep.subr.mxu0 0.0
        %3372 = vmatpush1.msra.mxu0 0.0
        %3373 = vmatprep.subr.mxu0 0.0
        %3374 = vmatpush1.msra.mxu0 0.0
        %3375 = vmatprep.subr.mxu0 0.0
        %3376 = vmatpush1.msra.mxu0 0.0
        %3377 = vmatprep.subr.mxu0 0.0
        %3378 = vmatpush1.msra.mxu0 0.0
        %3379 = vmatprep.subr.mxu0 0.0
        %3380 = vmatpush1.msra.mxu0 0.0
        %3381 = vmatprep.subr.mxu0 0.0
        %3382 = vmatpush1.msra.mxu0 0.0
        %3383 = vmatprep.subr.mxu0 0.0
        %3384 = vmatpush1.msra.mxu0 0.0
        %3385 = vmatprep.subr.mxu0 0.0
        %3386 = vmatpush1.msra.mxu0 0.0
        %3387 = vmatprep.subr.mxu0 0.0
        %3388 = vmatpush1.msra.mxu0 0.0
        %3389 = vmatprep.subr.mxu0 0.0
        %3390 = vmatpush1.msra.mxu0 0.0
        %3391 = vmatprep.subr.mxu0 0.0
        %3392 = vmatpush1.msra.mxu0 0.0
        %3393 = vmatprep.mubr.f32.mxu0 0.0
        %3394 = vmatmul.mubr.f32.gmra.mrb[0].mxu0 %v3280
        %v3395 = vpop.f32.mrb[0].mxu0
        %v3396 = vadd.f32 0.0, %v3395
        %v3397 = vpop.f32.mrb[0].mxu0
        %3398 = vmatprep.mubr.f32.mxu0 0.0
        %3399 = vmatmul.mubr.f32.gmra.mrb[0].mxu0 %v3281
        %v3400 = vpop.f32.mrb[0].mxu0
        %v3401 = vadd.f32 0.0, %v3400
        %v3402 = vpop.f32.mrb[0].mxu0
        %3403 = vmatprep.mubr.f32.mxu0 0.0
        %3404 = vmatmul.mubr.f32.gmra.mrb[0].mxu0 %v3282
        %v3405 = vpop.f32.mrb[0].mxu0
        %v3406 = vadd.f32 0.0, %v3405
        %v3407 = vpop.f32.mrb[0].mxu0
        %3408 = vmatprep.mubr.f32.mxu0 0.0
        %3409 = vmatmul.mubr.f32.gmra.mrb[0].mxu0 %v3283
        %v3410 = vpop.f32.mrb[0].mxu0
        %v3411 = vadd.f32 0.0, %v3410
        %v3412 = vpop.f32.mrb[0].mxu0
        %3413 = vmatprep.mubr.f32.mxu0 0.0
        %3414 = vmatmul.mubr.f32.gmra.mrb[0].mxu0 %v3284
        %v3415 = vpop.f32.mrb[0].mxu0
        %v3416 = vadd.f32 0.0, %v3415
        %v3417 = vpop.f32.mrb[0].mxu0
        %3418 = vmatprep.mubr.f32.mxu0 0.0
        %3419 = vmatmul.mubr.f32.gmra.mrb[0].mxu0 %v3285
        %v3420 = vpop.f32.mrb[0].mxu0
        %v3421 = vadd.f32 0.0, %v3420
        %v3422 = vpop.f32.mrb[0].mxu0
        %3423 = vmatprep.mubr.f32.mxu0 0.0
        %3424 = vmatmul.mubr.f32.gmra.mrb[0].mxu0 %v3286
        %v3425 = vpop.f32.mrb[0].mxu0
        %v3426 = vadd.f32 0.0, %v3425
        %v3427 = vpop.f32.mrb[0].mxu0
        %3428 = vmatprep.mubr.f32.mxu0 0.0
        %3429 = vmatmul.mubr.f32.gmra.mrb[0].mxu0 %v3287
        %v3430 = vpop.f32.mrb[0].mxu0
        %v3431 = vadd.f32 0.0, %v3430
        %v3432 = vpop.f32.mrb[0].mxu0
        %3433 = vmatprep.mubr.f32.mxu0 0.0
        %3434 = vmatmul.mubr.f32.gmra.mrb[0].mxu0 %v3288
        %v3435 = vpop.f32.mrb[0].mxu0
        %v3436 = vadd.f32 0.0, %v3435
        %v3437 = vpop.f32.mrb[0].mxu0
        %3438 = vmatprep.mubr.f32.mxu0 0.0
        %3439 = vmatmul.mubr.f32.gmra.mrb[0].mxu0 %v3289
        %v3440 = vpop.f32.mrb[0].mxu0
        %v3441 = vadd.f32 0.0, %v3440
        %v3442 = vpop.f32.mrb[0].mxu0
        %3443 = vmatprep.mubr.f32.mxu0 0.0
        %3444 = vmatmul.mubr.f32.gmra.mrb[0].mxu0 %v3290
        %v3445 = vpop.f32.mrb[0].mxu0
        %v3446 = vadd.f32 0.0, %v3445
        %v3447 = vpop.f32.mrb[0].mxu0
        %3448 = vmatprep.mubr.f32.mxu0 0.0
        %3449 = vmatmul.mubr.f32.gmra.mrb[0].mxu0 %v3291
        %v3450 = vpop.f32.mrb[0].mxu0
        %v3451 = vadd.f32 0.0, %v3450
        %v3452 = vpop.f32.mrb[0].mxu0
        %3453 = vmatprep.mubr.f32.mxu0 0.0
        %3454 = vmatmul.mubr.f32.gmra.mrb[0].mxu0 %v3292
        %v3455 = vpop.f32.mrb[0].mxu0
        %v3456 = vadd.f32 0.0, %v3455
        %v3457 = vpop.f32.mrb[0].mxu0
        %3458 = vmatprep.mubr.f32.mxu0 0.0
        %3459 = vmatmul.mubr.f32.gmra.mrb[0].mxu0 %v3293
        %v3460 = vpop.f32.mrb[0].mxu0
        %v3461 = vadd.f32 0.0, %v3460
        %v3462 = vpop.f32.mrb[0].mxu0
        %3463 = vmatprep.mubr.f32.mxu0 0.0
        %3464 = vmatmul.mubr.f32.gmra.mrb[0].mxu0 %v3294
        %v3465 = vpop.f32.mrb[0].mxu0
        %v3466 = vadd.f32 0.0, %v3465
        %v3467 = vpop.f32.mrb[0].mxu0
        %3468 = vmatprep.mubr.f32.mxu0 0.0
        %3469 = vmatmul.mubr.f32.gmra.mrb[0].mxu0 %v3295
        %v3470 = vpop.f32.mrb[0].mxu0
        %v3471 = vadd.f32 0.0, %v3470
        %v3472 = vpop.f32.mrb[0].mxu0
        %3473 = vmatprep.mubr.f32.mxu0 0.0
        %3474 = vmatmul.mubr.f32.gmra.mrb[0].mxu0 %v3296
        %v3475 = vpop.f32.mrb[0].mxu0
        %v3476 = vadd.f32 0.0, %v3475
        %v3477 = vpop.f32.mrb[0].mxu0
        %3478 = vmatprep.mubr.f32.mxu0 0.0
        %3479 = vmatmul.mubr.f32.gmra.mrb[0].mxu0 %v3297
        %v3480 = vpop.f32.mrb[0].mxu0
        %v3481 = vadd.f32 0.0, %v3480
        %v3482 = vpop.f32.mrb[0].mxu0
        %3483 = vmatprep.mubr.f32.mxu0 0.0
        %3484 = vmatmul.mubr.f32.gmra.mrb[0].mxu0 %v3298
        %v3485 = vpop.f32.mrb[0].mxu0
        %v3486 = vadd.f32 0.0, %v3485
        %v3487 = vpop.f32.mrb[0].mxu0
        %3488 = vmatprep.mubr.f32.mxu0 0.0
        %3489 = vmatmul.mubr.f32.gmra.mrb[0].mxu0 %v3299
        %v3490 = vpop.f32.mrb[0].mxu0
        %v3491 = vadd.f32 0.0, %v3490
        %v3492 = vpop.f32.mrb[0].mxu0
        %3493 = vmatprep.mubr.f32.mxu0 0.0
        %3494 = vmatmul.mubr.f32.gmra.mrb[0].mxu0 %v3300
        %v3495 = vpop.f32.mrb[0].mxu0
        %v3496 = vadd.f32 0.0, %v3495
        %v3497 = vpop.f32.mrb[0].mxu0
        %3498 = vmatprep.mubr.f32.mxu0 0.0
        %3499 = vmatmul.mubr.f32.gmra.mrb[0].mxu0 %v3301
        %v3500 = vpop.f32.mrb[0].mxu0
        %v3501 = vadd.f32 0.0, %v3500
        %v3502 = vpop.f32.mrb[0].mxu0
        %3503 = vmatprep.mubr.f32.mxu0 0.0
        %3504 = vmatmul.mubr.f32.gmra.mrb[0].mxu0 %v3302
        %v3505 = vpop.f32.mrb[0].mxu0
        %v3506 = vadd.f32 0.0, %v3505
        %v3507 = vpop.f32.mrb[0].mxu0
        %3508 = vmatprep.mubr.f32.mxu0 0.0
        %3509 = vmatmul.mubr.f32.gmra.mrb[0].mxu0 %v3303
        %v3510 = vpop.f32.mrb[0].mxu0
        %v3511 = vadd.f32 0.0, %v3510
        %v3512 = vpop.f32.mrb[0].mxu0
        %3513 = vmatprep.mubr.f32.mxu0 0.0
        %3514 = vmatmul.mubr.f32.gmra.mrb[0].mxu0 %v3304
        %v3515 = vpop.f32.mrb[0].mxu0
        %v3516 = vadd.f32 0.0, %v3515
        %v3517 = vpop.f32.mrb[0].mxu0
        %3518 = vmatprep.mubr.f32.mxu0 0.0
        %3519 = vmatmul.mubr.f32.gmra.mrb[0].mxu0 %v3305
        %v3520 = vpop.f32.mrb[0].mxu0
        %v3521 = vadd.f32 0.0, %v3520
        %v3522 = vpop.f32.mrb[0].mxu0
        %3523 = vmatprep.mubr.f32.mxu0 0.0
        %3524 = vmatmul.mubr.f32.gmra.mrb[0].mxu0 %v3306
        %v3525 = vpop.f32.mrb[0].mxu0
        %v3526 = vadd.f32 0.0, %v3525
        %v3527 = vpop.f32.mrb[0].mxu0
        %3528 = vmatprep.mubr.f32.mxu0 0.0
        %3529 = vmatmul.mubr.f32.gmra.mrb[0].mxu0 %v3307
        %v3530 = vpop.f32.mrb[0].mxu0
        %v3531 = vadd.f32 0.0, %v3530
        %v3532 = vpop.f32.mrb[0].mxu0
        %3533 = vmatprep.mubr.f32.mxu0 0.0
        %3534 = vmatmul.mubr.f32.gmra.mrb[0].mxu0 %v3308
        %v3535 = vpop.f32.mrb[0].mxu0
        %v3536 = vadd.f32 0.0, %v3535
        %v3537 = vpop.f32.mrb[0].mxu0
        %3538 = vmatprep.mubr.f32.mxu0 0.0
        %3539 = vmatmul.mubr.f32.gmra.mrb[0].mxu0 %v3309
        %v3540 = vpop.f32.mrb[0].mxu0
        %v3541 = vadd.f32 0.0, %v3540
        %v3542 = vpop.f32.mrb[0].mxu0
        %3543 = vmatprep.mubr.f32.mxu0 0.0
        %3544 = vmatmul.mubr.f32.gmra.mrb[0].mxu0 %v3310
        %v3545 = vpop.f32.mrb[0].mxu0
        %v3546 = vadd.f32 0.0, %v3545
        %v3547 = vpop.f32.mrb[0].mxu0
        %3548 = vmatprep.mubr.f32.mxu0 0.0
        %3549 = vmatmul.mubr.f32.gmra.mrb[0].mxu0 %v3311
        %v3550 = vpop.f32.mrb[0].mxu0
        %v3551 = vadd.f32 0.0, %v3550
        %v3552 = vpop.f32.mrb[0].mxu0
        %3553 = vdwg.mxu0
        %3554 = vmatprep.subr.mxu0 0.0
        %3555 = vmatpush1.msra.mxu0 %v3264
        %3556 = vmatprep.subr.mxu0 0.0
        %3557 = vmatpush1.msra.mxu0 %v3265
        %3558 = vmatprep.subr.mxu0 0.0
        %3559 = vmatpush1.msra.mxu0 %v3266
        %3560 = vmatprep.subr.mxu0 0.0
        %3561 = vmatpush1.msra.mxu0 %v3267
        %3562 = vmatprep.subr.mxu0 0.0
        %3563 = vmatpush1.msra.mxu0 %v3268
        %3564 = vmatprep.subr.mxu0 0.0
        %3565 = vmatpush1.msra.mxu0 %v3269
        %3566 = vmatprep.subr.mxu0 0.0
        %3567 = vmatpush1.msra.mxu0 %v3270
        %3568 = vmatprep.subr.mxu0 0.0
        %3569 = vmatpush1.msra.mxu0 %v3271
        %3570 = vmatprep.subr.mxu0 0.0
        %3571 = vmatpush1.msra.mxu0 %v3272
        %3572 = vmatprep.subr.mxu0 0.0
        %3573 = vmatpush1.msra.mxu0 %v3273
        %3574 = vmatprep.subr.mxu0 0.0
        %3575 = vmatpush1.msra.mxu0 %v3274
        %3576 = vmatprep.subr.mxu0 0.0
        %3577 = vmatpush1.msra.mxu0 %v3275
        %3578 = vmatprep.subr.mxu0 0.0
        %3579 = vmatpush1.msra.mxu0 %v3276
        %3580 = vmatprep.subr.mxu0 0.0
        %3581 = vmatpush1.msra.mxu0 %v3277
        %3582 = vmatprep.subr.mxu0 0.0
        %3583 = vmatpush1.msra.mxu0 %v3278
        %3584 = vmatprep.subr.mxu0 0.0
        %3585 = vmatpush1.msra.mxu0 %v3279
        %3586 = vmatprep.subr.mxu0 0.0
        %3587 = vmatpush1.msra.mxu0 0.0
        %3588 = vmatprep.subr.mxu0 0.0
        %3589 = vmatpush1.msra.mxu0 0.0
        %3590 = vmatprep.subr.mxu0 0.0
        %3591 = vmatpush1.msra.mxu0 0.0
        %3592 = vmatprep.subr.mxu0 0.0
        %3593 = vmatpush1.msra.mxu0 0.0
        %3594 = vmatprep.subr.mxu0 0.0
        %3595 = vmatpush1.msra.mxu0 0.0
        %3596 = vmatprep.subr.mxu0 0.0
        %3597 = vmatpush1.msra.mxu0 0.0
        %3598 = vmatprep.subr.mxu0 0.0
        %3599 = vmatpush1.msra.mxu0 0.0
        %3600 = vmatprep.subr.mxu0 0.0
        %3601 = vmatpush1.msra.mxu0 0.0
        %3602 = vmatprep.subr.mxu0 0.0
        %3603 = vmatpush1.msra.mxu0 0.0
        %3604 = vmatprep.subr.mxu0 0.0
        %3605 = vmatpush1.msra.mxu0 0.0
        %3606 = vmatprep.subr.mxu0 0.0
        %3607 = vmatpush1.msra.mxu0 0.0
        %3608 = vmatprep.subr.mxu0 0.0
        %3609 = vmatpush1.msra.mxu0 0.0
        %3610 = vmatprep.subr.mxu0 0.0
        %3611 = vmatpush1.msra.mxu0 0.0
        %3612 = vmatprep.subr.mxu0 0.0
        %3613 = vmatpush1.msra.mxu0 0.0
        %3614 = vmatprep.subr.mxu0 0.0
        %3615 = vmatpush1.msra.mxu0 0.0
        %3616 = vmatprep.subr.mxu0 0.0
        %3617 = vmatpush1.msra.mxu0 0.0
        %3618 = vmatprep.mubr.f32.mxu0 0.0
        %3619 = vmatmul.mubr.f32.gmra.mrb[0].mxu0 %v3232
        %v3620 = vpop.f32.mrb[0].mxu0
        %v3621 = vadd.f32 %v3396, %v3620
        %v3622 = vpop.f32.mrb[0].mxu0
        %3623 = vmatprep.mubr.f32.mxu0 0.0
        %3624 = vmatmul.mubr.f32.gmra.mrb[0].mxu0 %v3233
        %v3625 = vpop.f32.mrb[0].mxu0
        %v3626 = vadd.f32 %v3401, %v3625
        %v3627 = vpop.f32.mrb[0].mxu0
        %3628 = vmatprep.mubr.f32.mxu0 0.0
        %3629 = vmatmul.mubr.f32.gmra.mrb[0].mxu0 %v3234
        %v3630 = vpop.f32.mrb[0].mxu0
        %v3631 = vadd.f32 %v3406, %v3630
        %v3632 = vpop.f32.mrb[0].mxu0
        %3633 = vmatprep.mubr.f32.mxu0 0.0
        %3634 = vmatmul.mubr.f32.gmra.mrb[0].mxu0 %v3235
        %v3635 = vpop.f32.mrb[0].mxu0
        %v3636 = vadd.f32 %v3411, %v3635
        %v3637 = vpop.f32.mrb[0].mxu0
        %3638 = vmatprep.mubr.f32.mxu0 0.0
        %3639 = vmatmul.mubr.f32.gmra.mrb[0].mxu0 %v3236
        %v3640 = vpop.f32.mrb[0].mxu0
        %v3641 = vadd.f32 %v3416, %v3640
        %v3642 = vpop.f32.mrb[0].mxu0
        %3643 = vmatprep.mubr.f32.mxu0 0.0
        %3644 = vmatmul.mubr.f32.gmra.mrb[0].mxu0 %v3237
        %v3645 = vpop.f32.mrb[0].mxu0
        %v3646 = vadd.f32 %v3421, %v3645
        %v3647 = vpop.f32.mrb[0].mxu0
        %3648 = vmatprep.mubr.f32.mxu0 0.0
        %3649 = vmatmul.mubr.f32.gmra.mrb[0].mxu0 %v3238
        %v3650 = vpop.f32.mrb[0].mxu0
        %v3651 = vadd.f32 %v3426, %v3650
        %v3652 = vpop.f32.mrb[0].mxu0
        %3653 = vmatprep.mubr.f32.mxu0 0.0
        %3654 = vmatmul.mubr.f32.gmra.mrb[0].mxu0 %v3239
        %v3655 = vpop.f32.mrb[0].mxu0
        %v3656 = vadd.f32 %v3431, %v3655
        %v3657 = vpop.f32.mrb[0].mxu0
        %3658 = vmatprep.mubr.f32.mxu0 0.0
        %3659 = vmatmul.mubr.f32.gmra.mrb[0].mxu0 %v3240
        %v3660 = vpop.f32.mrb[0].mxu0
        %v3661 = vadd.f32 %v3436, %v3660
        %v3662 = vpop.f32.mrb[0].mxu0
        %3663 = vmatprep.mubr.f32.mxu0 0.0
        %3664 = vmatmul.mubr.f32.gmra.mrb[0].mxu0 %v3241
        %v3665 = vpop.f32.mrb[0].mxu0
        %v3666 = vadd.f32 %v3441, %v3665
        %v3667 = vpop.f32.mrb[0].mxu0
        %3668 = vmatprep.mubr.f32.mxu0 0.0
        %3669 = vmatmul.mubr.f32.gmra.mrb[0].mxu0 %v3242
        %v3670 = vpop.f32.mrb[0].mxu0
        %v3671 = vadd.f32 %v3446, %v3670
        %v3672 = vpop.f32.mrb[0].mxu0
        %3673 = vmatprep.mubr.f32.mxu0 0.0
        %3674 = vmatmul.mubr.f32.gmra.mrb[0].mxu0 %v3243
        %v3675 = vpop.f32.mrb[0].mxu0
        %v3676 = vadd.f32 %v3451, %v3675
        %v3677 = vpop.f32.mrb[0].mxu0
        %3678 = vmatprep.mubr.f32.mxu0 0.0
        %3679 = vmatmul.mubr.f32.gmra.mrb[0].mxu0 %v3244
        %v3680 = vpop.f32.mrb[0].mxu0
        %v3681 = vadd.f32 %v3456, %v3680
        %v3682 = vpop.f32.mrb[0].mxu0
        %3683 = vmatprep.mubr.f32.mxu0 0.0
        %3684 = vmatmul.mubr.f32.gmra.mrb[0].mxu0 %v3245
        %v3685 = vpop.f32.mrb[0].mxu0
        %v3686 = vadd.f32 %v3461, %v3685
        %v3687 = vpop.f32.mrb[0].mxu0
        %3688 = vmatprep.mubr.f32.mxu0 0.0
        %3689 = vmatmul.mubr.f32.gmra.mrb[0].mxu0 %v3246
        %v3690 = vpop.f32.mrb[0].mxu0
        %v3691 = vadd.f32 %v3466, %v3690
        %v3692 = vpop.f32.mrb[0].mxu0
        %3693 = vmatprep.mubr.f32.mxu0 0.0
        %3694 = vmatmul.mubr.f32.gmra.mrb[0].mxu0 %v3247
        %v3695 = vpop.f32.mrb[0].mxu0
        %v3696 = vadd.f32 %v3471, %v3695
        %v3697 = vpop.f32.mrb[0].mxu0
        %3698 = vmatprep.mubr.f32.mxu0 0.0
        %3699 = vmatmul.mubr.f32.gmra.mrb[0].mxu0 %v3248
        %v3700 = vpop.f32.mrb[0].mxu0
        %v3701 = vadd.f32 %v3476, %v3700
        %v3702 = vpop.f32.mrb[0].mxu0
        %3703 = vmatprep.mubr.f32.mxu0 0.0
        %3704 = vmatmul.mubr.f32.gmra.mrb[0].mxu0 %v3249
        %v3705 = vpop.f32.mrb[0].mxu0
        %v3706 = vadd.f32 %v3481, %v3705
        %v3707 = vpop.f32.mrb[0].mxu0
        %3708 = vmatprep.mubr.f32.mxu0 0.0
        %3709 = vmatmul.mubr.f32.gmra.mrb[0].mxu0 %v3250
        %v3710 = vpop.f32.mrb[0].mxu0
        %v3711 = vadd.f32 %v3486, %v3710
        %v3712 = vpop.f32.mrb[0].mxu0
        %3713 = vmatprep.mubr.f32.mxu0 0.0
        %3714 = vmatmul.mubr.f32.gmra.mrb[0].mxu0 %v3251
        %v3715 = vpop.f32.mrb[0].mxu0
        %v3716 = vadd.f32 %v3491, %v3715
        %v3717 = vpop.f32.mrb[0].mxu0
        %3718 = vmatprep.mubr.f32.mxu0 0.0
        %3719 = vmatmul.mubr.f32.gmra.mrb[0].mxu0 %v3252
        %v3720 = vpop.f32.mrb[0].mxu0
        %v3721 = vadd.f32 %v3496, %v3720
        %v3722 = vpop.f32.mrb[0].mxu0
        %3723 = vmatprep.mubr.f32.mxu0 0.0
        %3724 = vmatmul.mubr.f32.gmra.mrb[0].mxu0 %v3253
        %v3725 = vpop.f32.mrb[0].mxu0
        %v3726 = vadd.f32 %v3501, %v3725
        %v3727 = vpop.f32.mrb[0].mxu0
        %3728 = vmatprep.mubr.f32.mxu0 0.0
        %3729 = vmatmul.mubr.f32.gmra.mrb[0].mxu0 %v3254
        %v3730 = vpop.f32.mrb[0].mxu0
        %v3731 = vadd.f32 %v3506, %v3730
        %v3732 = vpop.f32.mrb[0].mxu0
        %3733 = vmatprep.mubr.f32.mxu0 0.0
        %3734 = vmatmul.mubr.f32.gmra.mrb[0].mxu0 %v3255
        %v3735 = vpop.f32.mrb[0].mxu0
        %v3736 = vadd.f32 %v3511, %v3735
        %v3737 = vpop.f32.mrb[0].mxu0
        %3738 = vmatprep.mubr.f32.mxu0 0.0
        %3739 = vmatmul.mubr.f32.gmra.mrb[0].mxu0 %v3256
        %v3740 = vpop.f32.mrb[0].mxu0
        %v3741 = vadd.f32 %v3516, %v3740
        %v3742 = vpop.f32.mrb[0].mxu0
        %3743 = vmatprep.mubr.f32.mxu0 0.0
        %3744 = vmatmul.mubr.f32.gmra.mrb[0].mxu0 %v3257
        %v3745 = vpop.f32.mrb[0].mxu0
        %v3746 = vadd.f32 %v3521, %v3745
        %v3747 = vpop.f32.mrb[0].mxu0
        %3748 = vmatprep.mubr.f32.mxu0 0.0
        %3749 = vmatmul.mubr.f32.gmra.mrb[0].mxu0 %v3258
        %v3750 = vpop.f32.mrb[0].mxu0
        %v3751 = vadd.f32 %v3526, %v3750
        %v3752 = vpop.f32.mrb[0].mxu0
        %3753 = vmatprep.mubr.f32.mxu0 0.0
        %3754 = vmatmul.mubr.f32.gmra.mrb[0].mxu0 %v3259
        %v3755 = vpop.f32.mrb[0].mxu0
        %v3756 = vadd.f32 %v3531, %v3755
        %v3757 = vpop.f32.mrb[0].mxu0
        %3758 = vmatprep.mubr.f32.mxu0 0.0
        %3759 = vmatmul.mubr.f32.gmra.mrb[0].mxu0 %v3260
        %v3760 = vpop.f32.mrb[0].mxu0
        %v3761 = vadd.f32 %v3536, %v3760
        %v3762 = vpop.f32.mrb[0].mxu0
        %3763 = vmatprep.mubr.f32.mxu0 0.0
        %3764 = vmatmul.mubr.f32.gmra.mrb[0].mxu0 %v3261
        %v3765 = vpop.f32.mrb[0].mxu0
        %v3766 = vadd.f32 %v3541, %v3765
        %v3767 = vpop.f32.mrb[0].mxu0
        %3768 = vmatprep.mubr.f32.mxu0 0.0
        %3769 = vmatmul.mubr.f32.gmra.mrb[0].mxu0 %v3262
        %v3770 = vpop.f32.mrb[0].mxu0
        %v3771 = vadd.f32 %v3546, %v3770
        %v3772 = vpop.f32.mrb[0].mxu0
        %3773 = vmatprep.mubr.f32.mxu0 0.0
        %3774 = vmatmul.mubr.f32.gmra.mrb[0].mxu0 %v3263
        %v3775 = vpop.f32.mrb[0].mxu0
        %v3776 = vadd.f32 %v3551, %v3775
        %v3777 = vpop.f32.mrb[0].mxu0
        %3778 = vdwg.mxu0
        %v3779 = vld [vmem:[#allocation2 + $0x2] sm:$0xff]
        %v3780 = vld [vmem:[#allocation2 + $0xa] sm:$0xff]
        %v3781 = vld [vmem:[#allocation2 + $0x1a] sm:$0xff]
        %v3782 = vld [vmem:[#allocation2 + $0x22] sm:$0xff]
        %v3783 = vld [vmem:[#allocation2 + $0x32] sm:$0xff]
        %v3784 = vld [vmem:[#allocation2 + $0x3a] sm:$0xff]
        %v3785 = vld [vmem:[#allocation2 + $0x4a] sm:$0xff]
        %v3786 = vld [vmem:[#allocation2 + $0x52] sm:$0xff]
        %v3787 = vld [vmem:[#allocation2 + $0x62] sm:$0xff]
        %v3788 = vld [vmem:[#allocation2 + $0x6a] sm:$0xff]
        %v3789 = vld [vmem:[#allocation2 + $0x7a] sm:$0xff]
        %v3790 = vld [vmem:[#allocation2 + $0x82] sm:$0xff]
        %v3791 = vld [vmem:[#allocation2 + $0x92] sm:$0xff]
        %v3792 = vld [vmem:[#allocation2 + $0x9a] sm:$0xff]
        %v3793 = vld [vmem:[#allocation2 + $0xaa] sm:$0xff]
        %v3794 = vld [vmem:[#allocation2 + $0xb2] sm:$0xff]
        %v3795 = vld [vmem:[#allocation2 + $0xc2] sm:$0xff]
        %v3796 = vld [vmem:[#allocation2 + $0xca] sm:$0xff]
        %v3797 = vld [vmem:[#allocation2 + $0xda] sm:$0xff]
        %v3798 = vld [vmem:[#allocation2 + $0xe2] sm:$0xff]
        %v3799 = vld [vmem:[#allocation2 + $0xf2] sm:$0xff]
        %v3800 = vld [vmem:[#allocation2 + $0xfa] sm:$0xff]
        %v3801 = vld [vmem:[#allocation2 + $0x10a] sm:$0xff]
        %v3802 = vld [vmem:[#allocation2 + $0x112] sm:$0xff]
        %v3803 = vld [vmem:[#allocation2 + $0x122] sm:$0xff]
        %v3804 = vld [vmem:[#allocation2 + $0x12a] sm:$0xff]
        %v3805 = vld [vmem:[#allocation2 + $0x13a] sm:$0xff]
        %v3806 = vld [vmem:[#allocation2 + $0x142] sm:$0xff]
        %v3807 = vld [vmem:[#allocation2 + $0x152] sm:$0xff]
        %v3808 = vld [vmem:[#allocation2 + $0x15a] sm:$0xff]
        %v3809 = vld [vmem:[#allocation2 + $0x16a] sm:$0xff]
        %v3810 = vld [vmem:[#allocation2 + $0x172] sm:$0xff]
        %s3811 = scalar_lea.vmem [#allocation8], 256
        %v3812 = vld [vmem:[%s3811] sm:$0xff]
        %v3813 = vld [vmem:[%s3811 + $0x8] sm:$0xff]
        %v3814 = vld [vmem:[%s3811 + $0x10] sm:$0xff]
        %v3815 = vld [vmem:[%s3811 + $0x18] sm:$0xff]
        %v3816 = vld [vmem:[%s3811 + $0x20] sm:$0xff]
        %v3817 = vld [vmem:[%s3811 + $0x28] sm:$0xff]
        %v3818 = vld [vmem:[%s3811 + $0x30] sm:$0xff]
        %v3819 = vld [vmem:[%s3811 + $0x38] sm:$0xff]
        %v3820 = vld [vmem:[%s3811 + $0x40] sm:$0xff]
        %v3821 = vld [vmem:[%s3811 + $0x48] sm:$0xff]
        %v3822 = vld [vmem:[%s3811 + $0x50] sm:$0xff]
        %v3823 = vld [vmem:[%s3811 + $0x58] sm:$0xff]
        %v3824 = vld [vmem:[%s3811 + $0x60] sm:$0xff]
        %v3825 = vld [vmem:[%s3811 + $0x68] sm:$0xff]
        %v3826 = vld [vmem:[%s3811 + $0x70] sm:$0xff]
        %v3827 = vld [vmem:[%s3811 + $0x78] sm:$0xff]
        %3828 = vmatprep.subr.mxu0 0.0
        %3829 = vmatpush1.msra.mxu0 %v3812
        %3830 = vmatprep.subr.mxu0 0.0
        %3831 = vmatpush1.msra.mxu0 %v3813
        %3832 = vmatprep.subr.mxu0 0.0
        %3833 = vmatpush1.msra.mxu0 %v3814
        %3834 = vmatprep.subr.mxu0 0.0
        %3835 = vmatpush1.msra.mxu0 %v3815
        %3836 = vmatprep.subr.mxu0 0.0
        %3837 = vmatpush1.msra.mxu0 %v3816
        %3838 = vmatprep.subr.mxu0 0.0
        %3839 = vmatpush1.msra.mxu0 %v3817
        %3840 = vmatprep.subr.mxu0 0.0
        %3841 = vmatpush1.msra.mxu0 %v3818
        %3842 = vmatprep.subr.mxu0 0.0
        %3843 = vmatpush1.msra.mxu0 %v3819
        %3844 = vmatprep.subr.mxu0 0.0
        %3845 = vmatpush1.msra.mxu0 %v3820
        %3846 = vmatprep.subr.mxu0 0.0
        %3847 = vmatpush1.msra.mxu0 %v3821
        %3848 = vmatprep.subr.mxu0 0.0
        %3849 = vmatpush1.msra.mxu0 %v3822
        %3850 = vmatprep.subr.mxu0 0.0
        %3851 = vmatpush1.msra.mxu0 %v3823
        %3852 = vmatprep.subr.mxu0 0.0
        %3853 = vmatpush1.msra.mxu0 %v3824
        %3854 = vmatprep.subr.mxu0 0.0
        %3855 = vmatpush1.msra.mxu0 %v3825
        %3856 = vmatprep.subr.mxu0 0.0
        %3857 = vmatpush1.msra.mxu0 %v3826
        %3858 = vmatprep.subr.mxu0 0.0
        %3859 = vmatpush1.msra.mxu0 %v3827
        %3860 = vmatprep.subr.mxu0 0.0
        %3861 = vmatpush1.msra.mxu0 0.0
        %3862 = vmatprep.subr.mxu0 0.0
        %3863 = vmatpush1.msra.mxu0 0.0
        %3864 = vmatprep.subr.mxu0 0.0
        %3865 = vmatpush1.msra.mxu0 0.0
        %3866 = vmatprep.subr.mxu0 0.0
        %3867 = vmatpush1.msra.mxu0 0.0
        %3868 = vmatprep.subr.mxu0 0.0
        %3869 = vmatpush1.msra.mxu0 0.0
        %3870 = vmatprep.subr.mxu0 0.0
        %3871 = vmatpush1.msra.mxu0 0.0
        %3872 = vmatprep.subr.mxu0 0.0
        %3873 = vmatpush1.msra.mxu0 0.0
        %3874 = vmatprep.subr.mxu0 0.0
        %3875 = vmatpush1.msra.mxu0 0.0
        %3876 = vmatprep.subr.mxu0 0.0
        %3877 = vmatpush1.msra.mxu0 0.0
        %3878 = vmatprep.subr.mxu0 0.0
        %3879 = vmatpush1.msra.mxu0 0.0
        %3880 = vmatprep.subr.mxu0 0.0
        %3881 = vmatpush1.msra.mxu0 0.0
        %3882 = vmatprep.subr.mxu0 0.0
        %3883 = vmatpush1.msra.mxu0 0.0
        %3884 = vmatprep.subr.mxu0 0.0
        %3885 = vmatpush1.msra.mxu0 0.0
        %3886 = vmatprep.subr.mxu0 0.0
        %3887 = vmatpush1.msra.mxu0 0.0
        %3888 = vmatprep.subr.mxu0 0.0
        %3889 = vmatpush1.msra.mxu0 0.0
        %3890 = vmatprep.subr.mxu0 0.0
        %3891 = vmatpush1.msra.mxu0 0.0
        %3892 = vmatprep.mubr.f32.mxu0 0.0
        %3893 = vmatmul.mubr.f32.gmra.mrb[0].mxu0 %v3779
        %v3894 = vpop.f32.mrb[0].mxu0
        %v3895 = vadd.f32 0.0, %v3894
        %v3896 = vpop.f32.mrb[0].mxu0
        %3897 = vmatprep.mubr.f32.mxu0 0.0
        %3898 = vmatmul.mubr.f32.gmra.mrb[0].mxu0 %v3780
        %v3899 = vpop.f32.mrb[0].mxu0
        %v3900 = vadd.f32 0.0, %v3899
        %v3901 = vpop.f32.mrb[0].mxu0
        %3902 = vmatprep.mubr.f32.mxu0 0.0
        %3903 = vmatmul.mubr.f32.gmra.mrb[0].mxu0 %v3781
        %v3904 = vpop.f32.mrb[0].mxu0
        %v3905 = vadd.f32 0.0, %v3904
        %v3906 = vpop.f32.mrb[0].mxu0
        %3907 = vmatprep.mubr.f32.mxu0 0.0
        %3908 = vmatmul.mubr.f32.gmra.mrb[0].mxu0 %v3782
        %v3909 = vpop.f32.mrb[0].mxu0
        %v3910 = vadd.f32 0.0, %v3909
        %v3911 = vpop.f32.mrb[0].mxu0
        %3912 = vmatprep.mubr.f32.mxu0 0.0
        %3913 = vmatmul.mubr.f32.gmra.mrb[0].mxu0 %v3783
        %v3914 = vpop.f32.mrb[0].mxu0
        %v3915 = vadd.f32 0.0, %v3914
        %v3916 = vpop.f32.mrb[0].mxu0
        %3917 = vmatprep.mubr.f32.mxu0 0.0
        %3918 = vmatmul.mubr.f32.gmra.mrb[0].mxu0 %v3784
        %v3919 = vpop.f32.mrb[0].mxu0
        %v3920 = vadd.f32 0.0, %v3919
        %v3921 = vpop.f32.mrb[0].mxu0
        %3922 = vmatprep.mubr.f32.mxu0 0.0
        %3923 = vmatmul.mubr.f32.gmra.mrb[0].mxu0 %v3785
        %v3924 = vpop.f32.mrb[0].mxu0
        %v3925 = vadd.f32 0.0, %v3924
        %v3926 = vpop.f32.mrb[0].mxu0
        %3927 = vmatprep.mubr.f32.mxu0 0.0
        %3928 = vmatmul.mubr.f32.gmra.mrb[0].mxu0 %v3786
        %v3929 = vpop.f32.mrb[0].mxu0
        %v3930 = vadd.f32 0.0, %v3929
        %v3931 = vpop.f32.mrb[0].mxu0
        %3932 = vmatprep.mubr.f32.mxu0 0.0
        %3933 = vmatmul.mubr.f32.gmra.mrb[0].mxu0 %v3787
        %v3934 = vpop.f32.mrb[0].mxu0
        %v3935 = vadd.f32 0.0, %v3934
        %v3936 = vpop.f32.mrb[0].mxu0
        %3937 = vmatprep.mubr.f32.mxu0 0.0
        %3938 = vmatmul.mubr.f32.gmra.mrb[0].mxu0 %v3788
        %v3939 = vpop.f32.mrb[0].mxu0
        %v3940 = vadd.f32 0.0, %v3939
        %v3941 = vpop.f32.mrb[0].mxu0
        %3942 = vmatprep.mubr.f32.mxu0 0.0
        %3943 = vmatmul.mubr.f32.gmra.mrb[0].mxu0 %v3789
        %v3944 = vpop.f32.mrb[0].mxu0
        %v3945 = vadd.f32 0.0, %v3944
        %v3946 = vpop.f32.mrb[0].mxu0
        %3947 = vmatprep.mubr.f32.mxu0 0.0
        %3948 = vmatmul.mubr.f32.gmra.mrb[0].mxu0 %v3790
        %v3949 = vpop.f32.mrb[0].mxu0
        %v3950 = vadd.f32 0.0, %v3949
        %v3951 = vpop.f32.mrb[0].mxu0
        %3952 = vmatprep.mubr.f32.mxu0 0.0
        %3953 = vmatmul.mubr.f32.gmra.mrb[0].mxu0 %v3791
        %v3954 = vpop.f32.mrb[0].mxu0
        %v3955 = vadd.f32 0.0, %v3954
        %v3956 = vpop.f32.mrb[0].mxu0
        %3957 = vmatprep.mubr.f32.mxu0 0.0
        %3958 = vmatmul.mubr.f32.gmra.mrb[0].mxu0 %v3792
        %v3959 = vpop.f32.mrb[0].mxu0
        %v3960 = vadd.f32 0.0, %v3959
        %v3961 = vpop.f32.mrb[0].mxu0
        %3962 = vmatprep.mubr.f32.mxu0 0.0
        %3963 = vmatmul.mubr.f32.gmra.mrb[0].mxu0 %v3793
        %v3964 = vpop.f32.mrb[0].mxu0
        %v3965 = vadd.f32 0.0, %v3964
        %v3966 = vpop.f32.mrb[0].mxu0
        %3967 = vmatprep.mubr.f32.mxu0 0.0
        %3968 = vmatmul.mubr.f32.gmra.mrb[0].mxu0 %v3794
        %v3969 = vpop.f32.mrb[0].mxu0
        %v3970 = vadd.f32 0.0, %v3969
        %v3971 = vpop.f32.mrb[0].mxu0
        %3972 = vmatprep.mubr.f32.mxu0 0.0
        %3973 = vmatmul.mubr.f32.gmra.mrb[0].mxu0 %v3795
        %v3974 = vpop.f32.mrb[0].mxu0
        %v3975 = vadd.f32 0.0, %v3974
        %v3976 = vpop.f32.mrb[0].mxu0
        %3977 = vmatprep.mubr.f32.mxu0 0.0
        %3978 = vmatmul.mubr.f32.gmra.mrb[0].mxu0 %v3796
        %v3979 = vpop.f32.mrb[0].mxu0
        %v3980 = vadd.f32 0.0, %v3979
        %v3981 = vpop.f32.mrb[0].mxu0
        %3982 = vmatprep.mubr.f32.mxu0 0.0
        %3983 = vmatmul.mubr.f32.gmra.mrb[0].mxu0 %v3797
        %v3984 = vpop.f32.mrb[0].mxu0
        %v3985 = vadd.f32 0.0, %v3984
        %v3986 = vpop.f32.mrb[0].mxu0
        %3987 = vmatprep.mubr.f32.mxu0 0.0
        %3988 = vmatmul.mubr.f32.gmra.mrb[0].mxu0 %v3798
        %v3989 = vpop.f32.mrb[0].mxu0
        %v3990 = vadd.f32 0.0, %v3989
        %v3991 = vpop.f32.mrb[0].mxu0
        %3992 = vmatprep.mubr.f32.mxu0 0.0
        %3993 = vmatmul.mubr.f32.gmra.mrb[0].mxu0 %v3799
        %v3994 = vpop.f32.mrb[0].mxu0
        %v3995 = vadd.f32 0.0, %v3994
        %v3996 = vpop.f32.mrb[0].mxu0
        %3997 = vmatprep.mubr.f32.mxu0 0.0
        %3998 = vmatmul.mubr.f32.gmra.mrb[0].mxu0 %v3800
        %v3999 = vpop.f32.mrb[0].mxu0
        %v4000 = vadd.f32 0.0, %v3999
        %v4001 = vpop.f32.mrb[0].mxu0
        %4002 = vmatprep.mubr.f32.mxu0 0.0
        %4003 = vmatmul.mubr.f32.gmra.mrb[0].mxu0 %v3801
        %v4004 = vpop.f32.mrb[0].mxu0
        %v4005 = vadd.f32 0.0, %v4004
        %v4006 = vpop.f32.mrb[0].mxu0
        %4007 = vmatprep.mubr.f32.mxu0 0.0
        %4008 = vmatmul.mubr.f32.gmra.mrb[0].mxu0 %v3802
        %v4009 = vpop.f32.mrb[0].mxu0
        %v4010 = vadd.f32 0.0, %v4009
        %v4011 = vpop.f32.mrb[0].mxu0
        %4012 = vmatprep.mubr.f32.mxu0 0.0
        %4013 = vmatmul.mubr.f32.gmra.mrb[0].mxu0 %v3803
        %v4014 = vpop.f32.mrb[0].mxu0
        %v4015 = vadd.f32 0.0, %v4014
        %v4016 = vpop.f32.mrb[0].mxu0
        %4017 = vmatprep.mubr.f32.mxu0 0.0
        %4018 = vmatmul.mubr.f32.gmra.mrb[0].mxu0 %v3804
        %v4019 = vpop.f32.mrb[0].mxu0
        %v4020 = vadd.f32 0.0, %v4019
        %v4021 = vpop.f32.mrb[0].mxu0
        %4022 = vmatprep.mubr.f32.mxu0 0.0
        %4023 = vmatmul.mubr.f32.gmra.mrb[0].mxu0 %v3805
        %v4024 = vpop.f32.mrb[0].mxu0
        %v4025 = vadd.f32 0.0, %v4024
        %v4026 = vpop.f32.mrb[0].mxu0
        %4027 = vmatprep.mubr.f32.mxu0 0.0
        %4028 = vmatmul.mubr.f32.gmra.mrb[0].mxu0 %v3806
        %v4029 = vpop.f32.mrb[0].mxu0
        %v4030 = vadd.f32 0.0, %v4029
        %v4031 = vpop.f32.mrb[0].mxu0
        %4032 = vmatprep.mubr.f32.mxu0 0.0
        %4033 = vmatmul.mubr.f32.gmra.mrb[0].mxu0 %v3807
        %v4034 = vpop.f32.mrb[0].mxu0
        %v4035 = vadd.f32 0.0, %v4034
        %v4036 = vpop.f32.mrb[0].mxu0
        %4037 = vmatprep.mubr.f32.mxu0 0.0
        %4038 = vmatmul.mubr.f32.gmra.mrb[0].mxu0 %v3808
        %v4039 = vpop.f32.mrb[0].mxu0
        %v4040 = vadd.f32 0.0, %v4039
        %v4041 = vpop.f32.mrb[0].mxu0
        %4042 = vmatprep.mubr.f32.mxu0 0.0
        %4043 = vmatmul.mubr.f32.gmra.mrb[0].mxu0 %v3809
        %v4044 = vpop.f32.mrb[0].mxu0
        %v4045 = vadd.f32 0.0, %v4044
        %v4046 = vpop.f32.mrb[0].mxu0
        %4047 = vmatprep.mubr.f32.mxu0 0.0
        %4048 = vmatmul.mubr.f32.gmra.mrb[0].mxu0 %v3810
        %v4049 = vpop.f32.mrb[0].mxu0
        %v4050 = vadd.f32 0.0, %v4049
        %v4051 = vpop.f32.mrb[0].mxu0
        %4052 = vdwg.mxu0
        %v4053 = vadd.f32 %v3621, %v3895
        %v4054 = vadd.f32 %v3626, %v3900
        %v4055 = vadd.f32 %v3631, %v3905
        %v4056 = vadd.f32 %v3636, %v3910
        %v4057 = vadd.f32 %v3641, %v3915
        %v4058 = vadd.f32 %v3646, %v3920
        %v4059 = vadd.f32 %v3651, %v3925
        %v4060 = vadd.f32 %v3656, %v3930
        %v4061 = vadd.f32 %v3661, %v3935
        %v4062 = vadd.f32 %v3666, %v3940
        %v4063 = vadd.f32 %v3671, %v3945
        %v4064 = vadd.f32 %v3676, %v3950
        %v4065 = vadd.f32 %v3681, %v3955
        %v4066 = vadd.f32 %v3686, %v3960
        %v4067 = vadd.f32 %v3691, %v3965
        %v4068 = vadd.f32 %v3696, %v3970
        %v4069 = vadd.f32 %v3701, %v3975
        %v4070 = vadd.f32 %v3706, %v3980
        %v4071 = vadd.f32 %v3711, %v3985
        %v4072 = vadd.f32 %v3716, %v3990
        %v4073 = vadd.f32 %v3721, %v3995
        %v4074 = vadd.f32 %v3726, %v4000
        %v4075 = vadd.f32 %v3731, %v4005
        %v4076 = vadd.f32 %v3736, %v4010
        %v4077 = vadd.f32 %v3741, %v4015
        %v4078 = vadd.f32 %v3746, %v4020
        %v4079 = vadd.f32 %v3751, %v4025
        %v4080 = vadd.f32 %v3756, %v4030
        %v4081 = vadd.f32 %v3761, %v4035
        %v4082 = vadd.f32 %v3766, %v4040
        %v4083 = vadd.f32 %v3771, %v4045
        %v4084 = vadd.f32 %v3776, %v4050
        %v4085 = vld [vmem:[%s3116] sm:$0xff]
        %v4086 = vld [vmem:[%s3116 + $0x8] sm:$0xff]
        %v4087 = vld [vmem:[%s3116 + $0x18] sm:$0xff]
        %v4088 = vld [vmem:[%s3116 + $0x20] sm:$0xff]
        %v4089 = vld [vmem:[%s3116 + $0x30] sm:$0xff]
        %v4090 = vld [vmem:[%s3116 + $0x38] sm:$0xff]
        %v4091 = vld [vmem:[%s3116 + $0x48] sm:$0xff]
        %v4092 = vld [vmem:[%s3116 + $0x50] sm:$0xff]
        %v4093 = vld [vmem:[%s3116 + $0x60] sm:$0xff]
        %v4094 = vld [vmem:[%s3116 + $0x68] sm:$0xff]
        %v4095 = vld [vmem:[%s3116 + $0x78] sm:$0xff]
        %v4096 = vld [vmem:[%s3116 + $0x80] sm:$0xff]
        %v4097 = vld [vmem:[%s3116 + $0x90] sm:$0xff]
        %v4098 = vld [vmem:[%s3116 + $0x98] sm:$0xff]
        %v4099 = vld [vmem:[%s3116 + $0xa8] sm:$0xff]
        %v4100 = vld [vmem:[%s3116 + $0xb0] sm:$0xff]
        %v4101 = vld [vmem:[%s3116 + $0xc0] sm:$0xff]
        %v4102 = vld [vmem:[%s3116 + $0xc8] sm:$0xff]
        %v4103 = vld [vmem:[%s3116 + $0xd8] sm:$0xff]
        %v4104 = vld [vmem:[%s3116 + $0xe0] sm:$0xff]
        %v4105 = vld [vmem:[%s3116 + $0xf0] sm:$0xff]
        %v4106 = vld [vmem:[%s3116 + $0xf8] sm:$0xff]
        %v4107 = vld [vmem:[%s3116 + $0x108] sm:$0xff]
        %v4108 = vld [vmem:[%s3116 + $0x110] sm:$0xff]
        %v4109 = vld [vmem:[%s3116 + $0x120] sm:$0xff]
        %v4110 = vld [vmem:[%s3116 + $0x128] sm:$0xff]
        %v4111 = vld [vmem:[%s3116 + $0x138] sm:$0xff]
        %v4112 = vld [vmem:[%s3116 + $0x140] sm:$0xff]
        %v4113 = vld [vmem:[%s3116 + $0x150] sm:$0xff]
        %v4114 = vld [vmem:[%s3116 + $0x158] sm:$0xff]
        %v4115 = vld [vmem:[%s3116 + $0x168] sm:$0xff]
        %v4116 = vld [vmem:[%s3116 + $0x170] sm:$0xff]
        %s4117 = scalar_lea.vmem [#allocation8], 384
        %v4118 = vld [vmem:[%s4117] sm:$0xff]
        %v4119 = vld [vmem:[%s4117 + $0x8] sm:$0xff]
        %v4120 = vld [vmem:[%s4117 + $0x10] sm:$0xff]
        %v4121 = vld [vmem:[%s4117 + $0x18] sm:$0xff]
        %v4122 = vld [vmem:[%s4117 + $0x20] sm:$0xff]
        %v4123 = vld [vmem:[%s4117 + $0x28] sm:$0xff]
        %v4124 = vld [vmem:[%s4117 + $0x30] sm:$0xff]
        %v4125 = vld [vmem:[%s4117 + $0x38] sm:$0xff]
        %v4126 = vld [vmem:[%s4117 + $0x40] sm:$0xff]
        %v4127 = vld [vmem:[%s4117 + $0x48] sm:$0xff]
        %v4128 = vld [vmem:[%s4117 + $0x50] sm:$0xff]
        %v4129 = vld [vmem:[%s4117 + $0x58] sm:$0xff]
        %v4130 = vld [vmem:[%s4117 + $0x60] sm:$0xff]
        %v4131 = vld [vmem:[%s4117 + $0x68] sm:$0xff]
        %v4132 = vld [vmem:[%s4117 + $0x70] sm:$0xff]
        %v4133 = vld [vmem:[%s4117 + $0x78] sm:$0xff]
        %4134 = vmatprep.subr.mxu0 0.0
        %4135 = vmatpush1.msra.mxu0 %v4118
        %4136 = vmatprep.subr.mxu0 0.0
        %4137 = vmatpush1.msra.mxu0 %v4119
        %4138 = vmatprep.subr.mxu0 0.0
        %4139 = vmatpush1.msra.mxu0 %v4120
        %4140 = vmatprep.subr.mxu0 0.0
        %4141 = vmatpush1.msra.mxu0 %v4121
        %4142 = vmatprep.subr.mxu0 0.0
        %4143 = vmatpush1.msra.mxu0 %v4122
        %4144 = vmatprep.subr.mxu0 0.0
        %4145 = vmatpush1.msra.mxu0 %v4123
        %4146 = vmatprep.subr.mxu0 0.0
        %4147 = vmatpush1.msra.mxu0 %v4124
        %4148 = vmatprep.subr.mxu0 0.0
        %4149 = vmatpush1.msra.mxu0 %v4125
        %4150 = vmatprep.subr.mxu0 0.0
        %4151 = vmatpush1.msra.mxu0 %v4126
        %4152 = vmatprep.subr.mxu0 0.0
        %4153 = vmatpush1.msra.mxu0 %v4127
        %4154 = vmatprep.subr.mxu0 0.0
        %4155 = vmatpush1.msra.mxu0 %v4128
        %4156 = vmatprep.subr.mxu0 0.0
        %4157 = vmatpush1.msra.mxu0 %v4129
        %4158 = vmatprep.subr.mxu0 0.0
        %4159 = vmatpush1.msra.mxu0 %v4130
        %4160 = vmatprep.subr.mxu0 0.0
        %4161 = vmatpush1.msra.mxu0 %v4131
        %4162 = vmatprep.subr.mxu0 0.0
        %4163 = vmatpush1.msra.mxu0 %v4132
        %4164 = vmatprep.subr.mxu0 0.0
        %4165 = vmatpush1.msra.mxu0 %v4133
        %4166 = vmatprep.subr.mxu0 0.0
        %4167 = vmatpush1.msra.mxu0 0.0
        %4168 = vmatprep.subr.mxu0 0.0
        %4169 = vmatpush1.msra.mxu0 0.0
        %4170 = vmatprep.subr.mxu0 0.0
        %4171 = vmatpush1.msra.mxu0 0.0
        %4172 = vmatprep.subr.mxu0 0.0
        %4173 = vmatpush1.msra.mxu0 0.0
        %4174 = vmatprep.subr.mxu0 0.0
        %4175 = vmatpush1.msra.mxu0 0.0
        %4176 = vmatprep.subr.mxu0 0.0
        %4177 = vmatpush1.msra.mxu0 0.0
        %4178 = vmatprep.subr.mxu0 0.0
        %4179 = vmatpush1.msra.mxu0 0.0
        %4180 = vmatprep.subr.mxu0 0.0
        %4181 = vmatpush1.msra.mxu0 0.0
        %4182 = vmatprep.subr.mxu0 0.0
        %4183 = vmatpush1.msra.mxu0 0.0
        %4184 = vmatprep.subr.mxu0 0.0
        %4185 = vmatpush1.msra.mxu0 0.0
        %4186 = vmatprep.subr.mxu0 0.0
        %4187 = vmatpush1.msra.mxu0 0.0
        %4188 = vmatprep.subr.mxu0 0.0
        %4189 = vmatpush1.msra.mxu0 0.0
        %4190 = vmatprep.subr.mxu0 0.0
        %4191 = vmatpush1.msra.mxu0 0.0
        %4192 = vmatprep.subr.mxu0 0.0
        %4193 = vmatpush1.msra.mxu0 0.0
        %4194 = vmatprep.subr.mxu0 0.0
        %4195 = vmatpush1.msra.mxu0 0.0
        %4196 = vmatprep.subr.mxu0 0.0
        %4197 = vmatpush1.msra.mxu0 0.0
        %4198 = vmatprep.mubr.f32.mxu0 0.0
        %4199 = vmatmul.mubr.f32.gmra.mrb[0].mxu0 %v4085
        %v4200 = vpop.f32.mrb[0].mxu0
        %v4201 = vadd.f32 0.0, %v4200
        %v4202 = vpop.f32.mrb[0].mxu0
        %4203 = vmatprep.mubr.f32.mxu0 0.0
        %4204 = vmatmul.mubr.f32.gmra.mrb[0].mxu0 %v4086
        %v4205 = vpop.f32.mrb[0].mxu0
        %v4206 = vadd.f32 0.0, %v4205
        %v4207 = vpop.f32.mrb[0].mxu0
        %4208 = vmatprep.mubr.f32.mxu0 0.0
        %4209 = vmatmul.mubr.f32.gmra.mrb[0].mxu0 %v4087
        %v4210 = vpop.f32.mrb[0].mxu0
        %v4211 = vadd.f32 0.0, %v4210
        %v4212 = vpop.f32.mrb[0].mxu0
        %4213 = vmatprep.mubr.f32.mxu0 0.0
        %4214 = vmatmul.mubr.f32.gmra.mrb[0].mxu0 %v4088
        %v4215 = vpop.f32.mrb[0].mxu0
        %v4216 = vadd.f32 0.0, %v4215
        %v4217 = vpop.f32.mrb[0].mxu0
        %4218 = vmatprep.mubr.f32.mxu0 0.0
        %4219 = vmatmul.mubr.f32.gmra.mrb[0].mxu0 %v4089
        %v4220 = vpop.f32.mrb[0].mxu0
        %v4221 = vadd.f32 0.0, %v4220
        %v4222 = vpop.f32.mrb[0].mxu0
        %4223 = vmatprep.mubr.f32.mxu0 0.0
        %4224 = vmatmul.mubr.f32.gmra.mrb[0].mxu0 %v4090
        %v4225 = vpop.f32.mrb[0].mxu0
        %v4226 = vadd.f32 0.0, %v4225
        %v4227 = vpop.f32.mrb[0].mxu0
        %4228 = vmatprep.mubr.f32.mxu0 0.0
        %4229 = vmatmul.mubr.f32.gmra.mrb[0].mxu0 %v4091
        %v4230 = vpop.f32.mrb[0].mxu0
        %v4231 = vadd.f32 0.0, %v4230
        %v4232 = vpop.f32.mrb[0].mxu0
        %4233 = vmatprep.mubr.f32.mxu0 0.0
        %4234 = vmatmul.mubr.f32.gmra.mrb[0].mxu0 %v4092
        %v4235 = vpop.f32.mrb[0].mxu0
        %v4236 = vadd.f32 0.0, %v4235
        %v4237 = vpop.f32.mrb[0].mxu0
        %4238 = vmatprep.mubr.f32.mxu0 0.0
        %4239 = vmatmul.mubr.f32.gmra.mrb[0].mxu0 %v4093
        %v4240 = vpop.f32.mrb[0].mxu0
        %v4241 = vadd.f32 0.0, %v4240
        %v4242 = vpop.f32.mrb[0].mxu0
        %4243 = vmatprep.mubr.f32.mxu0 0.0
        %4244 = vmatmul.mubr.f32.gmra.mrb[0].mxu0 %v4094
        %v4245 = vpop.f32.mrb[0].mxu0
        %v4246 = vadd.f32 0.0, %v4245
        %v4247 = vpop.f32.mrb[0].mxu0
        %4248 = vmatprep.mubr.f32.mxu0 0.0
        %4249 = vmatmul.mubr.f32.gmra.mrb[0].mxu0 %v4095
        %v4250 = vpop.f32.mrb[0].mxu0
        %v4251 = vadd.f32 0.0, %v4250
        %v4252 = vpop.f32.mrb[0].mxu0
        %4253 = vmatprep.mubr.f32.mxu0 0.0
        %4254 = vmatmul.mubr.f32.gmra.mrb[0].mxu0 %v4096
        %v4255 = vpop.f32.mrb[0].mxu0
        %v4256 = vadd.f32 0.0, %v4255
        %v4257 = vpop.f32.mrb[0].mxu0
        %4258 = vmatprep.mubr.f32.mxu0 0.0
        %4259 = vmatmul.mubr.f32.gmra.mrb[0].mxu0 %v4097
        %v4260 = vpop.f32.mrb[0].mxu0
        %v4261 = vadd.f32 0.0, %v4260
        %v4262 = vpop.f32.mrb[0].mxu0
        %4263 = vmatprep.mubr.f32.mxu0 0.0
        %4264 = vmatmul.mubr.f32.gmra.mrb[0].mxu0 %v4098
        %v4265 = vpop.f32.mrb[0].mxu0
        %v4266 = vadd.f32 0.0, %v4265
        %v4267 = vpop.f32.mrb[0].mxu0
        %4268 = vmatprep.mubr.f32.mxu0 0.0
        %4269 = vmatmul.mubr.f32.gmra.mrb[0].mxu0 %v4099
        %v4270 = vpop.f32.mrb[0].mxu0
        %v4271 = vadd.f32 0.0, %v4270
        %v4272 = vpop.f32.mrb[0].mxu0
        %4273 = vmatprep.mubr.f32.mxu0 0.0
        %4274 = vmatmul.mubr.f32.gmra.mrb[0].mxu0 %v4100
        %v4275 = vpop.f32.mrb[0].mxu0
        %v4276 = vadd.f32 0.0, %v4275
        %v4277 = vpop.f32.mrb[0].mxu0
        %4278 = vmatprep.mubr.f32.mxu0 0.0
        %4279 = vmatmul.mubr.f32.gmra.mrb[0].mxu0 %v4101
        %v4280 = vpop.f32.mrb[0].mxu0
        %v4281 = vadd.f32 0.0, %v4280
        %v4282 = vpop.f32.mrb[0].mxu0
        %4283 = vmatprep.mubr.f32.mxu0 0.0
        %4284 = vmatmul.mubr.f32.gmra.mrb[0].mxu0 %v4102
        %v4285 = vpop.f32.mrb[0].mxu0
        %v4286 = vadd.f32 0.0, %v4285
        %v4287 = vpop.f32.mrb[0].mxu0
        %4288 = vmatprep.mubr.f32.mxu0 0.0
        %4289 = vmatmul.mubr.f32.gmra.mrb[0].mxu0 %v4103
        %v4290 = vpop.f32.mrb[0].mxu0
        %v4291 = vadd.f32 0.0, %v4290
        %v4292 = vpop.f32.mrb[0].mxu0
        %4293 = vmatprep.mubr.f32.mxu0 0.0
        %4294 = vmatmul.mubr.f32.gmra.mrb[0].mxu0 %v4104
        %v4295 = vpop.f32.mrb[0].mxu0
        %v4296 = vadd.f32 0.0, %v4295
        %v4297 = vpop.f32.mrb[0].mxu0
        %4298 = vmatprep.mubr.f32.mxu0 0.0
        %4299 = vmatmul.mubr.f32.gmra.mrb[0].mxu0 %v4105
        %v4300 = vpop.f32.mrb[0].mxu0
        %v4301 = vadd.f32 0.0, %v4300
        %v4302 = vpop.f32.mrb[0].mxu0
        %4303 = vmatprep.mubr.f32.mxu0 0.0
        %4304 = vmatmul.mubr.f32.gmra.mrb[0].mxu0 %v4106
        %v4305 = vpop.f32.mrb[0].mxu0
        %v4306 = vadd.f32 0.0, %v4305
        %v4307 = vpop.f32.mrb[0].mxu0
        %4308 = vmatprep.mubr.f32.mxu0 0.0
        %4309 = vmatmul.mubr.f32.gmra.mrb[0].mxu0 %v4107
        %v4310 = vpop.f32.mrb[0].mxu0
        %v4311 = vadd.f32 0.0, %v4310
        %v4312 = vpop.f32.mrb[0].mxu0
        %4313 = vmatprep.mubr.f32.mxu0 0.0
        %4314 = vmatmul.mubr.f32.gmra.mrb[0].mxu0 %v4108
        %v4315 = vpop.f32.mrb[0].mxu0
        %v4316 = vadd.f32 0.0, %v4315
        %v4317 = vpop.f32.mrb[0].mxu0
        %4318 = vmatprep.mubr.f32.mxu0 0.0
        %4319 = vmatmul.mubr.f32.gmra.mrb[0].mxu0 %v4109
        %v4320 = vpop.f32.mrb[0].mxu0
        %v4321 = vadd.f32 0.0, %v4320
        %v4322 = vpop.f32.mrb[0].mxu0
        %4323 = vmatprep.mubr.f32.mxu0 0.0
        %4324 = vmatmul.mubr.f32.gmra.mrb[0].mxu0 %v4110
        %v4325 = vpop.f32.mrb[0].mxu0
        %v4326 = vadd.f32 0.0, %v4325
        %v4327 = vpop.f32.mrb[0].mxu0
        %4328 = vmatprep.mubr.f32.mxu0 0.0
        %4329 = vmatmul.mubr.f32.gmra.mrb[0].mxu0 %v4111
        %v4330 = vpop.f32.mrb[0].mxu0
        %v4331 = vadd.f32 0.0, %v4330
        %v4332 = vpop.f32.mrb[0].mxu0
        %4333 = vmatprep.mubr.f32.mxu0 0.0
        %4334 = vmatmul.mubr.f32.gmra.mrb[0].mxu0 %v4112
        %v4335 = vpop.f32.mrb[0].mxu0
        %v4336 = vadd.f32 0.0, %v4335
        %v4337 = vpop.f32.mrb[0].mxu0
        %4338 = vmatprep.mubr.f32.mxu0 0.0
        %4339 = vmatmul.mubr.f32.gmra.mrb[0].mxu0 %v4113
        %v4340 = vpop.f32.mrb[0].mxu0
        %v4341 = vadd.f32 0.0, %v4340
        %v4342 = vpop.f32.mrb[0].mxu0
        %4343 = vmatprep.mubr.f32.mxu0 0.0
        %4344 = vmatmul.mubr.f32.gmra.mrb[0].mxu0 %v4114
        %v4345 = vpop.f32.mrb[0].mxu0
        %v4346 = vadd.f32 0.0, %v4345
        %v4347 = vpop.f32.mrb[0].mxu0
        %4348 = vmatprep.mubr.f32.mxu0 0.0
        %4349 = vmatmul.mubr.f32.gmra.mrb[0].mxu0 %v4115
        %v4350 = vpop.f32.mrb[0].mxu0
        %v4351 = vadd.f32 0.0, %v4350
        %v4352 = vpop.f32.mrb[0].mxu0
        %4353 = vmatprep.mubr.f32.mxu0 0.0
        %4354 = vmatmul.mubr.f32.gmra.mrb[0].mxu0 %v4116
        %v4355 = vpop.f32.mrb[0].mxu0
        %v4356 = vadd.f32 0.0, %v4355
        %v4357 = vpop.f32.mrb[0].mxu0
        %4358 = vdwg.mxu0
        %v4359 = vadd.f32 %v4053, %v4201
        %v4360 = vadd.f32 %v4054, %v4206
        %v4361 = vadd.f32 %v4055, %v4211
        %v4362 = vadd.f32 %v4056, %v4216
        %v4363 = vadd.f32 %v4057, %v4221
        %v4364 = vadd.f32 %v4058, %v4226
        %v4365 = vadd.f32 %v4059, %v4231
        %v4366 = vadd.f32 %v4060, %v4236
        %v4367 = vadd.f32 %v4061, %v4241
        %v4368 = vadd.f32 %v4062, %v4246
        %v4369 = vadd.f32 %v4063, %v4251
        %v4370 = vadd.f32 %v4064, %v4256
        %v4371 = vadd.f32 %v4065, %v4261
        %v4372 = vadd.f32 %v4066, %v4266
        %v4373 = vadd.f32 %v4067, %v4271
        %v4374 = vadd.f32 %v4068, %v4276
        %v4375 = vadd.f32 %v4069, %v4281
        %v4376 = vadd.f32 %v4070, %v4286
        %v4377 = vadd.f32 %v4071, %v4291
        %v4378 = vadd.f32 %v4072, %v4296
        %v4379 = vadd.f32 %v4073, %v4301
        %v4380 = vadd.f32 %v4074, %v4306
        %v4381 = vadd.f32 %v4075, %v4311
        %v4382 = vadd.f32 %v4076, %v4316
        %v4383 = vadd.f32 %v4077, %v4321
        %v4384 = vadd.f32 %v4078, %v4326
        %v4385 = vadd.f32 %v4079, %v4331
        %v4386 = vadd.f32 %v4080, %v4336
        %v4387 = vadd.f32 %v4081, %v4341
        %v4388 = vadd.f32 %v4082, %v4346
        %v4389 = vadd.f32 %v4083, %v4351
        %v4390 = vadd.f32 %v4084, %v4356
        %v4391 = vld [vmem:[%s3116 + $0x1] sm:$0xff]
        %v4392 = vld [vmem:[%s3116 + $0x9] sm:$0xff]
        %v4393 = vld [vmem:[%s3116 + $0x19] sm:$0xff]
        %v4394 = vld [vmem:[%s3116 + $0x21] sm:$0xff]
        %v4395 = vld [vmem:[%s3116 + $0x31] sm:$0xff]
        %v4396 = vld [vmem:[%s3116 + $0x39] sm:$0xff]
        %v4397 = vld [vmem:[%s3116 + $0x49] sm:$0xff]
        %v4398 = vld [vmem:[%s3116 + $0x51] sm:$0xff]
        %v4399 = vld [vmem:[%s3116 + $0x61] sm:$0xff]
        %v4400 = vld [vmem:[%s3116 + $0x69] sm:$0xff]
        %v4401 = vld [vmem:[%s3116 + $0x79] sm:$0xff]
        %v4402 = vld [vmem:[%s3116 + $0x81] sm:$0xff]
        %v4403 = vld [vmem:[%s3116 + $0x91] sm:$0xff]
        %v4404 = vld [vmem:[%s3116 + $0x99] sm:$0xff]
        %v4405 = vld [vmem:[%s3116 + $0xa9] sm:$0xff]
        %v4406 = vld [vmem:[%s3116 + $0xb1] sm:$0xff]
        %v4407 = vld [vmem:[%s3116 + $0xc1] sm:$0xff]
        %v4408 = vld [vmem:[%s3116 + $0xc9] sm:$0xff]
        %v4409 = vld [vmem:[%s3116 + $0xd9] sm:$0xff]
        %v4410 = vld [vmem:[%s3116 + $0xe1] sm:$0xff]
        %v4411 = vld [vmem:[%s3116 + $0xf1] sm:$0xff]
        %v4412 = vld [vmem:[%s3116 + $0xf9] sm:$0xff]
        %v4413 = vld [vmem:[%s3116 + $0x109] sm:$0xff]
        %v4414 = vld [vmem:[%s3116 + $0x111] sm:$0xff]
        %v4415 = vld [vmem:[%s3116 + $0x121] sm:$0xff]
        %v4416 = vld [vmem:[%s3116 + $0x129] sm:$0xff]
        %v4417 = vld [vmem:[%s3116 + $0x139] sm:$0xff]
        %v4418 = vld [vmem:[%s3116 + $0x141] sm:$0xff]
        %v4419 = vld [vmem:[%s3116 + $0x151] sm:$0xff]
        %v4420 = vld [vmem:[%s3116 + $0x159] sm:$0xff]
        %v4421 = vld [vmem:[%s3116 + $0x169] sm:$0xff]
        %v4422 = vld [vmem:[%s3116 + $0x171] sm:$0xff]
        %s4423 = scalar_lea.vmem [#allocation8], 512
        %v4424 = vld [vmem:[%s4423] sm:$0xff]
        %v4425 = vld [vmem:[%s4423 + $0x8] sm:$0xff]
        %v4426 = vld [vmem:[%s4423 + $0x10] sm:$0xff]
        %v4427 = vld [vmem:[%s4423 + $0x18] sm:$0xff]
        %v4428 = vld [vmem:[%s4423 + $0x20] sm:$0xff]
        %v4429 = vld [vmem:[%s4423 + $0x28] sm:$0xff]
        %v4430 = vld [vmem:[%s4423 + $0x30] sm:$0xff]
        %v4431 = vld [vmem:[%s4423 + $0x38] sm:$0xff]
        %v4432 = vld [vmem:[%s4423 + $0x40] sm:$0xff]
        %v4433 = vld [vmem:[%s4423 + $0x48] sm:$0xff]
        %v4434 = vld [vmem:[%s4423 + $0x50] sm:$0xff]
        %v4435 = vld [vmem:[%s4423 + $0x58] sm:$0xff]
        %v4436 = vld [vmem:[%s4423 + $0x60] sm:$0xff]
        %v4437 = vld [vmem:[%s4423 + $0x68] sm:$0xff]
        %v4438 = vld [vmem:[%s4423 + $0x70] sm:$0xff]
        %v4439 = vld [vmem:[%s4423 + $0x78] sm:$0xff]
        %4440 = vmatprep.subr.mxu0 0.0
        %4441 = vmatpush1.msra.mxu0 %v4424
        %4442 = vmatprep.subr.mxu0 0.0
        %4443 = vmatpush1.msra.mxu0 %v4425
        %4444 = vmatprep.subr.mxu0 0.0
        %4445 = vmatpush1.msra.mxu0 %v4426
        %4446 = vmatprep.subr.mxu0 0.0
        %4447 = vmatpush1.msra.mxu0 %v4427
        %4448 = vmatprep.subr.mxu0 0.0
        %4449 = vmatpush1.msra.mxu0 %v4428
        %4450 = vmatprep.subr.mxu0 0.0
        %4451 = vmatpush1.msra.mxu0 %v4429
        %4452 = vmatprep.subr.mxu0 0.0
        %4453 = vmatpush1.msra.mxu0 %v4430
        %4454 = vmatprep.subr.mxu0 0.0
        %4455 = vmatpush1.msra.mxu0 %v4431
        %4456 = vmatprep.subr.mxu0 0.0
        %4457 = vmatpush1.msra.mxu0 %v4432
        %4458 = vmatprep.subr.mxu0 0.0
        %4459 = vmatpush1.msra.mxu0 %v4433
        %4460 = vmatprep.subr.mxu0 0.0
        %4461 = vmatpush1.msra.mxu0 %v4434
        %4462 = vmatprep.subr.mxu0 0.0
        %4463 = vmatpush1.msra.mxu0 %v4435
        %4464 = vmatprep.subr.mxu0 0.0
        %4465 = vmatpush1.msra.mxu0 %v4436
        %4466 = vmatprep.subr.mxu0 0.0
        %4467 = vmatpush1.msra.mxu0 %v4437
        %4468 = vmatprep.subr.mxu0 0.0
        %4469 = vmatpush1.msra.mxu0 %v4438
        %4470 = vmatprep.subr.mxu0 0.0
        %4471 = vmatpush1.msra.mxu0 %v4439
        %4472 = vmatprep.subr.mxu0 0.0
        %4473 = vmatpush1.msra.mxu0 0.0
        %4474 = vmatprep.subr.mxu0 0.0
        %4475 = vmatpush1.msra.mxu0 0.0
        %4476 = vmatprep.subr.mxu0 0.0
        %4477 = vmatpush1.msra.mxu0 0.0
        %4478 = vmatprep.subr.mxu0 0.0
        %4479 = vmatpush1.msra.mxu0 0.0
        %4480 = vmatprep.subr.mxu0 0.0
        %4481 = vmatpush1.msra.mxu0 0.0
        %4482 = vmatprep.subr.mxu0 0.0
        %4483 = vmatpush1.msra.mxu0 0.0
        %4484 = vmatprep.subr.mxu0 0.0
        %4485 = vmatpush1.msra.mxu0 0.0
        %4486 = vmatprep.subr.mxu0 0.0
        %4487 = vmatpush1.msra.mxu0 0.0
        %4488 = vmatprep.subr.mxu0 0.0
        %4489 = vmatpush1.msra.mxu0 0.0
        %4490 = vmatprep.subr.mxu0 0.0
        %4491 = vmatpush1.msra.mxu0 0.0
        %4492 = vmatprep.subr.mxu0 0.0
        %4493 = vmatpush1.msra.mxu0 0.0
        %4494 = vmatprep.subr.mxu0 0.0
        %4495 = vmatpush1.msra.mxu0 0.0
        %4496 = vmatprep.subr.mxu0 0.0
        %4497 = vmatpush1.msra.mxu0 0.0
        %4498 = vmatprep.subr.mxu0 0.0
        %4499 = vmatpush1.msra.mxu0 0.0
        %4500 = vmatprep.subr.mxu0 0.0
        %4501 = vmatpush1.msra.mxu0 0.0
        %4502 = vmatprep.subr.mxu0 0.0
        %4503 = vmatpush1.msra.mxu0 0.0
        %4504 = vmatprep.mubr.f32.mxu0 0.0
        %4505 = vmatmul.mubr.f32.gmra.mrb[0].mxu0 %v4391
        %v4506 = vpop.f32.mrb[0].mxu0
        %v4507 = vadd.f32 0.0, %v4506
        %v4508 = vpop.f32.mrb[0].mxu0
        %4509 = vmatprep.mubr.f32.mxu0 0.0
        %4510 = vmatmul.mubr.f32.gmra.mrb[0].mxu0 %v4392
        %v4511 = vpop.f32.mrb[0].mxu0
        %v4512 = vadd.f32 0.0, %v4511
        %v4513 = vpop.f32.mrb[0].mxu0
        %4514 = vmatprep.mubr.f32.mxu0 0.0
        %4515 = vmatmul.mubr.f32.gmra.mrb[0].mxu0 %v4393
        %v4516 = vpop.f32.mrb[0].mxu0
        %v4517 = vadd.f32 0.0, %v4516
        %v4518 = vpop.f32.mrb[0].mxu0
        %4519 = vmatprep.mubr.f32.mxu0 0.0
        %4520 = vmatmul.mubr.f32.gmra.mrb[0].mxu0 %v4394
        %v4521 = vpop.f32.mrb[0].mxu0
        %v4522 = vadd.f32 0.0, %v4521
        %v4523 = vpop.f32.mrb[0].mxu0
        %4524 = vmatprep.mubr.f32.mxu0 0.0
        %4525 = vmatmul.mubr.f32.gmra.mrb[0].mxu0 %v4395
        %v4526 = vpop.f32.mrb[0].mxu0
        %v4527 = vadd.f32 0.0, %v4526
        %v4528 = vpop.f32.mrb[0].mxu0
        %4529 = vmatprep.mubr.f32.mxu0 0.0
        %4530 = vmatmul.mubr.f32.gmra.mrb[0].mxu0 %v4396
        %v4531 = vpop.f32.mrb[0].mxu0
        %v4532 = vadd.f32 0.0, %v4531
        %v4533 = vpop.f32.mrb[0].mxu0
        %4534 = vmatprep.mubr.f32.mxu0 0.0
        %4535 = vmatmul.mubr.f32.gmra.mrb[0].mxu0 %v4397
        %v4536 = vpop.f32.mrb[0].mxu0
        %v4537 = vadd.f32 0.0, %v4536
        %v4538 = vpop.f32.mrb[0].mxu0
        %4539 = vmatprep.mubr.f32.mxu0 0.0
        %4540 = vmatmul.mubr.f32.gmra.mrb[0].mxu0 %v4398
        %v4541 = vpop.f32.mrb[0].mxu0
        %v4542 = vadd.f32 0.0, %v4541
        %v4543 = vpop.f32.mrb[0].mxu0
        %4544 = vmatprep.mubr.f32.mxu0 0.0
        %4545 = vmatmul.mubr.f32.gmra.mrb[0].mxu0 %v4399
        %v4546 = vpop.f32.mrb[0].mxu0
        %v4547 = vadd.f32 0.0, %v4546
        %v4548 = vpop.f32.mrb[0].mxu0
        %4549 = vmatprep.mubr.f32.mxu0 0.0
        %4550 = vmatmul.mubr.f32.gmra.mrb[0].mxu0 %v4400
        %v4551 = vpop.f32.mrb[0].mxu0
        %v4552 = vadd.f32 0.0, %v4551
        %v4553 = vpop.f32.mrb[0].mxu0
        %4554 = vmatprep.mubr.f32.mxu0 0.0
        %4555 = vmatmul.mubr.f32.gmra.mrb[0].mxu0 %v4401
        %v4556 = vpop.f32.mrb[0].mxu0
        %v4557 = vadd.f32 0.0, %v4556
        %v4558 = vpop.f32.mrb[0].mxu0
        %4559 = vmatprep.mubr.f32.mxu0 0.0
        %4560 = vmatmul.mubr.f32.gmra.mrb[0].mxu0 %v4402
        %v4561 = vpop.f32.mrb[0].mxu0
        %v4562 = vadd.f32 0.0, %v4561
        %v4563 = vpop.f32.mrb[0].mxu0
        %4564 = vmatprep.mubr.f32.mxu0 0.0
        %4565 = vmatmul.mubr.f32.gmra.mrb[0].mxu0 %v4403
        %v4566 = vpop.f32.mrb[0].mxu0
        %v4567 = vadd.f32 0.0, %v4566
        %v4568 = vpop.f32.mrb[0].mxu0
        %4569 = vmatprep.mubr.f32.mxu0 0.0
        %4570 = vmatmul.mubr.f32.gmra.mrb[0].mxu0 %v4404
        %v4571 = vpop.f32.mrb[0].mxu0
        %v4572 = vadd.f32 0.0, %v4571
        %v4573 = vpop.f32.mrb[0].mxu0
        %4574 = vmatprep.mubr.f32.mxu0 0.0
        %4575 = vmatmul.mubr.f32.gmra.mrb[0].mxu0 %v4405
        %v4576 = vpop.f32.mrb[0].mxu0
        %v4577 = vadd.f32 0.0, %v4576
        %v4578 = vpop.f32.mrb[0].mxu0
        %4579 = vmatprep.mubr.f32.mxu0 0.0
        %4580 = vmatmul.mubr.f32.gmra.mrb[0].mxu0 %v4406
        %v4581 = vpop.f32.mrb[0].mxu0
        %v4582 = vadd.f32 0.0, %v4581
        %v4583 = vpop.f32.mrb[0].mxu0
        %4584 = vmatprep.mubr.f32.mxu0 0.0
        %4585 = vmatmul.mubr.f32.gmra.mrb[0].mxu0 %v4407
        %v4586 = vpop.f32.mrb[0].mxu0
        %v4587 = vadd.f32 0.0, %v4586
        %v4588 = vpop.f32.mrb[0].mxu0
        %4589 = vmatprep.mubr.f32.mxu0 0.0
        %4590 = vmatmul.mubr.f32.gmra.mrb[0].mxu0 %v4408
        %v4591 = vpop.f32.mrb[0].mxu0
        %v4592 = vadd.f32 0.0, %v4591
        %v4593 = vpop.f32.mrb[0].mxu0
        %4594 = vmatprep.mubr.f32.mxu0 0.0
        %4595 = vmatmul.mubr.f32.gmra.mrb[0].mxu0 %v4409
        %v4596 = vpop.f32.mrb[0].mxu0
        %v4597 = vadd.f32 0.0, %v4596
        %v4598 = vpop.f32.mrb[0].mxu0
        %4599 = vmatprep.mubr.f32.mxu0 0.0
        %4600 = vmatmul.mubr.f32.gmra.mrb[0].mxu0 %v4410
        %v4601 = vpop.f32.mrb[0].mxu0
        %v4602 = vadd.f32 0.0, %v4601
        %v4603 = vpop.f32.mrb[0].mxu0
        %4604 = vmatprep.mubr.f32.mxu0 0.0
        %4605 = vmatmul.mubr.f32.gmra.mrb[0].mxu0 %v4411
        %v4606 = vpop.f32.mrb[0].mxu0
        %v4607 = vadd.f32 0.0, %v4606
        %v4608 = vpop.f32.mrb[0].mxu0
        %4609 = vmatprep.mubr.f32.mxu0 0.0
        %4610 = vmatmul.mubr.f32.gmra.mrb[0].mxu0 %v4412
        %v4611 = vpop.f32.mrb[0].mxu0
        %v4612 = vadd.f32 0.0, %v4611
        %v4613 = vpop.f32.mrb[0].mxu0
        %4614 = vmatprep.mubr.f32.mxu0 0.0
        %4615 = vmatmul.mubr.f32.gmra.mrb[0].mxu0 %v4413
        %v4616 = vpop.f32.mrb[0].mxu0
        %v4617 = vadd.f32 0.0, %v4616
        %v4618 = vpop.f32.mrb[0].mxu0
        %4619 = vmatprep.mubr.f32.mxu0 0.0
        %4620 = vmatmul.mubr.f32.gmra.mrb[0].mxu0 %v4414
        %v4621 = vpop.f32.mrb[0].mxu0
        %v4622 = vadd.f32 0.0, %v4621
        %v4623 = vpop.f32.mrb[0].mxu0
        %4624 = vmatprep.mubr.f32.mxu0 0.0
        %4625 = vmatmul.mubr.f32.gmra.mrb[0].mxu0 %v4415
        %v4626 = vpop.f32.mrb[0].mxu0
        %v4627 = vadd.f32 0.0, %v4626
        %v4628 = vpop.f32.mrb[0].mxu0
        %4629 = vmatprep.mubr.f32.mxu0 0.0
        %4630 = vmatmul.mubr.f32.gmra.mrb[0].mxu0 %v4416
        %v4631 = vpop.f32.mrb[0].mxu0
        %v4632 = vadd.f32 0.0, %v4631
        %v4633 = vpop.f32.mrb[0].mxu0
        %4634 = vmatprep.mubr.f32.mxu0 0.0
        %4635 = vmatmul.mubr.f32.gmra.mrb[0].mxu0 %v4417
        %v4636 = vpop.f32.mrb[0].mxu0
        %v4637 = vadd.f32 0.0, %v4636
        %v4638 = vpop.f32.mrb[0].mxu0
        %4639 = vmatprep.mubr.f32.mxu0 0.0
        %4640 = vmatmul.mubr.f32.gmra.mrb[0].mxu0 %v4418
        %v4641 = vpop.f32.mrb[0].mxu0
        %v4642 = vadd.f32 0.0, %v4641
        %v4643 = vpop.f32.mrb[0].mxu0
        %4644 = vmatprep.mubr.f32.mxu0 0.0
        %4645 = vmatmul.mubr.f32.gmra.mrb[0].mxu0 %v4419
        %v4646 = vpop.f32.mrb[0].mxu0
        %v4647 = vadd.f32 0.0, %v4646
        %v4648 = vpop.f32.mrb[0].mxu0
        %4649 = vmatprep.mubr.f32.mxu0 0.0
        %4650 = vmatmul.mubr.f32.gmra.mrb[0].mxu0 %v4420
        %v4651 = vpop.f32.mrb[0].mxu0
        %v4652 = vadd.f32 0.0, %v4651
        %v4653 = vpop.f32.mrb[0].mxu0
        %4654 = vmatprep.mubr.f32.mxu0 0.0
        %4655 = vmatmul.mubr.f32.gmra.mrb[0].mxu0 %v4421
        %v4656 = vpop.f32.mrb[0].mxu0
        %v4657 = vadd.f32 0.0, %v4656
        %v4658 = vpop.f32.mrb[0].mxu0
        %4659 = vmatprep.mubr.f32.mxu0 0.0
        %4660 = vmatmul.mubr.f32.gmra.mrb[0].mxu0 %v4422
        %v4661 = vpop.f32.mrb[0].mxu0
        %v4662 = vadd.f32 0.0, %v4661
        %v4663 = vpop.f32.mrb[0].mxu0
        %4664 = vdwg.mxu0
        %v4665 = vadd.f32 %v4359, %v4507
        %v4666 = vadd.f32 %v4360, %v4512
        %v4667 = vadd.f32 %v4361, %v4517
        %v4668 = vadd.f32 %v4362, %v4522
        %v4669 = vadd.f32 %v4363, %v4527
        %v4670 = vadd.f32 %v4364, %v4532
        %v4671 = vadd.f32 %v4365, %v4537
        %v4672 = vadd.f32 %v4366, %v4542
        %v4673 = vadd.f32 %v4367, %v4547
        %v4674 = vadd.f32 %v4368, %v4552
        %v4675 = vadd.f32 %v4369, %v4557
        %v4676 = vadd.f32 %v4370, %v4562
        %v4677 = vadd.f32 %v4371, %v4567
        %v4678 = vadd.f32 %v4372, %v4572
        %v4679 = vadd.f32 %v4373, %v4577
        %v4680 = vadd.f32 %v4374, %v4582
        %v4681 = vadd.f32 %v4375, %v4587
        %v4682 = vadd.f32 %v4376, %v4592
        %v4683 = vadd.f32 %v4377, %v4597
        %v4684 = vadd.f32 %v4378, %v4602
        %v4685 = vadd.f32 %v4379, %v4607
        %v4686 = vadd.f32 %v4380, %v4612
        %v4687 = vadd.f32 %v4381, %v4617
        %v4688 = vadd.f32 %v4382, %v4622
        %v4689 = vadd.f32 %v4383, %v4627
        %v4690 = vadd.f32 %v4384, %v4632
        %v4691 = vadd.f32 %v4385, %v4637
        %v4692 = vadd.f32 %v4386, %v4642
        %v4693 = vadd.f32 %v4387, %v4647
        %v4694 = vadd.f32 %v4388, %v4652
        %v4695 = vadd.f32 %v4389, %v4657
        %v4696 = vadd.f32 %v4390, %v4662
        %v4697 = vld [vmem:[%s3116 + $0x2] sm:$0xff]
        %v4698 = vld [vmem:[%s3116 + $0xa] sm:$0xff]
        %v4699 = vld [vmem:[%s3116 + $0x1a] sm:$0xff]
        %v4700 = vld [vmem:[%s3116 + $0x22] sm:$0xff]
        %v4701 = vld [vmem:[%s3116 + $0x32] sm:$0xff]
        %v4702 = vld [vmem:[%s3116 + $0x3a] sm:$0xff]
        %v4703 = vld [vmem:[%s3116 + $0x4a] sm:$0xff]
        %v4704 = vld [vmem:[%s3116 + $0x52] sm:$0xff]
        %v4705 = vld [vmem:[%s3116 + $0x62] sm:$0xff]
        %v4706 = vld [vmem:[%s3116 + $0x6a] sm:$0xff]
        %v4707 = vld [vmem:[%s3116 + $0x7a] sm:$0xff]
        %v4708 = vld [vmem:[%s3116 + $0x82] sm:$0xff]
        %v4709 = vld [vmem:[%s3116 + $0x92] sm:$0xff]
        %v4710 = vld [vmem:[%s3116 + $0x9a] sm:$0xff]
        %v4711 = vld [vmem:[%s3116 + $0xaa] sm:$0xff]
        %v4712 = vld [vmem:[%s3116 + $0xb2] sm:$0xff]
        %v4713 = vld [vmem:[%s3116 + $0xc2] sm:$0xff]
        %v4714 = vld [vmem:[%s3116 + $0xca] sm:$0xff]
        %v4715 = vld [vmem:[%s3116 + $0xda] sm:$0xff]
        %v4716 = vld [vmem:[%s3116 + $0xe2] sm:$0xff]
        %v4717 = vld [vmem:[%s3116 + $0xf2] sm:$0xff]
        %v4718 = vld [vmem:[%s3116 + $0xfa] sm:$0xff]
        %v4719 = vld [vmem:[%s3116 + $0x10a] sm:$0xff]
        %v4720 = vld [vmem:[%s3116 + $0x112] sm:$0xff]
        %v4721 = vld [vmem:[%s3116 + $0x122] sm:$0xff]
        %v4722 = vld [vmem:[%s3116 + $0x12a] sm:$0xff]
        %v4723 = vld [vmem:[%s3116 + $0x13a] sm:$0xff]
        %v4724 = vld [vmem:[%s3116 + $0x142] sm:$0xff]
        %v4725 = vld [vmem:[%s3116 + $0x152] sm:$0xff]
        %v4726 = vld [vmem:[%s3116 + $0x15a] sm:$0xff]
        %v4727 = vld [vmem:[%s3116 + $0x16a] sm:$0xff]
        %v4728 = vld [vmem:[%s3116 + $0x172] sm:$0xff]
        %s4729 = scalar_lea.vmem [#allocation8], 640
        %v4730 = vld [vmem:[%s4729] sm:$0xff]
        %v4731 = vld [vmem:[%s4729 + $0x8] sm:$0xff]
        %v4732 = vld [vmem:[%s4729 + $0x10] sm:$0xff]
        %v4733 = vld [vmem:[%s4729 + $0x18] sm:$0xff]
        %v4734 = vld [vmem:[%s4729 + $0x20] sm:$0xff]
        %v4735 = vld [vmem:[%s4729 + $0x28] sm:$0xff]
        %v4736 = vld [vmem:[%s4729 + $0x30] sm:$0xff]
        %v4737 = vld [vmem:[%s4729 + $0x38] sm:$0xff]
        %v4738 = vld [vmem:[%s4729 + $0x40] sm:$0xff]
        %v4739 = vld [vmem:[%s4729 + $0x48] sm:$0xff]
        %v4740 = vld [vmem:[%s4729 + $0x50] sm:$0xff]
        %v4741 = vld [vmem:[%s4729 + $0x58] sm:$0xff]
        %v4742 = vld [vmem:[%s4729 + $0x60] sm:$0xff]
        %v4743 = vld [vmem:[%s4729 + $0x68] sm:$0xff]
        %v4744 = vld [vmem:[%s4729 + $0x70] sm:$0xff]
        %v4745 = vld [vmem:[%s4729 + $0x78] sm:$0xff]
        %4746 = vmatprep.subr.mxu0 0.0
        %4747 = vmatpush1.msra.mxu0 %v4730
        %4748 = vmatprep.subr.mxu0 0.0
        %4749 = vmatpush1.msra.mxu0 %v4731
        %4750 = vmatprep.subr.mxu0 0.0
        %4751 = vmatpush1.msra.mxu0 %v4732
        %4752 = vmatprep.subr.mxu0 0.0
        %4753 = vmatpush1.msra.mxu0 %v4733
        %4754 = vmatprep.subr.mxu0 0.0
        %4755 = vmatpush1.msra.mxu0 %v4734
        %4756 = vmatprep.subr.mxu0 0.0
        %4757 = vmatpush1.msra.mxu0 %v4735
        %4758 = vmatprep.subr.mxu0 0.0
        %4759 = vmatpush1.msra.mxu0 %v4736
        %4760 = vmatprep.subr.mxu0 0.0
        %4761 = vmatpush1.msra.mxu0 %v4737
        %4762 = vmatprep.subr.mxu0 0.0
        %4763 = vmatpush1.msra.mxu0 %v4738
        %4764 = vmatprep.subr.mxu0 0.0
        %4765 = vmatpush1.msra.mxu0 %v4739
        %4766 = vmatprep.subr.mxu0 0.0
        %4767 = vmatpush1.msra.mxu0 %v4740
        %4768 = vmatprep.subr.mxu0 0.0
        %4769 = vmatpush1.msra.mxu0 %v4741
        %4770 = vmatprep.subr.mxu0 0.0
        %4771 = vmatpush1.msra.mxu0 %v4742
        %4772 = vmatprep.subr.mxu0 0.0
        %4773 = vmatpush1.msra.mxu0 %v4743
        %4774 = vmatprep.subr.mxu0 0.0
        %4775 = vmatpush1.msra.mxu0 %v4744
        %4776 = vmatprep.subr.mxu0 0.0
        %4777 = vmatpush1.msra.mxu0 %v4745
        %4778 = vmatprep.subr.mxu0 0.0
        %4779 = vmatpush1.msra.mxu0 0.0
        %4780 = vmatprep.subr.mxu0 0.0
        %4781 = vmatpush1.msra.mxu0 0.0
        %4782 = vmatprep.subr.mxu0 0.0
        %4783 = vmatpush1.msra.mxu0 0.0
        %4784 = vmatprep.subr.mxu0 0.0
        %4785 = vmatpush1.msra.mxu0 0.0
        %4786 = vmatprep.subr.mxu0 0.0
        %4787 = vmatpush1.msra.mxu0 0.0
        %4788 = vmatprep.subr.mxu0 0.0
        %4789 = vmatpush1.msra.mxu0 0.0
        %4790 = vmatprep.subr.mxu0 0.0
        %4791 = vmatpush1.msra.mxu0 0.0
        %4792 = vmatprep.subr.mxu0 0.0
        %4793 = vmatpush1.msra.mxu0 0.0
        %4794 = vmatprep.subr.mxu0 0.0
        %4795 = vmatpush1.msra.mxu0 0.0
        %4796 = vmatprep.subr.mxu0 0.0
        %4797 = vmatpush1.msra.mxu0 0.0
        %4798 = vmatprep.subr.mxu0 0.0
        %4799 = vmatpush1.msra.mxu0 0.0
        %4800 = vmatprep.subr.mxu0 0.0
        %4801 = vmatpush1.msra.mxu0 0.0
        %4802 = vmatprep.subr.mxu0 0.0
        %4803 = vmatpush1.msra.mxu0 0.0
        %4804 = vmatprep.subr.mxu0 0.0
        %4805 = vmatpush1.msra.mxu0 0.0
        %4806 = vmatprep.subr.mxu0 0.0
        %4807 = vmatpush1.msra.mxu0 0.0
        %4808 = vmatprep.subr.mxu0 0.0
        %4809 = vmatpush1.msra.mxu0 0.0
        %4810 = vmatprep.mubr.f32.mxu0 0.0
        %4811 = vmatmul.mubr.f32.gmra.mrb[0].mxu0 %v4697
        %v4812 = vpop.f32.mrb[0].mxu0
        %v4813 = vadd.f32 0.0, %v4812
        %v4814 = vpop.f32.mrb[0].mxu0
        %4815 = vmatprep.mubr.f32.mxu0 0.0
        %4816 = vmatmul.mubr.f32.gmra.mrb[0].mxu0 %v4698
        %v4817 = vpop.f32.mrb[0].mxu0
        %v4818 = vadd.f32 0.0, %v4817
        %v4819 = vpop.f32.mrb[0].mxu0
        %4820 = vmatprep.mubr.f32.mxu0 0.0
        %4821 = vmatmul.mubr.f32.gmra.mrb[0].mxu0 %v4699
        %v4822 = vpop.f32.mrb[0].mxu0
        %v4823 = vadd.f32 0.0, %v4822
        %v4824 = vpop.f32.mrb[0].mxu0
        %4825 = vmatprep.mubr.f32.mxu0 0.0
        %4826 = vmatmul.mubr.f32.gmra.mrb[0].mxu0 %v4700
        %v4827 = vpop.f32.mrb[0].mxu0
        %v4828 = vadd.f32 0.0, %v4827
        %v4829 = vpop.f32.mrb[0].mxu0
        %4830 = vmatprep.mubr.f32.mxu0 0.0
        %4831 = vmatmul.mubr.f32.gmra.mrb[0].mxu0 %v4701
        %v4832 = vpop.f32.mrb[0].mxu0
        %v4833 = vadd.f32 0.0, %v4832
        %v4834 = vpop.f32.mrb[0].mxu0
        %4835 = vmatprep.mubr.f32.mxu0 0.0
        %4836 = vmatmul.mubr.f32.gmra.mrb[0].mxu0 %v4702
        %v4837 = vpop.f32.mrb[0].mxu0
        %v4838 = vadd.f32 0.0, %v4837
        %v4839 = vpop.f32.mrb[0].mxu0
        %4840 = vmatprep.mubr.f32.mxu0 0.0
        %4841 = vmatmul.mubr.f32.gmra.mrb[0].mxu0 %v4703
        %v4842 = vpop.f32.mrb[0].mxu0
        %v4843 = vadd.f32 0.0, %v4842
        %v4844 = vpop.f32.mrb[0].mxu0
        %4845 = vmatprep.mubr.f32.mxu0 0.0
        %4846 = vmatmul.mubr.f32.gmra.mrb[0].mxu0 %v4704
        %v4847 = vpop.f32.mrb[0].mxu0
        %v4848 = vadd.f32 0.0, %v4847
        %v4849 = vpop.f32.mrb[0].mxu0
        %4850 = vmatprep.mubr.f32.mxu0 0.0
        %4851 = vmatmul.mubr.f32.gmra.mrb[0].mxu0 %v4705
        %v4852 = vpop.f32.mrb[0].mxu0
        %v4853 = vadd.f32 0.0, %v4852
        %v4854 = vpop.f32.mrb[0].mxu0
        %4855 = vmatprep.mubr.f32.mxu0 0.0
        %4856 = vmatmul.mubr.f32.gmra.mrb[0].mxu0 %v4706
        %v4857 = vpop.f32.mrb[0].mxu0
        %v4858 = vadd.f32 0.0, %v4857
        %v4859 = vpop.f32.mrb[0].mxu0
        %4860 = vmatprep.mubr.f32.mxu0 0.0
        %4861 = vmatmul.mubr.f32.gmra.mrb[0].mxu0 %v4707
        %v4862 = vpop.f32.mrb[0].mxu0
        %v4863 = vadd.f32 0.0, %v4862
        %v4864 = vpop.f32.mrb[0].mxu0
        %4865 = vmatprep.mubr.f32.mxu0 0.0
        %4866 = vmatmul.mubr.f32.gmra.mrb[0].mxu0 %v4708
        %v4867 = vpop.f32.mrb[0].mxu0
        %v4868 = vadd.f32 0.0, %v4867
        %v4869 = vpop.f32.mrb[0].mxu0
        %4870 = vmatprep.mubr.f32.mxu0 0.0
        %4871 = vmatmul.mubr.f32.gmra.mrb[0].mxu0 %v4709
        %v4872 = vpop.f32.mrb[0].mxu0
        %v4873 = vadd.f32 0.0, %v4872
        %v4874 = vpop.f32.mrb[0].mxu0
        %4875 = vmatprep.mubr.f32.mxu0 0.0
        %4876 = vmatmul.mubr.f32.gmra.mrb[0].mxu0 %v4710
        %v4877 = vpop.f32.mrb[0].mxu0
        %v4878 = vadd.f32 0.0, %v4877
        %v4879 = vpop.f32.mrb[0].mxu0
        %4880 = vmatprep.mubr.f32.mxu0 0.0
        %4881 = vmatmul.mubr.f32.gmra.mrb[0].mxu0 %v4711
        %v4882 = vpop.f32.mrb[0].mxu0
        %v4883 = vadd.f32 0.0, %v4882
        %v4884 = vpop.f32.mrb[0].mxu0
        %4885 = vmatprep.mubr.f32.mxu0 0.0
        %4886 = vmatmul.mubr.f32.gmra.mrb[0].mxu0 %v4712
        %v4887 = vpop.f32.mrb[0].mxu0
        %v4888 = vadd.f32 0.0, %v4887
        %v4889 = vpop.f32.mrb[0].mxu0
        %4890 = vmatprep.mubr.f32.mxu0 0.0
        %4891 = vmatmul.mubr.f32.gmra.mrb[0].mxu0 %v4713
        %v4892 = vpop.f32.mrb[0].mxu0
        %v4893 = vadd.f32 0.0, %v4892
        %v4894 = vpop.f32.mrb[0].mxu0
        %4895 = vmatprep.mubr.f32.mxu0 0.0
        %4896 = vmatmul.mubr.f32.gmra.mrb[0].mxu0 %v4714
        %v4897 = vpop.f32.mrb[0].mxu0
        %v4898 = vadd.f32 0.0, %v4897
        %v4899 = vpop.f32.mrb[0].mxu0
        %4900 = vmatprep.mubr.f32.mxu0 0.0
        %4901 = vmatmul.mubr.f32.gmra.mrb[0].mxu0 %v4715
        %v4902 = vpop.f32.mrb[0].mxu0
        %v4903 = vadd.f32 0.0, %v4902
        %v4904 = vpop.f32.mrb[0].mxu0
        %4905 = vmatprep.mubr.f32.mxu0 0.0
        %4906 = vmatmul.mubr.f32.gmra.mrb[0].mxu0 %v4716
        %v4907 = vpop.f32.mrb[0].mxu0
        %v4908 = vadd.f32 0.0, %v4907
        %v4909 = vpop.f32.mrb[0].mxu0
        %4910 = vmatprep.mubr.f32.mxu0 0.0
        %4911 = vmatmul.mubr.f32.gmra.mrb[0].mxu0 %v4717
        %v4912 = vpop.f32.mrb[0].mxu0
        %v4913 = vadd.f32 0.0, %v4912
        %v4914 = vpop.f32.mrb[0].mxu0
        %4915 = vmatprep.mubr.f32.mxu0 0.0
        %4916 = vmatmul.mubr.f32.gmra.mrb[0].mxu0 %v4718
        %v4917 = vpop.f32.mrb[0].mxu0
        %v4918 = vadd.f32 0.0, %v4917
        %v4919 = vpop.f32.mrb[0].mxu0
        %4920 = vmatprep.mubr.f32.mxu0 0.0
        %4921 = vmatmul.mubr.f32.gmra.mrb[0].mxu0 %v4719
        %v4922 = vpop.f32.mrb[0].mxu0
        %v4923 = vadd.f32 0.0, %v4922
        %v4924 = vpop.f32.mrb[0].mxu0
        %4925 = vmatprep.mubr.f32.mxu0 0.0
        %4926 = vmatmul.mubr.f32.gmra.mrb[0].mxu0 %v4720
        %v4927 = vpop.f32.mrb[0].mxu0
        %v4928 = vadd.f32 0.0, %v4927
        %v4929 = vpop.f32.mrb[0].mxu0
        %4930 = vmatprep.mubr.f32.mxu0 0.0
        %4931 = vmatmul.mubr.f32.gmra.mrb[0].mxu0 %v4721
        %v4932 = vpop.f32.mrb[0].mxu0
        %v4933 = vadd.f32 0.0, %v4932
        %v4934 = vpop.f32.mrb[0].mxu0
        %4935 = vmatprep.mubr.f32.mxu0 0.0
        %4936 = vmatmul.mubr.f32.gmra.mrb[0].mxu0 %v4722
        %v4937 = vpop.f32.mrb[0].mxu0
        %v4938 = vadd.f32 0.0, %v4937
        %v4939 = vpop.f32.mrb[0].mxu0
        %4940 = vmatprep.mubr.f32.mxu0 0.0
        %4941 = vmatmul.mubr.f32.gmra.mrb[0].mxu0 %v4723
        %v4942 = vpop.f32.mrb[0].mxu0
        %v4943 = vadd.f32 0.0, %v4942
        %v4944 = vpop.f32.mrb[0].mxu0
        %4945 = vmatprep.mubr.f32.mxu0 0.0
        %4946 = vmatmul.mubr.f32.gmra.mrb[0].mxu0 %v4724
        %v4947 = vpop.f32.mrb[0].mxu0
        %v4948 = vadd.f32 0.0, %v4947
        %v4949 = vpop.f32.mrb[0].mxu0
        %4950 = vmatprep.mubr.f32.mxu0 0.0
        %4951 = vmatmul.mubr.f32.gmra.mrb[0].mxu0 %v4725
        %v4952 = vpop.f32.mrb[0].mxu0
        %v4953 = vadd.f32 0.0, %v4952
        %v4954 = vpop.f32.mrb[0].mxu0
        %4955 = vmatprep.mubr.f32.mxu0 0.0
        %4956 = vmatmul.mubr.f32.gmra.mrb[0].mxu0 %v4726
        %v4957 = vpop.f32.mrb[0].mxu0
        %v4958 = vadd.f32 0.0, %v4957
        %v4959 = vpop.f32.mrb[0].mxu0
        %4960 = vmatprep.mubr.f32.mxu0 0.0
        %4961 = vmatmul.mubr.f32.gmra.mrb[0].mxu0 %v4727
        %v4962 = vpop.f32.mrb[0].mxu0
        %v4963 = vadd.f32 0.0, %v4962
        %v4964 = vpop.f32.mrb[0].mxu0
        %4965 = vmatprep.mubr.f32.mxu0 0.0
        %4966 = vmatmul.mubr.f32.gmra.mrb[0].mxu0 %v4728
        %v4967 = vpop.f32.mrb[0].mxu0
        %v4968 = vadd.f32 0.0, %v4967
        %v4969 = vpop.f32.mrb[0].mxu0
        %4970 = vdwg.mxu0
        %v4971 = vadd.f32 %v4665, %v4813
        %v4972 = vadd.f32 %v4666, %v4818
        %v4973 = vadd.f32 %v4667, %v4823
        %v4974 = vadd.f32 %v4668, %v4828
        %v4975 = vadd.f32 %v4669, %v4833
        %v4976 = vadd.f32 %v4670, %v4838
        %v4977 = vadd.f32 %v4671, %v4843
        %v4978 = vadd.f32 %v4672, %v4848
        %v4979 = vadd.f32 %v4673, %v4853
        %v4980 = vadd.f32 %v4674, %v4858
        %v4981 = vadd.f32 %v4675, %v4863
        %v4982 = vadd.f32 %v4676, %v4868
        %v4983 = vadd.f32 %v4677, %v4873
        %v4984 = vadd.f32 %v4678, %v4878
        %v4985 = vadd.f32 %v4679, %v4883
        %v4986 = vadd.f32 %v4680, %v4888
        %v4987 = vadd.f32 %v4681, %v4893
        %v4988 = vadd.f32 %v4682, %v4898
        %v4989 = vadd.f32 %v4683, %v4903
        %v4990 = vadd.f32 %v4684, %v4908
        %v4991 = vadd.f32 %v4685, %v4913
        %v4992 = vadd.f32 %v4686, %v4918
        %v4993 = vadd.f32 %v4687, %v4923
        %v4994 = vadd.f32 %v4688, %v4928
        %v4995 = vadd.f32 %v4689, %v4933
        %v4996 = vadd.f32 %v4690, %v4938
        %v4997 = vadd.f32 %v4691, %v4943
        %v4998 = vadd.f32 %v4692, %v4948
        %v4999 = vadd.f32 %v4693, %v4953
        %v5000 = vadd.f32 %v4694, %v4958
        %v5001 = vadd.f32 %v4695, %v4963
        %v5002 = vadd.f32 %v4696, %v4968
        %v5003 = vld [vmem:[%s3149] sm:$0xff]
        %v5004 = vld [vmem:[%s3149 + $0x8] sm:$0xff]
        %v5005 = vld [vmem:[%s3149 + $0x18] sm:$0xff]
        %v5006 = vld [vmem:[%s3149 + $0x20] sm:$0xff]
        %v5007 = vld [vmem:[%s3149 + $0x30] sm:$0xff]
        %v5008 = vld [vmem:[%s3149 + $0x38] sm:$0xff]
        %v5009 = vld [vmem:[%s3149 + $0x48] sm:$0xff]
        %v5010 = vld [vmem:[%s3149 + $0x50] sm:$0xff]
        %v5011 = vld [vmem:[%s3149 + $0x60] sm:$0xff]
        %v5012 = vld [vmem:[%s3149 + $0x68] sm:$0xff]
        %v5013 = vld [vmem:[%s3149 + $0x78] sm:$0xff]
        %v5014 = vld [vmem:[%s3149 + $0x80] sm:$0xff]
        %v5015 = vld [vmem:[%s3149 + $0x90] sm:$0xff]
        %v5016 = vld [vmem:[%s3149 + $0x98] sm:$0xff]
        %v5017 = vld [vmem:[%s3149 + $0xa8] sm:$0xff]
        %v5018 = vld [vmem:[%s3149 + $0xb0] sm:$0xff]
        %v5019 = vld [vmem:[%s3149 + $0xc0] sm:$0xff]
        %v5020 = vld [vmem:[%s3149 + $0xc8] sm:$0xff]
        %v5021 = vld [vmem:[%s3149 + $0xd8] sm:$0xff]
        %v5022 = vld [vmem:[%s3149 + $0xe0] sm:$0xff]
        %v5023 = vld [vmem:[%s3149 + $0xf0] sm:$0xff]
        %v5024 = vld [vmem:[%s3149 + $0xf8] sm:$0xff]
        %v5025 = vld [vmem:[%s3149 + $0x108] sm:$0xff]
        %v5026 = vld [vmem:[%s3149 + $0x110] sm:$0xff]
        %v5027 = vld [vmem:[%s3149 + $0x120] sm:$0xff]
        %v5028 = vld [vmem:[%s3149 + $0x128] sm:$0xff]
        %v5029 = vld [vmem:[%s3149 + $0x138] sm:$0xff]
        %v5030 = vld [vmem:[%s3149 + $0x140] sm:$0xff]
        %v5031 = vld [vmem:[%s3149 + $0x150] sm:$0xff]
        %v5032 = vld [vmem:[%s3149 + $0x158] sm:$0xff]
        %v5033 = vld [vmem:[%s3149 + $0x168] sm:$0xff]
        %v5034 = vld [vmem:[%s3149 + $0x170] sm:$0xff]
        %s5035 = scalar_lea.vmem [#allocation8], 768
        %v5036 = vld [vmem:[%s5035] sm:$0xff]
        %v5037 = vld [vmem:[%s5035 + $0x8] sm:$0xff]
        %v5038 = vld [vmem:[%s5035 + $0x10] sm:$0xff]
        %v5039 = vld [vmem:[%s5035 + $0x18] sm:$0xff]
        %v5040 = vld [vmem:[%s5035 + $0x20] sm:$0xff]
        %v5041 = vld [vmem:[%s5035 + $0x28] sm:$0xff]
        %v5042 = vld [vmem:[%s5035 + $0x30] sm:$0xff]
        %v5043 = vld [vmem:[%s5035 + $0x38] sm:$0xff]
        %v5044 = vld [vmem:[%s5035 + $0x40] sm:$0xff]
        %v5045 = vld [vmem:[%s5035 + $0x48] sm:$0xff]
        %v5046 = vld [vmem:[%s5035 + $0x50] sm:$0xff]
        %v5047 = vld [vmem:[%s5035 + $0x58] sm:$0xff]
        %v5048 = vld [vmem:[%s5035 + $0x60] sm:$0xff]
        %v5049 = vld [vmem:[%s5035 + $0x68] sm:$0xff]
        %v5050 = vld [vmem:[%s5035 + $0x70] sm:$0xff]
        %v5051 = vld [vmem:[%s5035 + $0x78] sm:$0xff]
        %5052 = vmatprep.subr.mxu0 0.0
        %5053 = vmatpush1.msra.mxu0 %v5036
        %5054 = vmatprep.subr.mxu0 0.0
        %5055 = vmatpush1.msra.mxu0 %v5037
        %5056 = vmatprep.subr.mxu0 0.0
        %5057 = vmatpush1.msra.mxu0 %v5038
        %5058 = vmatprep.subr.mxu0 0.0
        %5059 = vmatpush1.msra.mxu0 %v5039
        %5060 = vmatprep.subr.mxu0 0.0
        %5061 = vmatpush1.msra.mxu0 %v5040
        %5062 = vmatprep.subr.mxu0 0.0
        %5063 = vmatpush1.msra.mxu0 %v5041
        %5064 = vmatprep.subr.mxu0 0.0
        %5065 = vmatpush1.msra.mxu0 %v5042
        %5066 = vmatprep.subr.mxu0 0.0
        %5067 = vmatpush1.msra.mxu0 %v5043
        %5068 = vmatprep.subr.mxu0 0.0
        %5069 = vmatpush1.msra.mxu0 %v5044
        %5070 = vmatprep.subr.mxu0 0.0
        %5071 = vmatpush1.msra.mxu0 %v5045
        %5072 = vmatprep.subr.mxu0 0.0
        %5073 = vmatpush1.msra.mxu0 %v5046
        %5074 = vmatprep.subr.mxu0 0.0
        %5075 = vmatpush1.msra.mxu0 %v5047
        %5076 = vmatprep.subr.mxu0 0.0
        %5077 = vmatpush1.msra.mxu0 %v5048
        %5078 = vmatprep.subr.mxu0 0.0
        %5079 = vmatpush1.msra.mxu0 %v5049
        %5080 = vmatprep.subr.mxu0 0.0
        %5081 = vmatpush1.msra.mxu0 %v5050
        %5082 = vmatprep.subr.mxu0 0.0
        %5083 = vmatpush1.msra.mxu0 %v5051
        %5084 = vmatprep.subr.mxu0 0.0
        %5085 = vmatpush1.msra.mxu0 0.0
        %5086 = vmatprep.subr.mxu0 0.0
        %5087 = vmatpush1.msra.mxu0 0.0
        %5088 = vmatprep.subr.mxu0 0.0
        %5089 = vmatpush1.msra.mxu0 0.0
        %5090 = vmatprep.subr.mxu0 0.0
        %5091 = vmatpush1.msra.mxu0 0.0
        %5092 = vmatprep.subr.mxu0 0.0
        %5093 = vmatpush1.msra.mxu0 0.0
        %5094 = vmatprep.subr.mxu0 0.0
        %5095 = vmatpush1.msra.mxu0 0.0
        %5096 = vmatprep.subr.mxu0 0.0
        %5097 = vmatpush1.msra.mxu0 0.0
        %5098 = vmatprep.subr.mxu0 0.0
        %5099 = vmatpush1.msra.mxu0 0.0
        %5100 = vmatprep.subr.mxu0 0.0
        %5101 = vmatpush1.msra.mxu0 0.0
        %5102 = vmatprep.subr.mxu0 0.0
        %5103 = vmatpush1.msra.mxu0 0.0
        %5104 = vmatprep.subr.mxu0 0.0
        %5105 = vmatpush1.msra.mxu0 0.0
        %5106 = vmatprep.subr.mxu0 0.0
        %5107 = vmatpush1.msra.mxu0 0.0
        %5108 = vmatprep.subr.mxu0 0.0
        %5109 = vmatpush1.msra.mxu0 0.0
        %5110 = vmatprep.subr.mxu0 0.0
        %5111 = vmatpush1.msra.mxu0 0.0
        %5112 = vmatprep.subr.mxu0 0.0
        %5113 = vmatpush1.msra.mxu0 0.0
        %5114 = vmatprep.subr.mxu0 0.0
        %5115 = vmatpush1.msra.mxu0 0.0
        %5116 = vmatprep.mubr.f32.mxu0 0.0
        %5117 = vmatmul.mubr.f32.gmra.mrb[0].mxu0 %v5003
        %v5118 = vpop.f32.mrb[0].mxu0
        %v5119 = vadd.f32 0.0, %v5118
        %v5120 = vpop.f32.mrb[0].mxu0
        %5121 = vmatprep.mubr.f32.mxu0 0.0
        %5122 = vmatmul.mubr.f32.gmra.mrb[0].mxu0 %v5004
        %v5123 = vpop.f32.mrb[0].mxu0
        %v5124 = vadd.f32 0.0, %v5123
        %v5125 = vpop.f32.mrb[0].mxu0
        %5126 = vmatprep.mubr.f32.mxu0 0.0
        %5127 = vmatmul.mubr.f32.gmra.mrb[0].mxu0 %v5005
        %v5128 = vpop.f32.mrb[0].mxu0
        %v5129 = vadd.f32 0.0, %v5128
        %v5130 = vpop.f32.mrb[0].mxu0
        %5131 = vmatprep.mubr.f32.mxu0 0.0
        %5132 = vmatmul.mubr.f32.gmra.mrb[0].mxu0 %v5006
        %v5133 = vpop.f32.mrb[0].mxu0
        %v5134 = vadd.f32 0.0, %v5133
        %v5135 = vpop.f32.mrb[0].mxu0
        %5136 = vmatprep.mubr.f32.mxu0 0.0
        %5137 = vmatmul.mubr.f32.gmra.mrb[0].mxu0 %v5007
        %v5138 = vpop.f32.mrb[0].mxu0
        %v5139 = vadd.f32 0.0, %v5138
        %v5140 = vpop.f32.mrb[0].mxu0
        %5141 = vmatprep.mubr.f32.mxu0 0.0
        %5142 = vmatmul.mubr.f32.gmra.mrb[0].mxu0 %v5008
        %v5143 = vpop.f32.mrb[0].mxu0
        %v5144 = vadd.f32 0.0, %v5143
        %v5145 = vpop.f32.mrb[0].mxu0
        %5146 = vmatprep.mubr.f32.mxu0 0.0
        %5147 = vmatmul.mubr.f32.gmra.mrb[0].mxu0 %v5009
        %v5148 = vpop.f32.mrb[0].mxu0
        %v5149 = vadd.f32 0.0, %v5148
        %v5150 = vpop.f32.mrb[0].mxu0
        %5151 = vmatprep.mubr.f32.mxu0 0.0
        %5152 = vmatmul.mubr.f32.gmra.mrb[0].mxu0 %v5010
        %v5153 = vpop.f32.mrb[0].mxu0
        %v5154 = vadd.f32 0.0, %v5153
        %v5155 = vpop.f32.mrb[0].mxu0
        %5156 = vmatprep.mubr.f32.mxu0 0.0
        %5157 = vmatmul.mubr.f32.gmra.mrb[0].mxu0 %v5011
        %v5158 = vpop.f32.mrb[0].mxu0
        %v5159 = vadd.f32 0.0, %v5158
        %v5160 = vpop.f32.mrb[0].mxu0
        %5161 = vmatprep.mubr.f32.mxu0 0.0
        %5162 = vmatmul.mubr.f32.gmra.mrb[0].mxu0 %v5012
        %v5163 = vpop.f32.mrb[0].mxu0
        %v5164 = vadd.f32 0.0, %v5163
        %v5165 = vpop.f32.mrb[0].mxu0
        %5166 = vmatprep.mubr.f32.mxu0 0.0
        %5167 = vmatmul.mubr.f32.gmra.mrb[0].mxu0 %v5013
        %v5168 = vpop.f32.mrb[0].mxu0
        %v5169 = vadd.f32 0.0, %v5168
        %v5170 = vpop.f32.mrb[0].mxu0
        %5171 = vmatprep.mubr.f32.mxu0 0.0
        %5172 = vmatmul.mubr.f32.gmra.mrb[0].mxu0 %v5014
        %v5173 = vpop.f32.mrb[0].mxu0
        %v5174 = vadd.f32 0.0, %v5173
        %v5175 = vpop.f32.mrb[0].mxu0
        %5176 = vmatprep.mubr.f32.mxu0 0.0
        %5177 = vmatmul.mubr.f32.gmra.mrb[0].mxu0 %v5015
        %v5178 = vpop.f32.mrb[0].mxu0
        %v5179 = vadd.f32 0.0, %v5178
        %v5180 = vpop.f32.mrb[0].mxu0
        %5181 = vmatprep.mubr.f32.mxu0 0.0
        %5182 = vmatmul.mubr.f32.gmra.mrb[0].mxu0 %v5016
        %v5183 = vpop.f32.mrb[0].mxu0
        %v5184 = vadd.f32 0.0, %v5183
        %v5185 = vpop.f32.mrb[0].mxu0
        %5186 = vmatprep.mubr.f32.mxu0 0.0
        %5187 = vmatmul.mubr.f32.gmra.mrb[0].mxu0 %v5017
        %v5188 = vpop.f32.mrb[0].mxu0
        %v5189 = vadd.f32 0.0, %v5188
        %v5190 = vpop.f32.mrb[0].mxu0
        %5191 = vmatprep.mubr.f32.mxu0 0.0
        %5192 = vmatmul.mubr.f32.gmra.mrb[0].mxu0 %v5018
        %v5193 = vpop.f32.mrb[0].mxu0
        %v5194 = vadd.f32 0.0, %v5193
        %v5195 = vpop.f32.mrb[0].mxu0
        %5196 = vmatprep.mubr.f32.mxu0 0.0
        %5197 = vmatmul.mubr.f32.gmra.mrb[0].mxu0 %v5019
        %v5198 = vpop.f32.mrb[0].mxu0
        %v5199 = vadd.f32 0.0, %v5198
        %v5200 = vpop.f32.mrb[0].mxu0
        %5201 = vmatprep.mubr.f32.mxu0 0.0
        %5202 = vmatmul.mubr.f32.gmra.mrb[0].mxu0 %v5020
        %v5203 = vpop.f32.mrb[0].mxu0
        %v5204 = vadd.f32 0.0, %v5203
        %v5205 = vpop.f32.mrb[0].mxu0
        %5206 = vmatprep.mubr.f32.mxu0 0.0
        %5207 = vmatmul.mubr.f32.gmra.mrb[0].mxu0 %v5021
        %v5208 = vpop.f32.mrb[0].mxu0
        %v5209 = vadd.f32 0.0, %v5208
        %v5210 = vpop.f32.mrb[0].mxu0
        %5211 = vmatprep.mubr.f32.mxu0 0.0
        %5212 = vmatmul.mubr.f32.gmra.mrb[0].mxu0 %v5022
        %v5213 = vpop.f32.mrb[0].mxu0
        %v5214 = vadd.f32 0.0, %v5213
        %v5215 = vpop.f32.mrb[0].mxu0
        %5216 = vmatprep.mubr.f32.mxu0 0.0
        %5217 = vmatmul.mubr.f32.gmra.mrb[0].mxu0 %v5023
        %v5218 = vpop.f32.mrb[0].mxu0
        %v5219 = vadd.f32 0.0, %v5218
        %v5220 = vpop.f32.mrb[0].mxu0
        %5221 = vmatprep.mubr.f32.mxu0 0.0
        %5222 = vmatmul.mubr.f32.gmra.mrb[0].mxu0 %v5024
        %v5223 = vpop.f32.mrb[0].mxu0
        %v5224 = vadd.f32 0.0, %v5223
        %v5225 = vpop.f32.mrb[0].mxu0
        %5226 = vmatprep.mubr.f32.mxu0 0.0
        %5227 = vmatmul.mubr.f32.gmra.mrb[0].mxu0 %v5025
        %v5228 = vpop.f32.mrb[0].mxu0
        %v5229 = vadd.f32 0.0, %v5228
        %v5230 = vpop.f32.mrb[0].mxu0
        %5231 = vmatprep.mubr.f32.mxu0 0.0
        %5232 = vmatmul.mubr.f32.gmra.mrb[0].mxu0 %v5026
        %v5233 = vpop.f32.mrb[0].mxu0
        %v5234 = vadd.f32 0.0, %v5233
        %v5235 = vpop.f32.mrb[0].mxu0
        %5236 = vmatprep.mubr.f32.mxu0 0.0
        %5237 = vmatmul.mubr.f32.gmra.mrb[0].mxu0 %v5027
        %v5238 = vpop.f32.mrb[0].mxu0
        %v5239 = vadd.f32 0.0, %v5238
        %v5240 = vpop.f32.mrb[0].mxu0
        %5241 = vmatprep.mubr.f32.mxu0 0.0
        %5242 = vmatmul.mubr.f32.gmra.mrb[0].mxu0 %v5028
        %v5243 = vpop.f32.mrb[0].mxu0
        %v5244 = vadd.f32 0.0, %v5243
        %v5245 = vpop.f32.mrb[0].mxu0
        %5246 = vmatprep.mubr.f32.mxu0 0.0
        %5247 = vmatmul.mubr.f32.gmra.mrb[0].mxu0 %v5029
        %v5248 = vpop.f32.mrb[0].mxu0
        %v5249 = vadd.f32 0.0, %v5248
        %v5250 = vpop.f32.mrb[0].mxu0
        %5251 = vmatprep.mubr.f32.mxu0 0.0
        %5252 = vmatmul.mubr.f32.gmra.mrb[0].mxu0 %v5030
        %v5253 = vpop.f32.mrb[0].mxu0
        %v5254 = vadd.f32 0.0, %v5253
        %v5255 = vpop.f32.mrb[0].mxu0
        %5256 = vmatprep.mubr.f32.mxu0 0.0
        %5257 = vmatmul.mubr.f32.gmra.mrb[0].mxu0 %v5031
        %v5258 = vpop.f32.mrb[0].mxu0
        %v5259 = vadd.f32 0.0, %v5258
        %v5260 = vpop.f32.mrb[0].mxu0
        %5261 = vmatprep.mubr.f32.mxu0 0.0
        %5262 = vmatmul.mubr.f32.gmra.mrb[0].mxu0 %v5032
        %v5263 = vpop.f32.mrb[0].mxu0
        %v5264 = vadd.f32 0.0, %v5263
        %v5265 = vpop.f32.mrb[0].mxu0
        %5266 = vmatprep.mubr.f32.mxu0 0.0
        %5267 = vmatmul.mubr.f32.gmra.mrb[0].mxu0 %v5033
        %v5268 = vpop.f32.mrb[0].mxu0
        %v5269 = vadd.f32 0.0, %v5268
        %v5270 = vpop.f32.mrb[0].mxu0
        %5271 = vmatprep.mubr.f32.mxu0 0.0
        %5272 = vmatmul.mubr.f32.gmra.mrb[0].mxu0 %v5034
        %v5273 = vpop.f32.mrb[0].mxu0
        %v5274 = vadd.f32 0.0, %v5273
        %v5275 = vpop.f32.mrb[0].mxu0
        %5276 = vdwg.mxu0
        %v5277 = vadd.f32 %v4971, %v5119
        %v5278 = vadd.f32 %v4972, %v5124
        %v5279 = vadd.f32 %v4973, %v5129
        %v5280 = vadd.f32 %v4974, %v5134
        %v5281 = vadd.f32 %v4975, %v5139
        %v5282 = vadd.f32 %v4976, %v5144
        %v5283 = vadd.f32 %v4977, %v5149
        %v5284 = vadd.f32 %v4978, %v5154
        %v5285 = vadd.f32 %v4979, %v5159
        %v5286 = vadd.f32 %v4980, %v5164
        %v5287 = vadd.f32 %v4981, %v5169
        %v5288 = vadd.f32 %v4982, %v5174
        %v5289 = vadd.f32 %v4983, %v5179
        %v5290 = vadd.f32 %v4984, %v5184
        %v5291 = vadd.f32 %v4985, %v5189
        %v5292 = vadd.f32 %v4986, %v5194
        %v5293 = vadd.f32 %v4987, %v5199
        %v5294 = vadd.f32 %v4988, %v5204
        %v5295 = vadd.f32 %v4989, %v5209
        %v5296 = vadd.f32 %v4990, %v5214
        %v5297 = vadd.f32 %v4991, %v5219
        %v5298 = vadd.f32 %v4992, %v5224
        %v5299 = vadd.f32 %v4993, %v5229
        %v5300 = vadd.f32 %v4994, %v5234
        %v5301 = vadd.f32 %v4995, %v5239
        %v5302 = vadd.f32 %v4996, %v5244
        %v5303 = vadd.f32 %v4997, %v5249
        %v5304 = vadd.f32 %v4998, %v5254
        %v5305 = vadd.f32 %v4999, %v5259
        %v5306 = vadd.f32 %v5000, %v5264
        %v5307 = vadd.f32 %v5001, %v5269
        %v5308 = vadd.f32 %v5002, %v5274
        %v5309 = vld [vmem:[%s3149 + $0x1] sm:$0xff]
        %v5310 = vld [vmem:[%s3149 + $0x9] sm:$0xff]
        %v5311 = vld [vmem:[%s3149 + $0x19] sm:$0xff]
        %v5312 = vld [vmem:[%s3149 + $0x21] sm:$0xff]
        %v5313 = vld [vmem:[%s3149 + $0x31] sm:$0xff]
        %v5314 = vld [vmem:[%s3149 + $0x39] sm:$0xff]
        %v5315 = vld [vmem:[%s3149 + $0x49] sm:$0xff]
        %v5316 = vld [vmem:[%s3149 + $0x51] sm:$0xff]
        %v5317 = vld [vmem:[%s3149 + $0x61] sm:$0xff]
        %v5318 = vld [vmem:[%s3149 + $0x69] sm:$0xff]
        %v5319 = vld [vmem:[%s3149 + $0x79] sm:$0xff]
        %v5320 = vld [vmem:[%s3149 + $0x81] sm:$0xff]
        %v5321 = vld [vmem:[%s3149 + $0x91] sm:$0xff]
        %v5322 = vld [vmem:[%s3149 + $0x99] sm:$0xff]
        %v5323 = vld [vmem:[%s3149 + $0xa9] sm:$0xff]
        %v5324 = vld [vmem:[%s3149 + $0xb1] sm:$0xff]
        %v5325 = vld [vmem:[%s3149 + $0xc1] sm:$0xff]
        %v5326 = vld [vmem:[%s3149 + $0xc9] sm:$0xff]
        %v5327 = vld [vmem:[%s3149 + $0xd9] sm:$0xff]
        %v5328 = vld [vmem:[%s3149 + $0xe1] sm:$0xff]
        %v5329 = vld [vmem:[%s3149 + $0xf1] sm:$0xff]
        %v5330 = vld [vmem:[%s3149 + $0xf9] sm:$0xff]
        %v5331 = vld [vmem:[%s3149 + $0x109] sm:$0xff]
        %v5332 = vld [vmem:[%s3149 + $0x111] sm:$0xff]
        %v5333 = vld [vmem:[%s3149 + $0x121] sm:$0xff]
        %v5334 = vld [vmem:[%s3149 + $0x129] sm:$0xff]
        %v5335 = vld [vmem:[%s3149 + $0x139] sm:$0xff]
        %v5336 = vld [vmem:[%s3149 + $0x141] sm:$0xff]
        %v5337 = vld [vmem:[%s3149 + $0x151] sm:$0xff]
        %v5338 = vld [vmem:[%s3149 + $0x159] sm:$0xff]
        %v5339 = vld [vmem:[%s3149 + $0x169] sm:$0xff]
        %v5340 = vld [vmem:[%s3149 + $0x171] sm:$0xff]
        %s5341 = scalar_lea.vmem [#allocation8], 896
        %v5342 = vld [vmem:[%s5341] sm:$0xff]
        %v5343 = vld [vmem:[%s5341 + $0x8] sm:$0xff]
        %v5344 = vld [vmem:[%s5341 + $0x10] sm:$0xff]
        %v5345 = vld [vmem:[%s5341 + $0x18] sm:$0xff]
        %v5346 = vld [vmem:[%s5341 + $0x20] sm:$0xff]
        %v5347 = vld [vmem:[%s5341 + $0x28] sm:$0xff]
        %v5348 = vld [vmem:[%s5341 + $0x30] sm:$0xff]
        %v5349 = vld [vmem:[%s5341 + $0x38] sm:$0xff]
        %v5350 = vld [vmem:[%s5341 + $0x40] sm:$0xff]
        %v5351 = vld [vmem:[%s5341 + $0x48] sm:$0xff]
        %v5352 = vld [vmem:[%s5341 + $0x50] sm:$0xff]
        %v5353 = vld [vmem:[%s5341 + $0x58] sm:$0xff]
        %v5354 = vld [vmem:[%s5341 + $0x60] sm:$0xff]
        %v5355 = vld [vmem:[%s5341 + $0x68] sm:$0xff]
        %v5356 = vld [vmem:[%s5341 + $0x70] sm:$0xff]
        %v5357 = vld [vmem:[%s5341 + $0x78] sm:$0xff]
        %5358 = vmatprep.subr.mxu0 0.0
        %5359 = vmatpush1.msra.mxu0 %v5342
        %5360 = vmatprep.subr.mxu0 0.0
        %5361 = vmatpush1.msra.mxu0 %v5343
        %5362 = vmatprep.subr.mxu0 0.0
        %5363 = vmatpush1.msra.mxu0 %v5344
        %5364 = vmatprep.subr.mxu0 0.0
        %5365 = vmatpush1.msra.mxu0 %v5345
        %5366 = vmatprep.subr.mxu0 0.0
        %5367 = vmatpush1.msra.mxu0 %v5346
        %5368 = vmatprep.subr.mxu0 0.0
        %5369 = vmatpush1.msra.mxu0 %v5347
        %5370 = vmatprep.subr.mxu0 0.0
        %5371 = vmatpush1.msra.mxu0 %v5348
        %5372 = vmatprep.subr.mxu0 0.0
        %5373 = vmatpush1.msra.mxu0 %v5349
        %5374 = vmatprep.subr.mxu0 0.0
        %5375 = vmatpush1.msra.mxu0 %v5350
        %5376 = vmatprep.subr.mxu0 0.0
        %5377 = vmatpush1.msra.mxu0 %v5351
        %5378 = vmatprep.subr.mxu0 0.0
        %5379 = vmatpush1.msra.mxu0 %v5352
        %5380 = vmatprep.subr.mxu0 0.0
        %5381 = vmatpush1.msra.mxu0 %v5353
        %5382 = vmatprep.subr.mxu0 0.0
        %5383 = vmatpush1.msra.mxu0 %v5354
        %5384 = vmatprep.subr.mxu0 0.0
        %5385 = vmatpush1.msra.mxu0 %v5355
        %5386 = vmatprep.subr.mxu0 0.0
        %5387 = vmatpush1.msra.mxu0 %v5356
        %5388 = vmatprep.subr.mxu0 0.0
        %5389 = vmatpush1.msra.mxu0 %v5357
        %5390 = vmatprep.subr.mxu0 0.0
        %5391 = vmatpush1.msra.mxu0 0.0
        %5392 = vmatprep.subr.mxu0 0.0
        %5393 = vmatpush1.msra.mxu0 0.0
        %5394 = vmatprep.subr.mxu0 0.0
        %5395 = vmatpush1.msra.mxu0 0.0
        %5396 = vmatprep.subr.mxu0 0.0
        %5397 = vmatpush1.msra.mxu0 0.0
        %5398 = vmatprep.subr.mxu0 0.0
        %5399 = vmatpush1.msra.mxu0 0.0
        %5400 = vmatprep.subr.mxu0 0.0
        %5401 = vmatpush1.msra.mxu0 0.0
        %5402 = vmatprep.subr.mxu0 0.0
        %5403 = vmatpush1.msra.mxu0 0.0
        %5404 = vmatprep.subr.mxu0 0.0
        %5405 = vmatpush1.msra.mxu0 0.0
        %5406 = vmatprep.subr.mxu0 0.0
        %5407 = vmatpush1.msra.mxu0 0.0
        %5408 = vmatprep.subr.mxu0 0.0
        %5409 = vmatpush1.msra.mxu0 0.0
        %5410 = vmatprep.subr.mxu0 0.0
        %5411 = vmatpush1.msra.mxu0 0.0
        %5412 = vmatprep.subr.mxu0 0.0
        %5413 = vmatpush1.msra.mxu0 0.0
        %5414 = vmatprep.subr.mxu0 0.0
        %5415 = vmatpush1.msra.mxu0 0.0
        %5416 = vmatprep.subr.mxu0 0.0
        %5417 = vmatpush1.msra.mxu0 0.0
        %5418 = vmatprep.subr.mxu0 0.0
        %5419 = vmatpush1.msra.mxu0 0.0
        %5420 = vmatprep.subr.mxu0 0.0
        %5421 = vmatpush1.msra.mxu0 0.0
        %5422 = vmatprep.mubr.f32.mxu0 0.0
        %5423 = vmatmul.mubr.f32.gmra.mrb[0].mxu0 %v5309
        %v5424 = vpop.f32.mrb[0].mxu0
        %v5425 = vadd.f32 0.0, %v5424
        %v5426 = vpop.f32.mrb[0].mxu0
        %5427 = vmatprep.mubr.f32.mxu0 0.0
        %5428 = vmatmul.mubr.f32.gmra.mrb[0].mxu0 %v5310
        %v5429 = vpop.f32.mrb[0].mxu0
        %v5430 = vadd.f32 0.0, %v5429
        %v5431 = vpop.f32.mrb[0].mxu0
        %5432 = vmatprep.mubr.f32.mxu0 0.0
        %5433 = vmatmul.mubr.f32.gmra.mrb[0].mxu0 %v5311
        %v5434 = vpop.f32.mrb[0].mxu0
        %v5435 = vadd.f32 0.0, %v5434
        %v5436 = vpop.f32.mrb[0].mxu0
        %5437 = vmatprep.mubr.f32.mxu0 0.0
        %5438 = vmatmul.mubr.f32.gmra.mrb[0].mxu0 %v5312
        %v5439 = vpop.f32.mrb[0].mxu0
        %v5440 = vadd.f32 0.0, %v5439
        %v5441 = vpop.f32.mrb[0].mxu0
        %5442 = vmatprep.mubr.f32.mxu0 0.0
        %5443 = vmatmul.mubr.f32.gmra.mrb[0].mxu0 %v5313
        %v5444 = vpop.f32.mrb[0].mxu0
        %v5445 = vadd.f32 0.0, %v5444
        %v5446 = vpop.f32.mrb[0].mxu0
        %5447 = vmatprep.mubr.f32.mxu0 0.0
        %5448 = vmatmul.mubr.f32.gmra.mrb[0].mxu0 %v5314
        %v5449 = vpop.f32.mrb[0].mxu0
        %v5450 = vadd.f32 0.0, %v5449
        %v5451 = vpop.f32.mrb[0].mxu0
        %5452 = vmatprep.mubr.f32.mxu0 0.0
        %5453 = vmatmul.mubr.f32.gmra.mrb[0].mxu0 %v5315
        %v5454 = vpop.f32.mrb[0].mxu0
        %v5455 = vadd.f32 0.0, %v5454
        %v5456 = vpop.f32.mrb[0].mxu0
        %5457 = vmatprep.mubr.f32.mxu0 0.0
        %5458 = vmatmul.mubr.f32.gmra.mrb[0].mxu0 %v5316
        %v5459 = vpop.f32.mrb[0].mxu0
        %v5460 = vadd.f32 0.0, %v5459
        %v5461 = vpop.f32.mrb[0].mxu0
        %5462 = vmatprep.mubr.f32.mxu0 0.0
        %5463 = vmatmul.mubr.f32.gmra.mrb[0].mxu0 %v5317
        %v5464 = vpop.f32.mrb[0].mxu0
        %v5465 = vadd.f32 0.0, %v5464
        %v5466 = vpop.f32.mrb[0].mxu0
        %5467 = vmatprep.mubr.f32.mxu0 0.0
        %5468 = vmatmul.mubr.f32.gmra.mrb[0].mxu0 %v5318
        %v5469 = vpop.f32.mrb[0].mxu0
        %v5470 = vadd.f32 0.0, %v5469
        %v5471 = vpop.f32.mrb[0].mxu0
        %5472 = vmatprep.mubr.f32.mxu0 0.0
        %5473 = vmatmul.mubr.f32.gmra.mrb[0].mxu0 %v5319
        %v5474 = vpop.f32.mrb[0].mxu0
        %v5475 = vadd.f32 0.0, %v5474
        %v5476 = vpop.f32.mrb[0].mxu0
        %5477 = vmatprep.mubr.f32.mxu0 0.0
        %5478 = vmatmul.mubr.f32.gmra.mrb[0].mxu0 %v5320
        %v5479 = vpop.f32.mrb[0].mxu0
        %v5480 = vadd.f32 0.0, %v5479
        %v5481 = vpop.f32.mrb[0].mxu0
        %5482 = vmatprep.mubr.f32.mxu0 0.0
        %5483 = vmatmul.mubr.f32.gmra.mrb[0].mxu0 %v5321
        %v5484 = vpop.f32.mrb[0].mxu0
        %v5485 = vadd.f32 0.0, %v5484
        %v5486 = vpop.f32.mrb[0].mxu0
        %5487 = vmatprep.mubr.f32.mxu0 0.0
        %5488 = vmatmul.mubr.f32.gmra.mrb[0].mxu0 %v5322
        %v5489 = vpop.f32.mrb[0].mxu0
        %v5490 = vadd.f32 0.0, %v5489
        %v5491 = vpop.f32.mrb[0].mxu0
        %5492 = vmatprep.mubr.f32.mxu0 0.0
        %5493 = vmatmul.mubr.f32.gmra.mrb[0].mxu0 %v5323
        %v5494 = vpop.f32.mrb[0].mxu0
        %v5495 = vadd.f32 0.0, %v5494
        %v5496 = vpop.f32.mrb[0].mxu0
        %5497 = vmatprep.mubr.f32.mxu0 0.0
        %5498 = vmatmul.mubr.f32.gmra.mrb[0].mxu0 %v5324
        %v5499 = vpop.f32.mrb[0].mxu0
        %v5500 = vadd.f32 0.0, %v5499
        %v5501 = vpop.f32.mrb[0].mxu0
        %5502 = vmatprep.mubr.f32.mxu0 0.0
        %5503 = vmatmul.mubr.f32.gmra.mrb[0].mxu0 %v5325
        %v5504 = vpop.f32.mrb[0].mxu0
        %v5505 = vadd.f32 0.0, %v5504
        %v5506 = vpop.f32.mrb[0].mxu0
        %5507 = vmatprep.mubr.f32.mxu0 0.0
        %5508 = vmatmul.mubr.f32.gmra.mrb[0].mxu0 %v5326
        %v5509 = vpop.f32.mrb[0].mxu0
        %v5510 = vadd.f32 0.0, %v5509
        %v5511 = vpop.f32.mrb[0].mxu0
        %5512 = vmatprep.mubr.f32.mxu0 0.0
        %5513 = vmatmul.mubr.f32.gmra.mrb[0].mxu0 %v5327
        %v5514 = vpop.f32.mrb[0].mxu0
        %v5515 = vadd.f32 0.0, %v5514
        %v5516 = vpop.f32.mrb[0].mxu0
        %5517 = vmatprep.mubr.f32.mxu0 0.0
        %5518 = vmatmul.mubr.f32.gmra.mrb[0].mxu0 %v5328
        %v5519 = vpop.f32.mrb[0].mxu0
        %v5520 = vadd.f32 0.0, %v5519
        %v5521 = vpop.f32.mrb[0].mxu0
        %5522 = vmatprep.mubr.f32.mxu0 0.0
        %5523 = vmatmul.mubr.f32.gmra.mrb[0].mxu0 %v5329
        %v5524 = vpop.f32.mrb[0].mxu0
        %v5525 = vadd.f32 0.0, %v5524
        %v5526 = vpop.f32.mrb[0].mxu0
        %5527 = vmatprep.mubr.f32.mxu0 0.0
        %5528 = vmatmul.mubr.f32.gmra.mrb[0].mxu0 %v5330
        %v5529 = vpop.f32.mrb[0].mxu0
        %v5530 = vadd.f32 0.0, %v5529
        %v5531 = vpop.f32.mrb[0].mxu0
        %5532 = vmatprep.mubr.f32.mxu0 0.0
        %5533 = vmatmul.mubr.f32.gmra.mrb[0].mxu0 %v5331
        %v5534 = vpop.f32.mrb[0].mxu0
        %v5535 = vadd.f32 0.0, %v5534
        %v5536 = vpop.f32.mrb[0].mxu0
        %5537 = vmatprep.mubr.f32.mxu0 0.0
        %5538 = vmatmul.mubr.f32.gmra.mrb[0].mxu0 %v5332
        %v5539 = vpop.f32.mrb[0].mxu0
        %v5540 = vadd.f32 0.0, %v5539
        %v5541 = vpop.f32.mrb[0].mxu0
        %5542 = vmatprep.mubr.f32.mxu0 0.0
        %5543 = vmatmul.mubr.f32.gmra.mrb[0].mxu0 %v5333
        %v5544 = vpop.f32.mrb[0].mxu0
        %v5545 = vadd.f32 0.0, %v5544
        %v5546 = vpop.f32.mrb[0].mxu0
        %5547 = vmatprep.mubr.f32.mxu0 0.0
        %5548 = vmatmul.mubr.f32.gmra.mrb[0].mxu0 %v5334
        %v5549 = vpop.f32.mrb[0].mxu0
        %v5550 = vadd.f32 0.0, %v5549
        %v5551 = vpop.f32.mrb[0].mxu0
        %5552 = vmatprep.mubr.f32.mxu0 0.0
        %5553 = vmatmul.mubr.f32.gmra.mrb[0].mxu0 %v5335
        %v5554 = vpop.f32.mrb[0].mxu0
        %v5555 = vadd.f32 0.0, %v5554
        %v5556 = vpop.f32.mrb[0].mxu0
        %5557 = vmatprep.mubr.f32.mxu0 0.0
        %5558 = vmatmul.mubr.f32.gmra.mrb[0].mxu0 %v5336
        %v5559 = vpop.f32.mrb[0].mxu0
        %v5560 = vadd.f32 0.0, %v5559
        %v5561 = vpop.f32.mrb[0].mxu0
        %5562 = vmatprep.mubr.f32.mxu0 0.0
        %5563 = vmatmul.mubr.f32.gmra.mrb[0].mxu0 %v5337
        %v5564 = vpop.f32.mrb[0].mxu0
        %v5565 = vadd.f32 0.0, %v5564
        %v5566 = vpop.f32.mrb[0].mxu0
        %5567 = vmatprep.mubr.f32.mxu0 0.0
        %5568 = vmatmul.mubr.f32.gmra.mrb[0].mxu0 %v5338
        %v5569 = vpop.f32.mrb[0].mxu0
        %v5570 = vadd.f32 0.0, %v5569
        %v5571 = vpop.f32.mrb[0].mxu0
        %5572 = vmatprep.mubr.f32.mxu0 0.0
        %5573 = vmatmul.mubr.f32.gmra.mrb[0].mxu0 %v5339
        %v5574 = vpop.f32.mrb[0].mxu0
        %v5575 = vadd.f32 0.0, %v5574
        %v5576 = vpop.f32.mrb[0].mxu0
        %5577 = vmatprep.mubr.f32.mxu0 0.0
        %5578 = vmatmul.mubr.f32.gmra.mrb[0].mxu0 %v5340
        %v5579 = vpop.f32.mrb[0].mxu0
        %v5580 = vadd.f32 0.0, %v5579
        %v5581 = vpop.f32.mrb[0].mxu0
        %5582 = vdwg.mxu0
        %v5583 = vadd.f32 %v5277, %v5425
        %v5584 = vadd.f32 %v5278, %v5430
        %v5585 = vadd.f32 %v5279, %v5435
        %v5586 = vadd.f32 %v5280, %v5440
        %v5587 = vadd.f32 %v5281, %v5445
        %v5588 = vadd.f32 %v5282, %v5450
        %v5589 = vadd.f32 %v5283, %v5455
        %v5590 = vadd.f32 %v5284, %v5460
        %v5591 = vadd.f32 %v5285, %v5465
        %v5592 = vadd.f32 %v5286, %v5470
        %v5593 = vadd.f32 %v5287, %v5475
        %v5594 = vadd.f32 %v5288, %v5480
        %v5595 = vadd.f32 %v5289, %v5485
        %v5596 = vadd.f32 %v5290, %v5490
        %v5597 = vadd.f32 %v5291, %v5495
        %v5598 = vadd.f32 %v5292, %v5500
        %v5599 = vadd.f32 %v5293, %v5505
        %v5600 = vadd.f32 %v5294, %v5510
        %v5601 = vadd.f32 %v5295, %v5515
        %v5602 = vadd.f32 %v5296, %v5520
        %v5603 = vadd.f32 %v5297, %v5525
        %v5604 = vadd.f32 %v5298, %v5530
        %v5605 = vadd.f32 %v5299, %v5535
        %v5606 = vadd.f32 %v5300, %v5540
        %v5607 = vadd.f32 %v5301, %v5545
        %v5608 = vadd.f32 %v5302, %v5550
        %v5609 = vadd.f32 %v5303, %v5555
        %v5610 = vadd.f32 %v5304, %v5560
        %v5611 = vadd.f32 %v5305, %v5565
        %v5612 = vadd.f32 %v5306, %v5570
        %v5613 = vadd.f32 %v5307, %v5575
        %v5614 = vadd.f32 %v5308, %v5580
        %v5615 = vld [vmem:[%s3149 + $0x2] sm:$0xff]
        %v5616 = vld [vmem:[%s3149 + $0xa] sm:$0xff]
        %v5617 = vld [vmem:[%s3149 + $0x1a] sm:$0xff]
        %v5618 = vld [vmem:[%s3149 + $0x22] sm:$0xff]
        %v5619 = vld [vmem:[%s3149 + $0x32] sm:$0xff]
        %v5620 = vld [vmem:[%s3149 + $0x3a] sm:$0xff]
        %v5621 = vld [vmem:[%s3149 + $0x4a] sm:$0xff]
        %v5622 = vld [vmem:[%s3149 + $0x52] sm:$0xff]
        %v5623 = vld [vmem:[%s3149 + $0x62] sm:$0xff]
        %v5624 = vld [vmem:[%s3149 + $0x6a] sm:$0xff]
        %v5625 = vld [vmem:[%s3149 + $0x7a] sm:$0xff]
        %v5626 = vld [vmem:[%s3149 + $0x82] sm:$0xff]
        %v5627 = vld [vmem:[%s3149 + $0x92] sm:$0xff]
        %v5628 = vld [vmem:[%s3149 + $0x9a] sm:$0xff]
        %v5629 = vld [vmem:[%s3149 + $0xaa] sm:$0xff]
        %v5630 = vld [vmem:[%s3149 + $0xb2] sm:$0xff]
        %v5631 = vld [vmem:[%s3149 + $0xc2] sm:$0xff]
        %v5632 = vld [vmem:[%s3149 + $0xca] sm:$0xff]
        %v5633 = vld [vmem:[%s3149 + $0xda] sm:$0xff]
        %v5634 = vld [vmem:[%s3149 + $0xe2] sm:$0xff]
        %v5635 = vld [vmem:[%s3149 + $0xf2] sm:$0xff]
        %v5636 = vld [vmem:[%s3149 + $0xfa] sm:$0xff]
        %v5637 = vld [vmem:[%s3149 + $0x10a] sm:$0xff]
        %v5638 = vld [vmem:[%s3149 + $0x112] sm:$0xff]
        %v5639 = vld [vmem:[%s3149 + $0x122] sm:$0xff]
        %v5640 = vld [vmem:[%s3149 + $0x12a] sm:$0xff]
        %v5641 = vld [vmem:[%s3149 + $0x13a] sm:$0xff]
        %v5642 = vld [vmem:[%s3149 + $0x142] sm:$0xff]
        %v5643 = vld [vmem:[%s3149 + $0x152] sm:$0xff]
        %v5644 = vld [vmem:[%s3149 + $0x15a] sm:$0xff]
        %v5645 = vld [vmem:[%s3149 + $0x16a] sm:$0xff]
        %v5646 = vld [vmem:[%s3149 + $0x172] sm:$0xff]
        %s5647 = scalar_lea.vmem [#allocation8], 1024
        %v5648 = vld [vmem:[%s5647] sm:$0xff]
        %v5649 = vld [vmem:[%s5647 + $0x8] sm:$0xff]
        %v5650 = vld [vmem:[%s5647 + $0x10] sm:$0xff]
        %v5651 = vld [vmem:[%s5647 + $0x18] sm:$0xff]
        %v5652 = vld [vmem:[%s5647 + $0x20] sm:$0xff]
        %v5653 = vld [vmem:[%s5647 + $0x28] sm:$0xff]
        %v5654 = vld [vmem:[%s5647 + $0x30] sm:$0xff]
        %v5655 = vld [vmem:[%s5647 + $0x38] sm:$0xff]
        %v5656 = vld [vmem:[%s5647 + $0x40] sm:$0xff]
        %v5657 = vld [vmem:[%s5647 + $0x48] sm:$0xff]
        %v5658 = vld [vmem:[%s5647 + $0x50] sm:$0xff]
        %v5659 = vld [vmem:[%s5647 + $0x58] sm:$0xff]
        %v5660 = vld [vmem:[%s5647 + $0x60] sm:$0xff]
        %v5661 = vld [vmem:[%s5647 + $0x68] sm:$0xff]
        %v5662 = vld [vmem:[%s5647 + $0x70] sm:$0xff]
        %v5663 = vld [vmem:[%s5647 + $0x78] sm:$0xff]
        %5664 = vmatprep.subr.mxu0 0.0
        %5665 = vmatpush1.msra.mxu0 %v5648
        %5666 = vmatprep.subr.mxu0 0.0
        %5667 = vmatpush1.msra.mxu0 %v5649
        %5668 = vmatprep.subr.mxu0 0.0
        %5669 = vmatpush1.msra.mxu0 %v5650
        %5670 = vmatprep.subr.mxu0 0.0
        %5671 = vmatpush1.msra.mxu0 %v5651
        %5672 = vmatprep.subr.mxu0 0.0
        %5673 = vmatpush1.msra.mxu0 %v5652
        %5674 = vmatprep.subr.mxu0 0.0
        %5675 = vmatpush1.msra.mxu0 %v5653
        %5676 = vmatprep.subr.mxu0 0.0
        %5677 = vmatpush1.msra.mxu0 %v5654
        %5678 = vmatprep.subr.mxu0 0.0
        %5679 = vmatpush1.msra.mxu0 %v5655
        %5680 = vmatprep.subr.mxu0 0.0
        %5681 = vmatpush1.msra.mxu0 %v5656
        %5682 = vmatprep.subr.mxu0 0.0
        %5683 = vmatpush1.msra.mxu0 %v5657
        %5684 = vmatprep.subr.mxu0 0.0
        %5685 = vmatpush1.msra.mxu0 %v5658
        %5686 = vmatprep.subr.mxu0 0.0
        %5687 = vmatpush1.msra.mxu0 %v5659
        %5688 = vmatprep.subr.mxu0 0.0
        %5689 = vmatpush1.msra.mxu0 %v5660
        %5690 = vmatprep.subr.mxu0 0.0
        %5691 = vmatpush1.msra.mxu0 %v5661
        %5692 = vmatprep.subr.mxu0 0.0
        %5693 = vmatpush1.msra.mxu0 %v5662
        %5694 = vmatprep.subr.mxu0 0.0
        %5695 = vmatpush1.msra.mxu0 %v5663
        %5696 = vmatprep.subr.mxu0 0.0
        %5697 = vmatpush1.msra.mxu0 0.0
        %5698 = vmatprep.subr.mxu0 0.0
        %5699 = vmatpush1.msra.mxu0 0.0
        %5700 = vmatprep.subr.mxu0 0.0
        %5701 = vmatpush1.msra.mxu0 0.0
        %5702 = vmatprep.subr.mxu0 0.0
        %5703 = vmatpush1.msra.mxu0 0.0
        %5704 = vmatprep.subr.mxu0 0.0
        %5705 = vmatpush1.msra.mxu0 0.0
        %5706 = vmatprep.subr.mxu0 0.0
        %5707 = vmatpush1.msra.mxu0 0.0
        %5708 = vmatprep.subr.mxu0 0.0
        %5709 = vmatpush1.msra.mxu0 0.0
        %5710 = vmatprep.subr.mxu0 0.0
        %5711 = vmatpush1.msra.mxu0 0.0
        %5712 = vmatprep.subr.mxu0 0.0
        %5713 = vmatpush1.msra.mxu0 0.0
        %5714 = vmatprep.subr.mxu0 0.0
        %5715 = vmatpush1.msra.mxu0 0.0
        %5716 = vmatprep.subr.mxu0 0.0
        %5717 = vmatpush1.msra.mxu0 0.0
        %5718 = vmatprep.subr.mxu0 0.0
        %5719 = vmatpush1.msra.mxu0 0.0
        %5720 = vmatprep.subr.mxu0 0.0
        %5721 = vmatpush1.msra.mxu0 0.0
        %5722 = vmatprep.subr.mxu0 0.0
        %5723 = vmatpush1.msra.mxu0 0.0
        %5724 = vmatprep.subr.mxu0 0.0
        %5725 = vmatpush1.msra.mxu0 0.0
        %5726 = vmatprep.subr.mxu0 0.0
        %5727 = vmatpush1.msra.mxu0 0.0
        %5728 = vmatprep.mubr.f32.mxu0 0.0
        %5729 = vmatmul.mubr.f32.gmra.mrb[0].mxu0 %v5615
        %v5730 = vpop.f32.mrb[0].mxu0
        %v5731 = vadd.f32 0.0, %v5730
        %v5732 = vpop.f32.mrb[0].mxu0
        %5733 = vmatprep.mubr.f32.mxu0 0.0
        %5734 = vmatmul.mubr.f32.gmra.mrb[0].mxu0 %v5616
        %v5735 = vpop.f32.mrb[0].mxu0
        %v5736 = vadd.f32 0.0, %v5735
        %v5737 = vpop.f32.mrb[0].mxu0
        %5738 = vmatprep.mubr.f32.mxu0 0.0
        %5739 = vmatmul.mubr.f32.gmra.mrb[0].mxu0 %v5617
        %v5740 = vpop.f32.mrb[0].mxu0
        %v5741 = vadd.f32 0.0, %v5740
        %v5742 = vpop.f32.mrb[0].mxu0
        %5743 = vmatprep.mubr.f32.mxu0 0.0
        %5744 = vmatmul.mubr.f32.gmra.mrb[0].mxu0 %v5618
        %v5745 = vpop.f32.mrb[0].mxu0
        %v5746 = vadd.f32 0.0, %v5745
        %v5747 = vpop.f32.mrb[0].mxu0
        %5748 = vmatprep.mubr.f32.mxu0 0.0
        %5749 = vmatmul.mubr.f32.gmra.mrb[0].mxu0 %v5619
        %v5750 = vpop.f32.mrb[0].mxu0
        %v5751 = vadd.f32 0.0, %v5750
        %v5752 = vpop.f32.mrb[0].mxu0
        %5753 = vmatprep.mubr.f32.mxu0 0.0
        %5754 = vmatmul.mubr.f32.gmra.mrb[0].mxu0 %v5620
        %v5755 = vpop.f32.mrb[0].mxu0
        %v5756 = vadd.f32 0.0, %v5755
        %v5757 = vpop.f32.mrb[0].mxu0
        %5758 = vmatprep.mubr.f32.mxu0 0.0
        %5759 = vmatmul.mubr.f32.gmra.mrb[0].mxu0 %v5621
        %v5760 = vpop.f32.mrb[0].mxu0
        %v5761 = vadd.f32 0.0, %v5760
        %v5762 = vpop.f32.mrb[0].mxu0
        %5763 = vmatprep.mubr.f32.mxu0 0.0
        %5764 = vmatmul.mubr.f32.gmra.mrb[0].mxu0 %v5622
        %v5765 = vpop.f32.mrb[0].mxu0
        %v5766 = vadd.f32 0.0, %v5765
        %v5767 = vpop.f32.mrb[0].mxu0
        %5768 = vmatprep.mubr.f32.mxu0 0.0
        %5769 = vmatmul.mubr.f32.gmra.mrb[0].mxu0 %v5623
        %v5770 = vpop.f32.mrb[0].mxu0
        %v5771 = vadd.f32 0.0, %v5770
        %v5772 = vpop.f32.mrb[0].mxu0
        %5773 = vmatprep.mubr.f32.mxu0 0.0
        %5774 = vmatmul.mubr.f32.gmra.mrb[0].mxu0 %v5624
        %v5775 = vpop.f32.mrb[0].mxu0
        %v5776 = vadd.f32 0.0, %v5775
        %v5777 = vpop.f32.mrb[0].mxu0
        %5778 = vmatprep.mubr.f32.mxu0 0.0
        %5779 = vmatmul.mubr.f32.gmra.mrb[0].mxu0 %v5625
        %v5780 = vpop.f32.mrb[0].mxu0
        %v5781 = vadd.f32 0.0, %v5780
        %v5782 = vpop.f32.mrb[0].mxu0
        %5783 = vmatprep.mubr.f32.mxu0 0.0
        %5784 = vmatmul.mubr.f32.gmra.mrb[0].mxu0 %v5626
        %v5785 = vpop.f32.mrb[0].mxu0
        %v5786 = vadd.f32 0.0, %v5785
        %v5787 = vpop.f32.mrb[0].mxu0
        %5788 = vmatprep.mubr.f32.mxu0 0.0
        %5789 = vmatmul.mubr.f32.gmra.mrb[0].mxu0 %v5627
        %v5790 = vpop.f32.mrb[0].mxu0
        %v5791 = vadd.f32 0.0, %v5790
        %v5792 = vpop.f32.mrb[0].mxu0
        %5793 = vmatprep.mubr.f32.mxu0 0.0
        %5794 = vmatmul.mubr.f32.gmra.mrb[0].mxu0 %v5628
        %v5795 = vpop.f32.mrb[0].mxu0
        %v5796 = vadd.f32 0.0, %v5795
        %v5797 = vpop.f32.mrb[0].mxu0
        %5798 = vmatprep.mubr.f32.mxu0 0.0
        %5799 = vmatmul.mubr.f32.gmra.mrb[0].mxu0 %v5629
        %v5800 = vpop.f32.mrb[0].mxu0
        %v5801 = vadd.f32 0.0, %v5800
        %v5802 = vpop.f32.mrb[0].mxu0
        %5803 = vmatprep.mubr.f32.mxu0 0.0
        %5804 = vmatmul.mubr.f32.gmra.mrb[0].mxu0 %v5630
        %v5805 = vpop.f32.mrb[0].mxu0
        %v5806 = vadd.f32 0.0, %v5805
        %v5807 = vpop.f32.mrb[0].mxu0
        %5808 = vmatprep.mubr.f32.mxu0 0.0
        %5809 = vmatmul.mubr.f32.gmra.mrb[0].mxu0 %v5631
        %v5810 = vpop.f32.mrb[0].mxu0
        %v5811 = vadd.f32 0.0, %v5810
        %v5812 = vpop.f32.mrb[0].mxu0
        %5813 = vmatprep.mubr.f32.mxu0 0.0
        %5814 = vmatmul.mubr.f32.gmra.mrb[0].mxu0 %v5632
        %v5815 = vpop.f32.mrb[0].mxu0
        %v5816 = vadd.f32 0.0, %v5815
        %v5817 = vpop.f32.mrb[0].mxu0
        %5818 = vmatprep.mubr.f32.mxu0 0.0
        %5819 = vmatmul.mubr.f32.gmra.mrb[0].mxu0 %v5633
        %v5820 = vpop.f32.mrb[0].mxu0
        %v5821 = vadd.f32 0.0, %v5820
        %v5822 = vpop.f32.mrb[0].mxu0
        %5823 = vmatprep.mubr.f32.mxu0 0.0
        %5824 = vmatmul.mubr.f32.gmra.mrb[0].mxu0 %v5634
        %v5825 = vpop.f32.mrb[0].mxu0
        %v5826 = vadd.f32 0.0, %v5825
        %v5827 = vpop.f32.mrb[0].mxu0
        %5828 = vmatprep.mubr.f32.mxu0 0.0
        %5829 = vmatmul.mubr.f32.gmra.mrb[0].mxu0 %v5635
        %v5830 = vpop.f32.mrb[0].mxu0
        %v5831 = vadd.f32 0.0, %v5830
        %v5832 = vpop.f32.mrb[0].mxu0
        %5833 = vmatprep.mubr.f32.mxu0 0.0
        %5834 = vmatmul.mubr.f32.gmra.mrb[0].mxu0 %v5636
        %v5835 = vpop.f32.mrb[0].mxu0
        %v5836 = vadd.f32 0.0, %v5835
        %v5837 = vpop.f32.mrb[0].mxu0
        %5838 = vmatprep.mubr.f32.mxu0 0.0
        %5839 = vmatmul.mubr.f32.gmra.mrb[0].mxu0 %v5637
        %v5840 = vpop.f32.mrb[0].mxu0
        %v5841 = vadd.f32 0.0, %v5840
        %v5842 = vpop.f32.mrb[0].mxu0
        %5843 = vmatprep.mubr.f32.mxu0 0.0
        %5844 = vmatmul.mubr.f32.gmra.mrb[0].mxu0 %v5638
        %v5845 = vpop.f32.mrb[0].mxu0
        %v5846 = vadd.f32 0.0, %v5845
        %v5847 = vpop.f32.mrb[0].mxu0
        %5848 = vmatprep.mubr.f32.mxu0 0.0
        %5849 = vmatmul.mubr.f32.gmra.mrb[0].mxu0 %v5639
        %v5850 = vpop.f32.mrb[0].mxu0
        %v5851 = vadd.f32 0.0, %v5850
        %v5852 = vpop.f32.mrb[0].mxu0
        %5853 = vmatprep.mubr.f32.mxu0 0.0
        %5854 = vmatmul.mubr.f32.gmra.mrb[0].mxu0 %v5640
        %v5855 = vpop.f32.mrb[0].mxu0
        %v5856 = vadd.f32 0.0, %v5855
        %v5857 = vpop.f32.mrb[0].mxu0
        %5858 = vmatprep.mubr.f32.mxu0 0.0
        %5859 = vmatmul.mubr.f32.gmra.mrb[0].mxu0 %v5641
        %v5860 = vpop.f32.mrb[0].mxu0
        %v5861 = vadd.f32 0.0, %v5860
        %v5862 = vpop.f32.mrb[0].mxu0
        %5863 = vmatprep.mubr.f32.mxu0 0.0
        %5864 = vmatmul.mubr.f32.gmra.mrb[0].mxu0 %v5642
        %v5865 = vpop.f32.mrb[0].mxu0
        %v5866 = vadd.f32 0.0, %v5865
        %v5867 = vpop.f32.mrb[0].mxu0
        %5868 = vmatprep.mubr.f32.mxu0 0.0
        %5869 = vmatmul.mubr.f32.gmra.mrb[0].mxu0 %v5643
        %v5870 = vpop.f32.mrb[0].mxu0
        %v5871 = vadd.f32 0.0, %v5870
        %v5872 = vpop.f32.mrb[0].mxu0
        %5873 = vmatprep.mubr.f32.mxu0 0.0
        %5874 = vmatmul.mubr.f32.gmra.mrb[0].mxu0 %v5644
        %v5875 = vpop.f32.mrb[0].mxu0
        %v5876 = vadd.f32 0.0, %v5875
        %v5877 = vpop.f32.mrb[0].mxu0
        %5878 = vmatprep.mubr.f32.mxu0 0.0
        %5879 = vmatmul.mubr.f32.gmra.mrb[0].mxu0 %v5645
        %v5880 = vpop.f32.mrb[0].mxu0
        %v5881 = vadd.f32 0.0, %v5880
        %v5882 = vpop.f32.mrb[0].mxu0
        %5883 = vmatprep.mubr.f32.mxu0 0.0
        %5884 = vmatmul.mubr.f32.gmra.mrb[0].mxu0 %v5646
        %v5885 = vpop.f32.mrb[0].mxu0
        %v5886 = vadd.f32 0.0, %v5885
        %v5887 = vpop.f32.mrb[0].mxu0
        %5888 = vdwg.mxu0
        %v5889 = vadd.f32 %v5583, %v5731
        %v5890 = vadd.f32 %v5584, %v5736
        %v5891 = vadd.f32 %v5585, %v5741
        %v5892 = vadd.f32 %v5586, %v5746
        %v5893 = vadd.f32 %v5587, %v5751
        %v5894 = vadd.f32 %v5588, %v5756
        %v5895 = vadd.f32 %v5589, %v5761
        %v5896 = vadd.f32 %v5590, %v5766
        %v5897 = vadd.f32 %v5591, %v5771
        %v5898 = vadd.f32 %v5592, %v5776
        %v5899 = vadd.f32 %v5593, %v5781
        %v5900 = vadd.f32 %v5594, %v5786
        %v5901 = vadd.f32 %v5595, %v5791
        %v5902 = vadd.f32 %v5596, %v5796
        %v5903 = vadd.f32 %v5597, %v5801
        %v5904 = vadd.f32 %v5598, %v5806
        %v5905 = vadd.f32 %v5599, %v5811
        %v5906 = vadd.f32 %v5600, %v5816
        %v5907 = vadd.f32 %v5601, %v5821
        %v5908 = vadd.f32 %v5602, %v5826
        %v5909 = vadd.f32 %v5603, %v5831
        %v5910 = vadd.f32 %v5604, %v5836
        %v5911 = vadd.f32 %v5605, %v5841
        %v5912 = vadd.f32 %v5606, %v5846
        %v5913 = vadd.f32 %v5607, %v5851
        %v5914 = vadd.f32 %v5608, %v5856
        %v5915 = vadd.f32 %v5609, %v5861
        %v5916 = vadd.f32 %v5610, %v5866
        %v5917 = vadd.f32 %v5611, %v5871
        %v5918 = vadd.f32 %v5612, %v5876
        %v5919 = vadd.f32 %v5613, %v5881
        %v5920 = vadd.f32 %v5614, %v5886
        %v5921 = vadd.f32 %v5889, %v5890
        %v5922 = vadd.f32 %v5921, %v5891
        %v5923 = vadd.f32 %v5922, %v5892
        %v5924 = vadd.f32 %v5923, %v5893
        %v5925 = vadd.f32 %v5924, %v5894
        %v5926 = vadd.f32 %v5925, %v5895
        %v5927 = vadd.f32 %v5926, %v5896
        %v5928 = vadd.f32 %v5927, %v5897
        %v5929 = vadd.f32 %v5928, %v5898
        %v5930 = vadd.f32 %v5929, %v5899
        %v5931 = vadd.f32 %v5930, %v5900
        %v5932 = vadd.f32 %v5931, %v5901
        %v5933 = vadd.f32 %v5932, %v5902
        %v5934 = vadd.f32 %v5933, %v5903
        %v5935 = vadd.f32 %v5934, %v5904
        %v5936 = vadd.f32 %v5935, %v5905
        %v5937 = vadd.f32 %v5936, %v5906
        %v5938 = vadd.f32 %v5937, %v5907
        %v5939 = vadd.f32 %v5938, %v5908
        %v5940 = vadd.f32 %v5939, %v5909
        %v5941 = vadd.f32 %v5940, %v5910
        %v5942 = vadd.f32 %v5941, %v5911
        %v5943 = vadd.f32 %v5942, %v5912
        %v5944 = vadd.f32 %v5943, %v5913
        %v5945 = vadd.f32 %v5944, %v5914
        %v5946 = vadd.f32 %v5945, %v5915
        %v5947 = vadd.f32 %v5946, %v5916
        %v5948 = vadd.f32 %v5947, %v5917
        %v5949 = vadd.f32 %v5948, %v5918
        %v5950 = vadd.f32 %v5949, %v5919
        %v5951 = vadd.f32 %v5950, %v5920
        %v5952 = vrot.slane %v5951, 4
        %v5953 = vadd.f32 %v5951, %v5952
        %v5954 = vrot.slane %v5953, 2
        %v5955 = vadd.f32 %v5953, %v5954
        %v5956 = vrot.slane %v5955, 1
        %v5957 = vadd.f32 %v5955, %v5956
        %v5958 = vmul.f32 %v5957, %v2946
        %v5959 = vsub.f32 %v5889, %v5958
        %v5960 = vsub.f32 %v5890, %v5958
        %v5961 = vsub.f32 %v5891, %v5958
        %v5962 = vsub.f32 %v5892, %v5958
        %v5963 = vsub.f32 %v5893, %v5958
        %v5964 = vsub.f32 %v5894, %v5958
        %v5965 = vsub.f32 %v5895, %v5958
        %v5966 = vsub.f32 %v5896, %v5958
        %v5967 = vsub.f32 %v5897, %v5958
        %v5968 = vsub.f32 %v5898, %v5958
        %v5969 = vsub.f32 %v5899, %v5958
        %v5970 = vsub.f32 %v5900, %v5958
        %v5971 = vsub.f32 %v5901, %v5958
        %v5972 = vsub.f32 %v5902, %v5958
        %v5973 = vsub.f32 %v5903, %v5958
        %v5974 = vsub.f32 %v5904, %v5958
        %v5975 = vsub.f32 %v5905, %v5958
        %v5976 = vsub.f32 %v5906, %v5958
        %v5977 = vsub.f32 %v5907, %v5958
        %v5978 = vsub.f32 %v5908, %v5958
        %v5979 = vsub.f32 %v5909, %v5958
        %v5980 = vsub.f32 %v5910, %v5958
        %v5981 = vsub.f32 %v5911, %v5958
        %v5982 = vsub.f32 %v5912, %v5958
        %v5983 = vsub.f32 %v5913, %v5958
        %v5984 = vsub.f32 %v5914, %v5958
        %v5985 = vsub.f32 %v5915, %v5958
        %v5986 = vsub.f32 %v5916, %v5958
        %v5987 = vsub.f32 %v5917, %v5958
        %v5988 = vsub.f32 %v5918, %v5958
        %v5989 = vsub.f32 %v5919, %v5958
        %v5990 = vsub.f32 %v5920, %v5958
        %v5991 = vmul.f32 %v5959, %v5959
        %v5992 = vmul.f32 %v5960, %v5960
        %v5993 = vmul.f32 %v5961, %v5961
        %v5994 = vmul.f32 %v5962, %v5962
        %v5995 = vmul.f32 %v5963, %v5963
        %v5996 = vmul.f32 %v5964, %v5964
        %v5997 = vmul.f32 %v5965, %v5965
        %v5998 = vmul.f32 %v5966, %v5966
        %v5999 = vmul.f32 %v5967, %v5967
        %v6000 = vmul.f32 %v5968, %v5968
        %v6001 = vmul.f32 %v5969, %v5969
        %v6002 = vmul.f32 %v5970, %v5970
        %v6003 = vmul.f32 %v5971, %v5971
        %v6004 = vmul.f32 %v5972, %v5972
        %v6005 = vmul.f32 %v5973, %v5973
        %v6006 = vmul.f32 %v5974, %v5974
        %v6007 = vmul.f32 %v5975, %v5975
        %v6008 = vmul.f32 %v5976, %v5976
        %v6009 = vmul.f32 %v5977, %v5977
        %v6010 = vmul.f32 %v5978, %v5978
        %v6011 = vmul.f32 %v5979, %v5979
        %v6012 = vmul.f32 %v5980, %v5980
        %v6013 = vmul.f32 %v5981, %v5981
        %v6014 = vmul.f32 %v5982, %v5982
        %v6015 = vmul.f32 %v5983, %v5983
        %v6016 = vmul.f32 %v5984, %v5984
        %v6017 = vmul.f32 %v5985, %v5985
        %v6018 = vmul.f32 %v5986, %v5986
        %v6019 = vmul.f32 %v5987, %v5987
        %v6020 = vmul.f32 %v5988, %v5988
        %v6021 = vmul.f32 %v5989, %v5989
        %v6022 = vmul.f32 %v5990, %v5990
        %v6023 = vadd.f32 %v5991, %v5992
        %v6024 = vadd.f32 %v6023, %v5993
        %v6025 = vadd.f32 %v6024, %v5994
        %v6026 = vadd.f32 %v6025, %v5995
        %v6027 = vadd.f32 %v6026, %v5996
        %v6028 = vadd.f32 %v6027, %v5997
        %v6029 = vadd.f32 %v6028, %v5998
        %v6030 = vadd.f32 %v6029, %v5999
        %v6031 = vadd.f32 %v6030, %v6000
        %v6032 = vadd.f32 %v6031, %v6001
        %v6033 = vadd.f32 %v6032, %v6002
        %v6034 = vadd.f32 %v6033, %v6003
        %v6035 = vadd.f32 %v6034, %v6004
        %v6036 = vadd.f32 %v6035, %v6005
        %v6037 = vadd.f32 %v6036, %v6006
        %v6038 = vadd.f32 %v6037, %v6007
        %v6039 = vadd.f32 %v6038, %v6008
        %v6040 = vadd.f32 %v6039, %v6009
        %v6041 = vadd.f32 %v6040, %v6010
        %v6042 = vadd.f32 %v6041, %v6011
        %v6043 = vadd.f32 %v6042, %v6012
        %v6044 = vadd.f32 %v6043, %v6013
        %v6045 = vadd.f32 %v6044, %v6014
        %v6046 = vadd.f32 %v6045, %v6015
        %v6047 = vadd.f32 %v6046, %v6016
        %v6048 = vadd.f32 %v6047, %v6017
        %v6049 = vadd.f32 %v6048, %v6018
        %v6050 = vadd.f32 %v6049, %v6019
        %v6051 = vadd.f32 %v6050, %v6020
        %v6052 = vadd.f32 %v6051, %v6021
        %v6053 = vadd.f32 %v6052, %v6022
        %v6054 = vrot.slane %v6053, 4
        %v6055 = vadd.f32 %v6053, %v6054
        %v6056 = vrot.slane %v6055, 2
        %v6057 = vadd.f32 %v6055, %v6056
        %v6058 = vrot.slane %v6057, 1
        %v6059 = vadd.f32 %v6057, %v6058
        %v6060 = vmul.f32 %v6059, %v2946
        %v6061 = vadd.f32 %v6060, 1e-05
        %v6062 = vrsqrt.pop %v6061
        %v6063 = vmul.f32 %v5959, %v6062
        %v6064 = vmul.f32 %v5960, %v6062
        %v6065 = vmul.f32 %v5961, %v6062
        %v6066 = vmul.f32 %v5962, %v6062
        %v6067 = vmul.f32 %v5963, %v6062
        %v6068 = vmul.f32 %v5964, %v6062
        %v6069 = vmul.f32 %v5965, %v6062
        %v6070 = vmul.f32 %v5966, %v6062
        %v6071 = vmul.f32 %v5967, %v6062
        %v6072 = vmul.f32 %v5968, %v6062
        %v6073 = vmul.f32 %v5969, %v6062
        %v6074 = vmul.f32 %v5970, %v6062
        %v6075 = vmul.f32 %v5971, %v6062
        %v6076 = vmul.f32 %v5972, %v6062
        %v6077 = vmul.f32 %v5973, %v6062
        %v6078 = vmul.f32 %v5974, %v6062
        %v6079 = vmul.f32 %v5975, %v6062
        %v6080 = vmul.f32 %v5976, %v6062
        %v6081 = vmul.f32 %v5977, %v6062
        %v6082 = vmul.f32 %v5978, %v6062
        %v6083 = vmul.f32 %v5979, %v6062
        %v6084 = vmul.f32 %v5980, %v6062
        %v6085 = vmul.f32 %v5981, %v6062
        %v6086 = vmul.f32 %v5982, %v6062
        %v6087 = vmul.f32 %v5983, %v6062
        %v6088 = vmul.f32 %v5984, %v6062
        %v6089 = vmul.f32 %v5985, %v6062
        %v6090 = vmul.f32 %v5986, %v6062
        %v6091 = vmul.f32 %v5987, %v6062
        %v6092 = vmul.f32 %v5988, %v6062
        %v6093 = vmul.f32 %v5989, %v6062
        %v6094 = vmul.f32 %v5990, %v6062
        %v6095 = vld [vmem:[%s1071 + $0x1] sm:$0xff]
        %v6096 = vld [vmem:[%s1071 + $0x9] sm:$0xff]
        %v6097 = vld [vmem:[%s1071 + $0x19] sm:$0xff]
        %v6098 = vld [vmem:[%s1071 + $0x21] sm:$0xff]
        %v6099 = vld [vmem:[%s1071 + $0x31] sm:$0xff]
        %v6100 = vld [vmem:[%s1071 + $0x39] sm:$0xff]
        %v6101 = vld [vmem:[%s1071 + $0x49] sm:$0xff]
        %v6102 = vld [vmem:[%s1071 + $0x51] sm:$0xff]
        %v6103 = vld [vmem:[%s1071 + $0x61] sm:$0xff]
        %v6104 = vld [vmem:[%s1071 + $0x69] sm:$0xff]
        %v6105 = vld [vmem:[%s1071 + $0x79] sm:$0xff]
        %v6106 = vld [vmem:[%s1071 + $0x81] sm:$0xff]
        %v6107 = vld [vmem:[%s1071 + $0x91] sm:$0xff]
        %v6108 = vld [vmem:[%s1071 + $0x99] sm:$0xff]
        %v6109 = vld [vmem:[%s1071 + $0xa9] sm:$0xff]
        %v6110 = vld [vmem:[%s1071 + $0xb1] sm:$0xff]
        %v6111 = vld [vmem:[%s1071 + $0xc1] sm:$0xff]
        %v6112 = vld [vmem:[%s1071 + $0xc9] sm:$0xff]
        %v6113 = vld [vmem:[%s1071 + $0xd9] sm:$0xff]
        %v6114 = vld [vmem:[%s1071 + $0xe1] sm:$0xff]
        %v6115 = vld [vmem:[%s1071 + $0xf1] sm:$0xff]
        %v6116 = vld [vmem:[%s1071 + $0xf9] sm:$0xff]
        %v6117 = vld [vmem:[%s1071 + $0x109] sm:$0xff]
        %v6118 = vld [vmem:[%s1071 + $0x111] sm:$0xff]
        %v6119 = vld [vmem:[%s1071 + $0x121] sm:$0xff]
        %v6120 = vld [vmem:[%s1071 + $0x129] sm:$0xff]
        %v6121 = vld [vmem:[%s1071 + $0x139] sm:$0xff]
        %v6122 = vld [vmem:[%s1071 + $0x141] sm:$0xff]
        %v6123 = vld [vmem:[%s1071 + $0x151] sm:$0xff]
        %v6124 = vld [vmem:[%s1071 + $0x159] sm:$0xff]
        %v6125 = vld [vmem:[%s1071 + $0x169] sm:$0xff]
        %v6126 = vld [vmem:[%s1071 + $0x171] sm:$0xff]
        %v6127 = vadd.f32 %v6095, %v6063
        %v6128 = vadd.f32 %v6096, %v6064
        %v6129 = vadd.f32 %v6097, %v6065
        %v6130 = vadd.f32 %v6098, %v6066
        %v6131 = vadd.f32 %v6099, %v6067
        %v6132 = vadd.f32 %v6100, %v6068
        %v6133 = vadd.f32 %v6101, %v6069
        %v6134 = vadd.f32 %v6102, %v6070
        %v6135 = vadd.f32 %v6103, %v6071
        %v6136 = vadd.f32 %v6104, %v6072
        %v6137 = vadd.f32 %v6105, %v6073
        %v6138 = vadd.f32 %v6106, %v6074
        %v6139 = vadd.f32 %v6107, %v6075
        %v6140 = vadd.f32 %v6108, %v6076
        %v6141 = vadd.f32 %v6109, %v6077
        %v6142 = vadd.f32 %v6110, %v6078
        %v6143 = vadd.f32 %v6111, %v6079
        %v6144 = vadd.f32 %v6112, %v6080
        %v6145 = vadd.f32 %v6113, %v6081
        %v6146 = vadd.f32 %v6114, %v6082
        %v6147 = vadd.f32 %v6115, %v6083
        %v6148 = vadd.f32 %v6116, %v6084
        %v6149 = vadd.f32 %v6117, %v6085
        %v6150 = vadd.f32 %v6118, %v6086
        %v6151 = vadd.f32 %v6119, %v6087
        %v6152 = vadd.f32 %v6120, %v6088
        %v6153 = vadd.f32 %v6121, %v6089
        %v6154 = vadd.f32 %v6122, %v6090
        %v6155 = vadd.f32 %v6123, %v6091
        %v6156 = vadd.f32 %v6124, %v6092
        %v6157 = vadd.f32 %v6125, %v6093
        %v6158 = vadd.f32 %v6126, %v6094
        %6159 = vst [vmem:[%s217] sm:$0xff] %v6127
        %6160 = vst [vmem:[%s217 + $0x8] sm:$0xff] %v6128
        %6161 = vst [vmem:[%s217 + $0x10] sm:$0xff] %v6129
        %6162 = vst [vmem:[%s217 + $0x18] sm:$0xff] %v6130
        %6163 = vst [vmem:[%s217 + $0x20] sm:$0xff] %v6131
        %6164 = vst [vmem:[%s217 + $0x28] sm:$0xff] %v6132
        %6165 = vst [vmem:[%s217 + $0x30] sm:$0xff] %v6133
        %6166 = vst [vmem:[%s217 + $0x38] sm:$0xff] %v6134
        %6167 = vst [vmem:[%s217 + $0x40] sm:$0xff] %v6135
        %6168 = vst [vmem:[%s217 + $0x48] sm:$0xff] %v6136
        %6169 = vst [vmem:[%s217 + $0x50] sm:$0xff] %v6137
        %6170 = vst [vmem:[%s217 + $0x58] sm:$0xff] %v6138
        %6171 = vst [vmem:[%s217 + $0x60] sm:$0xff] %v6139
        %6172 = vst [vmem:[%s217 + $0x68] sm:$0xff] %v6140
        %6173 = vst [vmem:[%s217 + $0x70] sm:$0xff] %v6141
        %6174 = vst [vmem:[%s217 + $0x78] sm:$0xff] %v6142
        %6175 = vst [vmem:[%s217 + $0x80] sm:$0xff] %v6143
        %6176 = vst [vmem:[%s217 + $0x88] sm:$0xff] %v6144
        %6177 = vst [vmem:[%s217 + $0x90] sm:$0xff] %v6145
        %6178 = vst [vmem:[%s217 + $0x98] sm:$0xff] %v6146
        %6179 = vst [vmem:[%s217 + $0xa0] sm:$0xff] %v6147
        %6180 = vst [vmem:[%s217 + $0xa8] sm:$0xff] %v6148
        %6181 = vst [vmem:[%s217 + $0xb0] sm:$0xff] %v6149
        %6182 = vst [vmem:[%s217 + $0xb8] sm:$0xff] %v6150
        %6183 = vst [vmem:[%s217 + $0xc0] sm:$0xff] %v6151
        %6184 = vst [vmem:[%s217 + $0xc8] sm:$0xff] %v6152
        %6185 = vst [vmem:[%s217 + $0xd0] sm:$0xff] %v6153
        %6186 = vst [vmem:[%s217 + $0xd8] sm:$0xff] %v6154
        %6187 = vst [vmem:[%s217 + $0xe0] sm:$0xff] %v6155
        %6188 = vst [vmem:[%s217 + $0xe8] sm:$0xff] %v6156
        %6189 = vst [vmem:[%s217 + $0xf0] sm:$0xff] %v6157
        %6190 = vst [vmem:[%s217 + $0xf8] sm:$0xff] %v6158
        %s6191 = sand.u32 %s97, 1
        %s6192 = scalar_lea.sflag [#allocation5], %s6191
        %s6193 = sand.u32 %s97, 1
        %s6194 = smul.addr %s6193, 256
        %s6195 = scalar_lea.vmem [#allocation9], %s6194
        // Predicated region
        $region45: #{residual_block.1} parent=31 // pred_check
          %p6196 = pneg %p107
        $region46: #{residual_block.1} parent=31 // pred_check_branch
          %6198 = sbr.rel (%p6196) target = $region48
        $region47: #{residual_block.1} parent=31 // pred_region
          %s6200 = ssub.s32 4096, 4096
          %6201 = vsyncadd %s6192, %s6200
          %s6202 = smul.addr %s21, 32
          %s6203 = smul.addr %s6202, 128
          %s6204 = scalar_lea.hbm %s3, %s6203
          %s6205 = sshll.u32 %s6195, 4
          %s6206 = int_to_ptr.vmem [resolvable:$true] %s6205
          %6211 = dma.vmem_to_hbm [thread:$0]  %s6206, 4096, %s6204, %s6192, 128, 128, 8
        $region48: #{residual_block.1} parent=31 // pred_fallthru
          _
      $region32: #{residual_block.1} parent=5 // pred_fallthru
        _
      %p6212 = scmp.le.s32.totalorder 2, %s16
      // Predicated region
      $region49: #{residual_block.1} parent=5 // pred_check
        %p6213 = pneg %p6212
      $region50: #{residual_block.1} parent=5 // pred_check_branch
        %6215 = sbr.rel (%p6213) target = $region52
      $region51: #{residual_block.1} parent=5 // pred_region
        %s6216 = ssub.s32 %s16, 2
        // Predicated region
        $region53: #{residual_block.1} parent=51 // pred_check
          %p6217 = pneg %p113
        $region54: #{residual_block.1} parent=51 // pred_check_branch
          %6219 = sbr.rel (%p6217) target = $region56
        $region55: #{residual_block.1} parent=51 // pred_region
          %s6220 = sand.u32 %s98, 1
          %s6221 = scalar_lea.sflag [#allocation5], %s6220
          %s6222 = sand.u32 %s98, 1
          %s6223 = smul.addr %s6222, 256
          %s6224 = scalar_lea.vmem [#allocation9], %s6223
          %6225 = dma.done %s6221, 4096
        $region56: #{residual_block.1} parent=51 // pred_fallthru
          _
      $region52: #{residual_block.1} parent=5 // pred_fallthru
        _
    $region6: #{residual_block.1} parent=1 // loop_footer
      %s20 = sadd.s32 1, %s16
    $region7: #{residual_block.1} parent=1 // loop_footer_branch
      %15 = sbr.rel target = $region3
    $region8: #{residual_block.1} parent=1 // loop_exit
      _
    %6226 = vsyncpa [#allocation4], 1
    %s6227 = scalar_lea.sflag [#allocation4], 1
    %6228 = vsyncpa %s6227, 1
    %6229 = vsyncpa [#allocation7], 1
    %6230 = vsyncpa [#allocation5], 1
    %s6231 = scalar_lea.sflag [#allocation5], 1
    %6232 = vsyncpa %s6231, 1

</llo_original>
